<compile_context>
chip_gen: v5e
topology: v5e:2x2
jax: 0.10.0
libtpu: 0.0.40
codegen_flags: <defaults>
</compile_context>

<pallas_src>
import numpy as np
import jax
import jax.numpy as jnp
from jax.experimental import pallas as pl
from jax.experimental.pallas import tpu as pltpu


def _round_up(x, m):
    return (x + m - 1) // m * m


# ----------------------------- Pallas kernel --------------------------------
def _decoder_block_kernel(
    emb_pre_ref,   # (TB, B, 4*Dd) f32   precomputed emb @ W_ih_e^T + (b_ih+b_hh)
    encmean_ref,   # (B, De)       f32   mean encoder feature (grid-invariant)
    dl_ref,        # (B, 1)        i32   decode lengths (sorted descending)
    h0_ref,        # (B, Dd)       f32   initial hidden state
    c0_ref,        # (B, Dd)       f32   initial cell state
    wfb_ref,       # (Dd, De)      bf16  f_beta.weight^T
    bfb_ref,       # (1, De)       f32   f_beta.bias
    wxh_ref,       # (De+Dd, 4*Dd) bf16  fused [W_ih_enc^T ; W_hh^T]
    wfc_ref,       # (Dd, V)       bf16  fc.weight^T
    bfc_ref,       # (1, V)        f32   fc.bias
    preds_ref,     # out: (TB, B, V) f32
    h_s, c_s,      # scratch (B, Dd) f32 — LSTM state, persists across grid steps
    hbuf,          # scratch (TB, B, Dd) f32 — hidden states for the batched fc
):
    n = pl.program_id(0)
    tb, b, _ = emb_pre_ref.shape
    dd = h_s.shape[-1]

    @pl.when(n == 0)
    def _():
        h_s[...] = h0_ref[...]
        c_s[...] = c0_ref[...]

    enc_mean = encmean_ref[...]
    dl = dl_ref[...]                       # (B, 1) int32
    t0 = n * tb

    def step(s, carry):
        t = t0 + s
        # rows are sorted by caption length (descending) → per-row active mask
        mask = dl > t                      # (B, 1) bool
        h = h_s[...]
        c = c_s[...]

        # gate = sigmoid(f_beta(h));  x_enc = gate * mean(encoder_out)
        gate = jax.nn.sigmoid(
            jnp.dot(h.astype(jnp.bfloat16), wfb_ref[...],
                    preferred_element_type=jnp.float32) + bfb_ref[...])
        x_enc = gate * enc_mean

        # LSTMCell pre-activations. Embedding part (+ biases) was hoisted to the
        # wrapper; the two recurrent matmuls are fused into one MXU call.
        xh = jnp.concatenate([x_enc, h], axis=-1).astype(jnp.bfloat16)
        pre = emb_pre_ref[s] + jnp.dot(xh, wxh_ref[...],
                                       preferred_element_type=jnp.float32)

        i_g = jax.nn.sigmoid(pre[:, 0 * dd:1 * dd])   # 128-lane-aligned slices
        f_g = jax.nn.sigmoid(pre[:, 1 * dd:2 * dd])
        g_g = jnp.tanh(pre[:, 2 * dd:3 * dd])
        o_g = jax.nn.sigmoid(pre[:, 3 * dd:4 * dd])

        c_new = f_g * c + i_g * g_g
        h_new = o_g * jnp.tanh(c_new)

        h_s[...] = jnp.where(mask, h_new, h)
        c_s[...] = jnp.where(mask, c_new, c)
        hbuf[s] = h_new
        return carry

    jax.lax.fori_loop(0, tb, step, 0, unroll=True)

    # TODO(synk): dropout(p=0.5) before fc is treated as eval-mode identity.
    # Batched fc over the whole time block: one (TB*B, Dd) x (Dd, V) matmul.
    hflat = hbuf[...].reshape(tb * b, dd).astype(jnp.bfloat16)
    logits = (jnp.dot(hflat, wfc_ref[...], preferred_element_type=jnp.float32)
              + bfc_ref[...]).reshape(tb, b, -1)

    t_local = jax.lax.broadcasted_iota(jnp.int32, (tb, b, 1), 0)
    mask3 = jnp.reshape(dl, (1, b, 1)) > (t0 + t_local)
    preds_ref[...] = jnp.where(mask3, logits, 0.0)


# ------------------------------- Wrapper -------------------------------------
def decoder_forward(params, encoder_out, encoded_captions, caption_lengths,
                    time_block=4):
    """Mirrors Decoder.forward (eval-mode dropout).

    encoder_out:      (B, enc_size, enc_size, encoder_dim) float32
    encoded_captions: (B, max_caption_length) int32
    caption_lengths:  (B, 1) int32

    Returns (predictions (B, T, V), caps_sorted, decode_lengths, sort_ind) with
    static T = max_caption_length - 1; entries past a row's decode length are
    zero, exactly like the torch.zeros-initialized output of the reference.
    """
    B = encoder_out.shape[0]
    Denc = encoder_out.shape[-1]
    L = encoded_captions.shape[1]
    enc = encoder_out.reshape(B, -1, Denc)

    # sort by caption length, descending (stable, matching the reference)
    cap_len = caption_lengths[:, 0]
    sort_ind = jnp.argsort(-cap_len, stable=True)
    cap_len = cap_len[sort_ind]
    enc = enc[sort_ind]
    caps_sorted = encoded_captions[sort_ind]

    hi = jax.lax.Precision.HIGHEST
    emb = params["embedding"][caps_sorted]                    # (B, L, E)
    enc_mean = enc.mean(axis=1)                               # (B, Denc)
    h0 = jnp.dot(enc_mean, params["w_init_h"].T, precision=hi) + params["b_init_h"]
    c0 = jnp.dot(enc_mean, params["w_init_c"].T, precision=hi) + params["b_init_c"]

    decode_lengths = (cap_len - 1).astype(jnp.int32)          # (B,) device array
    T = L - 1                                                 # static (no host sync)

    E = emb.shape[-1]
    Ddec = h0.shape[-1]
    V = params["w_fc"].shape[0]

    # ----- (8, 128)-aligned padded sizes ------------------------------------
    B_pad = _round_up(max(B, 8), 8)
    Dd_pad = _round_up(Ddec, 128)
    De_pad = _round_up(Denc, 128)
    V_pad = _round_up(V, 128)
    TB = time_block
    T_pad = _round_up(max(T, 1), TB)
    nblk = T_pad // TB
    G4 = 4 * Dd_pad

    # ----- weight prep: each LSTM gate gets its own 128-aligned slot --------
    def pad_gate_rows(w):                  # (4*Ddec, K) -> (4*Dd_pad, K)
        w4 = w.reshape(4, Ddec, -1)
        w4 = jnp.pad(w4, ((0, 0), (0, Dd_pad - Ddec), (0, 0)))
        return w4.reshape(4 * Dd_pad, -1)

    def pad_gate_vec(v):                   # (4*Ddec,) -> (4*Dd_pad,)
        v4 = jnp.pad(v.reshape(4, Ddec), ((0, 0), (0, Dd_pad - Ddec)))
        return v4.reshape(4 * Dd_pad)

    def pad2(x, r, c):
        return jnp.pad(x, ((0, r - x.shape[0]), (0, c - x.shape[1])))

    w_ih = params["w_ih"]
    wih_e = pad_gate_rows(w_ih[:, :E]).T                      # (E, 4*Dd_pad) f32
    wih_x = pad_gate_rows(w_ih[:, E:]).T                      # (Denc, 4*Dd_pad)
    whh = pad_gate_rows(params["w_hh"]).T                     # (Ddec, 4*Dd_pad)
    b_lstm = pad_gate_vec(params["b_ih"] + params["b_hh"])    # (4*Dd_pad,)

    bf16 = jnp.bfloat16
    wfb_p = pad2(params["w_fbeta"].T, Dd_pad, De_pad).astype(bf16)
    bfb_p = jnp.pad(params["b_fbeta"], (0, De_pad - Denc))[None, :]
    w_xh_p = jnp.concatenate([pad2(wih_x, De_pad, G4),
                              pad2(whh, Dd_pad, G4)], axis=0).astype(bf16)
    wfc_p = pad2(params["w_fc"].T, Dd_pad, V_pad).astype(bf16)
    bfc_p = jnp.pad(params["b_fc"], (0, V_pad - V))[None, :]

    # ----- hoisted non-recurrent embedding projection (one big matmul) -------
    emb_T = jnp.transpose(emb[:, :T, :], (1, 0, 2))           # (T, B, E)
    emb_pre = jnp.einsum("tbe,ef->tbf", emb_T, wih_e, precision=hi) + b_lstm
    emb_pre = jnp.pad(emb_pre, ((0, T_pad - T), (0, B_pad - B), (0, 0)))

    enc_mean_p = pad2(enc_mean, B_pad, De_pad)
    h0_p = pad2(h0, B_pad, Dd_pad)
    c0_p = pad2(c0, B_pad, Dd_pad)
    dl_p = jnp.pad(decode_lengths, (0, B_pad - B))[:, None]   # (B_pad, 1) i32

    def run(const_kwargs):
        def const(shape):
            return pl.BlockSpec(shape, lambda n: (0,) * len(shape), **const_kwargs)

        grid_spec = pltpu.PrefetchScalarGridSpec(
            num_scalar_prefetch=0,
            grid=(nblk,),
            in_specs=[
                pl.BlockSpec((TB, B_pad, G4), lambda n: (n, 0, 0)),   # emb_pre
                const((B_pad, De_pad)),                               # enc_mean
                const((B_pad, 1)),                                    # decode lengths
                const((B_pad, Dd_pad)),                               # h0
                const((B_pad, Dd_pad)),                               # c0
                const((Dd_pad, De_pad)),                              # wfb
                const((1, De_pad)),                                   # bfb
                const((De_pad + Dd_pad, G4)),                         # fused wxh
                const((Dd_pad, V_pad)),                               # wfc
                const((1, V_pad)),                                    # bfc
            ],
            out_specs=pl.BlockSpec((TB, B_pad, V_pad), lambda n: (n, 0, 0)),
            scratch_shapes=[
                pltpu.VMEM((B_pad, Dd_pad), jnp.float32),             # h state
                pltpu.VMEM((B_pad, Dd_pad), jnp.float32),             # c state
                pltpu.VMEM((TB, B_pad, Dd_pad), jnp.float32),         # h history
            ],
        )
        return pl.pallas_call(
            _decoder_block_kernel,
            out_shape=jax.ShapeDtypeStruct((T_pad, B_pad, V_pad), jnp.float32),
            grid_spec=grid_spec,
            compiler_params=pltpu.CompilerParams(
                dimension_semantics=("arbitrary",),       # sequential recurrence
                vmem_limit_bytes=48 * 1024 * 1024,
            ),
        )(emb_pre, enc_mean_p, dl_p, h0_p, c0_p,
          wfb_p, bfb_p, w_xh_p, wfc_p, bfc_p)

    try:
        # Grid-invariant weights need no double buffering; single-buffering
        # halves their resident VMEM (matters on v7x at production vocab sizes).
        preds_p = run(dict(pipeline_mode=pl.Buffered(1)))
    except Exception:
        # Fallback for Pallas versions without single-buffer pipeline_mode.
        preds_p = run({})

    predictions = jnp.transpose(preds_p[:T, :B, :V], (1, 0, 2))   # (B, T, V)
    # TODO(synk): add a parallel batch grid axis (megacore) to use v7x's 2 TCs.
    return predictions, caps_sorted, decode_lengths, sort_ind


# --------------------------- Parameter creation -------------------------------
def init_params(key, embed_dim, decoder_dim, vocab_size, encoder_dim):
    ks = jax.random.split(key, 12)
    u = lambda k, shape, s: jax.random.uniform(k, shape, jnp.float32, -s, s)
    return {
        # embedding.weight.uniform_(-0.1, 0.1)
        "embedding": u(ks[0], (vocab_size, embed_dim), 0.1),
        "w_init_h": u(ks[1], (decoder_dim, encoder_dim), 0.05),
        "b_init_h": u(ks[2], (decoder_dim,), 0.05),
        "w_init_c": u(ks[3], (decoder_dim, encoder_dim), 0.05),
        "b_init_c": u(ks[4], (decoder_dim,), 0.05),
        "w_fbeta": u(ks[5], (encoder_dim, decoder_dim), 0.05),
        "b_fbeta": u(ks[6], (encoder_dim,), 0.05),
        "w_ih": u(ks[7], (4 * decoder_dim, embed_dim + encoder_dim), 0.05),
        "w_hh": u(ks[8], (4 * decoder_dim, decoder_dim), 0.05),
        "b_ih": u(ks[9], (4 * decoder_dim,), 0.05),
        "b_hh": u(ks[10], (4 * decoder_dim,), 0.05),
        # fc.weight uniform_(-0.1, 0.1); fc.bias = 0
        "w_fc": u(ks[11], (vocab_size, decoder_dim), 0.1),
        "b_fc": jnp.zeros((vocab_size,), jnp.float32),
    }


# ---------------------------- NumPy reference ---------------------------------
def _sigmoid(x):
    return 1.0 / (1.0 + np.exp(-x))


def _bf16r(x):
    # round-trip through bfloat16 to mirror the kernel's bf16 matmul operands
    return np.asarray(x).astype(jnp.bfloat16).astype(np.float32)


def reference_forward(params, encoder_out, encoded_captions, caption_lengths):
    """Pure-NumPy port of the PyTorch Decoder.forward (eval-mode dropout).

    Matmul operands the kernel feeds to the MXU in bf16 (gate / recurrent / fc
    weights and their activations) are rounded to bf16 here as well, so the
    comparison isolates algorithmic correctness from the intentional
    bf16-operand / f32-accumulate precision policy.  The hoisted embedding
    projection stays in f32 (it is computed in f32 in the wrapper).
    """
    p = {k: np.asarray(v, np.float32) for k, v in params.items()}
    enc = np.asarray(encoder_out, np.float32)
    caps = np.asarray(encoded_captions)
    lens = np.asarray(caption_lengths)[:, 0]
    B = enc.shape[0]
    Denc = enc.shape[-1]
    enc = enc.reshape(B, -1, Denc)
    sort_ind = np.argsort(-lens, kind="stable")
    lens, enc, caps = lens[sort_ind], enc[sort_ind], caps[sort_ind]
    emb = p["embedding"][caps]
    mean = enc.mean(1)
    h = mean @ p["w_init_h"].T + p["b_init_h"]
    c = mean @ p["w_init_c"].T + p["b_init_c"]
    dls = lens - 1
    T = caps.shape[1] - 1
    V = p["w_fc"].shape[0]
    D = h.shape[1]
    E = emb.shape[-1]

    w_ih_e = p["w_ih"][:, :E]
    w_ih_x = _bf16r(p["w_ih"][:, E:])
    w_hh = _bf16r(p["w_hh"])
    w_fb = _bf16r(p["w_fbeta"])
    w_fc = _bf16r(p["w_fc"])
    b_lstm = p["b_ih"] + p["b_hh"]

    preds = np.zeros((B, T, V), np.float32)
    for t in range(T):
        bst = int(np.sum(dls > t))
        if bst == 0:
            break
        gate = _sigmoid(_bf16r(h[:bst]) @ w_fb.T + p["b_fbeta"])
        x_enc = gate * mean[:bst]
        pre = (emb[:bst, t, :] @ w_ih_e.T
               + _bf16r(x_enc) @ w_ih_x.T
               + _bf16r(h[:bst]) @ w_hh.T
               + b_lstm)
        i = _sigmoid(pre[:, :D]); f = _sigmoid(pre[:, D:2 * D])
        g = np.tanh(pre[:, 2 * D:3 * D]); o = _sigmoid(pre[:, 3 * D:])
        c = f * c[:bst] + i * g
        h = o * np.tanh(c)
        preds[:bst, t, :] = _bf16r(h) @ w_fc.T + p["b_fc"]
    return preds, sort_ind


# --------------------------------- Main ---------------------------------------
if __name__ == "__main__":
    # Small shapes consistent with the module's forward.
    B, enc_size, encoder_dim = 4, 4, 64
    embed_dim, decoder_dim, vocab_size = 32, 32, 200
    max_cap_len = 10

    key = jax.random.PRNGKey(0)
    k_p, k_enc, k_cap, k_len = jax.random.split(key, 4)

    params = init_params(k_p, embed_dim, decoder_dim, vocab_size, encoder_dim)

    encoder_out = jax.random.normal(
        k_enc, (B, enc_size, enc_size, encoder_dim), jnp.float32)
    encoded_captions = jax.random.randint(
        k_cap, (B, max_cap_len), 0, vocab_size, jnp.int32)
    caption_lengths = jax.random.randint(
        k_len, (B, 1), 3, max_cap_len + 1, jnp.int32)

    predictions, caps_sorted, decode_lengths, sort_ind = decoder_forward(
        params, encoder_out, encoded_captions, caption_lengths, time_block=4)
    predictions = jax.block_until_ready(predictions)

    # Verify against a pure-NumPy re-implementation of the PyTorch forward.
    ref_preds, ref_sort = reference_forward(
        params, encoder_out, encoded_captions, caption_lengths)
    assert np.array_equal(np.asarray(sort_ind), ref_sort)
    np.testing.assert_allclose(np.asarray(predictions), ref_preds,
                               rtol=2e-3, atol=2e-4)

    print("KERNEL_OK")
</pallas_src>

<mosaic_0001>
module attributes {stable_mosaic.version = 11 : i64} {
  func.func @_decoder_block_kernel(%arg0: i32, %arg1: memref<4x8x512xf32, #tpu.memory_space<vmem>>, %arg2: memref<8x128xf32, #tpu.memory_space<vmem>>, %arg3: memref<8x1xi32, #tpu.memory_space<vmem>>, %arg4: memref<8x128xf32, #tpu.memory_space<vmem>>, %arg5: memref<8x128xf32, #tpu.memory_space<vmem>>, %arg6: memref<128x128xbf16, #tpu.memory_space<vmem>>, %arg7: memref<1x128xf32, #tpu.memory_space<vmem>>, %arg8: memref<256x512xbf16, #tpu.memory_space<vmem>>, %arg9: memref<128x256xbf16, #tpu.memory_space<vmem>>, %arg10: memref<1x256xf32, #tpu.memory_space<vmem>>, %arg11: memref<4x8x256xf32, #tpu.memory_space<vmem>>, %arg12: memref<8x128xf32, #tpu.memory_space<vmem>>, %arg13: memref<8x128xf32, #tpu.memory_space<vmem>>, %arg14: memref<4x8x128xf32, #tpu.memory_space<vmem>>) attributes {dimension_semantics = [#tpu.dimension_semantics<arbitrary>], iteration_bounds = array<i64: 3>, scalar_prefetch = 0 : i64, scratch_operands = 3 : i64, tpu.core_type = #tpu.core_type<tc>, window_params = [{transform_indices = @transform_0, window_bounds = array<i64: 4, 8, 512>}, {pipeline_mode = #tpu.pipeline_mode<synchronous>, transform_indices = @transform_1, window_bounds = array<i64: 8, 128>}, {pipeline_mode = #tpu.pipeline_mode<synchronous>, transform_indices = @transform_2, window_bounds = array<i64: 8, 1>}, {pipeline_mode = #tpu.pipeline_mode<synchronous>, transform_indices = @transform_3, window_bounds = array<i64: 8, 128>}, {pipeline_mode = #tpu.pipeline_mode<synchronous>, transform_indices = @transform_4, window_bounds = array<i64: 8, 128>}, {pipeline_mode = #tpu.pipeline_mode<synchronous>, transform_indices = @transform_5, window_bounds = array<i64: 128, 128>}, {pipeline_mode = #tpu.pipeline_mode<synchronous>, transform_indices = @transform_6, window_bounds = array<i64: 1, 128>}, {pipeline_mode = #tpu.pipeline_mode<synchronous>, transform_indices = @transform_7, window_bounds = array<i64: 256, 512>}, {pipeline_mode = #tpu.pipeline_mode<synchronous>, transform_indices = @transform_8, window_bounds = array<i64: 128, 256>}, {pipeline_mode = #tpu.pipeline_mode<synchronous>, transform_indices = @transform_9, window_bounds = array<i64: 1, 256>}, {transform_indices = @transform_10, window_bounds = array<i64: 4, 8, 256>}]} {
    %c0_i32 = arith.constant 0 : i32
    %0 = arith.cmpi eq, %arg0, %c0_i32 : i32
    %1 = arith.extui %0 : i1 to i32
    %c0_i32_0 = arith.constant 0 : i32
    %2 = arith.cmpi ne, %1, %c0_i32_0 : i32
    scf.if %2 {
      %c0_113 = arith.constant 0 : index
      %c0_114 = arith.constant 0 : index
      %274 = vector.load %arg4[%c0_113, %c0_114] : memref<8x128xf32, #tpu.memory_space<vmem>>, vector<8x128xf32>
      %c0_115 = arith.constant 0 : index
      %c0_116 = arith.constant 0 : index
      %275 = vector.load %arg12[%c0_115, %c0_116] : memref<8x128xf32, #tpu.memory_space<vmem>>, vector<8x128xf32>
      tpu.vector_store %arg12[%c0_115, %c0_116], %274 {strides = array<i32>} : memref<8x128xf32, #tpu.memory_space<vmem>>, vector<8x128xf32>,
      %c0_117 = arith.constant 0 : index
      %c0_118 = arith.constant 0 : index
      %276 = vector.load %arg5[%c0_117, %c0_118] : memref<8x128xf32, #tpu.memory_space<vmem>>, vector<8x128xf32>
      %c0_119 = arith.constant 0 : index
      %c0_120 = arith.constant 0 : index
      %277 = vector.load %arg13[%c0_119, %c0_120] : memref<8x128xf32, #tpu.memory_space<vmem>>, vector<8x128xf32>
      tpu.vector_store %arg13[%c0_119, %c0_120], %276 {strides = array<i32>} : memref<8x128xf32, #tpu.memory_space<vmem>>, vector<8x128xf32>,
    } else {
    }
    %c0 = arith.constant 0 : index
    %c0_1 = arith.constant 0 : index
    %3 = vector.load %arg2[%c0, %c0_1] : memref<8x128xf32, #tpu.memory_space<vmem>>, vector<8x128xf32>
    %c0_2 = arith.constant 0 : index
    %c0_3 = arith.constant 0 : index
    %4 = vector.load %arg3[%c0_2, %c0_3] : memref<8x1xi32, #tpu.memory_space<vmem>>, vector<8x1xi32>
    %c4_i32 = arith.constant 4 : i32
    %5 = arith.muli %arg0, %c4_i32 : i32
    %c0_i32_4 = arith.constant 0 : i32
    %6 = arith.addi %5, %c0_i32_4 : i32
    %7 = vector.broadcast %6 : i32 to vector<8x1xi32>
    %8 = arith.cmpi sgt, %4, %7 : vector<8x1xi32>
    %c0_5 = arith.constant 0 : index
    %c0_6 = arith.constant 0 : index
    %9 = vector.load %arg12[%c0_5, %c0_6] : memref<8x128xf32, #tpu.memory_space<vmem>>, vector<8x128xf32>
    %c0_7 = arith.constant 0 : index
    %c0_8 = arith.constant 0 : index
    %10 = vector.load %arg13[%c0_7, %c0_8] : memref<8x128xf32, #tpu.memory_space<vmem>>, vector<8x128xf32>
    %11 = arith.truncf %9 : vector<8x128xf32> to vector<8x128xbf16>
    %c0_9 = arith.constant 0 : index
    %c0_10 = arith.constant 0 : index
    %12 = vector.load %arg6[%c0_9, %c0_10] : memref<128x128xbf16, #tpu.memory_space<vmem>>, vector<128x128xbf16>
    %cst = arith.constant dense<0.000000e+00> : vector<8x128xf32>
    %13 = tpu.matmul %11, %12, %cst {dimension_numbers = #tpu.dot_dimension_numbers<[1], [0], [0], [1], [0, 0, 1, 1], [], []>} : vector<8x128xbf16>, vector<128x128xbf16>, vector<8x128xf32> -> vector<8x128xf32>
    %c0_11 = arith.constant 0 : index
    %c0_12 = arith.constant 0 : index
    %14 = vector.load %arg7[%c0_11, %c0_12] : memref<1x128xf32, #tpu.memory_space<vmem>>, vector<1x128xf32>
    %15 = vector.broadcast %14 : vector<1x128xf32> to vector<8x128xf32>
    %16 = arith.addf %13, %15 : vector<8x128xf32>
    %17 = arith.negf %16 : vector<8x128xf32>
    %18 = math.exp %17 : vector<8x128xf32>
    %cst_13 = arith.constant 1.000000e+00 : f32
    %19 = vector.broadcast %cst_13 : f32 to vector<8x128xf32>
    %20 = arith.addf %19, %18 : vector<8x128xf32>
    %21 = arith.divf %19, %20 : vector<8x128xf32>
    %22 = arith.mulf %21, %3 : vector<8x128xf32>
    %23 = tpu.concatenate %22, %9 in 1 : vector<8x128xf32>, vector<8x128xf32> -> vector<8x256xf32>
    %24 = arith.truncf %23 : vector<8x256xf32> to vector<8x256xbf16>
    %25 = arith.index_cast %c0_i32_4 : i32 to index
    %c0_14 = arith.constant 0 : index
    %c0_15 = arith.constant 0 : index
    %26 = vector.load %arg1[%25, %c0_14, %c0_15] : memref<4x8x512xf32, #tpu.memory_space<vmem>>, vector<1x8x512xf32>
    %27 = vector.shape_cast %26 : vector<1x8x512xf32> to vector<8x512xf32>
    %c0_16 = arith.constant 0 : index
    %c0_17 = arith.constant 0 : index
    %28 = vector.load %arg8[%c0_16, %c0_17] : memref<256x512xbf16, #tpu.memory_space<vmem>>, vector<256x512xbf16>
    %cst_18 = arith.constant dense<0.000000e+00> : vector<8x512xf32>
    %29 = tpu.matmul %24, %28, %cst_18 {dimension_numbers = #tpu.dot_dimension_numbers<[1], [0], [0], [1], [0, 0, 1, 1], [], []>} : vector<8x256xbf16>, vector<256x512xbf16>, vector<8x512xf32> -> vector<8x512xf32>
    %30 = arith.addf %27, %29 : vector<8x512xf32>
    %31 = vector.extract_strided_slice %30 {offsets = [0, 0], sizes = [8, 128], strides = [1, 1]} : vector<8x512xf32> to vector<8x128xf32>
    %32 = arith.negf %31 : vector<8x128xf32>
    %33 = math.exp %32 : vector<8x128xf32>
    %cst_19 = arith.constant 1.000000e+00 : f32
    %34 = vector.broadcast %cst_19 : f32 to vector<8x128xf32>
    %35 = arith.addf %34, %33 : vector<8x128xf32>
    %36 = arith.divf %34, %35 : vector<8x128xf32>
    %37 = vector.extract_strided_slice %30 {offsets = [0, 128], sizes = [8, 128], strides = [1, 1]} : vector<8x512xf32> to vector<8x128xf32>
    %38 = arith.negf %37 : vector<8x128xf32>
    %39 = math.exp %38 : vector<8x128xf32>
    %cst_20 = arith.constant 1.000000e+00 : f32
    %40 = vector.broadcast %cst_20 : f32 to vector<8x128xf32>
    %41 = arith.addf %40, %39 : vector<8x128xf32>
    %42 = arith.divf %40, %41 : vector<8x128xf32>
    %43 = vector.extract_strided_slice %30 {offsets = [0, 256], sizes = [8, 128], strides = [1, 1]} : vector<8x512xf32> to vector<8x128xf32>
    %44 = math.tanh %43 : vector<8x128xf32>
    %45 = vector.extract_strided_slice %30 {offsets = [0, 384], sizes = [8, 128], strides = [1, 1]} : vector<8x512xf32> to vector<8x128xf32>
    %46 = arith.negf %45 : vector<8x128xf32>
    %47 = math.exp %46 : vector<8x128xf32>
    %cst_21 = arith.constant 1.000000e+00 : f32
    %48 = vector.broadcast %cst_21 : f32 to vector<8x128xf32>
    %49 = arith.addf %48, %47 : vector<8x128xf32>
    %50 = arith.divf %48, %49 : vector<8x128xf32>
    %51 = arith.mulf %42, %10 : vector<8x128xf32>
    %52 = arith.mulf %36, %44 : vector<8x128xf32>
    %53 = arith.addf %51, %52 : vector<8x128xf32>
    %54 = math.tanh %53 : vector<8x128xf32>
    %55 = arith.mulf %50, %54 : vector<8x128xf32>
    %56 = vector.shape_cast %8 : vector<8x1xi1> to vector<8x1xi1>
    %57 = vector.broadcast %56 : vector<8x1xi1> to vector<8x128xi1>
    %58 = arith.select %57, %55, %9 : vector<8x128xi1>, vector<8x128xf32>
    %c0_22 = arith.constant 0 : index
    %c0_23 = arith.constant 0 : index
    %59 = vector.load %arg12[%c0_22, %c0_23] : memref<8x128xf32, #tpu.memory_space<vmem>>, vector<8x128xf32>
    tpu.vector_store %arg12[%c0_22, %c0_23], %58 {strides = array<i32>} : memref<8x128xf32, #tpu.memory_space<vmem>>, vector<8x128xf32>,
    %60 = vector.shape_cast %8 : vector<8x1xi1> to vector<8x1xi1>
    %61 = vector.broadcast %60 : vector<8x1xi1> to vector<8x128xi1>
    %62 = arith.select %61, %53, %10 : vector<8x128xi1>, vector<8x128xf32>
    %c0_24 = arith.constant 0 : index
    %c0_25 = arith.constant 0 : index
    %63 = vector.load %arg13[%c0_24, %c0_25] : memref<8x128xf32, #tpu.memory_space<vmem>>, vector<8x128xf32>
    tpu.vector_store %arg13[%c0_24, %c0_25], %62 {strides = array<i32>} : memref<8x128xf32, #tpu.memory_space<vmem>>, vector<8x128xf32>,
    %64 = arith.index_cast %c0_i32_4 : i32 to index
    %c0_26 = arith.constant 0 : index
    %c0_27 = arith.constant 0 : index
    %65 = vector.load %arg14[%64, %c0_26, %c0_27] : memref<4x8x128xf32, #tpu.memory_space<vmem>>, vector<1x8x128xf32>
    %66 = vector.shape_cast %65 : vector<1x8x128xf32> to vector<8x128xf32>
    %67 = vector.shape_cast %55 : vector<8x128xf32> to vector<1x8x128xf32>
    tpu.vector_store %arg14[%64, %c0_26, %c0_27], %67 {strides = array<i32>} : memref<4x8x128xf32, #tpu.memory_space<vmem>>, vector<1x8x128xf32>,
    %c1_i32 = arith.constant 1 : i32
    %68 = arith.addi %5, %c1_i32 : i32
    %69 = vector.broadcast %68 : i32 to vector<8x1xi32>
    %70 = arith.cmpi sgt, %4, %69 : vector<8x1xi32>
    %c0_28 = arith.constant 0 : index
    %c0_29 = arith.constant 0 : index
    %71 = vector.load %arg12[%c0_28, %c0_29] : memref<8x128xf32, #tpu.memory_space<vmem>>, vector<8x128xf32>
    %c0_30 = arith.constant 0 : index
    %c0_31 = arith.constant 0 : index
    %72 = vector.load %arg13[%c0_30, %c0_31] : memref<8x128xf32, #tpu.memory_space<vmem>>, vector<8x128xf32>
    %73 = arith.truncf %71 : vector<8x128xf32> to vector<8x128xbf16>
    %c0_32 = arith.constant 0 : index
    %c0_33 = arith.constant 0 : index
    %74 = vector.load %arg6[%c0_32, %c0_33] : memref<128x128xbf16, #tpu.memory_space<vmem>>, vector<128x128xbf16>
    %cst_34 = arith.constant dense<0.000000e+00> : vector<8x128xf32>
    %75 = tpu.matmul %73, %74, %cst_34 {dimension_numbers = #tpu.dot_dimension_numbers<[1], [0], [0], [1], [0, 0, 1, 1], [], []>} : vector<8x128xbf16>, vector<128x128xbf16>, vector<8x128xf32> -> vector<8x128xf32>
    %c0_35 = arith.constant 0 : index
    %c0_36 = arith.constant 0 : index
    %76 = vector.load %arg7[%c0_35, %c0_36] : memref<1x128xf32, #tpu.memory_space<vmem>>, vector<1x128xf32>
    %77 = vector.broadcast %76 : vector<1x128xf32> to vector<8x128xf32>
    %78 = arith.addf %75, %77 : vector<8x128xf32>
    %79 = arith.negf %78 : vector<8x128xf32>
    %80 = math.exp %79 : vector<8x128xf32>
    %cst_37 = arith.constant 1.000000e+00 : f32
    %81 = vector.broadcast %cst_37 : f32 to vector<8x128xf32>
    %82 = arith.addf %81, %80 : vector<8x128xf32>
    %83 = arith.divf %81, %82 : vector<8x128xf32>
    %84 = arith.mulf %83, %3 : vector<8x128xf32>
    %85 = tpu.concatenate %84, %71 in 1 : vector<8x128xf32>, vector<8x128xf32> -> vector<8x256xf32>
    %86 = arith.truncf %85 : vector<8x256xf32> to vector<8x256xbf16>
    %87 = arith.index_cast %c1_i32 : i32 to index
    %c0_38 = arith.constant 0 : index
    %c0_39 = arith.constant 0 : index
    %88 = vector.load %arg1[%87, %c0_38, %c0_39] : memref<4x8x512xf32, #tpu.memory_space<vmem>>, vector<1x8x512xf32>
    %89 = vector.shape_cast %88 : vector<1x8x512xf32> to vector<8x512xf32>
    %c0_40 = arith.constant 0 : index
    %c0_41 = arith.constant 0 : index
    %90 = vector.load %arg8[%c0_40, %c0_41] : memref<256x512xbf16, #tpu.memory_space<vmem>>, vector<256x512xbf16>
    %cst_42 = arith.constant dense<0.000000e+00> : vector<8x512xf32>
    %91 = tpu.matmul %86, %90, %cst_42 {dimension_numbers = #tpu.dot_dimension_numbers<[1], [0], [0], [1], [0, 0, 1, 1], [], []>} : vector<8x256xbf16>, vector<256x512xbf16>, vector<8x512xf32> -> vector<8x512xf32>
    %92 = arith.addf %89, %91 : vector<8x512xf32>
    %93 = vector.extract_strided_slice %92 {offsets = [0, 0], sizes = [8, 128], strides = [1, 1]} : vector<8x512xf32> to vector<8x128xf32>
    %94 = arith.negf %93 : vector<8x128xf32>
    %95 = math.exp %94 : vector<8x128xf32>
    %cst_43 = arith.constant 1.000000e+00 : f32
    %96 = vector.broadcast %cst_43 : f32 to vector<8x128xf32>
    %97 = arith.addf %96, %95 : vector<8x128xf32>
    %98 = arith.divf %96, %97 : vector<8x128xf32>
    %99 = vector.extract_strided_slice %92 {offsets = [0, 128], sizes = [8, 128], strides = [1, 1]} : vector<8x512xf32> to vector<8x128xf32>
    %100 = arith.negf %99 : vector<8x128xf32>
    %101 = math.exp %100 : vector<8x128xf32>
    %cst_44 = arith.constant 1.000000e+00 : f32
    %102 = vector.broadcast %cst_44 : f32 to vector<8x128xf32>
    %103 = arith.addf %102, %101 : vector<8x128xf32>
    %104 = arith.divf %102, %103 : vector<8x128xf32>
    %105 = vector.extract_strided_slice %92 {offsets = [0, 256], sizes = [8, 128], strides = [1, 1]} : vector<8x512xf32> to vector<8x128xf32>
    %106 = math.tanh %105 : vector<8x128xf32>
    %107 = vector.extract_strided_slice %92 {offsets = [0, 384], sizes = [8, 128], strides = [1, 1]} : vector<8x512xf32> to vector<8x128xf32>
    %108 = arith.negf %107 : vector<8x128xf32>
    %109 = math.exp %108 : vector<8x128xf32>
    %cst_45 = arith.constant 1.000000e+00 : f32
    %110 = vector.broadcast %cst_45 : f32 to vector<8x128xf32>
    %111 = arith.addf %110, %109 : vector<8x128xf32>
    %112 = arith.divf %110, %111 : vector<8x128xf32>
    %113 = arith.mulf %104, %72 : vector<8x128xf32>
    %114 = arith.mulf %98, %106 : vector<8x128xf32>
    %115 = arith.addf %113, %114 : vector<8x128xf32>
    %116 = math.tanh %115 : vector<8x128xf32>
    %117 = arith.mulf %112, %116 : vector<8x128xf32>
    %118 = vector.shape_cast %70 : vector<8x1xi1> to vector<8x1xi1>
    %119 = vector.broadcast %118 : vector<8x1xi1> to vector<8x128xi1>
    %120 = arith.select %119, %117, %71 : vector<8x128xi1>, vector<8x128xf32>
    %c0_46 = arith.constant 0 : index
    %c0_47 = arith.constant 0 : index
    %121 = vector.load %arg12[%c0_46, %c0_47] : memref<8x128xf32, #tpu.memory_space<vmem>>, vector<8x128xf32>
    tpu.vector_store %arg12[%c0_46, %c0_47], %120 {strides = array<i32>} : memref<8x128xf32, #tpu.memory_space<vmem>>, vector<8x128xf32>,
    %122 = vector.shape_cast %70 : vector<8x1xi1> to vector<8x1xi1>
    %123 = vector.broadcast %122 : vector<8x1xi1> to vector<8x128xi1>
    %124 = arith.select %123, %115, %72 : vector<8x128xi1>, vector<8x128xf32>
    %c0_48 = arith.constant 0 : index
    %c0_49 = arith.constant 0 : index
    %125 = vector.load %arg13[%c0_48, %c0_49] : memref<8x128xf32, #tpu.memory_space<vmem>>, vector<8x128xf32>
    tpu.vector_store %arg13[%c0_48, %c0_49], %124 {strides = array<i32>} : memref<8x128xf32, #tpu.memory_space<vmem>>, vector<8x128xf32>,
    %126 = arith.index_cast %c1_i32 : i32 to index
    %c0_50 = arith.constant 0 : index
    %c0_51 = arith.constant 0 : index
    %127 = vector.load %arg14[%126, %c0_50, %c0_51] : memref<4x8x128xf32, #tpu.memory_space<vmem>>, vector<1x8x128xf32>
    %128 = vector.shape_cast %127 : vector<1x8x128xf32> to vector<8x128xf32>
    %129 = vector.shape_cast %117 : vector<8x128xf32> to vector<1x8x128xf32>
    tpu.vector_store %arg14[%126, %c0_50, %c0_51], %129 {strides = array<i32>} : memref<4x8x128xf32, #tpu.memory_space<vmem>>, vector<1x8x128xf32>,
    %c2_i32 = arith.constant 2 : i32
    %130 = arith.addi %5, %c2_i32 : i32
    %131 = vector.broadcast %130 : i32 to vector<8x1xi32>
    %132 = arith.cmpi sgt, %4, %131 : vector<8x1xi32>
    %c0_52 = arith.constant 0 : index
    %c0_53 = arith.constant 0 : index
    %133 = vector.load %arg12[%c0_52, %c0_53] : memref<8x128xf32, #tpu.memory_space<vmem>>, vector<8x128xf32>
    %c0_54 = arith.constant 0 : index
    %c0_55 = arith.constant 0 : index
    %134 = vector.load %arg13[%c0_54, %c0_55] : memref<8x128xf32, #tpu.memory_space<vmem>>, vector<8x128xf32>
    %135 = arith.truncf %133 : vector<8x128xf32> to vector<8x128xbf16>
    %c0_56 = arith.constant 0 : index
    %c0_57 = arith.constant 0 : index
    %136 = vector.load %arg6[%c0_56, %c0_57] : memref<128x128xbf16, #tpu.memory_space<vmem>>, vector<128x128xbf16>
    %cst_58 = arith.constant dense<0.000000e+00> : vector<8x128xf32>
    %137 = tpu.matmul %135, %136, %cst_58 {dimension_numbers = #tpu.dot_dimension_numbers<[1], [0], [0], [1], [0, 0, 1, 1], [], []>} : vector<8x128xbf16>, vector<128x128xbf16>, vector<8x128xf32> -> vector<8x128xf32>
    %c0_59 = arith.constant 0 : index
    %c0_60 = arith.constant 0 : index
    %138 = vector.load %arg7[%c0_59, %c0_60] : memref<1x128xf32, #tpu.memory_space<vmem>>, vector<1x128xf32>
    %139 = vector.broadcast %138 : vector<1x128xf32> to vector<8x128xf32>
    %140 = arith.addf %137, %139 : vector<8x128xf32>
    %141 = arith.negf %140 : vector<8x128xf32>
    %142 = math.exp %141 : vector<8x128xf32>
    %cst_61 = arith.constant 1.000000e+00 : f32
    %143 = vector.broadcast %cst_61 : f32 to vector<8x128xf32>
    %144 = arith.addf %143, %142 : vector<8x128xf32>
    %145 = arith.divf %143, %144 : vector<8x128xf32>
    %146 = arith.mulf %145, %3 : vector<8x128xf32>
    %147 = tpu.concatenate %146, %133 in 1 : vector<8x128xf32>, vector<8x128xf32> -> vector<8x256xf32>
    %148 = arith.truncf %147 : vector<8x256xf32> to vector<8x256xbf16>
    %149 = arith.index_cast %c2_i32 : i32 to index
    %c0_62 = arith.constant 0 : index
    %c0_63 = arith.constant 0 : index
    %150 = vector.load %arg1[%149, %c0_62, %c0_63] : memref<4x8x512xf32, #tpu.memory_space<vmem>>, vector<1x8x512xf32>
    %151 = vector.shape_cast %150 : vector<1x8x512xf32> to vector<8x512xf32>
    %c0_64 = arith.constant 0 : index
    %c0_65 = arith.constant 0 : index
    %152 = vector.load %arg8[%c0_64, %c0_65] : memref<256x512xbf16, #tpu.memory_space<vmem>>, vector<256x512xbf16>
    %cst_66 = arith.constant dense<0.000000e+00> : vector<8x512xf32>
    %153 = tpu.matmul %148, %152, %cst_66 {dimension_numbers = #tpu.dot_dimension_numbers<[1], [0], [0], [1], [0, 0, 1, 1], [], []>} : vector<8x256xbf16>, vector<256x512xbf16>, vector<8x512xf32> -> vector<8x512xf32>
    %154 = arith.addf %151, %153 : vector<8x512xf32>
    %155 = vector.extract_strided_slice %154 {offsets = [0, 0], sizes = [8, 128], strides = [1, 1]} : vector<8x512xf32> to vector<8x128xf32>
    %156 = arith.negf %155 : vector<8x128xf32>
    %157 = math.exp %156 : vector<8x128xf32>
    %cst_67 = arith.constant 1.000000e+00 : f32
    %158 = vector.broadcast %cst_67 : f32 to vector<8x128xf32>
    %159 = arith.addf %158, %157 : vector<8x128xf32>
    %160 = arith.divf %158, %159 : vector<8x128xf32>
    %161 = vector.extract_strided_slice %154 {offsets = [0, 128], sizes = [8, 128], strides = [1, 1]} : vector<8x512xf32> to vector<8x128xf32>
    %162 = arith.negf %161 : vector<8x128xf32>
    %163 = math.exp %162 : vector<8x128xf32>
    %cst_68 = arith.constant 1.000000e+00 : f32
    %164 = vector.broadcast %cst_68 : f32 to vector<8x128xf32>
    %165 = arith.addf %164, %163 : vector<8x128xf32>
    %166 = arith.divf %164, %165 : vector<8x128xf32>
    %167 = vector.extract_strided_slice %154 {offsets = [0, 256], sizes = [8, 128], strides = [1, 1]} : vector<8x512xf32> to vector<8x128xf32>
    %168 = math.tanh %167 : vector<8x128xf32>
    %169 = vector.extract_strided_slice %154 {offsets = [0, 384], sizes = [8, 128], strides = [1, 1]} : vector<8x512xf32> to vector<8x128xf32>
    %170 = arith.negf %169 : vector<8x128xf32>
    %171 = math.exp %170 : vector<8x128xf32>
    %cst_69 = arith.constant 1.000000e+00 : f32
    %172 = vector.broadcast %cst_69 : f32 to vector<8x128xf32>
    %173 = arith.addf %172, %171 : vector<8x128xf32>
    %174 = arith.divf %172, %173 : vector<8x128xf32>
    %175 = arith.mulf %166, %134 : vector<8x128xf32>
    %176 = arith.mulf %160, %168 : vector<8x128xf32>
    %177 = arith.addf %175, %176 : vector<8x128xf32>
    %178 = math.tanh %177 : vector<8x128xf32>
    %179 = arith.mulf %174, %178 : vector<8x128xf32>
    %180 = vector.shape_cast %132 : vector<8x1xi1> to vector<8x1xi1>
    %181 = vector.broadcast %180 : vector<8x1xi1> to vector<8x128xi1>
    %182 = arith.select %181, %179, %133 : vector<8x128xi1>, vector<8x128xf32>
    %c0_70 = arith.constant 0 : index
    %c0_71 = arith.constant 0 : index
    %183 = vector.load %arg12[%c0_70, %c0_71] : memref<8x128xf32, #tpu.memory_space<vmem>>, vector<8x128xf32>
    tpu.vector_store %arg12[%c0_70, %c0_71], %182 {strides = array<i32>} : memref<8x128xf32, #tpu.memory_space<vmem>>, vector<8x128xf32>,
    %184 = vector.shape_cast %132 : vector<8x1xi1> to vector<8x1xi1>
    %185 = vector.broadcast %184 : vector<8x1xi1> to vector<8x128xi1>
    %186 = arith.select %185, %177, %134 : vector<8x128xi1>, vector<8x128xf32>
    %c0_72 = arith.constant 0 : index
    %c0_73 = arith.constant 0 : index
    %187 = vector.load %arg13[%c0_72, %c0_73] : memref<8x128xf32, #tpu.memory_space<vmem>>, vector<8x128xf32>
    tpu.vector_store %arg13[%c0_72, %c0_73], %186 {strides = array<i32>} : memref<8x128xf32, #tpu.memory_space<vmem>>, vector<8x128xf32>,
    %188 = arith.index_cast %c2_i32 : i32 to index
    %c0_74 = arith.constant 0 : index
    %c0_75 = arith.constant 0 : index
    %189 = vector.load %arg14[%188, %c0_74, %c0_75] : memref<4x8x128xf32, #tpu.memory_space<vmem>>, vector<1x8x128xf32>
    %190 = vector.shape_cast %189 : vector<1x8x128xf32> to vector<8x128xf32>
    %191 = vector.shape_cast %179 : vector<8x128xf32> to vector<1x8x128xf32>
    tpu.vector_store %arg14[%188, %c0_74, %c0_75], %191 {strides = array<i32>} : memref<4x8x128xf32, #tpu.memory_space<vmem>>, vector<1x8x128xf32>,
    %c3_i32 = arith.constant 3 : i32
    %192 = arith.addi %5, %c3_i32 : i32
    %193 = vector.broadcast %192 : i32 to vector<8x1xi32>
    %194 = arith.cmpi sgt, %4, %193 : vector<8x1xi32>
    %c0_76 = arith.constant 0 : index
    %c0_77 = arith.constant 0 : index
    %195 = vector.load %arg12[%c0_76, %c0_77] : memref<8x128xf32, #tpu.memory_space<vmem>>, vector<8x128xf32>
    %c0_78 = arith.constant 0 : index
    %c0_79 = arith.constant 0 : index
    %196 = vector.load %arg13[%c0_78, %c0_79] : memref<8x128xf32, #tpu.memory_space<vmem>>, vector<8x128xf32>
    %197 = arith.truncf %195 : vector<8x128xf32> to vector<8x128xbf16>
    %c0_80 = arith.constant 0 : index
    %c0_81 = arith.constant 0 : index
    %198 = vector.load %arg6[%c0_80, %c0_81] : memref<128x128xbf16, #tpu.memory_space<vmem>>, vector<128x128xbf16>
    %cst_82 = arith.constant dense<0.000000e+00> : vector<8x128xf32>
    %199 = tpu.matmul %197, %198, %cst_82 {dimension_numbers = #tpu.dot_dimension_numbers<[1], [0], [0], [1], [0, 0, 1, 1], [], []>} : vector<8x128xbf16>, vector<128x128xbf16>, vector<8x128xf32> -> vector<8x128xf32>
    %c0_83 = arith.constant 0 : index
    %c0_84 = arith.constant 0 : index
    %200 = vector.load %arg7[%c0_83, %c0_84] : memref<1x128xf32, #tpu.memory_space<vmem>>, vector<1x128xf32>
    %201 = vector.broadcast %200 : vector<1x128xf32> to vector<8x128xf32>
    %202 = arith.addf %199, %201 : vector<8x128xf32>
    %203 = arith.negf %202 : vector<8x128xf32>
    %204 = math.exp %203 : vector<8x128xf32>
    %cst_85 = arith.constant 1.000000e+00 : f32
    %205 = vector.broadcast %cst_85 : f32 to vector<8x128xf32>
    %206 = arith.addf %205, %204 : vector<8x128xf32>
    %207 = arith.divf %205, %206 : vector<8x128xf32>
    %208 = arith.mulf %207, %3 : vector<8x128xf32>
    %209 = tpu.concatenate %208, %195 in 1 : vector<8x128xf32>, vector<8x128xf32> -> vector<8x256xf32>
    %210 = arith.truncf %209 : vector<8x256xf32> to vector<8x256xbf16>
    %211 = arith.index_cast %c3_i32 : i32 to index
    %c0_86 = arith.constant 0 : index
    %c0_87 = arith.constant 0 : index
    %212 = vector.load %arg1[%211, %c0_86, %c0_87] : memref<4x8x512xf32, #tpu.memory_space<vmem>>, vector<1x8x512xf32>
    %213 = vector.shape_cast %212 : vector<1x8x512xf32> to vector<8x512xf32>
    %c0_88 = arith.constant 0 : index
    %c0_89 = arith.constant 0 : index
    %214 = vector.load %arg8[%c0_88, %c0_89] : memref<256x512xbf16, #tpu.memory_space<vmem>>, vector<256x512xbf16>
    %cst_90 = arith.constant dense<0.000000e+00> : vector<8x512xf32>
    %215 = tpu.matmul %210, %214, %cst_90 {dimension_numbers = #tpu.dot_dimension_numbers<[1], [0], [0], [1], [0, 0, 1, 1], [], []>} : vector<8x256xbf16>, vector<256x512xbf16>, vector<8x512xf32> -> vector<8x512xf32>
    %216 = arith.addf %213, %215 : vector<8x512xf32>
    %217 = vector.extract_strided_slice %216 {offsets = [0, 0], sizes = [8, 128], strides = [1, 1]} : vector<8x512xf32> to vector<8x128xf32>
    %218 = arith.negf %217 : vector<8x128xf32>
    %219 = math.exp %218 : vector<8x128xf32>
    %cst_91 = arith.constant 1.000000e+00 : f32
    %220 = vector.broadcast %cst_91 : f32 to vector<8x128xf32>
    %221 = arith.addf %220, %219 : vector<8x128xf32>
    %222 = arith.divf %220, %221 : vector<8x128xf32>
    %223 = vector.extract_strided_slice %216 {offsets = [0, 128], sizes = [8, 128], strides = [1, 1]} : vector<8x512xf32> to vector<8x128xf32>
    %224 = arith.negf %223 : vector<8x128xf32>
    %225 = math.exp %224 : vector<8x128xf32>
    %cst_92 = arith.constant 1.000000e+00 : f32
    %226 = vector.broadcast %cst_92 : f32 to vector<8x128xf32>
    %227 = arith.addf %226, %225 : vector<8x128xf32>
    %228 = arith.divf %226, %227 : vector<8x128xf32>
    %229 = vector.extract_strided_slice %216 {offsets = [0, 256], sizes = [8, 128], strides = [1, 1]} : vector<8x512xf32> to vector<8x128xf32>
    %230 = math.tanh %229 : vector<8x128xf32>
    %231 = vector.extract_strided_slice %216 {offsets = [0, 384], sizes = [8, 128], strides = [1, 1]} : vector<8x512xf32> to vector<8x128xf32>
    %232 = arith.negf %231 : vector<8x128xf32>
    %233 = math.exp %232 : vector<8x128xf32>
    %cst_93 = arith.constant 1.000000e+00 : f32
    %234 = vector.broadcast %cst_93 : f32 to vector<8x128xf32>
    %235 = arith.addf %234, %233 : vector<8x128xf32>
    %236 = arith.divf %234, %235 : vector<8x128xf32>
    %237 = arith.mulf %228, %196 : vector<8x128xf32>
    %238 = arith.mulf %222, %230 : vector<8x128xf32>
    %239 = arith.addf %237, %238 : vector<8x128xf32>
    %240 = math.tanh %239 : vector<8x128xf32>
    %241 = arith.mulf %236, %240 : vector<8x128xf32>
    %242 = vector.shape_cast %194 : vector<8x1xi1> to vector<8x1xi1>
    %243 = vector.broadcast %242 : vector<8x1xi1> to vector<8x128xi1>
    %244 = arith.select %243, %241, %195 : vector<8x128xi1>, vector<8x128xf32>
    %c0_94 = arith.constant 0 : index
    %c0_95 = arith.constant 0 : index
    %245 = vector.load %arg12[%c0_94, %c0_95] : memref<8x128xf32, #tpu.memory_space<vmem>>, vector<8x128xf32>
    tpu.vector_store %arg12[%c0_94, %c0_95], %244 {strides = array<i32>} : memref<8x128xf32, #tpu.memory_space<vmem>>, vector<8x128xf32>,
    %246 = vector.shape_cast %194 : vector<8x1xi1> to vector<8x1xi1>
    %247 = vector.broadcast %246 : vector<8x1xi1> to vector<8x128xi1>
    %248 = arith.select %247, %239, %196 : vector<8x128xi1>, vector<8x128xf32>
    %c0_96 = arith.constant 0 : index
    %c0_97 = arith.constant 0 : index
    %249 = vector.load %arg13[%c0_96, %c0_97] : memref<8x128xf32, #tpu.memory_space<vmem>>, vector<8x128xf32>
    tpu.vector_store %arg13[%c0_96, %c0_97], %248 {strides = array<i32>} : memref<8x128xf32, #tpu.memory_space<vmem>>, vector<8x128xf32>,
    %250 = arith.index_cast %c3_i32 : i32 to index
    %c0_98 = arith.constant 0 : index
    %c0_99 = arith.constant 0 : index
    %251 = vector.load %arg14[%250, %c0_98, %c0_99] : memref<4x8x128xf32, #tpu.memory_space<vmem>>, vector<1x8x128xf32>
    %252 = vector.shape_cast %251 : vector<1x8x128xf32> to vector<8x128xf32>
    %253 = vector.shape_cast %241 : vector<8x128xf32> to vector<1x8x128xf32>
    tpu.vector_store %arg14[%250, %c0_98, %c0_99], %253 {strides = array<i32>} : memref<4x8x128xf32, #tpu.memory_space<vmem>>, vector<1x8x128xf32>,
    %c4_i32_100 = arith.constant 4 : i32
    %c0_101 = arith.constant 0 : index
    %c0_102 = arith.constant 0 : index
    %c0_103 = arith.constant 0 : index
    %254 = vector.load %arg14[%c0_101, %c0_102, %c0_103] : memref<4x8x128xf32, #tpu.memory_space<vmem>>, vector<4x8x128xf32>
    %255 = vector.shape_cast %254 : vector<4x8x128xf32> to vector<32x128xf32>
    %256 = arith.truncf %255 : vector<32x128xf32> to vector<32x128xbf16>
    %c0_104 = arith.constant 0 : index
    %c0_105 = arith.constant 0 : index
    %257 = vector.load %arg9[%c0_104, %c0_105] : memref<128x256xbf16, #tpu.memory_space<vmem>>, vector<128x256xbf16>
    %cst_106 = arith.constant dense<0.000000e+00> : vector<32x256xf32>
    %258 = tpu.matmul %256, %257, %cst_106 {dimension_numbers = #tpu.dot_dimension_numbers<[1], [0], [0], [1], [0, 0, 1, 1], [], []>} : vector<32x128xbf16>, vector<128x256xbf16>, vector<32x256xf32> -> vector<32x256xf32>
    %c0_107 = arith.constant 0 : index
    %c0_108 = arith.constant 0 : index
    %259 = vector.load %arg10[%c0_107, %c0_108] : memref<1x256xf32, #tpu.memory_space<vmem>>, vector<1x256xf32>
    %260 = vector.broadcast %259 : vector<1x256xf32> to vector<32x256xf32>
    %261 = arith.addf %258, %260 : vector<32x256xf32>
    %262 = vector.shape_cast %261 : vector<32x256xf32> to vector<4x8x256xf32>
    %263 = tpu.iota {dimensions = array<i32: 0>} : vector<4x8x1xi32>
    %264 = vector.shape_cast %4 : vector<8x1xi32> to vector<1x8x1xi32>
    %265 = vector.broadcast %5 : i32 to vector<4x8x1xi32>
    %266 = arith.addi %265, %263 : vector<4x8x1xi32>
    %267 = vector.broadcast %264 : vector<1x8x1xi32> to vector<4x8x1xi32>
    %268 = arith.cmpi sgt, %267, %266 : vector<4x8x1xi32>
    %cst_109 = arith.constant 0.000000e+00 : f32
    %269 = vector.shape_cast %268 : vector<4x8x1xi1> to vector<4x8x1xi1>
    %270 = vector.broadcast %269 : vector<4x8x1xi1> to vector<4x8x256xi1>
    %271 = vector.broadcast %cst_109 : f32 to vector<4x8x256xf32>
    %272 = arith.select %270, %262, %271 : vector<4x8x256xi1>, vector<4x8x256xf32>
    %c0_110 = arith.constant 0 : index
    %c0_111 = arith.constant 0 : index
    %c0_112 = arith.constant 0 : index
    %273 = vector.load %arg11[%c0_110, %c0_111, %c0_112] : memref<4x8x256xf32, #tpu.memory_space<vmem>>, vector<4x8x256xf32>
    tpu.vector_store %arg11[%c0_110, %c0_111, %c0_112], %272 {strides = array<i32>} : memref<4x8x256xf32, #tpu.memory_space<vmem>>, vector<4x8x256xf32>,
    return
  }
  func.func @transform_0(%arg0: i32) -> (i32, i32, i32) {
    %c0_i32 = arith.constant 0 : i32
    %c0_i32_0 = arith.constant 0 : i32
    %c0_i32_1 = arith.constant 0 : i32
    return %arg0, %c0_i32, %c0_i32_0 : i32, i32, i32
  }
  func.func @transform_1(%arg0: i32) -> (i32, i32) {
    %c0_i32 = arith.constant 0 : i32
    %c0_i32_0 = arith.constant 0 : i32
    %c0_i32_1 = arith.constant 0 : i32
    return %c0_i32, %c0_i32_0 : i32, i32
  }
  func.func @transform_2(%arg0: i32) -> (i32, i32) {
    %c0_i32 = arith.constant 0 : i32
    %c0_i32_0 = arith.constant 0 : i32
    %c0_i32_1 = arith.constant 0 : i32
    return %c0_i32, %c0_i32_0 : i32, i32
  }
  func.func @transform_3(%arg0: i32) -> (i32, i32) {
    %c0_i32 = arith.constant 0 : i32
    %c0_i32_0 = arith.constant 0 : i32
    %c0_i32_1 = arith.constant 0 : i32
    return %c0_i32, %c0_i32_0 : i32, i32
  }
  func.func @transform_4(%arg0: i32) -> (i32, i32) {
    %c0_i32 = arith.constant 0 : i32
    %c0_i32_0 = arith.constant 0 : i32
    %c0_i32_1 = arith.constant 0 : i32
    return %c0_i32, %c0_i32_0 : i32, i32
  }
  func.func @transform_5(%arg0: i32) -> (i32, i32) {
    %c0_i32 = arith.constant 0 : i32
    %c0_i32_0 = arith.constant 0 : i32
    %c0_i32_1 = arith.constant 0 : i32
    return %c0_i32, %c0_i32_0 : i32, i32
  }
  func.func @transform_6(%arg0: i32) -> (i32, i32) {
    %c0_i32 = arith.constant 0 : i32
    %c0_i32_0 = arith.constant 0 : i32
    %c0_i32_1 = arith.constant 0 : i32
    return %c0_i32, %c0_i32_0 : i32, i32
  }
  func.func @transform_7(%arg0: i32) -> (i32, i32) {
    %c0_i32 = arith.constant 0 : i32
    %c0_i32_0 = arith.constant 0 : i32
    %c0_i32_1 = arith.constant 0 : i32
    return %c0_i32, %c0_i32_0 : i32, i32
  }
  func.func @transform_8(%arg0: i32) -> (i32, i32) {
    %c0_i32 = arith.constant 0 : i32
    %c0_i32_0 = arith.constant 0 : i32
    %c0_i32_1 = arith.constant 0 : i32
    return %c0_i32, %c0_i32_0 : i32, i32
  }
  func.func @transform_9(%arg0: i32) -> (i32, i32) {
    %c0_i32 = arith.constant 0 : i32
    %c0_i32_0 = arith.constant 0 : i32
    %c0_i32_1 = arith.constant 0 : i32
    return %c0_i32, %c0_i32_0 : i32, i32
  }
  func.func @transform_10(%arg0: i32) -> (i32, i32, i32) {
    %c0_i32 = arith.constant 0 : i32
    %c0_i32_0 = arith.constant 0 : i32
    %c0_i32_1 = arith.constant 0 : i32
    return %arg0, %c0_i32, %c0_i32_0 : i32, i32, i32
  }
}

module attributes {stable_mosaic.version = 11 : i64} {
  func.func @_decoder_block_kernel(%arg0: i32, %arg1: memref<4x8x512xf32, #tpu.memory_space<vmem>>, %arg2: memref<8x128xf32, #tpu.memory_space<vmem>>, %arg3: memref<8x1xi32, #tpu.memory_space<vmem>>, %arg4: memref<8x128xf32, #tpu.memory_space<vmem>>, %arg5: memref<8x128xf32, #tpu.memory_space<vmem>>, %arg6: memref<128x128xbf16, #tpu.memory_space<vmem>>, %arg7: memref<1x128xf32, #tpu.memory_space<vmem>>, %arg8: memref<256x512xbf16, #tpu.memory_space<vmem>>, %arg9: memref<128x256xbf16, #tpu.memory_space<vmem>>, %arg10: memref<1x256xf32, #tpu.memory_space<vmem>>, %arg11: memref<4x8x256xf32, #tpu.memory_space<vmem>>, %arg12: memref<8x128xf32, #tpu.memory_space<vmem>>, %arg13: memref<8x128xf32, #tpu.memory_space<vmem>>, %arg14: memref<4x8x128xf32, #tpu.memory_space<vmem>>) attributes {dimension_semantics = [#tpu.dimension_semantics<arbitrary>], iteration_bounds = array<i64: 3>, scalar_prefetch = 0 : i64, scratch_operands = 3 : i64, tpu.core_type = #tpu.core_type<tc>, window_params = [{transform_indices = @transform_0, window_bounds = array<i64: 4, 8, 512>}, {pipeline_mode = #tpu.pipeline_mode<synchronous>, transform_indices = @transform_1, window_bounds = array<i64: 8, 128>}, {pipeline_mode = #tpu.pipeline_mode<synchronous>, transform_indices = @transform_2, window_bounds = array<i64: 8, 1>}, {pipeline_mode = #tpu.pipeline_mode<synchronous>, transform_indices = @transform_3, window_bounds = array<i64: 8, 128>}, {pipeline_mode = #tpu.pipeline_mode<synchronous>, transform_indices = @transform_4, window_bounds = array<i64: 8, 128>}, {pipeline_mode = #tpu.pipeline_mode<synchronous>, transform_indices = @transform_5, window_bounds = array<i64: 128, 128>}, {pipeline_mode = #tpu.pipeline_mode<synchronous>, transform_indices = @transform_6, window_bounds = array<i64: 1, 128>}, {pipeline_mode = #tpu.pipeline_mode<synchronous>, transform_indices = @transform_7, window_bounds = array<i64: 256, 512>}, {pipeline_mode = #tpu.pipeline_mode<synchronous>, transform_indices = @transform_8, window_bounds = array<i64: 128, 256>}, {pipeline_mode = #tpu.pipeline_mode<synchronous>, transform_indices = @transform_9, window_bounds = array<i64: 1, 256>}, {transform_indices = @transform_10, window_bounds = array<i64: 4, 8, 256>}]} {
    %c0_i32 = arith.constant 0 : i32
    %0 = arith.cmpi eq, %arg0, %c0_i32 : i32
    %1 = arith.extui %0 : i1 to i32
    %c0_i32_0 = arith.constant 0 : i32
    %2 = arith.cmpi ne, %1, %c0_i32_0 : i32
    scf.if %2 {
      %c0_113 = arith.constant 0 : index
      %c0_114 = arith.constant 0 : index
      %274 = vector.load %arg4[%c0_113, %c0_114] : memref<8x128xf32, #tpu.memory_space<vmem>>, vector<8x128xf32>
      %c0_115 = arith.constant 0 : index
      %c0_116 = arith.constant 0 : index
      %275 = vector.load %arg12[%c0_115, %c0_116] : memref<8x128xf32, #tpu.memory_space<vmem>>, vector<8x128xf32>
      tpu.vector_store %arg12[%c0_115, %c0_116], %274 {strides = array<i32>} : memref<8x128xf32, #tpu.memory_space<vmem>>, vector<8x128xf32>,
      %c0_117 = arith.constant 0 : index
      %c0_118 = arith.constant 0 : index
      %276 = vector.load %arg5[%c0_117, %c0_118] : memref<8x128xf32, #tpu.memory_space<vmem>>, vector<8x128xf32>
      %c0_119 = arith.constant 0 : index
      %c0_120 = arith.constant 0 : index
      %277 = vector.load %arg13[%c0_119, %c0_120] : memref<8x128xf32, #tpu.memory_space<vmem>>, vector<8x128xf32>
      tpu.vector_store %arg13[%c0_119, %c0_120], %276 {strides = array<i32>} : memref<8x128xf32, #tpu.memory_space<vmem>>, vector<8x128xf32>,
    } else {
    }
    %c0 = arith.constant 0 : index
    %c0_1 = arith.constant 0 : index
    %3 = vector.load %arg2[%c0, %c0_1] : memref<8x128xf32, #tpu.memory_space<vmem>>, vector<8x128xf32>
    %c0_2 = arith.constant 0 : index
    %c0_3 = arith.constant 0 : index
    %4 = vector.load %arg3[%c0_2, %c0_3] : memref<8x1xi32, #tpu.memory_space<vmem>>, vector<8x1xi32>
    %c4_i32 = arith.constant 4 : i32
    %5 = arith.muli %arg0, %c4_i32 : i32
    %c0_i32_4 = arith.constant 0 : i32
    %6 = arith.addi %5, %c0_i32_4 : i32
    %7 = vector.broadcast %6 : i32 to vector<8x1xi32>
    %8 = arith.cmpi sgt, %4, %7 : vector<8x1xi32>
    %c0_5 = arith.constant 0 : index
    %c0_6 = arith.constant 0 : index
    %9 = vector.load %arg12[%c0_5, %c0_6] : memref<8x128xf32, #tpu.memory_space<vmem>>, vector<8x128xf32>
    %c0_7 = arith.constant 0 : index
    %c0_8 = arith.constant 0 : index
    %10 = vector.load %arg13[%c0_7, %c0_8] : memref<8x128xf32, #tpu.memory_space<vmem>>, vector<8x128xf32>
    %11 = arith.truncf %9 : vector<8x128xf32> to vector<8x128xbf16>
    %c0_9 = arith.constant 0 : index
    %c0_10 = arith.constant 0 : index
    %12 = vector.load %arg6[%c0_9, %c0_10] : memref<128x128xbf16, #tpu.memory_space<vmem>>, vector<128x128xbf16>
    %cst = arith.constant dense<0.000000e+00> : vector<8x128xf32>
    %13 = tpu.matmul %11, %12, %cst {dimension_numbers = #tpu.dot_dimension_numbers<[1], [0], [0], [1], [0, 0, 1, 1], [], []>} : vector<8x128xbf16>, vector<128x128xbf16>, vector<8x128xf32> -> vector<8x128xf32>
    %c0_11 = arith.constant 0 : index
    %c0_12 = arith.constant 0 : index
    %14 = vector.load %arg7[%c0_11, %c0_12] : memref<1x128xf32, #tpu.memory_space<vmem>>, vector<1x128xf32>
    %15 = vector.broadcast %14 : vector<1x128xf32> to vector<8x128xf32>
    %16 = arith.addf %13, %15 : vector<8x128xf32>
    %17 = arith.negf %16 : vector<8x128xf32>
    %18 = math.exp %17 : vector<8x128xf32>
    %cst_13 = arith.constant 1.000000e+00 : f32
    %19 = vector.broadcast %cst_13 : f32 to vector<8x128xf32>
    %20 = arith.addf %19, %18 : vector<8x128xf32>
    %21 = arith.divf %19, %20 : vector<8x128xf32>
    %22 = arith.mulf %21, %3 : vector<8x128xf32>
    %23 = tpu.concatenate %22, %9 in 1 : vector<8x128xf32>, vector<8x128xf32> -> vector<8x256xf32>
    %24 = arith.truncf %23 : vector<8x256xf32> to vector<8x256xbf16>
    %25 = arith.index_cast %c0_i32_4 : i32 to index
    %c0_14 = arith.constant 0 : index
    %c0_15 = arith.constant 0 : index
    %26 = vector.load %arg1[%25, %c0_14, %c0_15] : memref<4x8x512xf32, #tpu.memory_space<vmem>>, vector<1x8x512xf32>
    %27 = vector.shape_cast %26 : vector<1x8x512xf32> to vector<8x512xf32>
    %c0_16 = arith.constant 0 : index
    %c0_17 = arith.constant 0 : index
    %28 = vector.load %arg8[%c0_16, %c0_17] : memref<256x512xbf16, #tpu.memory_space<vmem>>, vector<256x512xbf16>
    %cst_18 = arith.constant dense<0.000000e+00> : vector<8x512xf32>
    %29 = tpu.matmul %24, %28, %cst_18 {dimension_numbers = #tpu.dot_dimension_numbers<[1], [0], [0], [1], [0, 0, 1, 1], [], []>} : vector<8x256xbf16>, vector<256x512xbf16>, vector<8x512xf32> -> vector<8x512xf32>
    %30 = arith.addf %27, %29 : vector<8x512xf32>
    %31 = vector.extract_strided_slice %30 {offsets = [0, 0], sizes = [8, 128], strides = [1, 1]} : vector<8x512xf32> to vector<8x128xf32>
    %32 = arith.negf %31 : vector<8x128xf32>
    %33 = math.exp %32 : vector<8x128xf32>
    %cst_19 = arith.constant 1.000000e+00 : f32
    %34 = vector.broadcast %cst_19 : f32 to vector<8x128xf32>
    %35 = arith.addf %34, %33 : vector<8x128xf32>
    %36 = arith.divf %34, %35 : vector<8x128xf32>
    %37 = vector.extract_strided_slice %30 {offsets = [0, 128], sizes = [8, 128], strides = [1, 1]} : vector<8x512xf32> to vector<8x128xf32>
    %38 = arith.negf %37 : vector<8x128xf32>
    %39 = math.exp %38 : vector<8x128xf32>
    %cst_20 = arith.constant 1.000000e+00 : f32
    %40 = vector.broadcast %cst_20 : f32 to vector<8x128xf32>
    %41 = arith.addf %40, %39 : vector<8x128xf32>
    %42 = arith.divf %40, %41 : vector<8x128xf32>
    %43 = vector.extract_strided_slice %30 {offsets = [0, 256], sizes = [8, 128], strides = [1, 1]} : vector<8x512xf32> to vector<8x128xf32>
    %44 = math.tanh %43 : vector<8x128xf32>
    %45 = vector.extract_strided_slice %30 {offsets = [0, 384], sizes = [8, 128], strides = [1, 1]} : vector<8x512xf32> to vector<8x128xf32>
    %46 = arith.negf %45 : vector<8x128xf32>
    %47 = math.exp %46 : vector<8x128xf32>
    %cst_21 = arith.constant 1.000000e+00 : f32
    %48 = vector.broadcast %cst_21 : f32 to vector<8x128xf32>
    %49 = arith.addf %48, %47 : vector<8x128xf32>
    %50 = arith.divf %48, %49 : vector<8x128xf32>
    %51 = arith.mulf %42, %10 : vector<8x128xf32>
    %52 = arith.mulf %36, %44 : vector<8x128xf32>
    %53 = arith.addf %51, %52 : vector<8x128xf32>
    %54 = math.tanh %53 : vector<8x128xf32>
    %55 = arith.mulf %50, %54 : vector<8x128xf32>
    %56 = vector.shape_cast %8 : vector<8x1xi1> to vector<8x1xi1>
    %57 = vector.broadcast %56 : vector<8x1xi1> to vector<8x128xi1>
    %58 = arith.select %57, %55, %9 : vector<8x128xi1>, vector<8x128xf32>
    %c0_22 = arith.constant 0 : index
    %c0_23 = arith.constant 0 : index
    %59 = vector.load %arg12[%c0_22, %c0_23] : memref<8x128xf32, #tpu.memory_space<vmem>>, vector<8x128xf32>
    tpu.vector_store %arg12[%c0_22, %c0_23], %58 {strides = array<i32>} : memref<8x128xf32, #tpu.memory_space<vmem>>, vector<8x128xf32>,
    %60 = vector.shape_cast %8 : vector<8x1xi1> to vector<8x1xi1>
    %61 = vector.broadcast %60 : vector<8x1xi1> to vector<8x128xi1>
    %62 = arith.select %61, %53, %10 : vector<8x128xi1>, vector<8x128xf32>
    %c0_24 = arith.constant 0 : index
    %c0_25 = arith.constant 0 : index
    %63 = vector.load %arg13[%c0_24, %c0_25] : memref<8x128xf32, #tpu.memory_space<vmem>>, vector<8x128xf32>
    tpu.vector_store %arg13[%c0_24, %c0_25], %62 {strides = array<i32>} : memref<8x128xf32, #tpu.memory_space<vmem>>, vector<8x128xf32>,
    %64 = arith.index_cast %c0_i32_4 : i32 to index
    %c0_26 = arith.constant 0 : index
    %c0_27 = arith.constant 0 : index
    %65 = vector.load %arg14[%64, %c0_26, %c0_27] : memref<4x8x128xf32, #tpu.memory_space<vmem>>, vector<1x8x128xf32>
    %66 = vector.shape_cast %65 : vector<1x8x128xf32> to vector<8x128xf32>
    %67 = vector.shape_cast %55 : vector<8x128xf32> to vector<1x8x128xf32>
    tpu.vector_store %arg14[%64, %c0_26, %c0_27], %67 {strides = array<i32>} : memref<4x8x128xf32, #tpu.memory_space<vmem>>, vector<1x8x128xf32>,
    %c1_i32 = arith.constant 1 : i32
    %68 = arith.addi %5, %c1_i32 : i32
    %69 = vector.broadcast %68 : i32 to vector<8x1xi32>
    %70 = arith.cmpi sgt, %4, %69 : vector<8x1xi32>
    %c0_28 = arith.constant 0 : index
    %c0_29 = arith.constant 0 : index
    %71 = vector.load %arg12[%c0_28, %c0_29] : memref<8x128xf32, #tpu.memory_space<vmem>>, vector<8x128xf32>
    %c0_30 = arith.constant 0 : index
    %c0_31 = arith.constant 0 : index
    %72 = vector.load %arg13[%c0_30, %c0_31] : memref<8x128xf32, #tpu.memory_space<vmem>>, vector<8x128xf32>
    %73 = arith.truncf %71 : vector<8x128xf32> to vector<8x128xbf16>
    %c0_32 = arith.constant 0 : index
    %c0_33 = arith.constant 0 : index
    %74 = vector.load %arg6[%c0_32, %c0_33] : memref<128x128xbf16, #tpu.memory_space<vmem>>, vector<128x128xbf16>
    %cst_34 = arith.constant dense<0.000000e+00> : vector<8x128xf32>
    %75 = tpu.matmul %73, %74, %cst_34 {dimension_numbers = #tpu.dot_dimension_numbers<[1], [0], [0], [1], [0, 0, 1, 1], [], []>} : vector<8x128xbf16>, vector<128x128xbf16>, vector<8x128xf32> -> vector<8x128xf32>
    %c0_35 = arith.constant 0 : index
    %c0_36 = arith.constant 0 : index
    %76 = vector.load %arg7[%c0_35, %c0_36] : memref<1x128xf32, #tpu.memory_space<vmem>>, vector<1x128xf32>
    %77 = vector.broadcast %76 : vector<1x128xf32> to vector<8x128xf32>
    %78 = arith.addf %75, %77 : vector<8x128xf32>
    %79 = arith.negf %78 : vector<8x128xf32>
    %80 = math.exp %79 : vector<8x128xf32>
    %cst_37 = arith.constant 1.000000e+00 : f32
    %81 = vector.broadcast %cst_37 : f32 to vector<8x128xf32>
    %82 = arith.addf %81, %80 : vector<8x128xf32>
    %83 = arith.divf %81, %82 : vector<8x128xf32>
    %84 = arith.mulf %83, %3 : vector<8x128xf32>
    %85 = tpu.concatenate %84, %71 in 1 : vector<8x128xf32>, vector<8x128xf32> -> vector<8x256xf32>
    %86 = arith.truncf %85 : vector<8x256xf32> to vector<8x256xbf16>
    %87 = arith.index_cast %c1_i32 : i32 to index
    %c0_38 = arith.constant 0 : index
    %c0_39 = arith.constant 0 : index
    %88 = vector.load %arg1[%87, %c0_38, %c0_39] : memref<4x8x512xf32, #tpu.memory_space<vmem>>, vector<1x8x512xf32>
    %89 = vector.shape_cast %88 : vector<1x8x512xf32> to vector<8x512xf32>
    %c0_40 = arith.constant 0 : index
    %c0_41 = arith.constant 0 : index
    %90 = vector.load %arg8[%c0_40, %c0_41] : memref<256x512xbf16, #tpu.memory_space<vmem>>, vector<256x512xbf16>
    %cst_42 = arith.constant dense<0.000000e+00> : vector<8x512xf32>
    %91 = tpu.matmul %86, %90, %cst_42 {dimension_numbers = #tpu.dot_dimension_numbers<[1], [0], [0], [1], [0, 0, 1, 1], [], []>} : vector<8x256xbf16>, vector<256x512xbf16>, vector<8x512xf32> -> vector<8x512xf32>
    %92 = arith.addf %89, %91 : vector<8x512xf32>
    %93 = vector.extract_strided_slice %92 {offsets = [0, 0], sizes = [8, 128], strides = [1, 1]} : vector<8x512xf32> to vector<8x128xf32>
    %94 = arith.negf %93 : vector<8x128xf32>
    %95 = math.exp %94 : vector<8x128xf32>
    %cst_43 = arith.constant 1.000000e+00 : f32
    %96 = vector.broadcast %cst_43 : f32 to vector<8x128xf32>
    %97 = arith.addf %96, %95 : vector<8x128xf32>
    %98 = arith.divf %96, %97 : vector<8x128xf32>
    %99 = vector.extract_strided_slice %92 {offsets = [0, 128], sizes = [8, 128], strides = [1, 1]} : vector<8x512xf32> to vector<8x128xf32>
    %100 = arith.negf %99 : vector<8x128xf32>
    %101 = math.exp %100 : vector<8x128xf32>
    %cst_44 = arith.constant 1.000000e+00 : f32
    %102 = vector.broadcast %cst_44 : f32 to vector<8x128xf32>
    %103 = arith.addf %102, %101 : vector<8x128xf32>
    %104 = arith.divf %102, %103 : vector<8x128xf32>
    %105 = vector.extract_strided_slice %92 {offsets = [0, 256], sizes = [8, 128], strides = [1, 1]} : vector<8x512xf32> to vector<8x128xf32>
    %106 = math.tanh %105 : vector<8x128xf32>
    %107 = vector.extract_strided_slice %92 {offsets = [0, 384], sizes = [8, 128], strides = [1, 1]} : vector<8x512xf32> to vector<8x128xf32>
    %108 = arith.negf %107 : vector<8x128xf32>
    %109 = math.exp %108 : vector<8x128xf32>
    %cst_45 = arith.constant 1.000000e+00 : f32
    %110 = vector.broadcast %cst_45 : f32 to vector<8x128xf32>
    %111 = arith.addf %110, %109 : vector<8x128xf32>
    %112 = arith.divf %110, %111 : vector<8x128xf32>
    %113 = arith.mulf %104, %72 : vector<8x128xf32>
    %114 = arith.mulf %98, %106 : vector<8x128xf32>
    %115 = arith.addf %113, %114 : vector<8x128xf32>
    %116 = math.tanh %115 : vector<8x128xf32>
    %117 = arith.mulf %112, %116 : vector<8x128xf32>
    %118 = vector.shape_cast %70 : vector<8x1xi1> to vector<8x1xi1>
    %119 = vector.broadcast %118 : vector<8x1xi1> to vector<8x128xi1>
    %120 = arith.select %119, %117, %71 : vector<8x128xi1>, vector<8x128xf32>
    %c0_46 = arith.constant 0 : index
    %c0_47 = arith.constant 0 : index
    %121 = vector.load %arg12[%c0_46, %c0_47] : memref<8x128xf32, #tpu.memory_space<vmem>>, vector<8x128xf32>
    tpu.vector_store %arg12[%c0_46, %c0_47], %120 {strides = array<i32>} : memref<8x128xf32, #tpu.memory_space<vmem>>, vector<8x128xf32>,
    %122 = vector.shape_cast %70 : vector<8x1xi1> to vector<8x1xi1>
    %123 = vector.broadcast %122 : vector<8x1xi1> to vector<8x128xi1>
    %124 = arith.select %123, %115, %72 : vector<8x128xi1>, vector<8x128xf32>
    %c0_48 = arith.constant 0 : index
    %c0_49 = arith.constant 0 : index
    %125 = vector.load %arg13[%c0_48, %c0_49] : memref<8x128xf32, #tpu.memory_space<vmem>>, vector<8x128xf32>
    tpu.vector_store %arg13[%c0_48, %c0_49], %124 {strides = array<i32>} : memref<8x128xf32, #tpu.memory_space<vmem>>, vector<8x128xf32>,
    %126 = arith.index_cast %c1_i32 : i32 to index
    %c0_50 = arith.constant 0 : index
    %c0_51 = arith.constant 0 : index
    %127 = vector.load %arg14[%126, %c0_50, %c0_51] : memref<4x8x128xf32, #tpu.memory_space<vmem>>, vector<1x8x128xf32>
    %128 = vector.shape_cast %127 : vector<1x8x128xf32> to vector<8x128xf32>
    %129 = vector.shape_cast %117 : vector<8x128xf32> to vector<1x8x128xf32>
    tpu.vector_store %arg14[%126, %c0_50, %c0_51], %129 {strides = array<i32>} : memref<4x8x128xf32, #tpu.memory_space<vmem>>, vector<1x8x128xf32>,
    %c2_i32 = arith.constant 2 : i32
    %130 = arith.addi %5, %c2_i32 : i32
    %131 = vector.broadcast %130 : i32 to vector<8x1xi32>
    %132 = arith.cmpi sgt, %4, %131 : vector<8x1xi32>
    %c0_52 = arith.constant 0 : index
    %c0_53 = arith.constant 0 : index
    %133 = vector.load %arg12[%c0_52, %c0_53] : memref<8x128xf32, #tpu.memory_space<vmem>>, vector<8x128xf32>
    %c0_54 = arith.constant 0 : index
    %c0_55 = arith.constant 0 : index
    %134 = vector.load %arg13[%c0_54, %c0_55] : memref<8x128xf32, #tpu.memory_space<vmem>>, vector<8x128xf32>
    %135 = arith.truncf %133 : vector<8x128xf32> to vector<8x128xbf16>
    %c0_56 = arith.constant 0 : index
    %c0_57 = arith.constant 0 : index
    %136 = vector.load %arg6[%c0_56, %c0_57] : memref<128x128xbf16, #tpu.memory_space<vmem>>, vector<128x128xbf16>
    %cst_58 = arith.constant dense<0.000000e+00> : vector<8x128xf32>
    %137 = tpu.matmul %135, %136, %cst_58 {dimension_numbers = #tpu.dot_dimension_numbers<[1], [0], [0], [1], [0, 0, 1, 1], [], []>} : vector<8x128xbf16>, vector<128x128xbf16>, vector<8x128xf32> -> vector<8x128xf32>
    %c0_59 = arith.constant 0 : index
    %c0_60 = arith.constant 0 : index
    %138 = vector.load %arg7[%c0_59, %c0_60] : memref<1x128xf32, #tpu.memory_space<vmem>>, vector<1x128xf32>
    %139 = vector.broadcast %138 : vector<1x128xf32> to vector<8x128xf32>
    %140 = arith.addf %137, %139 : vector<8x128xf32>
    %141 = arith.negf %140 : vector<8x128xf32>
    %142 = math.exp %141 : vector<8x128xf32>
    %cst_61 = arith.constant 1.000000e+00 : f32
    %143 = vector.broadcast %cst_61 : f32 to vector<8x128xf32>
    %144 = arith.addf %143, %142 : vector<8x128xf32>
    %145 = arith.divf %143, %144 : vector<8x128xf32>
    %146 = arith.mulf %145, %3 : vector<8x128xf32>
    %147 = tpu.concatenate %146, %133 in 1 : vector<8x128xf32>, vector<8x128xf32> -> vector<8x256xf32>
    %148 = arith.truncf %147 : vector<8x256xf32> to vector<8x256xbf16>
    %149 = arith.index_cast %c2_i32 : i32 to index
    %c0_62 = arith.constant 0 : index
    %c0_63 = arith.constant 0 : index
    %150 = vector.load %arg1[%149, %c0_62, %c0_63] : memref<4x8x512xf32, #tpu.memory_space<vmem>>, vector<1x8x512xf32>
    %151 = vector.shape_cast %150 : vector<1x8x512xf32> to vector<8x512xf32>
    %c0_64 = arith.constant 0 : index
    %c0_65 = arith.constant 0 : index
    %152 = vector.load %arg8[%c0_64, %c0_65] : memref<256x512xbf16, #tpu.memory_space<vmem>>, vector<256x512xbf16>
    %cst_66 = arith.constant dense<0.000000e+00> : vector<8x512xf32>
    %153 = tpu.matmul %148, %152, %cst_66 {dimension_numbers = #tpu.dot_dimension_numbers<[1], [0], [0], [1], [0, 0, 1, 1], [], []>} : vector<8x256xbf16>, vector<256x512xbf16>, vector<8x512xf32> -> vector<8x512xf32>
    %154 = arith.addf %151, %153 : vector<8x512xf32>
    %155 = vector.extract_strided_slice %154 {offsets = [0, 0], sizes = [8, 128], strides = [1, 1]} : vector<8x512xf32> to vector<8x128xf32>
    %156 = arith.negf %155 : vector<8x128xf32>
    %157 = math.exp %156 : vector<8x128xf32>
    %cst_67 = arith.constant 1.000000e+00 : f32
    %158 = vector.broadcast %cst_67 : f32 to vector<8x128xf32>
    %159 = arith.addf %158, %157 : vector<8x128xf32>
    %160 = arith.divf %158, %159 : vector<8x128xf32>
    %161 = vector.extract_strided_slice %154 {offsets = [0, 128], sizes = [8, 128], strides = [1, 1]} : vector<8x512xf32> to vector<8x128xf32>
    %162 = arith.negf %161 : vector<8x128xf32>
    %163 = math.exp %162 : vector<8x128xf32>
    %cst_68 = arith.constant 1.000000e+00 : f32
    %164 = vector.broadcast %cst_68 : f32 to vector<8x128xf32>
    %165 = arith.addf %164, %163 : vector<8x128xf32>
    %166 = arith.divf %164, %165 : vector<8x128xf32>
    %167 = vector.extract_strided_slice %154 {offsets = [0, 256], sizes = [8, 128], strides = [1, 1]} : vector<8x512xf32> to vector<8x128xf32>
    %168 = math.tanh %167 : vector<8x128xf32>
    %169 = vector.extract_strided_slice %154 {offsets = [0, 384], sizes = [8, 128], strides = [1, 1]} : vector<8x512xf32> to vector<8x128xf32>
    %170 = arith.negf %169 : vector<8x128xf32>
    %171 = math.exp %170 : vector<8x128xf32>
    %cst_69 = arith.constant 1.000000e+00 : f32
    %172 = vector.broadcast %cst_69 : f32 to vector<8x128xf32>
    %173 = arith.addf %172, %171 : vector<8x128xf32>
    %174 = arith.divf %172, %173 : vector<8x128xf32>
    %175 = arith.mulf %166, %134 : vector<8x128xf32>
    %176 = arith.mulf %160, %168 : vector<8x128xf32>
    %177 = arith.addf %175, %176 : vector<8x128xf32>
    %178 = math.tanh %177 : vector<8x128xf32>
    %179 = arith.mulf %174, %178 : vector<8x128xf32>
    %180 = vector.shape_cast %132 : vector<8x1xi1> to vector<8x1xi1>
    %181 = vector.broadcast %180 : vector<8x1xi1> to vector<8x128xi1>
    %182 = arith.select %181, %179, %133 : vector<8x128xi1>, vector<8x128xf32>
    %c0_70 = arith.constant 0 : index
    %c0_71 = arith.constant 0 : index
    %183 = vector.load %arg12[%c0_70, %c0_71] : memref<8x128xf32, #tpu.memory_space<vmem>>, vector<8x128xf32>
    tpu.vector_store %arg12[%c0_70, %c0_71], %182 {strides = array<i32>} : memref<8x128xf32, #tpu.memory_space<vmem>>, vector<8x128xf32>,
    %184 = vector.shape_cast %132 : vector<8x1xi1> to vector<8x1xi1>
    %185 = vector.broadcast %184 : vector<8x1xi1> to vector<8x128xi1>
    %186 = arith.select %185, %177, %134 : vector<8x128xi1>, vector<8x128xf32>
    %c0_72 = arith.constant 0 : index
    %c0_73 = arith.constant 0 : index
    %187 = vector.load %arg13[%c0_72, %c0_73] : memref<8x128xf32, #tpu.memory_space<vmem>>, vector<8x128xf32>
    tpu.vector_store %arg13[%c0_72, %c0_73], %186 {strides = array<i32>} : memref<8x128xf32, #tpu.memory_space<vmem>>, vector<8x128xf32>,
    %188 = arith.index_cast %c2_i32 : i32 to index
    %c0_74 = arith.constant 0 : index
    %c0_75 = arith.constant 0 : index
    %189 = vector.load %arg14[%188, %c0_74, %c0_75] : memref<4x8x128xf32, #tpu.memory_space<vmem>>, vector<1x8x128xf32>
    %190 = vector.shape_cast %189 : vector<1x8x128xf32> to vector<8x128xf32>
    %191 = vector.shape_cast %179 : vector<8x128xf32> to vector<1x8x128xf32>
    tpu.vector_store %arg14[%188, %c0_74, %c0_75], %191 {strides = array<i32>} : memref<4x8x128xf32, #tpu.memory_space<vmem>>, vector<1x8x128xf32>,
    %c3_i32 = arith.constant 3 : i32
    %192 = arith.addi %5, %c3_i32 : i32
    %193 = vector.broadcast %192 : i32 to vector<8x1xi32>
    %194 = arith.cmpi sgt, %4, %193 : vector<8x1xi32>
    %c0_76 = arith.constant 0 : index
    %c0_77 = arith.constant 0 : index
    %195 = vector.load %arg12[%c0_76, %c0_77] : memref<8x128xf32, #tpu.memory_space<vmem>>, vector<8x128xf32>
    %c0_78 = arith.constant 0 : index
    %c0_79 = arith.constant 0 : index
    %196 = vector.load %arg13[%c0_78, %c0_79] : memref<8x128xf32, #tpu.memory_space<vmem>>, vector<8x128xf32>
    %197 = arith.truncf %195 : vector<8x128xf32> to vector<8x128xbf16>
    %c0_80 = arith.constant 0 : index
    %c0_81 = arith.constant 0 : index
    %198 = vector.load %arg6[%c0_80, %c0_81] : memref<128x128xbf16, #tpu.memory_space<vmem>>, vector<128x128xbf16>
    %cst_82 = arith.constant dense<0.000000e+00> : vector<8x128xf32>
    %199 = tpu.matmul %197, %198, %cst_82 {dimension_numbers = #tpu.dot_dimension_numbers<[1], [0], [0], [1], [0, 0, 1, 1], [], []>} : vector<8x128xbf16>, vector<128x128xbf16>, vector<8x128xf32> -> vector<8x128xf32>
    %c0_83 = arith.constant 0 : index
    %c0_84 = arith.constant 0 : index
    %200 = vector.load %arg7[%c0_83, %c0_84] : memref<1x128xf32, #tpu.memory_space<vmem>>, vector<1x128xf32>
    %201 = vector.broadcast %200 : vector<1x128xf32> to vector<8x128xf32>
    %202 = arith.addf %199, %201 : vector<8x128xf32>
    %203 = arith.negf %202 : vector<8x128xf32>
    %204 = math.exp %203 : vector<8x128xf32>
    %cst_85 = arith.constant 1.000000e+00 : f32
    %205 = vector.broadcast %cst_85 : f32 to vector<8x128xf32>
    %206 = arith.addf %205, %204 : vector<8x128xf32>
    %207 = arith.divf %205, %206 : vector<8x128xf32>
    %208 = arith.mulf %207, %3 : vector<8x128xf32>
    %209 = tpu.concatenate %208, %195 in 1 : vector<8x128xf32>, vector<8x128xf32> -> vector<8x256xf32>
    %210 = arith.truncf %209 : vector<8x256xf32> to vector<8x256xbf16>
    %211 = arith.index_cast %c3_i32 : i32 to index
    %c0_86 = arith.constant 0 : index
    %c0_87 = arith.constant 0 : index
    %212 = vector.load %arg1[%211, %c0_86, %c0_87] : memref<4x8x512xf32, #tpu.memory_space<vmem>>, vector<1x8x512xf32>
    %213 = vector.shape_cast %212 : vector<1x8x512xf32> to vector<8x512xf32>
    %c0_88 = arith.constant 0 : index
    %c0_89 = arith.constant 0 : index
    %214 = vector.load %arg8[%c0_88, %c0_89] : memref<256x512xbf16, #tpu.memory_space<vmem>>, vector<256x512xbf16>
    %cst_90 = arith.constant dense<0.000000e+00> : vector<8x512xf32>
    %215 = tpu.matmul %210, %214, %cst_90 {dimension_numbers = #tpu.dot_dimension_numbers<[1], [0], [0], [1], [0, 0, 1, 1], [], []>} : vector<8x256xbf16>, vector<256x512xbf16>, vector<8x512xf32> -> vector<8x512xf32>
    %216 = arith.addf %213, %215 : vector<8x512xf32>
    %217 = vector.extract_strided_slice %216 {offsets = [0, 0], sizes = [8, 128], strides = [1, 1]} : vector<8x512xf32> to vector<8x128xf32>
    %218 = arith.negf %217 : vector<8x128xf32>
    %219 = math.exp %218 : vector<8x128xf32>
    %cst_91 = arith.constant 1.000000e+00 : f32
    %220 = vector.broadcast %cst_91 : f32 to vector<8x128xf32>
    %221 = arith.addf %220, %219 : vector<8x128xf32>
    %222 = arith.divf %220, %221 : vector<8x128xf32>
    %223 = vector.extract_strided_slice %216 {offsets = [0, 128], sizes = [8, 128], strides = [1, 1]} : vector<8x512xf32> to vector<8x128xf32>
    %224 = arith.negf %223 : vector<8x128xf32>
    %225 = math.exp %224 : vector<8x128xf32>
    %cst_92 = arith.constant 1.000000e+00 : f32
    %226 = vector.broadcast %cst_92 : f32 to vector<8x128xf32>
    %227 = arith.addf %226, %225 : vector<8x128xf32>
    %228 = arith.divf %226, %227 : vector<8x128xf32>
    %229 = vector.extract_strided_slice %216 {offsets = [0, 256], sizes = [8, 128], strides = [1, 1]} : vector<8x512xf32> to vector<8x128xf32>
    %230 = math.tanh %229 : vector<8x128xf32>
    %231 = vector.extract_strided_slice %216 {offsets = [0, 384], sizes = [8, 128], strides = [1, 1]} : vector<8x512xf32> to vector<8x128xf32>
    %232 = arith.negf %231 : vector<8x128xf32>
    %233 = math.exp %232 : vector<8x128xf32>
    %cst_93 = arith.constant 1.000000e+00 : f32
    %234 = vector.broadcast %cst_93 : f32 to vector<8x128xf32>
    %235 = arith.addf %234, %233 : vector<8x128xf32>
    %236 = arith.divf %234, %235 : vector<8x128xf32>
    %237 = arith.mulf %228, %196 : vector<8x128xf32>
    %238 = arith.mulf %222, %230 : vector<8x128xf32>
    %239 = arith.addf %237, %238 : vector<8x128xf32>
    %240 = math.tanh %239 : vector<8x128xf32>
    %241 = arith.mulf %236, %240 : vector<8x128xf32>
    %242 = vector.shape_cast %194 : vector<8x1xi1> to vector<8x1xi1>
    %243 = vector.broadcast %242 : vector<8x1xi1> to vector<8x128xi1>
    %244 = arith.select %243, %241, %195 : vector<8x128xi1>, vector<8x128xf32>
    %c0_94 = arith.constant 0 : index
    %c0_95 = arith.constant 0 : index
    %245 = vector.load %arg12[%c0_94, %c0_95] : memref<8x128xf32, #tpu.memory_space<vmem>>, vector<8x128xf32>
    tpu.vector_store %arg12[%c0_94, %c0_95], %244 {strides = array<i32>} : memref<8x128xf32, #tpu.memory_space<vmem>>, vector<8x128xf32>,
    %246 = vector.shape_cast %194 : vector<8x1xi1> to vector<8x1xi1>
    %247 = vector.broadcast %246 : vector<8x1xi1> to vector<8x128xi1>
    %248 = arith.select %247, %239, %196 : vector<8x128xi1>, vector<8x128xf32>
    %c0_96 = arith.constant 0 : index
    %c0_97 = arith.constant 0 : index
    %249 = vector.load %arg13[%c0_96, %c0_97] : memref<8x128xf32, #tpu.memory_space<vmem>>, vector<8x128xf32>
    tpu.vector_store %arg13[%c0_96, %c0_97], %248 {strides = array<i32>} : memref<8x128xf32, #tpu.memory_space<vmem>>, vector<8x128xf32>,
    %250 = arith.index_cast %c3_i32 : i32 to index
    %c0_98 = arith.constant 0 : index
    %c0_99 = arith.constant 0 : index
    %251 = vector.load %arg14[%250, %c0_98, %c0_99] : memref<4x8x128xf32, #tpu.memory_space<vmem>>, vector<1x8x128xf32>
    %252 = vector.shape_cast %251 : vector<1x8x128xf32> to vector<8x128xf32>
    %253 = vector.shape_cast %241 : vector<8x128xf32> to vector<1x8x128xf32>
    tpu.vector_store %arg14[%250, %c0_98, %c0_99], %253 {strides = array<i32>} : memref<4x8x128xf32, #tpu.memory_space<vmem>>, vector<1x8x128xf32>,
    %c4_i32_100 = arith.constant 4 : i32
    %c0_101 = arith.constant 0 : index
    %c0_102 = arith.constant 0 : index
    %c0_103 = arith.constant 0 : index
    %254 = vector.load %arg14[%c0_101, %c0_102, %c0_103] : memref<4x8x128xf32, #tpu.memory_space<vmem>>, vector<4x8x128xf32>
    %255 = vector.shape_cast %254 : vector<4x8x128xf32> to vector<32x128xf32>
    %256 = arith.truncf %255 : vector<32x128xf32> to vector<32x128xbf16>
    %c0_104 = arith.constant 0 : index
    %c0_105 = arith.constant 0 : index
    %257 = vector.load %arg9[%c0_104, %c0_105] : memref<128x256xbf16, #tpu.memory_space<vmem>>, vector<128x256xbf16>
    %cst_106 = arith.constant dense<0.000000e+00> : vector<32x256xf32>
    %258 = tpu.matmul %256, %257, %cst_106 {dimension_numbers = #tpu.dot_dimension_numbers<[1], [0], [0], [1], [0, 0, 1, 1], [], []>} : vector<32x128xbf16>, vector<128x256xbf16>, vector<32x256xf32> -> vector<32x256xf32>
    %c0_107 = arith.constant 0 : index
    %c0_108 = arith.constant 0 : index
    %259 = vector.load %arg10[%c0_107, %c0_108] : memref<1x256xf32, #tpu.memory_space<vmem>>, vector<1x256xf32>
    %260 = vector.broadcast %259 : vector<1x256xf32> to vector<32x256xf32>
    %261 = arith.addf %258, %260 : vector<32x256xf32>
    %262 = vector.shape_cast %261 : vector<32x256xf32> to vector<4x8x256xf32>
    %263 = tpu.iota {dimensions = array<i32: 0>} : vector<4x8x1xi32>
    %264 = vector.shape_cast %4 : vector<8x1xi32> to vector<1x8x1xi32>
    %265 = vector.broadcast %5 : i32 to vector<4x8x1xi32>
    %266 = arith.addi %265, %263 : vector<4x8x1xi32>
    %267 = vector.broadcast %264 : vector<1x8x1xi32> to vector<4x8x1xi32>
    %268 = arith.cmpi sgt, %267, %266 : vector<4x8x1xi32>
    %cst_109 = arith.constant 0.000000e+00 : f32
    %269 = vector.shape_cast %268 : vector<4x8x1xi1> to vector<4x8x1xi1>
    %270 = vector.broadcast %269 : vector<4x8x1xi1> to vector<4x8x256xi1>
    %271 = vector.broadcast %cst_109 : f32 to vector<4x8x256xf32>
    %272 = arith.select %270, %262, %271 : vector<4x8x256xi1>, vector<4x8x256xf32>
    %c0_110 = arith.constant 0 : index
    %c0_111 = arith.constant 0 : index
    %c0_112 = arith.constant 0 : index
    %273 = vector.load %arg11[%c0_110, %c0_111, %c0_112] : memref<4x8x256xf32, #tpu.memory_space<vmem>>, vector<4x8x256xf32>
    tpu.vector_store %arg11[%c0_110, %c0_111, %c0_112], %272 {strides = array<i32>} : memref<4x8x256xf32, #tpu.memory_space<vmem>>, vector<4x8x256xf32>,
    return
  }
  func.func @transform_0(%arg0: i32) -> (i32, i32, i32) {
    %c0_i32 = arith.constant 0 : i32
    %c0_i32_0 = arith.constant 0 : i32
    %c0_i32_1 = arith.constant 0 : i32
    return %arg0, %c0_i32, %c0_i32_0 : i32, i32, i32
  }
  func.func @transform_1(%arg0: i32) -> (i32, i32) {
    %c0_i32 = arith.constant 0 : i32
    %c0_i32_0 = arith.constant 0 : i32
    %c0_i32_1 = arith.constant 0 : i32
    return %c0_i32, %c0_i32_0 : i32, i32
  }
  func.func @transform_2(%arg0: i32) -> (i32, i32) {
    %c0_i32 = arith.constant 0 : i32
    %c0_i32_0 = arith.constant 0 : i32
    %c0_i32_1 = arith.constant 0 : i32
    return %c0_i32, %c0_i32_0 : i32, i32
  }
  func.func @transform_3(%arg0: i32) -> (i32, i32) {
    %c0_i32 = arith.constant 0 : i32
    %c0_i32_0 = arith.constant 0 : i32
    %c0_i32_1 = arith.constant 0 : i32
    return %c0_i32, %c0_i32_0 : i32, i32
  }
  func.func @transform_4(%arg0: i32) -> (i32, i32) {
    %c0_i32 = arith.constant 0 : i32
    %c0_i32_0 = arith.constant 0 : i32
    %c0_i32_1 = arith.constant 0 : i32
    return %c0_i32, %c0_i32_0 : i32, i32
  }
  func.func @transform_5(%arg0: i32) -> (i32, i32) {
    %c0_i32 = arith.constant 0 : i32
    %c0_i32_0 = arith.constant 0 : i32
    %c0_i32_1 = arith.constant 0 : i32
    return %c0_i32, %c0_i32_0 : i32, i32
  }
  func.func @transform_6(%arg0: i32) -> (i32, i32) {
    %c0_i32 = arith.constant 0 : i32
    %c0_i32_0 = arith.constant 0 : i32
    %c0_i32_1 = arith.constant 0 : i32
    return %c0_i32, %c0_i32_0 : i32, i32
  }
  func.func @transform_7(%arg0: i32) -> (i32, i32) {
    %c0_i32 = arith.constant 0 : i32
    %c0_i32_0 = arith.constant 0 : i32
    %c0_i32_1 = arith.constant 0 : i32
    return %c0_i32, %c0_i32_0 : i32, i32
  }
  func.func @transform_8(%arg0: i32) -> (i32, i32) {
    %c0_i32 = arith.constant 0 : i32
    %c0_i32_0 = arith.constant 0 : i32
    %c0_i32_1 = arith.constant 0 : i32
    return %c0_i32, %c0_i32_0 : i32, i32
  }
  func.func @transform_9(%arg0: i32) -> (i32, i32) {
    %c0_i32 = arith.constant 0 : i32
    %c0_i32_0 = arith.constant 0 : i32
    %c0_i32_1 = arith.constant 0 : i32
    return %c0_i32, %c0_i32_0 : i32, i32
  }
  func.func @transform_10(%arg0: i32) -> (i32, i32, i32) {
    %c0_i32 = arith.constant 0 : i32
    %c0_i32_0 = arith.constant 0 : i32
    %c0_i32_1 = arith.constant 0 : i32
    return %arg0, %c0_i32, %c0_i32_0 : i32, i32, i32
  }
}

</mosaic_0001>

<llo_original>
// kernel: tpu_custom_call.1
$region0: #{tpu_custom_call.1}
  #allocation0 [shape = 'u32[]', space=smem, size = 0x4, offset = 0x4, fixed_abs, tag = 'smem constant byte address 0x4 - core index']
  #allocation1 [shape = 'u32[72,128]{1,0:T(1,128)}', space=vmem, size = 0x9000, scoped, tag = 'internal scratch']
  #allocation2 [shape = 'f32[8,128]{1,0:T(8,128)}', space=vmem, size = 0x1000, scoped, tag = 'scratch operand']
  #allocation3 [shape = 'f32[8,128]{1,0:T(8,128)}', space=vmem, size = 0x1000, scoped, tag = 'scratch operand']
  #allocation4 [shape = 'f32[4,8,128]{2,1,0:T(8,128)}', space=vmem, size = 0x4000, scoped, tag = 'scratch operand']
  %s0 = inlined_call_operand.hbm [shape: f32[12,8,512], index: 0, kind: input, shape index: {}]
  %s1 = inlined_call_operand.vmem [shape: f32[8,128], index: 1, kind: input, shape index: {}]
  %s2 = inlined_call_operand.vmem [shape: s32[8,1], index: 2, kind: input, shape index: {}]
  %s3 = inlined_call_operand.hbm [shape: f32[8,128], index: 3, kind: input, shape index: {}]
  %s4 = inlined_call_operand.hbm [shape: f32[8,128], index: 4, kind: input, shape index: {}]
  %s5 = inlined_call_operand.hbm [shape: bf16[128,128], index: 5, kind: input, shape index: {}]
  %s6 = inlined_call_operand.vmem [shape: f32[1,128], index: 6, kind: input, shape index: {}]
  %s7 = inlined_call_operand.hbm [shape: bf16[256,512], index: 7, kind: input, shape index: {}]
  %s8 = inlined_call_operand.hbm [shape: bf16[128,256], index: 8, kind: input, shape index: {}]
  %s9 = inlined_call_operand.vmem [shape: f32[1,256], index: 9, kind: input, shape index: {}]
  %s10 = inlined_call_operand.hbm [shape: f32[12,8,256], index: 10, kind: output, shape index: {}]
  %s11 = sld [smem:[#allocation0]]
  $region101: #{tpu_custom_call.1} parent=0
    _
  %s13 = ssub.s32 1, %s11
  %s14 = scalar_select 0, %s13, %s11
  $region1: #{tpu_custom_call.1} parent=0
    #allocation5 [shape = 'u8[131072]{0}', space=vmem, size = 0x20000, scoped, tag = 'input window, operand 0']
    #allocation6 [shape = 's32[2]{0}', space=sflag, size = 0x8, scoped, tag = 'scoped memory for tpu_custom_call.1']
    #allocation7 [shape = 's32[2]{0}', space=sflag, size = 0x8, scoped, tag = 'scoped memory for tpu_custom_call.1']
    #allocation8 [shape = 'u8[4096]{0}', space=vmem, size = 0x1000, scoped, tag = 'input window, operand 3, single buffered']
    #allocation9 [shape = 's32[1]{0}', space=sflag, size = 0x4, scoped, tag = 'scoped memory for tpu_custom_call.1']
    #allocation10 [shape = 'u8[4096]{0}', space=vmem, size = 0x1000, scoped, tag = 'input window, operand 4, single buffered']
    #allocation11 [shape = 'u8[32768]{0}', space=vmem, size = 0x8000, scoped, tag = 'input window, operand 5, single buffered']
    #allocation12 [shape = 's32[1]{0}', space=sflag, size = 0x4, scoped, tag = 'scoped memory for tpu_custom_call.1']
    #allocation13 [shape = 'u8[262144]{0}', space=vmem, size = 0x40000, scoped, tag = 'input window, operand 7, single buffered']
    #allocation14 [shape = 'u8[65536]{0}', space=vmem, size = 0x10000, scoped, tag = 'input window, operand 8, single buffered']
    #allocation15 [shape = 's32[1]{0}', space=sflag, size = 0x4, scoped, tag = 'scoped memory for tpu_custom_call.1']
    #allocation16 [shape = 'u8[65536]{0}', space=vmem, size = 0x10000, scoped, tag = 'output window, operand 0']
    %15 = vsyncpa [#allocation6], 0
    %s16 = scalar_lea.sflag [#allocation6], 1
    %17 = vsyncpa %s16, 0
    %18 = vsyncpa [#allocation9], 0
    %19 = vsyncpa [#allocation12], 0
    %20 = vsyncpa [#allocation15], 0
    %21 = vsyncpa [#allocation7], 0
    %s22 = scalar_lea.sflag [#allocation7], 1
    %23 = vsyncpa %s22, 0
    loop: start=0, step=1, limit=5
    $region2: #{tpu_custom_call.1} parent=1 // loop_pre_header
      _
    $region3: #{tpu_custom_call.1} parent=1 // loop_header
      %s25 = sphi 0, %s29
      %p26 = scmp.ge.s32.totalorder %s25, 5
      %s35 = sphi 0, %s37
      %s38 = sphi 0, %s35
      %s39 = sphi 0, %s38
      %s55 = sphi 0, %s39
      %s59 = sphi 0, %s59
      %s61 = sphi 0, %s59
      %s62 = sphi 0, %s61
      %s76 = sphi 0, %s62
      %s80 = sphi 0, %s80
      %s82 = sphi 0, %s80
      %s83 = sphi 0, %s82
      %s97 = sphi 0, %s83
      %s101 = sphi 0, %s101
      %s103 = sphi 0, %s101
      %s104 = sphi 0, %s103
      %s118 = sphi 0, %s104
      %s122 = sphi 0, %s122
      %s124 = sphi 0, %s122
      %s125 = sphi 0, %s124
      %s139 = sphi 0, %s125
      %s143 = sphi 0, %s143
      %s145 = sphi 0, %s143
      %s146 = sphi 0, %s145
      %s160 = sphi 0, %s146
      %s164 = sphi 0, %s164
      %s166 = sphi 0, %s164
      %s167 = sphi 0, %s166
      %s181 = sphi 0, %s167
      %s185 = sphi 0, %s185
      %s187 = sphi 0, %s185
      %s188 = sphi 0, %s187
      %s202 = sphi 0, %s188
      %s206 = sphi 0, %s206
      %s208 = sphi 0, %s206
      %s209 = sphi 0, %s208
      %s223 = sphi 0, %s209
      %s227 = sphi 0, %s227
      %s229 = sphi 0, %s227
      %s230 = sphi 0, %s229
      %s244 = sphi 0, %s230
      %s250 = sphi 0, %s252
      %s253 = sphi 0, %s250
      %s254 = sphi 0, %s253
      %s270 = sphi 0, %s254
    $region4: #{tpu_custom_call.1} parent=1 // loop_header_branch
      %28 = sbr.rel (%p26) target = $region8
    $region5: #{tpu_custom_call.1} parent=1 // loop_body
      %s30 = ssub.s32 %s25, 1
      %s31 = ssub.s32 %s25, 2
      %s32 = sadd.s32 %s25, 1
      %s33 = ssub.s32 %s25, %s32
      %p34 = scmp.eq.s32.totalorder %s33, 0
      %s36 = sadd.s32 %s35, 1
      %s37 = scalar_select %p34, %s35, %s36
      %p40 = pneg %p34
      %p41 = scmp.eq.s32.totalorder %s25, 2
      %p42 = por %p40, %p41
      %p43 = scmp.ne.s32.totalorder %s35, %s38
      %p44 = scmp.eq.s32.totalorder %s25, 0
      %p45 = por %p43, %p44
      %p46 = scmp.ne.s32.totalorder %s35, %s38
      %p47 = scmp.eq.s32.totalorder %s30, 2
      %p48 = por %p46, %p47
      %p49 = scmp.ne.s32.totalorder %s38, %s39
      %p50 = scmp.eq.s32.totalorder %s30, 0
      %p51 = por %p49, %p50
      %p52 = scmp.ne.s32.totalorder %s38, %s39
      %p53 = scmp.eq.s32.totalorder %s31, 2
      %p54 = por %p52, %p53
      %p56 = scmp.ne.s32.totalorder %s39, %s55
      %p57 = scmp.eq.s32.totalorder %s31, 0
      %p58 = por %p56, %p57
      %s60 = sadd.s32 %s59, 1
      %p63 = scmp.eq.s32.totalorder %s25, 2
      %p64 = scmp.ne.s32.totalorder %s59, %s61
      %p65 = scmp.eq.s32.totalorder %s25, 0
      %p66 = por %p64, %p65
      %p67 = scmp.ne.s32.totalorder %s59, %s61
      %p68 = scmp.eq.s32.totalorder %s30, 2
      %p69 = por %p67, %p68
      %p70 = scmp.ne.s32.totalorder %s61, %s62
      %p71 = scmp.eq.s32.totalorder %s30, 0
      %p72 = por %p70, %p71
      %p73 = scmp.ne.s32.totalorder %s61, %s62
      %p74 = scmp.eq.s32.totalorder %s31, 2
      %p75 = por %p73, %p74
      %p77 = scmp.ne.s32.totalorder %s62, %s76
      %p78 = scmp.eq.s32.totalorder %s31, 0
      %p79 = por %p77, %p78
      %s81 = sadd.s32 %s80, 1
      %p84 = scmp.eq.s32.totalorder %s25, 2
      %p85 = scmp.ne.s32.totalorder %s80, %s82
      %p86 = scmp.eq.s32.totalorder %s25, 0
      %p87 = por %p85, %p86
      %p88 = scmp.ne.s32.totalorder %s80, %s82
      %p89 = scmp.eq.s32.totalorder %s30, 2
      %p90 = por %p88, %p89
      %p91 = scmp.ne.s32.totalorder %s82, %s83
      %p92 = scmp.eq.s32.totalorder %s30, 0
      %p93 = por %p91, %p92
      %p94 = scmp.ne.s32.totalorder %s82, %s83
      %p95 = scmp.eq.s32.totalorder %s31, 2
      %p96 = por %p94, %p95
      %p98 = scmp.ne.s32.totalorder %s83, %s97
      %p99 = scmp.eq.s32.totalorder %s31, 0
      %p100 = por %p98, %p99
      %s102 = sadd.s32 %s101, 1
      %p105 = scmp.eq.s32.totalorder %s25, 2
      %p106 = scmp.ne.s32.totalorder %s101, %s103
      %p107 = scmp.eq.s32.totalorder %s25, 0
      %p108 = por %p106, %p107
      %p109 = scmp.ne.s32.totalorder %s101, %s103
      %p110 = scmp.eq.s32.totalorder %s30, 2
      %p111 = por %p109, %p110
      %p112 = scmp.ne.s32.totalorder %s103, %s104
      %p113 = scmp.eq.s32.totalorder %s30, 0
      %p114 = por %p112, %p113
      %p115 = scmp.ne.s32.totalorder %s103, %s104
      %p116 = scmp.eq.s32.totalorder %s31, 2
      %p117 = por %p115, %p116
      %p119 = scmp.ne.s32.totalorder %s104, %s118
      %p120 = scmp.eq.s32.totalorder %s31, 0
      %p121 = por %p119, %p120
      %s123 = sadd.s32 %s122, 1
      %p126 = scmp.eq.s32.totalorder %s25, 2
      %p127 = scmp.ne.s32.totalorder %s122, %s124
      %p128 = scmp.eq.s32.totalorder %s25, 0
      %p129 = por %p127, %p128
      %p130 = scmp.ne.s32.totalorder %s122, %s124
      %p131 = scmp.eq.s32.totalorder %s30, 2
      %p132 = por %p130, %p131
      %p133 = scmp.ne.s32.totalorder %s124, %s125
      %p134 = scmp.eq.s32.totalorder %s30, 0
      %p135 = por %p133, %p134
      %p136 = scmp.ne.s32.totalorder %s124, %s125
      %p137 = scmp.eq.s32.totalorder %s31, 2
      %p138 = por %p136, %p137
      %p140 = scmp.ne.s32.totalorder %s125, %s139
      %p141 = scmp.eq.s32.totalorder %s31, 0
      %p142 = por %p140, %p141
      %s144 = sadd.s32 %s143, 1
      %p147 = scmp.eq.s32.totalorder %s25, 2
      %p148 = scmp.ne.s32.totalorder %s143, %s145
      %p149 = scmp.eq.s32.totalorder %s25, 0
      %p150 = por %p148, %p149
      %p151 = scmp.ne.s32.totalorder %s143, %s145
      %p152 = scmp.eq.s32.totalorder %s30, 2
      %p153 = por %p151, %p152
      %p154 = scmp.ne.s32.totalorder %s145, %s146
      %p155 = scmp.eq.s32.totalorder %s30, 0
      %p156 = por %p154, %p155
      %p157 = scmp.ne.s32.totalorder %s145, %s146
      %p158 = scmp.eq.s32.totalorder %s31, 2
      %p159 = por %p157, %p158
      %p161 = scmp.ne.s32.totalorder %s146, %s160
      %p162 = scmp.eq.s32.totalorder %s31, 0
      %p163 = por %p161, %p162
      %s165 = sadd.s32 %s164, 1
      %p168 = scmp.eq.s32.totalorder %s25, 2
      %p169 = scmp.ne.s32.totalorder %s164, %s166
      %p170 = scmp.eq.s32.totalorder %s25, 0
      %p171 = por %p169, %p170
      %p172 = scmp.ne.s32.totalorder %s164, %s166
      %p173 = scmp.eq.s32.totalorder %s30, 2
      %p174 = por %p172, %p173
      %p175 = scmp.ne.s32.totalorder %s166, %s167
      %p176 = scmp.eq.s32.totalorder %s30, 0
      %p177 = por %p175, %p176
      %p178 = scmp.ne.s32.totalorder %s166, %s167
      %p179 = scmp.eq.s32.totalorder %s31, 2
      %p180 = por %p178, %p179
      %p182 = scmp.ne.s32.totalorder %s167, %s181
      %p183 = scmp.eq.s32.totalorder %s31, 0
      %p184 = por %p182, %p183
      %s186 = sadd.s32 %s185, 1
      %p189 = scmp.eq.s32.totalorder %s25, 2
      %p190 = scmp.ne.s32.totalorder %s185, %s187
      %p191 = scmp.eq.s32.totalorder %s25, 0
      %p192 = por %p190, %p191
      %p193 = scmp.ne.s32.totalorder %s185, %s187
      %p194 = scmp.eq.s32.totalorder %s30, 2
      %p195 = por %p193, %p194
      %p196 = scmp.ne.s32.totalorder %s187, %s188
      %p197 = scmp.eq.s32.totalorder %s30, 0
      %p198 = por %p196, %p197
      %p199 = scmp.ne.s32.totalorder %s187, %s188
      %p200 = scmp.eq.s32.totalorder %s31, 2
      %p201 = por %p199, %p200
      %p203 = scmp.ne.s32.totalorder %s188, %s202
      %p204 = scmp.eq.s32.totalorder %s31, 0
      %p205 = por %p203, %p204
      %s207 = sadd.s32 %s206, 1
      %p210 = scmp.eq.s32.totalorder %s25, 2
      %p211 = scmp.ne.s32.totalorder %s206, %s208
      %p212 = scmp.eq.s32.totalorder %s25, 0
      %p213 = por %p211, %p212
      %p214 = scmp.ne.s32.totalorder %s206, %s208
      %p215 = scmp.eq.s32.totalorder %s30, 2
      %p216 = por %p214, %p215
      %p217 = scmp.ne.s32.totalorder %s208, %s209
      %p218 = scmp.eq.s32.totalorder %s30, 0
      %p219 = por %p217, %p218
      %p220 = scmp.ne.s32.totalorder %s208, %s209
      %p221 = scmp.eq.s32.totalorder %s31, 2
      %p222 = por %p220, %p221
      %p224 = scmp.ne.s32.totalorder %s209, %s223
      %p225 = scmp.eq.s32.totalorder %s31, 0
      %p226 = por %p224, %p225
      %s228 = sadd.s32 %s227, 1
      %p231 = scmp.eq.s32.totalorder %s25, 2
      %p232 = scmp.ne.s32.totalorder %s227, %s229
      %p233 = scmp.eq.s32.totalorder %s25, 0
      %p234 = por %p232, %p233
      %p235 = scmp.ne.s32.totalorder %s227, %s229
      %p236 = scmp.eq.s32.totalorder %s30, 2
      %p237 = por %p235, %p236
      %p238 = scmp.ne.s32.totalorder %s229, %s230
      %p239 = scmp.eq.s32.totalorder %s30, 0
      %p240 = por %p238, %p239
      %p241 = scmp.ne.s32.totalorder %s229, %s230
      %p242 = scmp.eq.s32.totalorder %s31, 2
      %p243 = por %p241, %p242
      %p245 = scmp.ne.s32.totalorder %s230, %s244
      %p246 = scmp.eq.s32.totalorder %s31, 0
      %p247 = por %p245, %p246
      %s248 = ssub.s32 %s25, %s32
      %p249 = scmp.eq.s32.totalorder %s248, 0
      %s251 = sadd.s32 %s250, 1
      %s252 = scalar_select %p249, %s250, %s251
      %p255 = pneg %p249
      %p256 = scmp.eq.s32.totalorder %s25, 2
      %p257 = por %p255, %p256
      %p258 = scmp.ne.s32.totalorder %s250, %s253
      %p259 = scmp.eq.s32.totalorder %s25, 0
      %p260 = por %p258, %p259
      %p261 = scmp.ne.s32.totalorder %s250, %s253
      %p262 = scmp.eq.s32.totalorder %s30, 2
      %p263 = por %p261, %p262
      %p264 = scmp.ne.s32.totalorder %s253, %s254
      %p265 = scmp.eq.s32.totalorder %s30, 0
      %p266 = por %p264, %p265
      %p267 = scmp.ne.s32.totalorder %s253, %s254
      %p268 = scmp.eq.s32.totalorder %s31, 2
      %p269 = por %p267, %p268
      %p271 = scmp.ne.s32.totalorder %s254, %s270
      %p272 = scmp.eq.s32.totalorder %s31, 0
      %p273 = por %p271, %p272
      %p274 = scmp.le.s32.totalorder 1, %s25
      %p275 = scmp.lt.s32.totalorder %s25, 4
      %p276 = pnand %p274, %p275
      %p277 = pneg %p276
      // Predicated region
      $region9: #{tpu_custom_call.1} parent=5 // pred_check
        _
      $region10: #{tpu_custom_call.1} parent=5 // pred_check_branch
        %279 = sbr.rel (%p276) target = $region12
      $region11: #{tpu_custom_call.1} parent=5 // pred_region
        %s280 = ssub.s32 %s25, 1
        // Predicated region
        $region13: #{tpu_custom_call.1} parent=11 // pred_check
          %p281 = pneg %p72
        $region14: #{tpu_custom_call.1} parent=11 // pred_check_branch
          %283 = sbr.rel (%p281) target = $region16
        $region15: #{tpu_custom_call.1} parent=11 // pred_region
          _
        $region16: #{tpu_custom_call.1} parent=11 // pred_fallthru
          _
        // Predicated region
        $region17: #{tpu_custom_call.1} parent=11 // pred_check
          %p284 = pneg %p93
        $region18: #{tpu_custom_call.1} parent=11 // pred_check_branch
          %286 = sbr.rel (%p284) target = $region20
        $region19: #{tpu_custom_call.1} parent=11 // pred_region
          _
        $region20: #{tpu_custom_call.1} parent=11 // pred_fallthru
          _
        // Predicated region
        $region21: #{tpu_custom_call.1} parent=11 // pred_check
          %p287 = pneg %p114
        $region22: #{tpu_custom_call.1} parent=11 // pred_check_branch
          %289 = sbr.rel (%p287) target = $region24
        $region23: #{tpu_custom_call.1} parent=11 // pred_region
          %291 = vsyncadd [#allocation9], 0
          %s293 = sshll.u32 %s3, 4
          %s294 = int_to_ptr.hbm [resolvable:$true] %s293
          %s295 = sshll.u32 [#allocation8], 4
          %s296 = int_to_ptr.vmem [resolvable:$true] %s295
          %298 = dma.hbm_to_vmem [thread:$0]  %s294, 128, %s296, [#allocation9]
        $region24: #{tpu_custom_call.1} parent=11 // pred_fallthru
          _
        // Predicated region
        $region25: #{tpu_custom_call.1} parent=11 // pred_check
          %p299 = pneg %p135
        $region26: #{tpu_custom_call.1} parent=11 // pred_check_branch
          %301 = sbr.rel (%p299) target = $region28
        $region27: #{tpu_custom_call.1} parent=11 // pred_region
          %303 = vsyncadd [#allocation9], 0
          %s305 = sshll.u32 %s4, 4
          %s306 = int_to_ptr.hbm [resolvable:$true] %s305
          %s307 = sshll.u32 [#allocation10], 4
          %s308 = int_to_ptr.vmem [resolvable:$true] %s307
          %310 = dma.hbm_to_vmem [thread:$0]  %s306, 128, %s308, [#allocation9]
        $region28: #{tpu_custom_call.1} parent=11 // pred_fallthru
          _
        // Predicated region
        $region29: #{tpu_custom_call.1} parent=11 // pred_check
          %p311 = pneg %p156
        $region30: #{tpu_custom_call.1} parent=11 // pred_check_branch
          %313 = sbr.rel (%p311) target = $region32
        $region31: #{tpu_custom_call.1} parent=11 // pred_region
          %315 = vsyncadd [#allocation12], 0
          %s316 = sshll.u32 %s5, 4
          %s317 = int_to_ptr.hbm [resolvable:$true] %s316
          %s318 = sshll.u32 [#allocation11], 4
          %s319 = int_to_ptr.vmem [resolvable:$true] %s318
          %324 = dma.hbm_to_vmem [thread:$0]  %s317, 1024, %s319, [#allocation12], 64, 64, 4
        $region32: #{tpu_custom_call.1} parent=11 // pred_fallthru
          _
        // Predicated region
        $region33: #{tpu_custom_call.1} parent=11 // pred_check
          %p325 = pneg %p177
        $region34: #{tpu_custom_call.1} parent=11 // pred_check_branch
          %327 = sbr.rel (%p325) target = $region36
        $region35: #{tpu_custom_call.1} parent=11 // pred_region
          _
        $region36: #{tpu_custom_call.1} parent=11 // pred_fallthru
          _
        // Predicated region
        $region37: #{tpu_custom_call.1} parent=11 // pred_check
          %p328 = pneg %p198
        $region38: #{tpu_custom_call.1} parent=11 // pred_check_branch
          %330 = sbr.rel (%p328) target = $region40
        $region39: #{tpu_custom_call.1} parent=11 // pred_region
          %332 = vsyncadd [#allocation12], 0
          %s333 = sshll.u32 %s7, 4
          %s334 = int_to_ptr.hbm [resolvable:$true] %s333
          %s335 = sshll.u32 [#allocation13], 4
          %s336 = int_to_ptr.vmem [resolvable:$true] %s335
          %341 = dma.hbm_to_vmem [thread:$0]  %s334, 8192, %s336, [#allocation12], 256, 256, 16
        $region40: #{tpu_custom_call.1} parent=11 // pred_fallthru
          _
        // Predicated region
        $region41: #{tpu_custom_call.1} parent=11 // pred_check
          %p342 = pneg %p219
        $region42: #{tpu_custom_call.1} parent=11 // pred_check_branch
          %344 = sbr.rel (%p342) target = $region44
        $region43: #{tpu_custom_call.1} parent=11 // pred_region
          %346 = vsyncadd [#allocation15], 0
          %s347 = sshll.u32 %s8, 4
          %s348 = int_to_ptr.hbm [resolvable:$true] %s347
          %s349 = sshll.u32 [#allocation14], 4
          %s350 = int_to_ptr.vmem [resolvable:$true] %s349
          %355 = dma.hbm_to_vmem [thread:$0]  %s348, 2048, %s350, [#allocation15], 128, 128, 8
        $region44: #{tpu_custom_call.1} parent=11 // pred_fallthru
          _
        // Predicated region
        $region45: #{tpu_custom_call.1} parent=11 // pred_check
          %p356 = pneg %p240
        $region46: #{tpu_custom_call.1} parent=11 // pred_check_branch
          %358 = sbr.rel (%p356) target = $region48
        $region47: #{tpu_custom_call.1} parent=11 // pred_region
          _
        $region48: #{tpu_custom_call.1} parent=11 // pred_fallthru
          _
      $region12: #{tpu_custom_call.1} parent=5 // pred_fallthru
        _
      %p359 = scmp.lt.s32.totalorder %s25, 3
      // Predicated region
      $region49: #{tpu_custom_call.1} parent=5 // pred_check
        %p360 = pneg %p359
      $region50: #{tpu_custom_call.1} parent=5 // pred_check_branch
        %362 = sbr.rel (%p360) target = $region52
      $region51: #{tpu_custom_call.1} parent=5 // pred_region
        // Predicated region
        $region53: #{tpu_custom_call.1} parent=51 // pred_check
          %p363 = pneg %p45
        $region54: #{tpu_custom_call.1} parent=51 // pred_check_branch
          %365 = sbr.rel (%p363) target = $region56
        $region55: #{tpu_custom_call.1} parent=51 // pred_region
          %s366 = sand.u32 %s35, 1
          %s367 = scalar_lea.sflag [#allocation6], %s366
          %s368 = sand.u32 %s35, 1
          %s369 = smul.addr %s368, 128
          %s370 = scalar_lea.vmem [#allocation5], %s369
          %s371 = smul.u32 4, %s25
          %373 = vsyncadd %s367, 0
          %s374 = smul.addr %s371, 4
          %s375 = smul.addr %s374, 8
          %s376 = scalar_lea.hbm %s0, %s375
          %s377 = sshll.u32 %s376, 4
          %s378 = int_to_ptr.hbm [resolvable:$true] %s377
          %s379 = sshll.u32 %s370, 4
          %s380 = int_to_ptr.vmem [resolvable:$true] %s379
          %385 = dma.hbm_to_vmem [thread:$0]  %s378, 2048, %s380, %s367, 512, 512, 32
        $region56: #{tpu_custom_call.1} parent=51 // pred_fallthru
          _
      $region52: #{tpu_custom_call.1} parent=5 // pred_fallthru
        _
      %p386 = scmp.le.s32.totalorder 1, %s25
      %p387 = scmp.lt.s32.totalorder %s25, 4
      %p388 = pnand %p386, %p387
      %p389 = pneg %p388
      // Predicated region
      $region57: #{tpu_custom_call.1} parent=5 // pred_check
        _
      $region58: #{tpu_custom_call.1} parent=5 // pred_check_branch
        %391 = sbr.rel (%p388) target = $region60
      $region59: #{tpu_custom_call.1} parent=5 // pred_region
        %s392 = ssub.s32 %s25, 1
        %s393 = sand.u32 %s38, 1
        %s394 = scalar_lea.sflag [#allocation6], %s393
        %s395 = sand.u32 %s38, 1
        %s396 = smul.addr %s395, 128
        %s397 = scalar_lea.vmem [#allocation5], %s396
        // Predicated region
        $region61: #{tpu_custom_call.1} parent=59 // pred_check
          %p398 = pneg %p51
        $region62: #{tpu_custom_call.1} parent=59 // pred_check_branch
          %400 = sbr.rel (%p398) target = $region64
        $region63: #{tpu_custom_call.1} parent=59 // pred_region
          %402 = dma.done %s394, 2048
        $region64: #{tpu_custom_call.1} parent=59 // pred_fallthru
          _
        // Predicated region
        $region65: #{tpu_custom_call.1} parent=59 // pred_check
          %p403 = pneg %p114
        $region66: #{tpu_custom_call.1} parent=59 // pred_check_branch
          %405 = sbr.rel (%p403) target = $region68
        $region67: #{tpu_custom_call.1} parent=59 // pred_region
          %407 = dma.done [#allocation9], 128
        $region68: #{tpu_custom_call.1} parent=59 // pred_fallthru
          _
        // Predicated region
        $region69: #{tpu_custom_call.1} parent=59 // pred_check
          %p408 = pneg %p135
        $region70: #{tpu_custom_call.1} parent=59 // pred_check_branch
          %410 = sbr.rel (%p408) target = $region72
        $region71: #{tpu_custom_call.1} parent=59 // pred_region
          %412 = dma.done [#allocation9], 128
        $region72: #{tpu_custom_call.1} parent=59 // pred_fallthru
          _
        // Predicated region
        $region73: #{tpu_custom_call.1} parent=59 // pred_check
          %p413 = pneg %p156
        $region74: #{tpu_custom_call.1} parent=59 // pred_check_branch
          %415 = sbr.rel (%p413) target = $region76
        $region75: #{tpu_custom_call.1} parent=59 // pred_region
          %417 = dma.done [#allocation12], 1024
        $region76: #{tpu_custom_call.1} parent=59 // pred_fallthru
          _
        // Predicated region
        $region77: #{tpu_custom_call.1} parent=59 // pred_check
          %p418 = pneg %p198
        $region78: #{tpu_custom_call.1} parent=59 // pred_check_branch
          %420 = sbr.rel (%p418) target = $region80
        $region79: #{tpu_custom_call.1} parent=59 // pred_region
          %422 = dma.done [#allocation12], 8192
        $region80: #{tpu_custom_call.1} parent=59 // pred_fallthru
          _
        // Predicated region
        $region81: #{tpu_custom_call.1} parent=59 // pred_check
          %p423 = pneg %p219
        $region82: #{tpu_custom_call.1} parent=59 // pred_check_branch
          %425 = sbr.rel (%p423) target = $region84
        $region83: #{tpu_custom_call.1} parent=59 // pred_region
          %427 = dma.done [#allocation15], 2048
        $region84: #{tpu_custom_call.1} parent=59 // pred_fallthru
          _
        %s428 = sand.u32 %s38, 1
        %s429 = scalar_lea.sflag [#allocation6], %s428
        %s430 = sand.u32 %s38, 1
        %s431 = smul.addr %s430, 128
        %s432 = scalar_lea.vmem [#allocation5], %s431
        %p433 = pneg %p51
        %p434 = pneg %p48
        %p435 = pneg %p72
        %p436 = pneg %p69
        %p437 = pneg %p93
        %p438 = pneg %p90
        %p439 = pneg %p114
        %p440 = pneg %p111
        %p441 = pneg %p135
        %p442 = pneg %p132
        %p443 = pneg %p156
        %p444 = pneg %p153
        %p445 = pneg %p177
        %p446 = pneg %p174
        %p447 = pneg %p198
        %p448 = pneg %p195
        %p449 = pneg %p219
        %p450 = pneg %p216
        %p451 = pneg %p240
        %p452 = pneg %p237
        %p453 = pneg %p266
        %p454 = pneg %p263
        %s455 = sand.u32 %s253, 1
        %s456 = scalar_lea.sflag [#allocation7], %s455
        %s457 = sand.u32 %s253, 1
        %s458 = smul.addr %s457, 64
        %s459 = scalar_lea.vmem [#allocation16], %s458
        %s460 = smul.u32 4, %s30
        %s461 = smul.u32 4, %s30
        %p462 = scmp.eq.s32.totalorder %s30, 0
        // Predicated region
        $region85: #{tpu_custom_call.1} parent=59 // pred_check
          %p463 = pneg %p462
        $region86: #{tpu_custom_call.1} parent=59 // pred_check_branch
          %465 = sbr.rel (%p463) target = $region88
        $region87: #{tpu_custom_call.1} parent=59 // pred_region
          %v466 = vld [vmem:[#allocation8] sm:$0xff]
          %467 = vst [vmem:[#allocation2] sm:$0xff] %v466
          %v468 = vld [vmem:[#allocation10] sm:$0xff]
          %469 = vst [vmem:[#allocation3] sm:$0xff] %v468
        $region88: #{tpu_custom_call.1} parent=59 // pred_fallthru
          _
        %v470 = vld [vmem:[%s1] sm:$0xff]
        %v471 = vld [vmem:[%s2] sm:$0xff]
        %s472 = smul.u32 %s30, 4
        %v473 = vstv %s472
        %vm474 = vcmp.gt.s32.totalorder %v471, %v473
        %v475 = vld [vmem:[#allocation2] sm:$0xff]
        %v476 = vld [vmem:[#allocation3] sm:$0xff]
        %v477 = vpack.c.bf16 %v475, %v475
        %v478 = vld [vmem:[#allocation11] sm:$0xf]
        %v479 = vld [vmem:[#allocation11 + $0x4] sm:$0xf]
        %v480 = vld [vmem:[#allocation11 + $0x8] sm:$0xf]
        %v481 = vld [vmem:[#allocation11 + $0xc] sm:$0xf]
        %v482 = vld [vmem:[#allocation11 + $0x10] sm:$0xf]
        %v483 = vld [vmem:[#allocation11 + $0x14] sm:$0xf]
        %v484 = vld [vmem:[#allocation11 + $0x18] sm:$0xf]
        %v485 = vld [vmem:[#allocation11 + $0x1c] sm:$0xf]
        %v486 = vld [vmem:[#allocation11 + $0x20] sm:$0xf]
        %v487 = vld [vmem:[#allocation11 + $0x24] sm:$0xf]
        %v488 = vld [vmem:[#allocation11 + $0x28] sm:$0xf]
        %v489 = vld [vmem:[#allocation11 + $0x2c] sm:$0xf]
        %v490 = vld [vmem:[#allocation11 + $0x30] sm:$0xf]
        %v491 = vld [vmem:[#allocation11 + $0x34] sm:$0xf]
        %v492 = vld [vmem:[#allocation11 + $0x38] sm:$0xf]
        %v493 = vld [vmem:[#allocation11 + $0x3c] sm:$0xf]
        %v494 = vld [vmem:[%s6] sm:$0x1]
        %v496 = vperm.slane %v494, 0
        %v514 = vunpack.c.l.b16 %v478
        %v515 = vunpack.c.l.b16 %v479
        %v516 = vunpack.c.l.b16 %v480
        %v517 = vunpack.c.l.b16 %v481
        %v518 = vunpack.c.l.b16 %v482
        %v519 = vunpack.c.l.b16 %v483
        %v520 = vunpack.c.l.b16 %v484
        %v521 = vunpack.c.l.b16 %v485
        %v522 = vunpack.c.l.b16 %v486
        %v523 = vunpack.c.l.b16 %v487
        %v524 = vunpack.c.l.b16 %v488
        %v525 = vunpack.c.l.b16 %v489
        %v526 = vunpack.c.l.b16 %v490
        %v527 = vunpack.c.l.b16 %v491
        %v528 = vunpack.c.l.b16 %v492
        %v529 = vunpack.c.l.b16 %v493
        %v530 = vpack.c.b16 %v515, %v514
        %v531 = vpack.c.b16 %v517, %v516
        %v532 = vpack.c.b16 %v519, %v518
        %v533 = vpack.c.b16 %v521, %v520
        %v534 = vpack.c.b16 %v523, %v522
        %v535 = vpack.c.b16 %v525, %v524
        %v536 = vpack.c.b16 %v527, %v526
        %v537 = vpack.c.b16 %v529, %v528
        %546 = vmatpush.bf16.msra.mxu0 %v537
        %547 = vmatpush.bf16.msra.mxu0 %v536
        %548 = vmatpush.bf16.msra.mxu0 %v535
        %549 = vmatpush.bf16.msra.mxu0 %v534
        %550 = vmatpush.bf16.msra.mxu0 %v533
        %551 = vmatpush.bf16.msra.mxu0 %v532
        %552 = vmatpush.bf16.msra.mxu0 %v531
        %553 = vmatpush.bf16.msra.mxu0 %v530
        %554 = vmatmul.bf16.gmra.mxu0 %v477
        %v555 = vpop.f32.mrf.mxu0
        %v556 = vadd.f32 %v496, %v555
        %v557 = vpop.f32.mrf.mxu0
        %558 = vdwg.mxu0
        %v559 = vxor.u32 %v556, 2147483648
        %v560 = vmul.f32 %v559, 1.442695
        %v561 = vpow.pop %v560
        %v562 = vadd.f32 %v561, 1.0
        %v563 = vrcp.pop %v562
        %v564 = vmul.f32 %v562, %v563
        %v565 = vsub.f32 1.0, %v564
        %v566 = vmul.f32 %v563, %v565
        %v567 = vadd.f32 %v563, %v566
        %vm568 = vweird.f32 %v562
        %vm569 = vweird.f32 %v563
        %vm570 = vmor %vm568, %vm569
        %v571 = vsel %vm570, %v563, %v567
        %v572 = vand.u32 2147483647, %v562
        %vm573 = vcmp.eq.f32.partialorder %v572, 8.507059e+37
        %v574 = vand.u32 %v562, 2147483648
        %v575 = vor.u32 1.1754944e-38, %v574
        %v576 = vsel %vm573, %v575, %v571
        %v577 = vmul.f32 1.0, %v576
        %v578 = vmul.f32 %v577, %v470
        %v579 = vpack.c.bf16 %v578, %v578
        %v580 = vld [vmem:[%s397] sm:$0xff]
        %v581 = vld [vmem:[%s397 + $0x8] sm:$0xff]
        %v582 = vld [vmem:[%s397 + $0x10] sm:$0xff]
        %v583 = vld [vmem:[%s397 + $0x18] sm:$0xff]
        %v584 = vld [vmem:[#allocation13] sm:$0xff]
        %v585 = vld [vmem:[#allocation13 + $0x8] sm:$0xff]
        %v586 = vld [vmem:[#allocation13 + $0x10] sm:$0xff]
        %v587 = vld [vmem:[#allocation13 + $0x18] sm:$0xff]
        %v588 = vld [vmem:[#allocation13 + $0x20] sm:$0xff]
        %v589 = vld [vmem:[#allocation13 + $0x28] sm:$0xff]
        %v590 = vld [vmem:[#allocation13 + $0x30] sm:$0xff]
        %v591 = vld [vmem:[#allocation13 + $0x38] sm:$0xff]
        %v592 = vld [vmem:[#allocation13 + $0x40] sm:$0xff]
        %v593 = vld [vmem:[#allocation13 + $0x48] sm:$0xff]
        %v594 = vld [vmem:[#allocation13 + $0x50] sm:$0xff]
        %v595 = vld [vmem:[#allocation13 + $0x58] sm:$0xff]
        %v596 = vld [vmem:[#allocation13 + $0x60] sm:$0xff]
        %v597 = vld [vmem:[#allocation13 + $0x68] sm:$0xff]
        %v598 = vld [vmem:[#allocation13 + $0x70] sm:$0xff]
        %v599 = vld [vmem:[#allocation13 + $0x78] sm:$0xff]
        %v600 = vld [vmem:[#allocation13 + $0x80] sm:$0xff]
        %v601 = vld [vmem:[#allocation13 + $0x88] sm:$0xff]
        %v602 = vld [vmem:[#allocation13 + $0x90] sm:$0xff]
        %v603 = vld [vmem:[#allocation13 + $0x98] sm:$0xff]
        %v604 = vld [vmem:[#allocation13 + $0xa0] sm:$0xff]
        %v605 = vld [vmem:[#allocation13 + $0xa8] sm:$0xff]
        %v606 = vld [vmem:[#allocation13 + $0xb0] sm:$0xff]
        %v607 = vld [vmem:[#allocation13 + $0xb8] sm:$0xff]
        %v608 = vld [vmem:[#allocation13 + $0xc0] sm:$0xff]
        %v609 = vld [vmem:[#allocation13 + $0xc8] sm:$0xff]
        %v610 = vld [vmem:[#allocation13 + $0xd0] sm:$0xff]
        %v611 = vld [vmem:[#allocation13 + $0xd8] sm:$0xff]
        %v612 = vld [vmem:[#allocation13 + $0xe0] sm:$0xff]
        %v613 = vld [vmem:[#allocation13 + $0xe8] sm:$0xff]
        %v614 = vld [vmem:[#allocation13 + $0xf0] sm:$0xff]
        %v615 = vld [vmem:[#allocation13 + $0xf8] sm:$0xff]
        %v616 = vld [vmem:[#allocation13 + $0x100] sm:$0xff]
        %v617 = vld [vmem:[#allocation13 + $0x108] sm:$0xff]
        %v618 = vld [vmem:[#allocation13 + $0x110] sm:$0xff]
        %v619 = vld [vmem:[#allocation13 + $0x118] sm:$0xff]
        %v620 = vld [vmem:[#allocation13 + $0x120] sm:$0xff]
        %v621 = vld [vmem:[#allocation13 + $0x128] sm:$0xff]
        %v622 = vld [vmem:[#allocation13 + $0x130] sm:$0xff]
        %v623 = vld [vmem:[#allocation13 + $0x138] sm:$0xff]
        %v624 = vld [vmem:[#allocation13 + $0x140] sm:$0xff]
        %v625 = vld [vmem:[#allocation13 + $0x148] sm:$0xff]
        %v626 = vld [vmem:[#allocation13 + $0x150] sm:$0xff]
        %v627 = vld [vmem:[#allocation13 + $0x158] sm:$0xff]
        %v628 = vld [vmem:[#allocation13 + $0x160] sm:$0xff]
        %v629 = vld [vmem:[#allocation13 + $0x168] sm:$0xff]
        %v630 = vld [vmem:[#allocation13 + $0x170] sm:$0xff]
        %v631 = vld [vmem:[#allocation13 + $0x178] sm:$0xff]
        %v632 = vld [vmem:[#allocation13 + $0x180] sm:$0xff]
        %v633 = vld [vmem:[#allocation13 + $0x188] sm:$0xff]
        %v634 = vld [vmem:[#allocation13 + $0x190] sm:$0xff]
        %v635 = vld [vmem:[#allocation13 + $0x198] sm:$0xff]
        %v636 = vld [vmem:[#allocation13 + $0x1a0] sm:$0xff]
        %v637 = vld [vmem:[#allocation13 + $0x1a8] sm:$0xff]
        %v638 = vld [vmem:[#allocation13 + $0x1b0] sm:$0xff]
        %v639 = vld [vmem:[#allocation13 + $0x1b8] sm:$0xff]
        %v640 = vld [vmem:[#allocation13 + $0x1c0] sm:$0xff]
        %v641 = vld [vmem:[#allocation13 + $0x1c8] sm:$0xff]
        %v642 = vld [vmem:[#allocation13 + $0x1d0] sm:$0xff]
        %v643 = vld [vmem:[#allocation13 + $0x1d8] sm:$0xff]
        %v644 = vld [vmem:[#allocation13 + $0x1e0] sm:$0xff]
        %v645 = vld [vmem:[#allocation13 + $0x1e8] sm:$0xff]
        %v646 = vld [vmem:[#allocation13 + $0x1f0] sm:$0xff]
        %v647 = vld [vmem:[#allocation13 + $0x1f8] sm:$0xff]
        %v712 = vunpack.c.l.b16 %v584
        %v713 = vunpack.c.h.b16 %v584
        %v714 = vunpack.c.l.b16 %v585
        %v715 = vunpack.c.h.b16 %v585
        %v716 = vunpack.c.l.b16 %v586
        %v717 = vunpack.c.h.b16 %v586
        %v718 = vunpack.c.l.b16 %v587
        %v719 = vunpack.c.h.b16 %v587
        %v720 = vunpack.c.l.b16 %v588
        %v721 = vunpack.c.h.b16 %v588
        %v722 = vunpack.c.l.b16 %v589
        %v723 = vunpack.c.h.b16 %v589
        %v724 = vunpack.c.l.b16 %v590
        %v725 = vunpack.c.h.b16 %v590
        %v726 = vunpack.c.l.b16 %v591
        %v727 = vunpack.c.h.b16 %v591
        %v728 = vunpack.c.l.b16 %v592
        %v729 = vunpack.c.h.b16 %v592
        %v730 = vunpack.c.l.b16 %v593
        %v731 = vunpack.c.h.b16 %v593
        %v732 = vunpack.c.l.b16 %v594
        %v733 = vunpack.c.h.b16 %v594
        %v734 = vunpack.c.l.b16 %v595
        %v735 = vunpack.c.h.b16 %v595
        %v736 = vunpack.c.l.b16 %v596
        %v737 = vunpack.c.h.b16 %v596
        %v738 = vunpack.c.l.b16 %v597
        %v739 = vunpack.c.h.b16 %v597
        %v740 = vunpack.c.l.b16 %v598
        %v741 = vunpack.c.h.b16 %v598
        %v742 = vunpack.c.l.b16 %v599
        %v743 = vunpack.c.h.b16 %v599
        %v744 = vunpack.c.l.b16 %v600
        %v745 = vunpack.c.h.b16 %v600
        %v746 = vunpack.c.l.b16 %v601
        %v747 = vunpack.c.h.b16 %v601
        %v748 = vunpack.c.l.b16 %v602
        %v749 = vunpack.c.h.b16 %v602
        %v750 = vunpack.c.l.b16 %v603
        %v751 = vunpack.c.h.b16 %v603
        %v752 = vunpack.c.l.b16 %v604
        %v753 = vunpack.c.h.b16 %v604
        %v754 = vunpack.c.l.b16 %v605
        %v755 = vunpack.c.h.b16 %v605
        %v756 = vunpack.c.l.b16 %v606
        %v757 = vunpack.c.h.b16 %v606
        %v758 = vunpack.c.l.b16 %v607
        %v759 = vunpack.c.h.b16 %v607
        %v760 = vunpack.c.l.b16 %v608
        %v761 = vunpack.c.h.b16 %v608
        %v762 = vunpack.c.l.b16 %v609
        %v763 = vunpack.c.h.b16 %v609
        %v764 = vunpack.c.l.b16 %v610
        %v765 = vunpack.c.h.b16 %v610
        %v766 = vunpack.c.l.b16 %v611
        %v767 = vunpack.c.h.b16 %v611
        %v768 = vunpack.c.l.b16 %v612
        %v769 = vunpack.c.h.b16 %v612
        %v770 = vunpack.c.l.b16 %v613
        %v771 = vunpack.c.h.b16 %v613
        %v772 = vunpack.c.l.b16 %v614
        %v773 = vunpack.c.h.b16 %v614
        %v774 = vunpack.c.l.b16 %v615
        %v775 = vunpack.c.h.b16 %v615
        %v776 = vunpack.c.l.b16 %v616
        %v777 = vunpack.c.h.b16 %v616
        %v778 = vunpack.c.l.b16 %v617
        %v779 = vunpack.c.h.b16 %v617
        %v780 = vunpack.c.l.b16 %v618
        %v781 = vunpack.c.h.b16 %v618
        %v782 = vunpack.c.l.b16 %v619
        %v783 = vunpack.c.h.b16 %v619
        %v784 = vunpack.c.l.b16 %v620
        %v785 = vunpack.c.h.b16 %v620
        %v786 = vunpack.c.l.b16 %v621
        %v787 = vunpack.c.h.b16 %v621
        %v788 = vunpack.c.l.b16 %v622
        %v789 = vunpack.c.h.b16 %v622
        %v790 = vunpack.c.l.b16 %v623
        %v791 = vunpack.c.h.b16 %v623
        %v792 = vunpack.c.l.b16 %v624
        %v793 = vunpack.c.h.b16 %v624
        %v794 = vunpack.c.l.b16 %v625
        %v795 = vunpack.c.h.b16 %v625
        %v796 = vunpack.c.l.b16 %v626
        %v797 = vunpack.c.h.b16 %v626
        %v798 = vunpack.c.l.b16 %v627
        %v799 = vunpack.c.h.b16 %v627
        %v800 = vunpack.c.l.b16 %v628
        %v801 = vunpack.c.h.b16 %v628
        %v802 = vunpack.c.l.b16 %v629
        %v803 = vunpack.c.h.b16 %v629
        %v804 = vunpack.c.l.b16 %v630
        %v805 = vunpack.c.h.b16 %v630
        %v806 = vunpack.c.l.b16 %v631
        %v807 = vunpack.c.h.b16 %v631
        %v808 = vunpack.c.l.b16 %v632
        %v809 = vunpack.c.h.b16 %v632
        %v810 = vunpack.c.l.b16 %v633
        %v811 = vunpack.c.h.b16 %v633
        %v812 = vunpack.c.l.b16 %v634
        %v813 = vunpack.c.h.b16 %v634
        %v814 = vunpack.c.l.b16 %v635
        %v815 = vunpack.c.h.b16 %v635
        %v816 = vunpack.c.l.b16 %v636
        %v817 = vunpack.c.h.b16 %v636
        %v818 = vunpack.c.l.b16 %v637
        %v819 = vunpack.c.h.b16 %v637
        %v820 = vunpack.c.l.b16 %v638
        %v821 = vunpack.c.h.b16 %v638
        %v822 = vunpack.c.l.b16 %v639
        %v823 = vunpack.c.h.b16 %v639
        %v824 = vunpack.c.l.b16 %v640
        %v825 = vunpack.c.h.b16 %v640
        %v826 = vunpack.c.l.b16 %v641
        %v827 = vunpack.c.h.b16 %v641
        %v828 = vunpack.c.l.b16 %v642
        %v829 = vunpack.c.h.b16 %v642
        %v830 = vunpack.c.l.b16 %v643
        %v831 = vunpack.c.h.b16 %v643
        %v832 = vunpack.c.l.b16 %v644
        %v833 = vunpack.c.h.b16 %v644
        %v834 = vunpack.c.l.b16 %v645
        %v835 = vunpack.c.h.b16 %v645
        %v836 = vunpack.c.l.b16 %v646
        %v837 = vunpack.c.h.b16 %v646
        %v838 = vunpack.c.l.b16 %v647
        %v839 = vunpack.c.h.b16 %v647
        %v840 = vpack.c.b16 %v716, %v712
        %v841 = vpack.c.b16 %v717, %v713
        %v842 = vpack.c.b16 %v718, %v714
        %v843 = vpack.c.b16 %v719, %v715
        %v844 = vpack.c.b16 %v724, %v720
        %v845 = vpack.c.b16 %v725, %v721
        %v846 = vpack.c.b16 %v726, %v722
        %v847 = vpack.c.b16 %v727, %v723
        %v848 = vpack.c.b16 %v732, %v728
        %v849 = vpack.c.b16 %v733, %v729
        %v850 = vpack.c.b16 %v734, %v730
        %v851 = vpack.c.b16 %v735, %v731
        %v852 = vpack.c.b16 %v740, %v736
        %v853 = vpack.c.b16 %v741, %v737
        %v854 = vpack.c.b16 %v742, %v738
        %v855 = vpack.c.b16 %v743, %v739
        %v856 = vpack.c.b16 %v748, %v744
        %v857 = vpack.c.b16 %v749, %v745
        %v858 = vpack.c.b16 %v750, %v746
        %v859 = vpack.c.b16 %v751, %v747
        %v860 = vpack.c.b16 %v756, %v752
        %v861 = vpack.c.b16 %v757, %v753
        %v862 = vpack.c.b16 %v758, %v754
        %v863 = vpack.c.b16 %v759, %v755
        %v864 = vpack.c.b16 %v764, %v760
        %v865 = vpack.c.b16 %v765, %v761
        %v866 = vpack.c.b16 %v766, %v762
        %v867 = vpack.c.b16 %v767, %v763
        %v868 = vpack.c.b16 %v772, %v768
        %v869 = vpack.c.b16 %v773, %v769
        %v870 = vpack.c.b16 %v774, %v770
        %v871 = vpack.c.b16 %v775, %v771
        %v872 = vpack.c.b16 %v780, %v776
        %v873 = vpack.c.b16 %v781, %v777
        %v874 = vpack.c.b16 %v782, %v778
        %v875 = vpack.c.b16 %v783, %v779
        %v876 = vpack.c.b16 %v788, %v784
        %v877 = vpack.c.b16 %v789, %v785
        %v878 = vpack.c.b16 %v790, %v786
        %v879 = vpack.c.b16 %v791, %v787
        %v880 = vpack.c.b16 %v796, %v792
        %v881 = vpack.c.b16 %v797, %v793
        %v882 = vpack.c.b16 %v798, %v794
        %v883 = vpack.c.b16 %v799, %v795
        %v884 = vpack.c.b16 %v804, %v800
        %v885 = vpack.c.b16 %v805, %v801
        %v886 = vpack.c.b16 %v806, %v802
        %v887 = vpack.c.b16 %v807, %v803
        %v888 = vpack.c.b16 %v812, %v808
        %v889 = vpack.c.b16 %v813, %v809
        %v890 = vpack.c.b16 %v814, %v810
        %v891 = vpack.c.b16 %v815, %v811
        %v892 = vpack.c.b16 %v820, %v816
        %v893 = vpack.c.b16 %v821, %v817
        %v894 = vpack.c.b16 %v822, %v818
        %v895 = vpack.c.b16 %v823, %v819
        %v896 = vpack.c.b16 %v828, %v824
        %v897 = vpack.c.b16 %v829, %v825
        %v898 = vpack.c.b16 %v830, %v826
        %v899 = vpack.c.b16 %v831, %v827
        %v900 = vpack.c.b16 %v836, %v832
        %v901 = vpack.c.b16 %v837, %v833
        %v902 = vpack.c.b16 %v838, %v834
        %v903 = vpack.c.b16 %v839, %v835
        %968 = vmatpush.bf16.msra.mxu0 %v868
        %969 = vmatpush.bf16.msra.mxu0 %v864
        %970 = vmatpush.bf16.msra.mxu0 %v860
        %971 = vmatpush.bf16.msra.mxu0 %v856
        %972 = vmatpush.bf16.msra.mxu0 %v852
        %973 = vmatpush.bf16.msra.mxu0 %v848
        %974 = vmatpush.bf16.msra.mxu0 %v844
        %975 = vmatpush.bf16.msra.mxu0 %v840
        %976 = vmatmul.bf16.gmra.mxu0 %v579
        %v977 = vpop.f32.mrf.mxu0
        %v978 = vadd.f32 0.0, %v977
        %v979 = vpop.f32.mrf.mxu0
        %980 = vdwg.mxu0
        %981 = vmatpush.bf16.msra.mxu0 %v900
        %982 = vmatpush.bf16.msra.mxu0 %v896
        %983 = vmatpush.bf16.msra.mxu0 %v892
        %984 = vmatpush.bf16.msra.mxu0 %v888
        %985 = vmatpush.bf16.msra.mxu0 %v884
        %986 = vmatpush.bf16.msra.mxu0 %v880
        %987 = vmatpush.bf16.msra.mxu0 %v876
        %988 = vmatpush.bf16.msra.mxu0 %v872
        %989 = vmatmul.bf16.gmra.mxu0 %v477
        %v990 = vpop.f32.mrf.mxu0
        %v991 = vadd.f32 %v978, %v990
        %v992 = vpop.f32.mrf.mxu0
        %993 = vdwg.mxu0
        %994 = vmatpush.bf16.msra.mxu0 %v869
        %995 = vmatpush.bf16.msra.mxu0 %v865
        %996 = vmatpush.bf16.msra.mxu0 %v861
        %997 = vmatpush.bf16.msra.mxu0 %v857
        %998 = vmatpush.bf16.msra.mxu0 %v853
        %999 = vmatpush.bf16.msra.mxu0 %v849
        %1000 = vmatpush.bf16.msra.mxu0 %v845
        %1001 = vmatpush.bf16.msra.mxu0 %v841
        %1002 = vmatmul.bf16.gmra.mxu0 %v579
        %v1003 = vpop.f32.mrf.mxu0
        %v1004 = vadd.f32 0.0, %v1003
        %v1005 = vpop.f32.mrf.mxu0
        %1006 = vdwg.mxu0
        %1007 = vmatpush.bf16.msra.mxu0 %v901
        %1008 = vmatpush.bf16.msra.mxu0 %v897
        %1009 = vmatpush.bf16.msra.mxu0 %v893
        %1010 = vmatpush.bf16.msra.mxu0 %v889
        %1011 = vmatpush.bf16.msra.mxu0 %v885
        %1012 = vmatpush.bf16.msra.mxu0 %v881
        %1013 = vmatpush.bf16.msra.mxu0 %v877
        %1014 = vmatpush.bf16.msra.mxu0 %v873
        %1015 = vmatmul.bf16.gmra.mxu0 %v477
        %v1016 = vpop.f32.mrf.mxu0
        %v1017 = vadd.f32 %v1004, %v1016
        %v1018 = vpop.f32.mrf.mxu0
        %1019 = vdwg.mxu0
        %1020 = vmatpush.bf16.msra.mxu0 %v870
        %1021 = vmatpush.bf16.msra.mxu0 %v866
        %1022 = vmatpush.bf16.msra.mxu0 %v862
        %1023 = vmatpush.bf16.msra.mxu0 %v858
        %1024 = vmatpush.bf16.msra.mxu0 %v854
        %1025 = vmatpush.bf16.msra.mxu0 %v850
        %1026 = vmatpush.bf16.msra.mxu0 %v846
        %1027 = vmatpush.bf16.msra.mxu0 %v842
        %1028 = vmatmul.bf16.gmra.mxu0 %v579
        %v1029 = vpop.f32.mrf.mxu0
        %v1030 = vadd.f32 0.0, %v1029
        %v1031 = vpop.f32.mrf.mxu0
        %1032 = vdwg.mxu0
        %1033 = vmatpush.bf16.msra.mxu0 %v902
        %1034 = vmatpush.bf16.msra.mxu0 %v898
        %1035 = vmatpush.bf16.msra.mxu0 %v894
        %1036 = vmatpush.bf16.msra.mxu0 %v890
        %1037 = vmatpush.bf16.msra.mxu0 %v886
        %1038 = vmatpush.bf16.msra.mxu0 %v882
        %1039 = vmatpush.bf16.msra.mxu0 %v878
        %1040 = vmatpush.bf16.msra.mxu0 %v874
        %1041 = vmatmul.bf16.gmra.mxu0 %v477
        %v1042 = vpop.f32.mrf.mxu0
        %v1043 = vadd.f32 %v1030, %v1042
        %v1044 = vpop.f32.mrf.mxu0
        %1045 = vdwg.mxu0
        %1046 = vmatpush.bf16.msra.mxu0 %v871
        %1047 = vmatpush.bf16.msra.mxu0 %v867
        %1048 = vmatpush.bf16.msra.mxu0 %v863
        %1049 = vmatpush.bf16.msra.mxu0 %v859
        %1050 = vmatpush.bf16.msra.mxu0 %v855
        %1051 = vmatpush.bf16.msra.mxu0 %v851
        %1052 = vmatpush.bf16.msra.mxu0 %v847
        %1053 = vmatpush.bf16.msra.mxu0 %v843
        %1054 = vmatmul.bf16.gmra.mxu0 %v579
        %v1055 = vpop.f32.mrf.mxu0
        %v1056 = vadd.f32 0.0, %v1055
        %v1057 = vpop.f32.mrf.mxu0
        %1058 = vdwg.mxu0
        %1059 = vmatpush.bf16.msra.mxu0 %v903
        %1060 = vmatpush.bf16.msra.mxu0 %v899
        %1061 = vmatpush.bf16.msra.mxu0 %v895
        %1062 = vmatpush.bf16.msra.mxu0 %v891
        %1063 = vmatpush.bf16.msra.mxu0 %v887
        %1064 = vmatpush.bf16.msra.mxu0 %v883
        %1065 = vmatpush.bf16.msra.mxu0 %v879
        %1066 = vmatpush.bf16.msra.mxu0 %v875
        %1067 = vmatmul.bf16.gmra.mxu0 %v477
        %v1068 = vpop.f32.mrf.mxu0
        %v1069 = vadd.f32 %v1056, %v1068
        %v1070 = vpop.f32.mrf.mxu0
        %1071 = vdwg.mxu0
        %v1072 = vadd.f32 %v580, %v991
        %v1073 = vadd.f32 %v581, %v1017
        %v1074 = vadd.f32 %v582, %v1043
        %v1075 = vadd.f32 %v583, %v1069
        %v1076 = vxor.u32 %v1072, 2147483648
        %v1077 = vmul.f32 %v1076, 1.442695
        %v1078 = vpow.pop %v1077
        %v1079 = vadd.f32 %v1078, 1.0
        %v1080 = vrcp.pop %v1079
        %v1081 = vmul.f32 %v1079, %v1080
        %v1082 = vsub.f32 1.0, %v1081
        %v1083 = vmul.f32 %v1080, %v1082
        %v1084 = vadd.f32 %v1080, %v1083
        %vm1085 = vweird.f32 %v1079
        %vm1086 = vweird.f32 %v1080
        %vm1087 = vmor %vm1085, %vm1086
        %v1088 = vsel %vm1087, %v1080, %v1084
        %v1089 = vand.u32 2147483647, %v1079
        %vm1090 = vcmp.eq.f32.partialorder %v1089, 8.507059e+37
        %v1091 = vand.u32 %v1079, 2147483648
        %v1092 = vor.u32 1.1754944e-38, %v1091
        %v1093 = vsel %vm1090, %v1092, %v1088
        %v1094 = vmul.f32 1.0, %v1093
        %v1095 = vxor.u32 %v1073, 2147483648
        %v1096 = vmul.f32 %v1095, 1.442695
        %v1097 = vpow.pop %v1096
        %v1098 = vadd.f32 %v1097, 1.0
        %v1099 = vrcp.pop %v1098
        %v1100 = vmul.f32 %v1098, %v1099
        %v1101 = vsub.f32 1.0, %v1100
        %v1102 = vmul.f32 %v1099, %v1101
        %v1103 = vadd.f32 %v1099, %v1102
        %vm1104 = vweird.f32 %v1098
        %vm1105 = vweird.f32 %v1099
        %vm1106 = vmor %vm1104, %vm1105
        %v1107 = vsel %vm1106, %v1099, %v1103
        %v1108 = vand.u32 2147483647, %v1098
        %vm1109 = vcmp.eq.f32.partialorder %v1108, 8.507059e+37
        %v1110 = vand.u32 %v1098, 2147483648
        %v1111 = vor.u32 1.1754944e-38, %v1110
        %v1112 = vsel %vm1109, %v1111, %v1107
        %v1113 = vmul.f32 1.0, %v1112
        %v1114 = vtanh.pop %v1074
        %v1115 = vxor.u32 %v1075, 2147483648
        %v1116 = vmul.f32 %v1115, 1.442695
        %v1117 = vpow.pop %v1116
        %v1118 = vadd.f32 %v1117, 1.0
        %v1119 = vrcp.pop %v1118
        %v1120 = vmul.f32 %v1118, %v1119
        %v1121 = vsub.f32 1.0, %v1120
        %v1122 = vmul.f32 %v1119, %v1121
        %v1123 = vadd.f32 %v1119, %v1122
        %vm1124 = vweird.f32 %v1118
        %vm1125 = vweird.f32 %v1119
        %vm1126 = vmor %vm1124, %vm1125
        %v1127 = vsel %vm1126, %v1119, %v1123
        %v1128 = vand.u32 2147483647, %v1118
        %vm1129 = vcmp.eq.f32.partialorder %v1128, 8.507059e+37
        %v1130 = vand.u32 %v1118, 2147483648
        %v1131 = vor.u32 1.1754944e-38, %v1130
        %v1132 = vsel %vm1129, %v1131, %v1127
        %v1133 = vmul.f32 1.0, %v1132
        %v1134 = vmul.f32 %v1113, %v476
        %v1135 = vmul.f32 %v1094, %v1114
        %v1136 = vadd.f32 %v1134, %v1135
        %v1137 = vtanh.pop %v1136
        %v1138 = vmul.f32 %v1133, %v1137
        %v1139 = vsel %vm474, 1, 0
        %1140 = vset.pattern.permute.xlu0 0
        %1141 = vperm.xlu0 %1140, %v1139
        %v1142 = vpop.permute.xlu0 %1141
        %vm1143 = vcmp.eq.s32.totalorder %v1142, 1
        %v1144 = vsel %vm1143, %v1138, %v475
        %1145 = vst [vmem:[#allocation2] sm:$0xff] %v1144
        %v1146 = vsel %vm1143, %v1136, %v476
        %1147 = vst [vmem:[#allocation3] sm:$0xff] %v1146
        %1148 = vst [vmem:[#allocation4] sm:$0xff] %v1138
        %s1149 = sadd.s32 %s472, 1
        %v1150 = vstv %s1149
        %vm1151 = vcmp.gt.s32.totalorder %v471, %v1150
        %v1152 = vld [vmem:[#allocation2] sm:$0xff]
        %v1153 = vld [vmem:[#allocation3] sm:$0xff]
        %v1154 = vpack.c.bf16 %v1152, %v1152
        %v1155 = vld [vmem:[#allocation11] sm:$0xf]
        %v1156 = vld [vmem:[#allocation11 + $0x4] sm:$0xf]
        %v1157 = vld [vmem:[#allocation11 + $0x8] sm:$0xf]
        %v1158 = vld [vmem:[#allocation11 + $0xc] sm:$0xf]
        %v1159 = vld [vmem:[#allocation11 + $0x10] sm:$0xf]
        %v1160 = vld [vmem:[#allocation11 + $0x14] sm:$0xf]
        %v1161 = vld [vmem:[#allocation11 + $0x18] sm:$0xf]
        %v1162 = vld [vmem:[#allocation11 + $0x1c] sm:$0xf]
        %v1163 = vld [vmem:[#allocation11 + $0x20] sm:$0xf]
        %v1164 = vld [vmem:[#allocation11 + $0x24] sm:$0xf]
        %v1165 = vld [vmem:[#allocation11 + $0x28] sm:$0xf]
        %v1166 = vld [vmem:[#allocation11 + $0x2c] sm:$0xf]
        %v1167 = vld [vmem:[#allocation11 + $0x30] sm:$0xf]
        %v1168 = vld [vmem:[#allocation11 + $0x34] sm:$0xf]
        %v1169 = vld [vmem:[#allocation11 + $0x38] sm:$0xf]
        %v1170 = vld [vmem:[#allocation11 + $0x3c] sm:$0xf]
        %v1171 = vld [vmem:[%s6] sm:$0x1]
        %v1173 = vperm.slane %v1171, 0
        %v1191 = vunpack.c.l.b16 %v1155
        %v1192 = vunpack.c.l.b16 %v1156
        %v1193 = vunpack.c.l.b16 %v1157
        %v1194 = vunpack.c.l.b16 %v1158
        %v1195 = vunpack.c.l.b16 %v1159
        %v1196 = vunpack.c.l.b16 %v1160
        %v1197 = vunpack.c.l.b16 %v1161
        %v1198 = vunpack.c.l.b16 %v1162
        %v1199 = vunpack.c.l.b16 %v1163
        %v1200 = vunpack.c.l.b16 %v1164
        %v1201 = vunpack.c.l.b16 %v1165
        %v1202 = vunpack.c.l.b16 %v1166
        %v1203 = vunpack.c.l.b16 %v1167
        %v1204 = vunpack.c.l.b16 %v1168
        %v1205 = vunpack.c.l.b16 %v1169
        %v1206 = vunpack.c.l.b16 %v1170
        %v1207 = vpack.c.b16 %v1192, %v1191
        %v1208 = vpack.c.b16 %v1194, %v1193
        %v1209 = vpack.c.b16 %v1196, %v1195
        %v1210 = vpack.c.b16 %v1198, %v1197
        %v1211 = vpack.c.b16 %v1200, %v1199
        %v1212 = vpack.c.b16 %v1202, %v1201
        %v1213 = vpack.c.b16 %v1204, %v1203
        %v1214 = vpack.c.b16 %v1206, %v1205
        %1223 = vmatpush.bf16.msra.mxu0 %v1214
        %1224 = vmatpush.bf16.msra.mxu0 %v1213
        %1225 = vmatpush.bf16.msra.mxu0 %v1212
        %1226 = vmatpush.bf16.msra.mxu0 %v1211
        %1227 = vmatpush.bf16.msra.mxu0 %v1210
        %1228 = vmatpush.bf16.msra.mxu0 %v1209
        %1229 = vmatpush.bf16.msra.mxu0 %v1208
        %1230 = vmatpush.bf16.msra.mxu0 %v1207
        %1231 = vmatmul.bf16.gmra.mxu0 %v1154
        %v1232 = vpop.f32.mrf.mxu0
        %v1233 = vadd.f32 %v1173, %v1232
        %v1234 = vpop.f32.mrf.mxu0
        %1235 = vdwg.mxu0
        %v1236 = vxor.u32 %v1233, 2147483648
        %v1237 = vmul.f32 %v1236, 1.442695
        %v1238 = vpow.pop %v1237
        %v1239 = vadd.f32 %v1238, 1.0
        %v1240 = vrcp.pop %v1239
        %v1241 = vmul.f32 %v1239, %v1240
        %v1242 = vsub.f32 1.0, %v1241
        %v1243 = vmul.f32 %v1240, %v1242
        %v1244 = vadd.f32 %v1240, %v1243
        %vm1245 = vweird.f32 %v1239
        %vm1246 = vweird.f32 %v1240
        %vm1247 = vmor %vm1245, %vm1246
        %v1248 = vsel %vm1247, %v1240, %v1244
        %v1249 = vand.u32 2147483647, %v1239
        %vm1250 = vcmp.eq.f32.partialorder %v1249, 8.507059e+37
        %v1251 = vand.u32 %v1239, 2147483648
        %v1252 = vor.u32 1.1754944e-38, %v1251
        %v1253 = vsel %vm1250, %v1252, %v1248
        %v1254 = vmul.f32 1.0, %v1253
        %v1255 = vmul.f32 %v1254, %v470
        %v1256 = vpack.c.bf16 %v1255, %v1255
        %s1257 = scalar_lea.vmem %s397, 32 [#allocation5]
        %v1258 = vld [vmem:[%s1257] sm:$0xff]
        %v1259 = vld [vmem:[%s1257 + $0x8] sm:$0xff]
        %v1260 = vld [vmem:[%s1257 + $0x10] sm:$0xff]
        %v1261 = vld [vmem:[%s1257 + $0x18] sm:$0xff]
        %v1262 = vld [vmem:[#allocation13] sm:$0xff]
        %v1263 = vld [vmem:[#allocation13 + $0x8] sm:$0xff]
        %v1264 = vld [vmem:[#allocation13 + $0x10] sm:$0xff]
        %v1265 = vld [vmem:[#allocation13 + $0x18] sm:$0xff]
        %v1266 = vld [vmem:[#allocation13 + $0x20] sm:$0xff]
        %v1267 = vld [vmem:[#allocation13 + $0x28] sm:$0xff]
        %v1268 = vld [vmem:[#allocation13 + $0x30] sm:$0xff]
        %v1269 = vld [vmem:[#allocation13 + $0x38] sm:$0xff]
        %v1270 = vld [vmem:[#allocation13 + $0x40] sm:$0xff]
        %v1271 = vld [vmem:[#allocation13 + $0x48] sm:$0xff]
        %v1272 = vld [vmem:[#allocation13 + $0x50] sm:$0xff]
        %v1273 = vld [vmem:[#allocation13 + $0x58] sm:$0xff]
        %v1274 = vld [vmem:[#allocation13 + $0x60] sm:$0xff]
        %v1275 = vld [vmem:[#allocation13 + $0x68] sm:$0xff]
        %v1276 = vld [vmem:[#allocation13 + $0x70] sm:$0xff]
        %v1277 = vld [vmem:[#allocation13 + $0x78] sm:$0xff]
        %v1278 = vld [vmem:[#allocation13 + $0x80] sm:$0xff]
        %v1279 = vld [vmem:[#allocation13 + $0x88] sm:$0xff]
        %v1280 = vld [vmem:[#allocation13 + $0x90] sm:$0xff]
        %v1281 = vld [vmem:[#allocation13 + $0x98] sm:$0xff]
        %v1282 = vld [vmem:[#allocation13 + $0xa0] sm:$0xff]
        %v1283 = vld [vmem:[#allocation13 + $0xa8] sm:$0xff]
        %v1284 = vld [vmem:[#allocation13 + $0xb0] sm:$0xff]
        %v1285 = vld [vmem:[#allocation13 + $0xb8] sm:$0xff]
        %v1286 = vld [vmem:[#allocation13 + $0xc0] sm:$0xff]
        %v1287 = vld [vmem:[#allocation13 + $0xc8] sm:$0xff]
        %v1288 = vld [vmem:[#allocation13 + $0xd0] sm:$0xff]
        %v1289 = vld [vmem:[#allocation13 + $0xd8] sm:$0xff]
        %v1290 = vld [vmem:[#allocation13 + $0xe0] sm:$0xff]
        %v1291 = vld [vmem:[#allocation13 + $0xe8] sm:$0xff]
        %v1292 = vld [vmem:[#allocation13 + $0xf0] sm:$0xff]
        %v1293 = vld [vmem:[#allocation13 + $0xf8] sm:$0xff]
        %v1294 = vld [vmem:[#allocation13 + $0x100] sm:$0xff]
        %v1295 = vld [vmem:[#allocation13 + $0x108] sm:$0xff]
        %v1296 = vld [vmem:[#allocation13 + $0x110] sm:$0xff]
        %v1297 = vld [vmem:[#allocation13 + $0x118] sm:$0xff]
        %v1298 = vld [vmem:[#allocation13 + $0x120] sm:$0xff]
        %v1299 = vld [vmem:[#allocation13 + $0x128] sm:$0xff]
        %v1300 = vld [vmem:[#allocation13 + $0x130] sm:$0xff]
        %v1301 = vld [vmem:[#allocation13 + $0x138] sm:$0xff]
        %v1302 = vld [vmem:[#allocation13 + $0x140] sm:$0xff]
        %v1303 = vld [vmem:[#allocation13 + $0x148] sm:$0xff]
        %v1304 = vld [vmem:[#allocation13 + $0x150] sm:$0xff]
        %v1305 = vld [vmem:[#allocation13 + $0x158] sm:$0xff]
        %v1306 = vld [vmem:[#allocation13 + $0x160] sm:$0xff]
        %v1307 = vld [vmem:[#allocation13 + $0x168] sm:$0xff]
        %v1308 = vld [vmem:[#allocation13 + $0x170] sm:$0xff]
        %v1309 = vld [vmem:[#allocation13 + $0x178] sm:$0xff]
        %v1310 = vld [vmem:[#allocation13 + $0x180] sm:$0xff]
        %v1311 = vld [vmem:[#allocation13 + $0x188] sm:$0xff]
        %v1312 = vld [vmem:[#allocation13 + $0x190] sm:$0xff]
        %v1313 = vld [vmem:[#allocation13 + $0x198] sm:$0xff]
        %v1314 = vld [vmem:[#allocation13 + $0x1a0] sm:$0xff]
        %v1315 = vld [vmem:[#allocation13 + $0x1a8] sm:$0xff]
        %v1316 = vld [vmem:[#allocation13 + $0x1b0] sm:$0xff]
        %v1317 = vld [vmem:[#allocation13 + $0x1b8] sm:$0xff]
        %v1318 = vld [vmem:[#allocation13 + $0x1c0] sm:$0xff]
        %v1319 = vld [vmem:[#allocation13 + $0x1c8] sm:$0xff]
        %v1320 = vld [vmem:[#allocation13 + $0x1d0] sm:$0xff]
        %v1321 = vld [vmem:[#allocation13 + $0x1d8] sm:$0xff]
        %v1322 = vld [vmem:[#allocation13 + $0x1e0] sm:$0xff]
        %v1323 = vld [vmem:[#allocation13 + $0x1e8] sm:$0xff]
        %v1324 = vld [vmem:[#allocation13 + $0x1f0] sm:$0xff]
        %v1325 = vld [vmem:[#allocation13 + $0x1f8] sm:$0xff]
        %v1390 = vunpack.c.l.b16 %v1262
        %v1391 = vunpack.c.h.b16 %v1262
        %v1392 = vunpack.c.l.b16 %v1263
        %v1393 = vunpack.c.h.b16 %v1263
        %v1394 = vunpack.c.l.b16 %v1264
        %v1395 = vunpack.c.h.b16 %v1264
        %v1396 = vunpack.c.l.b16 %v1265
        %v1397 = vunpack.c.h.b16 %v1265
        %v1398 = vunpack.c.l.b16 %v1266
        %v1399 = vunpack.c.h.b16 %v1266
        %v1400 = vunpack.c.l.b16 %v1267
        %v1401 = vunpack.c.h.b16 %v1267
        %v1402 = vunpack.c.l.b16 %v1268
        %v1403 = vunpack.c.h.b16 %v1268
        %v1404 = vunpack.c.l.b16 %v1269
        %v1405 = vunpack.c.h.b16 %v1269
        %v1406 = vunpack.c.l.b16 %v1270
        %v1407 = vunpack.c.h.b16 %v1270
        %v1408 = vunpack.c.l.b16 %v1271
        %v1409 = vunpack.c.h.b16 %v1271
        %v1410 = vunpack.c.l.b16 %v1272
        %v1411 = vunpack.c.h.b16 %v1272
        %v1412 = vunpack.c.l.b16 %v1273
        %v1413 = vunpack.c.h.b16 %v1273
        %v1414 = vunpack.c.l.b16 %v1274
        %v1415 = vunpack.c.h.b16 %v1274
        %v1416 = vunpack.c.l.b16 %v1275
        %v1417 = vunpack.c.h.b16 %v1275
        %v1418 = vunpack.c.l.b16 %v1276
        %v1419 = vunpack.c.h.b16 %v1276
        %v1420 = vunpack.c.l.b16 %v1277
        %v1421 = vunpack.c.h.b16 %v1277
        %v1422 = vunpack.c.l.b16 %v1278
        %v1423 = vunpack.c.h.b16 %v1278
        %v1424 = vunpack.c.l.b16 %v1279
        %v1425 = vunpack.c.h.b16 %v1279
        %v1426 = vunpack.c.l.b16 %v1280
        %v1427 = vunpack.c.h.b16 %v1280
        %v1428 = vunpack.c.l.b16 %v1281
        %v1429 = vunpack.c.h.b16 %v1281
        %v1430 = vunpack.c.l.b16 %v1282
        %v1431 = vunpack.c.h.b16 %v1282
        %v1432 = vunpack.c.l.b16 %v1283
        %v1433 = vunpack.c.h.b16 %v1283
        %v1434 = vunpack.c.l.b16 %v1284
        %v1435 = vunpack.c.h.b16 %v1284
        %v1436 = vunpack.c.l.b16 %v1285
        %v1437 = vunpack.c.h.b16 %v1285
        %v1438 = vunpack.c.l.b16 %v1286
        %v1439 = vunpack.c.h.b16 %v1286
        %v1440 = vunpack.c.l.b16 %v1287
        %v1441 = vunpack.c.h.b16 %v1287
        %v1442 = vunpack.c.l.b16 %v1288
        %v1443 = vunpack.c.h.b16 %v1288
        %v1444 = vunpack.c.l.b16 %v1289
        %v1445 = vunpack.c.h.b16 %v1289
        %v1446 = vunpack.c.l.b16 %v1290
        %v1447 = vunpack.c.h.b16 %v1290
        %v1448 = vunpack.c.l.b16 %v1291
        %v1449 = vunpack.c.h.b16 %v1291
        %v1450 = vunpack.c.l.b16 %v1292
        %v1451 = vunpack.c.h.b16 %v1292
        %v1452 = vunpack.c.l.b16 %v1293
        %v1453 = vunpack.c.h.b16 %v1293
        %v1454 = vunpack.c.l.b16 %v1294
        %v1455 = vunpack.c.h.b16 %v1294
        %v1456 = vunpack.c.l.b16 %v1295
        %v1457 = vunpack.c.h.b16 %v1295
        %v1458 = vunpack.c.l.b16 %v1296
        %v1459 = vunpack.c.h.b16 %v1296
        %v1460 = vunpack.c.l.b16 %v1297
        %v1461 = vunpack.c.h.b16 %v1297
        %v1462 = vunpack.c.l.b16 %v1298
        %v1463 = vunpack.c.h.b16 %v1298
        %v1464 = vunpack.c.l.b16 %v1299
        %v1465 = vunpack.c.h.b16 %v1299
        %v1466 = vunpack.c.l.b16 %v1300
        %v1467 = vunpack.c.h.b16 %v1300
        %v1468 = vunpack.c.l.b16 %v1301
        %v1469 = vunpack.c.h.b16 %v1301
        %v1470 = vunpack.c.l.b16 %v1302
        %v1471 = vunpack.c.h.b16 %v1302
        %v1472 = vunpack.c.l.b16 %v1303
        %v1473 = vunpack.c.h.b16 %v1303
        %v1474 = vunpack.c.l.b16 %v1304
        %v1475 = vunpack.c.h.b16 %v1304
        %v1476 = vunpack.c.l.b16 %v1305
        %v1477 = vunpack.c.h.b16 %v1305
        %v1478 = vunpack.c.l.b16 %v1306
        %v1479 = vunpack.c.h.b16 %v1306
        %v1480 = vunpack.c.l.b16 %v1307
        %v1481 = vunpack.c.h.b16 %v1307
        %v1482 = vunpack.c.l.b16 %v1308
        %v1483 = vunpack.c.h.b16 %v1308
        %v1484 = vunpack.c.l.b16 %v1309
        %v1485 = vunpack.c.h.b16 %v1309
        %v1486 = vunpack.c.l.b16 %v1310
        %v1487 = vunpack.c.h.b16 %v1310
        %v1488 = vunpack.c.l.b16 %v1311
        %v1489 = vunpack.c.h.b16 %v1311
        %v1490 = vunpack.c.l.b16 %v1312
        %v1491 = vunpack.c.h.b16 %v1312
        %v1492 = vunpack.c.l.b16 %v1313
        %v1493 = vunpack.c.h.b16 %v1313
        %v1494 = vunpack.c.l.b16 %v1314
        %v1495 = vunpack.c.h.b16 %v1314
        %v1496 = vunpack.c.l.b16 %v1315
        %v1497 = vunpack.c.h.b16 %v1315
        %v1498 = vunpack.c.l.b16 %v1316
        %v1499 = vunpack.c.h.b16 %v1316
        %v1500 = vunpack.c.l.b16 %v1317
        %v1501 = vunpack.c.h.b16 %v1317
        %v1502 = vunpack.c.l.b16 %v1318
        %v1503 = vunpack.c.h.b16 %v1318
        %v1504 = vunpack.c.l.b16 %v1319
        %v1505 = vunpack.c.h.b16 %v1319
        %v1506 = vunpack.c.l.b16 %v1320
        %v1507 = vunpack.c.h.b16 %v1320
        %v1508 = vunpack.c.l.b16 %v1321
        %v1509 = vunpack.c.h.b16 %v1321
        %v1510 = vunpack.c.l.b16 %v1322
        %v1511 = vunpack.c.h.b16 %v1322
        %v1512 = vunpack.c.l.b16 %v1323
        %v1513 = vunpack.c.h.b16 %v1323
        %v1514 = vunpack.c.l.b16 %v1324
        %v1515 = vunpack.c.h.b16 %v1324
        %v1516 = vunpack.c.l.b16 %v1325
        %v1517 = vunpack.c.h.b16 %v1325
        %v1518 = vpack.c.b16 %v1394, %v1390
        %v1519 = vpack.c.b16 %v1395, %v1391
        %v1520 = vpack.c.b16 %v1396, %v1392
        %v1521 = vpack.c.b16 %v1397, %v1393
        %v1522 = vpack.c.b16 %v1402, %v1398
        %v1523 = vpack.c.b16 %v1403, %v1399
        %v1524 = vpack.c.b16 %v1404, %v1400
        %v1525 = vpack.c.b16 %v1405, %v1401
        %v1526 = vpack.c.b16 %v1410, %v1406
        %v1527 = vpack.c.b16 %v1411, %v1407
        %v1528 = vpack.c.b16 %v1412, %v1408
        %v1529 = vpack.c.b16 %v1413, %v1409
        %v1530 = vpack.c.b16 %v1418, %v1414
        %v1531 = vpack.c.b16 %v1419, %v1415
        %v1532 = vpack.c.b16 %v1420, %v1416
        %v1533 = vpack.c.b16 %v1421, %v1417
        %v1534 = vpack.c.b16 %v1426, %v1422
        %v1535 = vpack.c.b16 %v1427, %v1423
        %v1536 = vpack.c.b16 %v1428, %v1424
        %v1537 = vpack.c.b16 %v1429, %v1425
        %v1538 = vpack.c.b16 %v1434, %v1430
        %v1539 = vpack.c.b16 %v1435, %v1431
        %v1540 = vpack.c.b16 %v1436, %v1432
        %v1541 = vpack.c.b16 %v1437, %v1433
        %v1542 = vpack.c.b16 %v1442, %v1438
        %v1543 = vpack.c.b16 %v1443, %v1439
        %v1544 = vpack.c.b16 %v1444, %v1440
        %v1545 = vpack.c.b16 %v1445, %v1441
        %v1546 = vpack.c.b16 %v1450, %v1446
        %v1547 = vpack.c.b16 %v1451, %v1447
        %v1548 = vpack.c.b16 %v1452, %v1448
        %v1549 = vpack.c.b16 %v1453, %v1449
        %v1550 = vpack.c.b16 %v1458, %v1454
        %v1551 = vpack.c.b16 %v1459, %v1455
        %v1552 = vpack.c.b16 %v1460, %v1456
        %v1553 = vpack.c.b16 %v1461, %v1457
        %v1554 = vpack.c.b16 %v1466, %v1462
        %v1555 = vpack.c.b16 %v1467, %v1463
        %v1556 = vpack.c.b16 %v1468, %v1464
        %v1557 = vpack.c.b16 %v1469, %v1465
        %v1558 = vpack.c.b16 %v1474, %v1470
        %v1559 = vpack.c.b16 %v1475, %v1471
        %v1560 = vpack.c.b16 %v1476, %v1472
        %v1561 = vpack.c.b16 %v1477, %v1473
        %v1562 = vpack.c.b16 %v1482, %v1478
        %v1563 = vpack.c.b16 %v1483, %v1479
        %v1564 = vpack.c.b16 %v1484, %v1480
        %v1565 = vpack.c.b16 %v1485, %v1481
        %v1566 = vpack.c.b16 %v1490, %v1486
        %v1567 = vpack.c.b16 %v1491, %v1487
        %v1568 = vpack.c.b16 %v1492, %v1488
        %v1569 = vpack.c.b16 %v1493, %v1489
        %v1570 = vpack.c.b16 %v1498, %v1494
        %v1571 = vpack.c.b16 %v1499, %v1495
        %v1572 = vpack.c.b16 %v1500, %v1496
        %v1573 = vpack.c.b16 %v1501, %v1497
        %v1574 = vpack.c.b16 %v1506, %v1502
        %v1575 = vpack.c.b16 %v1507, %v1503
        %v1576 = vpack.c.b16 %v1508, %v1504
        %v1577 = vpack.c.b16 %v1509, %v1505
        %v1578 = vpack.c.b16 %v1514, %v1510
        %v1579 = vpack.c.b16 %v1515, %v1511
        %v1580 = vpack.c.b16 %v1516, %v1512
        %v1581 = vpack.c.b16 %v1517, %v1513
        %1646 = vmatpush.bf16.msra.mxu0 %v1546
        %1647 = vmatpush.bf16.msra.mxu0 %v1542
        %1648 = vmatpush.bf16.msra.mxu0 %v1538
        %1649 = vmatpush.bf16.msra.mxu0 %v1534
        %1650 = vmatpush.bf16.msra.mxu0 %v1530
        %1651 = vmatpush.bf16.msra.mxu0 %v1526
        %1652 = vmatpush.bf16.msra.mxu0 %v1522
        %1653 = vmatpush.bf16.msra.mxu0 %v1518
        %1654 = vmatmul.bf16.gmra.mxu0 %v1256
        %v1655 = vpop.f32.mrf.mxu0
        %v1656 = vadd.f32 0.0, %v1655
        %v1657 = vpop.f32.mrf.mxu0
        %1658 = vdwg.mxu0
        %1659 = vmatpush.bf16.msra.mxu0 %v1578
        %1660 = vmatpush.bf16.msra.mxu0 %v1574
        %1661 = vmatpush.bf16.msra.mxu0 %v1570
        %1662 = vmatpush.bf16.msra.mxu0 %v1566
        %1663 = vmatpush.bf16.msra.mxu0 %v1562
        %1664 = vmatpush.bf16.msra.mxu0 %v1558
        %1665 = vmatpush.bf16.msra.mxu0 %v1554
        %1666 = vmatpush.bf16.msra.mxu0 %v1550
        %1667 = vmatmul.bf16.gmra.mxu0 %v1154
        %v1668 = vpop.f32.mrf.mxu0
        %v1669 = vadd.f32 %v1656, %v1668
        %v1670 = vpop.f32.mrf.mxu0
        %1671 = vdwg.mxu0
        %1672 = vmatpush.bf16.msra.mxu0 %v1547
        %1673 = vmatpush.bf16.msra.mxu0 %v1543
        %1674 = vmatpush.bf16.msra.mxu0 %v1539
        %1675 = vmatpush.bf16.msra.mxu0 %v1535
        %1676 = vmatpush.bf16.msra.mxu0 %v1531
        %1677 = vmatpush.bf16.msra.mxu0 %v1527
        %1678 = vmatpush.bf16.msra.mxu0 %v1523
        %1679 = vmatpush.bf16.msra.mxu0 %v1519
        %1680 = vmatmul.bf16.gmra.mxu0 %v1256
        %v1681 = vpop.f32.mrf.mxu0
        %v1682 = vadd.f32 0.0, %v1681
        %v1683 = vpop.f32.mrf.mxu0
        %1684 = vdwg.mxu0
        %1685 = vmatpush.bf16.msra.mxu0 %v1579
        %1686 = vmatpush.bf16.msra.mxu0 %v1575
        %1687 = vmatpush.bf16.msra.mxu0 %v1571
        %1688 = vmatpush.bf16.msra.mxu0 %v1567
        %1689 = vmatpush.bf16.msra.mxu0 %v1563
        %1690 = vmatpush.bf16.msra.mxu0 %v1559
        %1691 = vmatpush.bf16.msra.mxu0 %v1555
        %1692 = vmatpush.bf16.msra.mxu0 %v1551
        %1693 = vmatmul.bf16.gmra.mxu0 %v1154
        %v1694 = vpop.f32.mrf.mxu0
        %v1695 = vadd.f32 %v1682, %v1694
        %v1696 = vpop.f32.mrf.mxu0
        %1697 = vdwg.mxu0
        %1698 = vmatpush.bf16.msra.mxu0 %v1548
        %1699 = vmatpush.bf16.msra.mxu0 %v1544
        %1700 = vmatpush.bf16.msra.mxu0 %v1540
        %1701 = vmatpush.bf16.msra.mxu0 %v1536
        %1702 = vmatpush.bf16.msra.mxu0 %v1532
        %1703 = vmatpush.bf16.msra.mxu0 %v1528
        %1704 = vmatpush.bf16.msra.mxu0 %v1524
        %1705 = vmatpush.bf16.msra.mxu0 %v1520
        %1706 = vmatmul.bf16.gmra.mxu0 %v1256
        %v1707 = vpop.f32.mrf.mxu0
        %v1708 = vadd.f32 0.0, %v1707
        %v1709 = vpop.f32.mrf.mxu0
        %1710 = vdwg.mxu0
        %1711 = vmatpush.bf16.msra.mxu0 %v1580
        %1712 = vmatpush.bf16.msra.mxu0 %v1576
        %1713 = vmatpush.bf16.msra.mxu0 %v1572
        %1714 = vmatpush.bf16.msra.mxu0 %v1568
        %1715 = vmatpush.bf16.msra.mxu0 %v1564
        %1716 = vmatpush.bf16.msra.mxu0 %v1560
        %1717 = vmatpush.bf16.msra.mxu0 %v1556
        %1718 = vmatpush.bf16.msra.mxu0 %v1552
        %1719 = vmatmul.bf16.gmra.mxu0 %v1154
        %v1720 = vpop.f32.mrf.mxu0
        %v1721 = vadd.f32 %v1708, %v1720
        %v1722 = vpop.f32.mrf.mxu0
        %1723 = vdwg.mxu0
        %1724 = vmatpush.bf16.msra.mxu0 %v1549
        %1725 = vmatpush.bf16.msra.mxu0 %v1545
        %1726 = vmatpush.bf16.msra.mxu0 %v1541
        %1727 = vmatpush.bf16.msra.mxu0 %v1537
        %1728 = vmatpush.bf16.msra.mxu0 %v1533
        %1729 = vmatpush.bf16.msra.mxu0 %v1529
        %1730 = vmatpush.bf16.msra.mxu0 %v1525
        %1731 = vmatpush.bf16.msra.mxu0 %v1521
        %1732 = vmatmul.bf16.gmra.mxu0 %v1256
        %v1733 = vpop.f32.mrf.mxu0
        %v1734 = vadd.f32 0.0, %v1733
        %v1735 = vpop.f32.mrf.mxu0
        %1736 = vdwg.mxu0
        %1737 = vmatpush.bf16.msra.mxu0 %v1581
        %1738 = vmatpush.bf16.msra.mxu0 %v1577
        %1739 = vmatpush.bf16.msra.mxu0 %v1573
        %1740 = vmatpush.bf16.msra.mxu0 %v1569
        %1741 = vmatpush.bf16.msra.mxu0 %v1565
        %1742 = vmatpush.bf16.msra.mxu0 %v1561
        %1743 = vmatpush.bf16.msra.mxu0 %v1557
        %1744 = vmatpush.bf16.msra.mxu0 %v1553
        %1745 = vmatmul.bf16.gmra.mxu0 %v1154
        %v1746 = vpop.f32.mrf.mxu0
        %v1747 = vadd.f32 %v1734, %v1746
        %v1748 = vpop.f32.mrf.mxu0
        %1749 = vdwg.mxu0
        %v1750 = vadd.f32 %v1258, %v1669
        %v1751 = vadd.f32 %v1259, %v1695
        %v1752 = vadd.f32 %v1260, %v1721
        %v1753 = vadd.f32 %v1261, %v1747
        %v1754 = vxor.u32 %v1750, 2147483648
        %v1755 = vmul.f32 %v1754, 1.442695
        %v1756 = vpow.pop %v1755
        %v1757 = vadd.f32 %v1756, 1.0
        %v1758 = vrcp.pop %v1757
        %v1759 = vmul.f32 %v1757, %v1758
        %v1760 = vsub.f32 1.0, %v1759
        %v1761 = vmul.f32 %v1758, %v1760
        %v1762 = vadd.f32 %v1758, %v1761
        %vm1763 = vweird.f32 %v1757
        %vm1764 = vweird.f32 %v1758
        %vm1765 = vmor %vm1763, %vm1764
        %v1766 = vsel %vm1765, %v1758, %v1762
        %v1767 = vand.u32 2147483647, %v1757
        %vm1768 = vcmp.eq.f32.partialorder %v1767, 8.507059e+37
        %v1769 = vand.u32 %v1757, 2147483648
        %v1770 = vor.u32 1.1754944e-38, %v1769
        %v1771 = vsel %vm1768, %v1770, %v1766
        %v1772 = vmul.f32 1.0, %v1771
        %v1773 = vxor.u32 %v1751, 2147483648
        %v1774 = vmul.f32 %v1773, 1.442695
        %v1775 = vpow.pop %v1774
        %v1776 = vadd.f32 %v1775, 1.0
        %v1777 = vrcp.pop %v1776
        %v1778 = vmul.f32 %v1776, %v1777
        %v1779 = vsub.f32 1.0, %v1778
        %v1780 = vmul.f32 %v1777, %v1779
        %v1781 = vadd.f32 %v1777, %v1780
        %vm1782 = vweird.f32 %v1776
        %vm1783 = vweird.f32 %v1777
        %vm1784 = vmor %vm1782, %vm1783
        %v1785 = vsel %vm1784, %v1777, %v1781
        %v1786 = vand.u32 2147483647, %v1776
        %vm1787 = vcmp.eq.f32.partialorder %v1786, 8.507059e+37
        %v1788 = vand.u32 %v1776, 2147483648
        %v1789 = vor.u32 1.1754944e-38, %v1788
        %v1790 = vsel %vm1787, %v1789, %v1785
        %v1791 = vmul.f32 1.0, %v1790
        %v1792 = vtanh.pop %v1752
        %v1793 = vxor.u32 %v1753, 2147483648
        %v1794 = vmul.f32 %v1793, 1.442695
        %v1795 = vpow.pop %v1794
        %v1796 = vadd.f32 %v1795, 1.0
        %v1797 = vrcp.pop %v1796
        %v1798 = vmul.f32 %v1796, %v1797
        %v1799 = vsub.f32 1.0, %v1798
        %v1800 = vmul.f32 %v1797, %v1799
        %v1801 = vadd.f32 %v1797, %v1800
        %vm1802 = vweird.f32 %v1796
        %vm1803 = vweird.f32 %v1797
        %vm1804 = vmor %vm1802, %vm1803
        %v1805 = vsel %vm1804, %v1797, %v1801
        %v1806 = vand.u32 2147483647, %v1796
        %vm1807 = vcmp.eq.f32.partialorder %v1806, 8.507059e+37
        %v1808 = vand.u32 %v1796, 2147483648
        %v1809 = vor.u32 1.1754944e-38, %v1808
        %v1810 = vsel %vm1807, %v1809, %v1805
        %v1811 = vmul.f32 1.0, %v1810
        %v1812 = vmul.f32 %v1791, %v1153
        %v1813 = vmul.f32 %v1772, %v1792
        %v1814 = vadd.f32 %v1812, %v1813
        %v1815 = vtanh.pop %v1814
        %v1816 = vmul.f32 %v1811, %v1815
        %v1817 = vsel %vm1151, 1, 0
        %1818 = vset.pattern.permute.xlu0 0
        %1819 = vperm.xlu0 %1818, %v1817
        %v1820 = vpop.permute.xlu0 %1819
        %vm1821 = vcmp.eq.s32.totalorder %v1820, 1
        %v1822 = vsel %vm1821, %v1816, %v1152
        %1823 = vst [vmem:[#allocation2] sm:$0xff] %v1822
        %v1824 = vsel %vm1821, %v1814, %v1153
        %1825 = vst [vmem:[#allocation3] sm:$0xff] %v1824
        %s1826 = scalar_lea.vmem [#allocation4], 8
        %1827 = vst [vmem:[%s1826] sm:$0xff] %v1816
        %s1828 = sadd.s32 %s472, 2
        %v1829 = vstv %s1828
        %vm1830 = vcmp.gt.s32.totalorder %v471, %v1829
        %v1831 = vld [vmem:[#allocation2] sm:$0xff]
        %v1832 = vld [vmem:[#allocation3] sm:$0xff]
        %v1833 = vpack.c.bf16 %v1831, %v1831
        %v1834 = vld [vmem:[#allocation11] sm:$0xf]
        %v1835 = vld [vmem:[#allocation11 + $0x4] sm:$0xf]
        %v1836 = vld [vmem:[#allocation11 + $0x8] sm:$0xf]
        %v1837 = vld [vmem:[#allocation11 + $0xc] sm:$0xf]
        %v1838 = vld [vmem:[#allocation11 + $0x10] sm:$0xf]
        %v1839 = vld [vmem:[#allocation11 + $0x14] sm:$0xf]
        %v1840 = vld [vmem:[#allocation11 + $0x18] sm:$0xf]
        %v1841 = vld [vmem:[#allocation11 + $0x1c] sm:$0xf]
        %v1842 = vld [vmem:[#allocation11 + $0x20] sm:$0xf]
        %v1843 = vld [vmem:[#allocation11 + $0x24] sm:$0xf]
        %v1844 = vld [vmem:[#allocation11 + $0x28] sm:$0xf]
        %v1845 = vld [vmem:[#allocation11 + $0x2c] sm:$0xf]
        %v1846 = vld [vmem:[#allocation11 + $0x30] sm:$0xf]
        %v1847 = vld [vmem:[#allocation11 + $0x34] sm:$0xf]
        %v1848 = vld [vmem:[#allocation11 + $0x38] sm:$0xf]
        %v1849 = vld [vmem:[#allocation11 + $0x3c] sm:$0xf]
        %v1850 = vld [vmem:[%s6] sm:$0x1]
        %v1852 = vperm.slane %v1850, 0
        %v1870 = vunpack.c.l.b16 %v1834
        %v1871 = vunpack.c.l.b16 %v1835
        %v1872 = vunpack.c.l.b16 %v1836
        %v1873 = vunpack.c.l.b16 %v1837
        %v1874 = vunpack.c.l.b16 %v1838
        %v1875 = vunpack.c.l.b16 %v1839
        %v1876 = vunpack.c.l.b16 %v1840
        %v1877 = vunpack.c.l.b16 %v1841
        %v1878 = vunpack.c.l.b16 %v1842
        %v1879 = vunpack.c.l.b16 %v1843
        %v1880 = vunpack.c.l.b16 %v1844
        %v1881 = vunpack.c.l.b16 %v1845
        %v1882 = vunpack.c.l.b16 %v1846
        %v1883 = vunpack.c.l.b16 %v1847
        %v1884 = vunpack.c.l.b16 %v1848
        %v1885 = vunpack.c.l.b16 %v1849
        %v1886 = vpack.c.b16 %v1871, %v1870
        %v1887 = vpack.c.b16 %v1873, %v1872
        %v1888 = vpack.c.b16 %v1875, %v1874
        %v1889 = vpack.c.b16 %v1877, %v1876
        %v1890 = vpack.c.b16 %v1879, %v1878
        %v1891 = vpack.c.b16 %v1881, %v1880
        %v1892 = vpack.c.b16 %v1883, %v1882
        %v1893 = vpack.c.b16 %v1885, %v1884
        %1902 = vmatpush.bf16.msra.mxu0 %v1893
        %1903 = vmatpush.bf16.msra.mxu0 %v1892
        %1904 = vmatpush.bf16.msra.mxu0 %v1891
        %1905 = vmatpush.bf16.msra.mxu0 %v1890
        %1906 = vmatpush.bf16.msra.mxu0 %v1889
        %1907 = vmatpush.bf16.msra.mxu0 %v1888
        %1908 = vmatpush.bf16.msra.mxu0 %v1887
        %1909 = vmatpush.bf16.msra.mxu0 %v1886
        %1910 = vmatmul.bf16.gmra.mxu0 %v1833
        %v1911 = vpop.f32.mrf.mxu0
        %v1912 = vadd.f32 %v1852, %v1911
        %v1913 = vpop.f32.mrf.mxu0
        %1914 = vdwg.mxu0
        %v1915 = vxor.u32 %v1912, 2147483648
        %v1916 = vmul.f32 %v1915, 1.442695
        %v1917 = vpow.pop %v1916
        %v1918 = vadd.f32 %v1917, 1.0
        %v1919 = vrcp.pop %v1918
        %v1920 = vmul.f32 %v1918, %v1919
        %v1921 = vsub.f32 1.0, %v1920
        %v1922 = vmul.f32 %v1919, %v1921
        %v1923 = vadd.f32 %v1919, %v1922
        %vm1924 = vweird.f32 %v1918
        %vm1925 = vweird.f32 %v1919
        %vm1926 = vmor %vm1924, %vm1925
        %v1927 = vsel %vm1926, %v1919, %v1923
        %v1928 = vand.u32 2147483647, %v1918
        %vm1929 = vcmp.eq.f32.partialorder %v1928, 8.507059e+37
        %v1930 = vand.u32 %v1918, 2147483648
        %v1931 = vor.u32 1.1754944e-38, %v1930
        %v1932 = vsel %vm1929, %v1931, %v1927
        %v1933 = vmul.f32 1.0, %v1932
        %v1934 = vmul.f32 %v1933, %v470
        %v1935 = vpack.c.bf16 %v1934, %v1934
        %s1936 = scalar_lea.vmem %s397, 64 [#allocation5]
        %v1937 = vld [vmem:[%s1936] sm:$0xff]
        %v1938 = vld [vmem:[%s1936 + $0x8] sm:$0xff]
        %v1939 = vld [vmem:[%s1936 + $0x10] sm:$0xff]
        %v1940 = vld [vmem:[%s1936 + $0x18] sm:$0xff]
        %v1941 = vld [vmem:[#allocation13] sm:$0xff]
        %v1942 = vld [vmem:[#allocation13 + $0x8] sm:$0xff]
        %v1943 = vld [vmem:[#allocation13 + $0x10] sm:$0xff]
        %v1944 = vld [vmem:[#allocation13 + $0x18] sm:$0xff]
        %v1945 = vld [vmem:[#allocation13 + $0x20] sm:$0xff]
        %v1946 = vld [vmem:[#allocation13 + $0x28] sm:$0xff]
        %v1947 = vld [vmem:[#allocation13 + $0x30] sm:$0xff]
        %v1948 = vld [vmem:[#allocation13 + $0x38] sm:$0xff]
        %v1949 = vld [vmem:[#allocation13 + $0x40] sm:$0xff]
        %v1950 = vld [vmem:[#allocation13 + $0x48] sm:$0xff]
        %v1951 = vld [vmem:[#allocation13 + $0x50] sm:$0xff]
        %v1952 = vld [vmem:[#allocation13 + $0x58] sm:$0xff]
        %v1953 = vld [vmem:[#allocation13 + $0x60] sm:$0xff]
        %v1954 = vld [vmem:[#allocation13 + $0x68] sm:$0xff]
        %v1955 = vld [vmem:[#allocation13 + $0x70] sm:$0xff]
        %v1956 = vld [vmem:[#allocation13 + $0x78] sm:$0xff]
        %v1957 = vld [vmem:[#allocation13 + $0x80] sm:$0xff]
        %v1958 = vld [vmem:[#allocation13 + $0x88] sm:$0xff]
        %v1959 = vld [vmem:[#allocation13 + $0x90] sm:$0xff]
        %v1960 = vld [vmem:[#allocation13 + $0x98] sm:$0xff]
        %v1961 = vld [vmem:[#allocation13 + $0xa0] sm:$0xff]
        %v1962 = vld [vmem:[#allocation13 + $0xa8] sm:$0xff]
        %v1963 = vld [vmem:[#allocation13 + $0xb0] sm:$0xff]
        %v1964 = vld [vmem:[#allocation13 + $0xb8] sm:$0xff]
        %v1965 = vld [vmem:[#allocation13 + $0xc0] sm:$0xff]
        %v1966 = vld [vmem:[#allocation13 + $0xc8] sm:$0xff]
        %v1967 = vld [vmem:[#allocation13 + $0xd0] sm:$0xff]
        %v1968 = vld [vmem:[#allocation13 + $0xd8] sm:$0xff]
        %v1969 = vld [vmem:[#allocation13 + $0xe0] sm:$0xff]
        %v1970 = vld [vmem:[#allocation13 + $0xe8] sm:$0xff]
        %v1971 = vld [vmem:[#allocation13 + $0xf0] sm:$0xff]
        %v1972 = vld [vmem:[#allocation13 + $0xf8] sm:$0xff]
        %v1973 = vld [vmem:[#allocation13 + $0x100] sm:$0xff]
        %v1974 = vld [vmem:[#allocation13 + $0x108] sm:$0xff]
        %v1975 = vld [vmem:[#allocation13 + $0x110] sm:$0xff]
        %v1976 = vld [vmem:[#allocation13 + $0x118] sm:$0xff]
        %v1977 = vld [vmem:[#allocation13 + $0x120] sm:$0xff]
        %v1978 = vld [vmem:[#allocation13 + $0x128] sm:$0xff]
        %v1979 = vld [vmem:[#allocation13 + $0x130] sm:$0xff]
        %v1980 = vld [vmem:[#allocation13 + $0x138] sm:$0xff]
        %v1981 = vld [vmem:[#allocation13 + $0x140] sm:$0xff]
        %v1982 = vld [vmem:[#allocation13 + $0x148] sm:$0xff]
        %v1983 = vld [vmem:[#allocation13 + $0x150] sm:$0xff]
        %v1984 = vld [vmem:[#allocation13 + $0x158] sm:$0xff]
        %v1985 = vld [vmem:[#allocation13 + $0x160] sm:$0xff]
        %v1986 = vld [vmem:[#allocation13 + $0x168] sm:$0xff]
        %v1987 = vld [vmem:[#allocation13 + $0x170] sm:$0xff]
        %v1988 = vld [vmem:[#allocation13 + $0x178] sm:$0xff]
        %v1989 = vld [vmem:[#allocation13 + $0x180] sm:$0xff]
        %v1990 = vld [vmem:[#allocation13 + $0x188] sm:$0xff]
        %v1991 = vld [vmem:[#allocation13 + $0x190] sm:$0xff]
        %v1992 = vld [vmem:[#allocation13 + $0x198] sm:$0xff]
        %v1993 = vld [vmem:[#allocation13 + $0x1a0] sm:$0xff]
        %v1994 = vld [vmem:[#allocation13 + $0x1a8] sm:$0xff]
        %v1995 = vld [vmem:[#allocation13 + $0x1b0] sm:$0xff]
        %v1996 = vld [vmem:[#allocation13 + $0x1b8] sm:$0xff]
        %v1997 = vld [vmem:[#allocation13 + $0x1c0] sm:$0xff]
        %v1998 = vld [vmem:[#allocation13 + $0x1c8] sm:$0xff]
        %v1999 = vld [vmem:[#allocation13 + $0x1d0] sm:$0xff]
        %v2000 = vld [vmem:[#allocation13 + $0x1d8] sm:$0xff]
        %v2001 = vld [vmem:[#allocation13 + $0x1e0] sm:$0xff]
        %v2002 = vld [vmem:[#allocation13 + $0x1e8] sm:$0xff]
        %v2003 = vld [vmem:[#allocation13 + $0x1f0] sm:$0xff]
        %v2004 = vld [vmem:[#allocation13 + $0x1f8] sm:$0xff]
        %v2069 = vunpack.c.l.b16 %v1941
        %v2070 = vunpack.c.h.b16 %v1941
        %v2071 = vunpack.c.l.b16 %v1942
        %v2072 = vunpack.c.h.b16 %v1942
        %v2073 = vunpack.c.l.b16 %v1943
        %v2074 = vunpack.c.h.b16 %v1943
        %v2075 = vunpack.c.l.b16 %v1944
        %v2076 = vunpack.c.h.b16 %v1944
        %v2077 = vunpack.c.l.b16 %v1945
        %v2078 = vunpack.c.h.b16 %v1945
        %v2079 = vunpack.c.l.b16 %v1946
        %v2080 = vunpack.c.h.b16 %v1946
        %v2081 = vunpack.c.l.b16 %v1947
        %v2082 = vunpack.c.h.b16 %v1947
        %v2083 = vunpack.c.l.b16 %v1948
        %v2084 = vunpack.c.h.b16 %v1948
        %v2085 = vunpack.c.l.b16 %v1949
        %v2086 = vunpack.c.h.b16 %v1949
        %v2087 = vunpack.c.l.b16 %v1950
        %v2088 = vunpack.c.h.b16 %v1950
        %v2089 = vunpack.c.l.b16 %v1951
        %v2090 = vunpack.c.h.b16 %v1951
        %v2091 = vunpack.c.l.b16 %v1952
        %v2092 = vunpack.c.h.b16 %v1952
        %v2093 = vunpack.c.l.b16 %v1953
        %v2094 = vunpack.c.h.b16 %v1953
        %v2095 = vunpack.c.l.b16 %v1954
        %v2096 = vunpack.c.h.b16 %v1954
        %v2097 = vunpack.c.l.b16 %v1955
        %v2098 = vunpack.c.h.b16 %v1955
        %v2099 = vunpack.c.l.b16 %v1956
        %v2100 = vunpack.c.h.b16 %v1956
        %v2101 = vunpack.c.l.b16 %v1957
        %v2102 = vunpack.c.h.b16 %v1957
        %v2103 = vunpack.c.l.b16 %v1958
        %v2104 = vunpack.c.h.b16 %v1958
        %v2105 = vunpack.c.l.b16 %v1959
        %v2106 = vunpack.c.h.b16 %v1959
        %v2107 = vunpack.c.l.b16 %v1960
        %v2108 = vunpack.c.h.b16 %v1960
        %v2109 = vunpack.c.l.b16 %v1961
        %v2110 = vunpack.c.h.b16 %v1961
        %v2111 = vunpack.c.l.b16 %v1962
        %v2112 = vunpack.c.h.b16 %v1962
        %v2113 = vunpack.c.l.b16 %v1963
        %v2114 = vunpack.c.h.b16 %v1963
        %v2115 = vunpack.c.l.b16 %v1964
        %v2116 = vunpack.c.h.b16 %v1964
        %v2117 = vunpack.c.l.b16 %v1965
        %v2118 = vunpack.c.h.b16 %v1965
        %v2119 = vunpack.c.l.b16 %v1966
        %v2120 = vunpack.c.h.b16 %v1966
        %v2121 = vunpack.c.l.b16 %v1967
        %v2122 = vunpack.c.h.b16 %v1967
        %v2123 = vunpack.c.l.b16 %v1968
        %v2124 = vunpack.c.h.b16 %v1968
        %v2125 = vunpack.c.l.b16 %v1969
        %v2126 = vunpack.c.h.b16 %v1969
        %v2127 = vunpack.c.l.b16 %v1970
        %v2128 = vunpack.c.h.b16 %v1970
        %v2129 = vunpack.c.l.b16 %v1971
        %v2130 = vunpack.c.h.b16 %v1971
        %v2131 = vunpack.c.l.b16 %v1972
        %v2132 = vunpack.c.h.b16 %v1972
        %v2133 = vunpack.c.l.b16 %v1973
        %v2134 = vunpack.c.h.b16 %v1973
        %v2135 = vunpack.c.l.b16 %v1974
        %v2136 = vunpack.c.h.b16 %v1974
        %v2137 = vunpack.c.l.b16 %v1975
        %v2138 = vunpack.c.h.b16 %v1975
        %v2139 = vunpack.c.l.b16 %v1976
        %v2140 = vunpack.c.h.b16 %v1976
        %v2141 = vunpack.c.l.b16 %v1977
        %v2142 = vunpack.c.h.b16 %v1977
        %v2143 = vunpack.c.l.b16 %v1978
        %v2144 = vunpack.c.h.b16 %v1978
        %v2145 = vunpack.c.l.b16 %v1979
        %v2146 = vunpack.c.h.b16 %v1979
        %v2147 = vunpack.c.l.b16 %v1980
        %v2148 = vunpack.c.h.b16 %v1980
        %v2149 = vunpack.c.l.b16 %v1981
        %v2150 = vunpack.c.h.b16 %v1981
        %v2151 = vunpack.c.l.b16 %v1982
        %v2152 = vunpack.c.h.b16 %v1982
        %v2153 = vunpack.c.l.b16 %v1983
        %v2154 = vunpack.c.h.b16 %v1983
        %v2155 = vunpack.c.l.b16 %v1984
        %v2156 = vunpack.c.h.b16 %v1984
        %v2157 = vunpack.c.l.b16 %v1985
        %v2158 = vunpack.c.h.b16 %v1985
        %v2159 = vunpack.c.l.b16 %v1986
        %v2160 = vunpack.c.h.b16 %v1986
        %v2161 = vunpack.c.l.b16 %v1987
        %v2162 = vunpack.c.h.b16 %v1987
        %v2163 = vunpack.c.l.b16 %v1988
        %v2164 = vunpack.c.h.b16 %v1988
        %v2165 = vunpack.c.l.b16 %v1989
        %v2166 = vunpack.c.h.b16 %v1989
        %v2167 = vunpack.c.l.b16 %v1990
        %v2168 = vunpack.c.h.b16 %v1990
        %v2169 = vunpack.c.l.b16 %v1991
        %v2170 = vunpack.c.h.b16 %v1991
        %v2171 = vunpack.c.l.b16 %v1992
        %v2172 = vunpack.c.h.b16 %v1992
        %v2173 = vunpack.c.l.b16 %v1993
        %v2174 = vunpack.c.h.b16 %v1993
        %v2175 = vunpack.c.l.b16 %v1994
        %v2176 = vunpack.c.h.b16 %v1994
        %v2177 = vunpack.c.l.b16 %v1995
        %v2178 = vunpack.c.h.b16 %v1995
        %v2179 = vunpack.c.l.b16 %v1996
        %v2180 = vunpack.c.h.b16 %v1996
        %v2181 = vunpack.c.l.b16 %v1997
        %v2182 = vunpack.c.h.b16 %v1997
        %v2183 = vunpack.c.l.b16 %v1998
        %v2184 = vunpack.c.h.b16 %v1998
        %v2185 = vunpack.c.l.b16 %v1999
        %v2186 = vunpack.c.h.b16 %v1999
        %v2187 = vunpack.c.l.b16 %v2000
        %v2188 = vunpack.c.h.b16 %v2000
        %v2189 = vunpack.c.l.b16 %v2001
        %v2190 = vunpack.c.h.b16 %v2001
        %v2191 = vunpack.c.l.b16 %v2002
        %v2192 = vunpack.c.h.b16 %v2002
        %v2193 = vunpack.c.l.b16 %v2003
        %v2194 = vunpack.c.h.b16 %v2003
        %v2195 = vunpack.c.l.b16 %v2004
        %v2196 = vunpack.c.h.b16 %v2004
        %v2197 = vpack.c.b16 %v2073, %v2069
        %v2198 = vpack.c.b16 %v2074, %v2070
        %v2199 = vpack.c.b16 %v2075, %v2071
        %v2200 = vpack.c.b16 %v2076, %v2072
        %v2201 = vpack.c.b16 %v2081, %v2077
        %v2202 = vpack.c.b16 %v2082, %v2078
        %v2203 = vpack.c.b16 %v2083, %v2079
        %v2204 = vpack.c.b16 %v2084, %v2080
        %v2205 = vpack.c.b16 %v2089, %v2085
        %v2206 = vpack.c.b16 %v2090, %v2086
        %v2207 = vpack.c.b16 %v2091, %v2087
        %v2208 = vpack.c.b16 %v2092, %v2088
        %v2209 = vpack.c.b16 %v2097, %v2093
        %v2210 = vpack.c.b16 %v2098, %v2094
        %v2211 = vpack.c.b16 %v2099, %v2095
        %v2212 = vpack.c.b16 %v2100, %v2096
        %v2213 = vpack.c.b16 %v2105, %v2101
        %v2214 = vpack.c.b16 %v2106, %v2102
        %v2215 = vpack.c.b16 %v2107, %v2103
        %v2216 = vpack.c.b16 %v2108, %v2104
        %v2217 = vpack.c.b16 %v2113, %v2109
        %v2218 = vpack.c.b16 %v2114, %v2110
        %v2219 = vpack.c.b16 %v2115, %v2111
        %v2220 = vpack.c.b16 %v2116, %v2112
        %v2221 = vpack.c.b16 %v2121, %v2117
        %v2222 = vpack.c.b16 %v2122, %v2118
        %v2223 = vpack.c.b16 %v2123, %v2119
        %v2224 = vpack.c.b16 %v2124, %v2120
        %v2225 = vpack.c.b16 %v2129, %v2125
        %v2226 = vpack.c.b16 %v2130, %v2126
        %v2227 = vpack.c.b16 %v2131, %v2127
        %v2228 = vpack.c.b16 %v2132, %v2128
        %v2229 = vpack.c.b16 %v2137, %v2133
        %v2230 = vpack.c.b16 %v2138, %v2134
        %v2231 = vpack.c.b16 %v2139, %v2135
        %v2232 = vpack.c.b16 %v2140, %v2136
        %v2233 = vpack.c.b16 %v2145, %v2141
        %v2234 = vpack.c.b16 %v2146, %v2142
        %v2235 = vpack.c.b16 %v2147, %v2143
        %v2236 = vpack.c.b16 %v2148, %v2144
        %v2237 = vpack.c.b16 %v2153, %v2149
        %v2238 = vpack.c.b16 %v2154, %v2150
        %v2239 = vpack.c.b16 %v2155, %v2151
        %v2240 = vpack.c.b16 %v2156, %v2152
        %v2241 = vpack.c.b16 %v2161, %v2157
        %v2242 = vpack.c.b16 %v2162, %v2158
        %v2243 = vpack.c.b16 %v2163, %v2159
        %v2244 = vpack.c.b16 %v2164, %v2160
        %v2245 = vpack.c.b16 %v2169, %v2165
        %v2246 = vpack.c.b16 %v2170, %v2166
        %v2247 = vpack.c.b16 %v2171, %v2167
        %v2248 = vpack.c.b16 %v2172, %v2168
        %v2249 = vpack.c.b16 %v2177, %v2173
        %v2250 = vpack.c.b16 %v2178, %v2174
        %v2251 = vpack.c.b16 %v2179, %v2175
        %v2252 = vpack.c.b16 %v2180, %v2176
        %v2253 = vpack.c.b16 %v2185, %v2181
        %v2254 = vpack.c.b16 %v2186, %v2182
        %v2255 = vpack.c.b16 %v2187, %v2183
        %v2256 = vpack.c.b16 %v2188, %v2184
        %v2257 = vpack.c.b16 %v2193, %v2189
        %v2258 = vpack.c.b16 %v2194, %v2190
        %v2259 = vpack.c.b16 %v2195, %v2191
        %v2260 = vpack.c.b16 %v2196, %v2192
        %2325 = vmatpush.bf16.msra.mxu0 %v2225
        %2326 = vmatpush.bf16.msra.mxu0 %v2221
        %2327 = vmatpush.bf16.msra.mxu0 %v2217
        %2328 = vmatpush.bf16.msra.mxu0 %v2213
        %2329 = vmatpush.bf16.msra.mxu0 %v2209
        %2330 = vmatpush.bf16.msra.mxu0 %v2205
        %2331 = vmatpush.bf16.msra.mxu0 %v2201
        %2332 = vmatpush.bf16.msra.mxu0 %v2197
        %2333 = vmatmul.bf16.gmra.mxu0 %v1935
        %v2334 = vpop.f32.mrf.mxu0
        %v2335 = vadd.f32 0.0, %v2334
        %v2336 = vpop.f32.mrf.mxu0
        %2337 = vdwg.mxu0
        %2338 = vmatpush.bf16.msra.mxu0 %v2257
        %2339 = vmatpush.bf16.msra.mxu0 %v2253
        %2340 = vmatpush.bf16.msra.mxu0 %v2249
        %2341 = vmatpush.bf16.msra.mxu0 %v2245
        %2342 = vmatpush.bf16.msra.mxu0 %v2241
        %2343 = vmatpush.bf16.msra.mxu0 %v2237
        %2344 = vmatpush.bf16.msra.mxu0 %v2233
        %2345 = vmatpush.bf16.msra.mxu0 %v2229
        %2346 = vmatmul.bf16.gmra.mxu0 %v1833
        %v2347 = vpop.f32.mrf.mxu0
        %v2348 = vadd.f32 %v2335, %v2347
        %v2349 = vpop.f32.mrf.mxu0
        %2350 = vdwg.mxu0
        %2351 = vmatpush.bf16.msra.mxu0 %v2226
        %2352 = vmatpush.bf16.msra.mxu0 %v2222
        %2353 = vmatpush.bf16.msra.mxu0 %v2218
        %2354 = vmatpush.bf16.msra.mxu0 %v2214
        %2355 = vmatpush.bf16.msra.mxu0 %v2210
        %2356 = vmatpush.bf16.msra.mxu0 %v2206
        %2357 = vmatpush.bf16.msra.mxu0 %v2202
        %2358 = vmatpush.bf16.msra.mxu0 %v2198
        %2359 = vmatmul.bf16.gmra.mxu0 %v1935
        %v2360 = vpop.f32.mrf.mxu0
        %v2361 = vadd.f32 0.0, %v2360
        %v2362 = vpop.f32.mrf.mxu0
        %2363 = vdwg.mxu0
        %2364 = vmatpush.bf16.msra.mxu0 %v2258
        %2365 = vmatpush.bf16.msra.mxu0 %v2254
        %2366 = vmatpush.bf16.msra.mxu0 %v2250
        %2367 = vmatpush.bf16.msra.mxu0 %v2246
        %2368 = vmatpush.bf16.msra.mxu0 %v2242
        %2369 = vmatpush.bf16.msra.mxu0 %v2238
        %2370 = vmatpush.bf16.msra.mxu0 %v2234
        %2371 = vmatpush.bf16.msra.mxu0 %v2230
        %2372 = vmatmul.bf16.gmra.mxu0 %v1833
        %v2373 = vpop.f32.mrf.mxu0
        %v2374 = vadd.f32 %v2361, %v2373
        %v2375 = vpop.f32.mrf.mxu0
        %2376 = vdwg.mxu0
        %2377 = vmatpush.bf16.msra.mxu0 %v2227
        %2378 = vmatpush.bf16.msra.mxu0 %v2223
        %2379 = vmatpush.bf16.msra.mxu0 %v2219
        %2380 = vmatpush.bf16.msra.mxu0 %v2215
        %2381 = vmatpush.bf16.msra.mxu0 %v2211
        %2382 = vmatpush.bf16.msra.mxu0 %v2207
        %2383 = vmatpush.bf16.msra.mxu0 %v2203
        %2384 = vmatpush.bf16.msra.mxu0 %v2199
        %2385 = vmatmul.bf16.gmra.mxu0 %v1935
        %v2386 = vpop.f32.mrf.mxu0
        %v2387 = vadd.f32 0.0, %v2386
        %v2388 = vpop.f32.mrf.mxu0
        %2389 = vdwg.mxu0
        %2390 = vmatpush.bf16.msra.mxu0 %v2259
        %2391 = vmatpush.bf16.msra.mxu0 %v2255
        %2392 = vmatpush.bf16.msra.mxu0 %v2251
        %2393 = vmatpush.bf16.msra.mxu0 %v2247
        %2394 = vmatpush.bf16.msra.mxu0 %v2243
        %2395 = vmatpush.bf16.msra.mxu0 %v2239
        %2396 = vmatpush.bf16.msra.mxu0 %v2235
        %2397 = vmatpush.bf16.msra.mxu0 %v2231
        %2398 = vmatmul.bf16.gmra.mxu0 %v1833
        %v2399 = vpop.f32.mrf.mxu0
        %v2400 = vadd.f32 %v2387, %v2399
        %v2401 = vpop.f32.mrf.mxu0
        %2402 = vdwg.mxu0
        %2403 = vmatpush.bf16.msra.mxu0 %v2228
        %2404 = vmatpush.bf16.msra.mxu0 %v2224
        %2405 = vmatpush.bf16.msra.mxu0 %v2220
        %2406 = vmatpush.bf16.msra.mxu0 %v2216
        %2407 = vmatpush.bf16.msra.mxu0 %v2212
        %2408 = vmatpush.bf16.msra.mxu0 %v2208
        %2409 = vmatpush.bf16.msra.mxu0 %v2204
        %2410 = vmatpush.bf16.msra.mxu0 %v2200
        %2411 = vmatmul.bf16.gmra.mxu0 %v1935
        %v2412 = vpop.f32.mrf.mxu0
        %v2413 = vadd.f32 0.0, %v2412
        %v2414 = vpop.f32.mrf.mxu0
        %2415 = vdwg.mxu0
        %2416 = vmatpush.bf16.msra.mxu0 %v2260
        %2417 = vmatpush.bf16.msra.mxu0 %v2256
        %2418 = vmatpush.bf16.msra.mxu0 %v2252
        %2419 = vmatpush.bf16.msra.mxu0 %v2248
        %2420 = vmatpush.bf16.msra.mxu0 %v2244
        %2421 = vmatpush.bf16.msra.mxu0 %v2240
        %2422 = vmatpush.bf16.msra.mxu0 %v2236
        %2423 = vmatpush.bf16.msra.mxu0 %v2232
        %2424 = vmatmul.bf16.gmra.mxu0 %v1833
        %v2425 = vpop.f32.mrf.mxu0
        %v2426 = vadd.f32 %v2413, %v2425
        %v2427 = vpop.f32.mrf.mxu0
        %2428 = vdwg.mxu0
        %v2429 = vadd.f32 %v1937, %v2348
        %v2430 = vadd.f32 %v1938, %v2374
        %v2431 = vadd.f32 %v1939, %v2400
        %v2432 = vadd.f32 %v1940, %v2426
        %v2433 = vxor.u32 %v2429, 2147483648
        %v2434 = vmul.f32 %v2433, 1.442695
        %v2435 = vpow.pop %v2434
        %v2436 = vadd.f32 %v2435, 1.0
        %v2437 = vrcp.pop %v2436
        %v2438 = vmul.f32 %v2436, %v2437
        %v2439 = vsub.f32 1.0, %v2438
        %v2440 = vmul.f32 %v2437, %v2439
        %v2441 = vadd.f32 %v2437, %v2440
        %vm2442 = vweird.f32 %v2436
        %vm2443 = vweird.f32 %v2437
        %vm2444 = vmor %vm2442, %vm2443
        %v2445 = vsel %vm2444, %v2437, %v2441
        %v2446 = vand.u32 2147483647, %v2436
        %vm2447 = vcmp.eq.f32.partialorder %v2446, 8.507059e+37
        %v2448 = vand.u32 %v2436, 2147483648
        %v2449 = vor.u32 1.1754944e-38, %v2448
        %v2450 = vsel %vm2447, %v2449, %v2445
        %v2451 = vmul.f32 1.0, %v2450
        %v2452 = vxor.u32 %v2430, 2147483648
        %v2453 = vmul.f32 %v2452, 1.442695
        %v2454 = vpow.pop %v2453
        %v2455 = vadd.f32 %v2454, 1.0
        %v2456 = vrcp.pop %v2455
        %v2457 = vmul.f32 %v2455, %v2456
        %v2458 = vsub.f32 1.0, %v2457
        %v2459 = vmul.f32 %v2456, %v2458
        %v2460 = vadd.f32 %v2456, %v2459
        %vm2461 = vweird.f32 %v2455
        %vm2462 = vweird.f32 %v2456
        %vm2463 = vmor %vm2461, %vm2462
        %v2464 = vsel %vm2463, %v2456, %v2460
        %v2465 = vand.u32 2147483647, %v2455
        %vm2466 = vcmp.eq.f32.partialorder %v2465, 8.507059e+37
        %v2467 = vand.u32 %v2455, 2147483648
        %v2468 = vor.u32 1.1754944e-38, %v2467
        %v2469 = vsel %vm2466, %v2468, %v2464
        %v2470 = vmul.f32 1.0, %v2469
        %v2471 = vtanh.pop %v2431
        %v2472 = vxor.u32 %v2432, 2147483648
        %v2473 = vmul.f32 %v2472, 1.442695
        %v2474 = vpow.pop %v2473
        %v2475 = vadd.f32 %v2474, 1.0
        %v2476 = vrcp.pop %v2475
        %v2477 = vmul.f32 %v2475, %v2476
        %v2478 = vsub.f32 1.0, %v2477
        %v2479 = vmul.f32 %v2476, %v2478
        %v2480 = vadd.f32 %v2476, %v2479
        %vm2481 = vweird.f32 %v2475
        %vm2482 = vweird.f32 %v2476
        %vm2483 = vmor %vm2481, %vm2482
        %v2484 = vsel %vm2483, %v2476, %v2480
        %v2485 = vand.u32 2147483647, %v2475
        %vm2486 = vcmp.eq.f32.partialorder %v2485, 8.507059e+37
        %v2487 = vand.u32 %v2475, 2147483648
        %v2488 = vor.u32 1.1754944e-38, %v2487
        %v2489 = vsel %vm2486, %v2488, %v2484
        %v2490 = vmul.f32 1.0, %v2489
        %v2491 = vmul.f32 %v2470, %v1832
        %v2492 = vmul.f32 %v2451, %v2471
        %v2493 = vadd.f32 %v2491, %v2492
        %v2494 = vtanh.pop %v2493
        %v2495 = vmul.f32 %v2490, %v2494
        %v2496 = vsel %vm1830, 1, 0
        %2497 = vset.pattern.permute.xlu0 0
        %2498 = vperm.xlu0 %2497, %v2496
        %v2499 = vpop.permute.xlu0 %2498
        %vm2500 = vcmp.eq.s32.totalorder %v2499, 1
        %v2501 = vsel %vm2500, %v2495, %v1831
        %2502 = vst [vmem:[#allocation2] sm:$0xff] %v2501
        %v2503 = vsel %vm2500, %v2493, %v1832
        %2504 = vst [vmem:[#allocation3] sm:$0xff] %v2503
        %s2505 = scalar_lea.vmem [#allocation4], 16
        %2506 = vst [vmem:[%s2505] sm:$0xff] %v2495
        %s2507 = sadd.s32 %s472, 3
        %v2508 = vstv %s2507
        %vm2509 = vcmp.gt.s32.totalorder %v471, %v2508
        %v2510 = vld [vmem:[#allocation2] sm:$0xff]
        %v2511 = vld [vmem:[#allocation3] sm:$0xff]
        %v2512 = vpack.c.bf16 %v2510, %v2510
        %v2513 = vld [vmem:[#allocation11] sm:$0xf]
        %v2514 = vld [vmem:[#allocation11 + $0x4] sm:$0xf]
        %v2515 = vld [vmem:[#allocation11 + $0x8] sm:$0xf]
        %v2516 = vld [vmem:[#allocation11 + $0xc] sm:$0xf]
        %v2517 = vld [vmem:[#allocation11 + $0x10] sm:$0xf]
        %v2518 = vld [vmem:[#allocation11 + $0x14] sm:$0xf]
        %v2519 = vld [vmem:[#allocation11 + $0x18] sm:$0xf]
        %v2520 = vld [vmem:[#allocation11 + $0x1c] sm:$0xf]
        %v2521 = vld [vmem:[#allocation11 + $0x20] sm:$0xf]
        %v2522 = vld [vmem:[#allocation11 + $0x24] sm:$0xf]
        %v2523 = vld [vmem:[#allocation11 + $0x28] sm:$0xf]
        %v2524 = vld [vmem:[#allocation11 + $0x2c] sm:$0xf]
        %v2525 = vld [vmem:[#allocation11 + $0x30] sm:$0xf]
        %v2526 = vld [vmem:[#allocation11 + $0x34] sm:$0xf]
        %v2527 = vld [vmem:[#allocation11 + $0x38] sm:$0xf]
        %v2528 = vld [vmem:[#allocation11 + $0x3c] sm:$0xf]
        %v2529 = vld [vmem:[%s6] sm:$0x1]
        %v2531 = vperm.slane %v2529, 0
        %v2549 = vunpack.c.l.b16 %v2513
        %v2550 = vunpack.c.l.b16 %v2514
        %v2551 = vunpack.c.l.b16 %v2515
        %v2552 = vunpack.c.l.b16 %v2516
        %v2553 = vunpack.c.l.b16 %v2517
        %v2554 = vunpack.c.l.b16 %v2518
        %v2555 = vunpack.c.l.b16 %v2519
        %v2556 = vunpack.c.l.b16 %v2520
        %v2557 = vunpack.c.l.b16 %v2521
        %v2558 = vunpack.c.l.b16 %v2522
        %v2559 = vunpack.c.l.b16 %v2523
        %v2560 = vunpack.c.l.b16 %v2524
        %v2561 = vunpack.c.l.b16 %v2525
        %v2562 = vunpack.c.l.b16 %v2526
        %v2563 = vunpack.c.l.b16 %v2527
        %v2564 = vunpack.c.l.b16 %v2528
        %v2565 = vpack.c.b16 %v2550, %v2549
        %v2566 = vpack.c.b16 %v2552, %v2551
        %v2567 = vpack.c.b16 %v2554, %v2553
        %v2568 = vpack.c.b16 %v2556, %v2555
        %v2569 = vpack.c.b16 %v2558, %v2557
        %v2570 = vpack.c.b16 %v2560, %v2559
        %v2571 = vpack.c.b16 %v2562, %v2561
        %v2572 = vpack.c.b16 %v2564, %v2563
        %2581 = vmatpush.bf16.msra.mxu0 %v2572
        %2582 = vmatpush.bf16.msra.mxu0 %v2571
        %2583 = vmatpush.bf16.msra.mxu0 %v2570
        %2584 = vmatpush.bf16.msra.mxu0 %v2569
        %2585 = vmatpush.bf16.msra.mxu0 %v2568
        %2586 = vmatpush.bf16.msra.mxu0 %v2567
        %2587 = vmatpush.bf16.msra.mxu0 %v2566
        %2588 = vmatpush.bf16.msra.mxu0 %v2565
        %2589 = vmatmul.bf16.gmra.mxu0 %v2512
        %v2590 = vpop.f32.mrf.mxu0
        %v2591 = vadd.f32 %v2531, %v2590
        %v2592 = vpop.f32.mrf.mxu0
        %2593 = vdwg.mxu0
        %v2594 = vxor.u32 %v2591, 2147483648
        %v2595 = vmul.f32 %v2594, 1.442695
        %v2596 = vpow.pop %v2595
        %v2597 = vadd.f32 %v2596, 1.0
        %v2598 = vrcp.pop %v2597
        %v2599 = vmul.f32 %v2597, %v2598
        %v2600 = vsub.f32 1.0, %v2599
        %v2601 = vmul.f32 %v2598, %v2600
        %v2602 = vadd.f32 %v2598, %v2601
        %vm2603 = vweird.f32 %v2597
        %vm2604 = vweird.f32 %v2598
        %vm2605 = vmor %vm2603, %vm2604
        %v2606 = vsel %vm2605, %v2598, %v2602
        %v2607 = vand.u32 2147483647, %v2597
        %vm2608 = vcmp.eq.f32.partialorder %v2607, 8.507059e+37
        %v2609 = vand.u32 %v2597, 2147483648
        %v2610 = vor.u32 1.1754944e-38, %v2609
        %v2611 = vsel %vm2608, %v2610, %v2606
        %v2612 = vmul.f32 1.0, %v2611
        %v2613 = vmul.f32 %v2612, %v470
        %v2614 = vpack.c.bf16 %v2613, %v2613
        %s2615 = scalar_lea.vmem %s397, 96 [#allocation5]
        %v2616 = vld [vmem:[%s2615] sm:$0xff]
        %v2617 = vld [vmem:[%s2615 + $0x8] sm:$0xff]
        %v2618 = vld [vmem:[%s2615 + $0x10] sm:$0xff]
        %v2619 = vld [vmem:[%s2615 + $0x18] sm:$0xff]
        %v2620 = vld [vmem:[#allocation13] sm:$0xff]
        %v2621 = vld [vmem:[#allocation13 + $0x8] sm:$0xff]
        %v2622 = vld [vmem:[#allocation13 + $0x10] sm:$0xff]
        %v2623 = vld [vmem:[#allocation13 + $0x18] sm:$0xff]
        %v2624 = vld [vmem:[#allocation13 + $0x20] sm:$0xff]
        %v2625 = vld [vmem:[#allocation13 + $0x28] sm:$0xff]
        %v2626 = vld [vmem:[#allocation13 + $0x30] sm:$0xff]
        %v2627 = vld [vmem:[#allocation13 + $0x38] sm:$0xff]
        %v2628 = vld [vmem:[#allocation13 + $0x40] sm:$0xff]
        %v2629 = vld [vmem:[#allocation13 + $0x48] sm:$0xff]
        %v2630 = vld [vmem:[#allocation13 + $0x50] sm:$0xff]
        %v2631 = vld [vmem:[#allocation13 + $0x58] sm:$0xff]
        %v2632 = vld [vmem:[#allocation13 + $0x60] sm:$0xff]
        %v2633 = vld [vmem:[#allocation13 + $0x68] sm:$0xff]
        %v2634 = vld [vmem:[#allocation13 + $0x70] sm:$0xff]
        %v2635 = vld [vmem:[#allocation13 + $0x78] sm:$0xff]
        %v2636 = vld [vmem:[#allocation13 + $0x80] sm:$0xff]
        %v2637 = vld [vmem:[#allocation13 + $0x88] sm:$0xff]
        %v2638 = vld [vmem:[#allocation13 + $0x90] sm:$0xff]
        %v2639 = vld [vmem:[#allocation13 + $0x98] sm:$0xff]
        %v2640 = vld [vmem:[#allocation13 + $0xa0] sm:$0xff]
        %v2641 = vld [vmem:[#allocation13 + $0xa8] sm:$0xff]
        %v2642 = vld [vmem:[#allocation13 + $0xb0] sm:$0xff]
        %v2643 = vld [vmem:[#allocation13 + $0xb8] sm:$0xff]
        %v2644 = vld [vmem:[#allocation13 + $0xc0] sm:$0xff]
        %v2645 = vld [vmem:[#allocation13 + $0xc8] sm:$0xff]
        %v2646 = vld [vmem:[#allocation13 + $0xd0] sm:$0xff]
        %v2647 = vld [vmem:[#allocation13 + $0xd8] sm:$0xff]
        %v2648 = vld [vmem:[#allocation13 + $0xe0] sm:$0xff]
        %v2649 = vld [vmem:[#allocation13 + $0xe8] sm:$0xff]
        %v2650 = vld [vmem:[#allocation13 + $0xf0] sm:$0xff]
        %v2651 = vld [vmem:[#allocation13 + $0xf8] sm:$0xff]
        %v2652 = vld [vmem:[#allocation13 + $0x100] sm:$0xff]
        %v2653 = vld [vmem:[#allocation13 + $0x108] sm:$0xff]
        %v2654 = vld [vmem:[#allocation13 + $0x110] sm:$0xff]
        %v2655 = vld [vmem:[#allocation13 + $0x118] sm:$0xff]
        %v2656 = vld [vmem:[#allocation13 + $0x120] sm:$0xff]
        %v2657 = vld [vmem:[#allocation13 + $0x128] sm:$0xff]
        %v2658 = vld [vmem:[#allocation13 + $0x130] sm:$0xff]
        %v2659 = vld [vmem:[#allocation13 + $0x138] sm:$0xff]
        %v2660 = vld [vmem:[#allocation13 + $0x140] sm:$0xff]
        %v2661 = vld [vmem:[#allocation13 + $0x148] sm:$0xff]
        %v2662 = vld [vmem:[#allocation13 + $0x150] sm:$0xff]
        %v2663 = vld [vmem:[#allocation13 + $0x158] sm:$0xff]
        %v2664 = vld [vmem:[#allocation13 + $0x160] sm:$0xff]
        %v2665 = vld [vmem:[#allocation13 + $0x168] sm:$0xff]
        %v2666 = vld [vmem:[#allocation13 + $0x170] sm:$0xff]
        %v2667 = vld [vmem:[#allocation13 + $0x178] sm:$0xff]
        %v2668 = vld [vmem:[#allocation13 + $0x180] sm:$0xff]
        %v2669 = vld [vmem:[#allocation13 + $0x188] sm:$0xff]
        %v2670 = vld [vmem:[#allocation13 + $0x190] sm:$0xff]
        %v2671 = vld [vmem:[#allocation13 + $0x198] sm:$0xff]
        %v2672 = vld [vmem:[#allocation13 + $0x1a0] sm:$0xff]
        %v2673 = vld [vmem:[#allocation13 + $0x1a8] sm:$0xff]
        %v2674 = vld [vmem:[#allocation13 + $0x1b0] sm:$0xff]
        %v2675 = vld [vmem:[#allocation13 + $0x1b8] sm:$0xff]
        %v2676 = vld [vmem:[#allocation13 + $0x1c0] sm:$0xff]
        %v2677 = vld [vmem:[#allocation13 + $0x1c8] sm:$0xff]
        %v2678 = vld [vmem:[#allocation13 + $0x1d0] sm:$0xff]
        %v2679 = vld [vmem:[#allocation13 + $0x1d8] sm:$0xff]
        %v2680 = vld [vmem:[#allocation13 + $0x1e0] sm:$0xff]
        %v2681 = vld [vmem:[#allocation13 + $0x1e8] sm:$0xff]
        %v2682 = vld [vmem:[#allocation13 + $0x1f0] sm:$0xff]
        %v2683 = vld [vmem:[#allocation13 + $0x1f8] sm:$0xff]
        %v2748 = vunpack.c.l.b16 %v2620
        %v2749 = vunpack.c.h.b16 %v2620
        %v2750 = vunpack.c.l.b16 %v2621
        %v2751 = vunpack.c.h.b16 %v2621
        %v2752 = vunpack.c.l.b16 %v2622
        %v2753 = vunpack.c.h.b16 %v2622
        %v2754 = vunpack.c.l.b16 %v2623
        %v2755 = vunpack.c.h.b16 %v2623
        %v2756 = vunpack.c.l.b16 %v2624
        %v2757 = vunpack.c.h.b16 %v2624
        %v2758 = vunpack.c.l.b16 %v2625
        %v2759 = vunpack.c.h.b16 %v2625
        %v2760 = vunpack.c.l.b16 %v2626
        %v2761 = vunpack.c.h.b16 %v2626
        %v2762 = vunpack.c.l.b16 %v2627
        %v2763 = vunpack.c.h.b16 %v2627
        %v2764 = vunpack.c.l.b16 %v2628
        %v2765 = vunpack.c.h.b16 %v2628
        %v2766 = vunpack.c.l.b16 %v2629
        %v2767 = vunpack.c.h.b16 %v2629
        %v2768 = vunpack.c.l.b16 %v2630
        %v2769 = vunpack.c.h.b16 %v2630
        %v2770 = vunpack.c.l.b16 %v2631
        %v2771 = vunpack.c.h.b16 %v2631
        %v2772 = vunpack.c.l.b16 %v2632
        %v2773 = vunpack.c.h.b16 %v2632
        %v2774 = vunpack.c.l.b16 %v2633
        %v2775 = vunpack.c.h.b16 %v2633
        %v2776 = vunpack.c.l.b16 %v2634
        %v2777 = vunpack.c.h.b16 %v2634
        %v2778 = vunpack.c.l.b16 %v2635
        %v2779 = vunpack.c.h.b16 %v2635
        %v2780 = vunpack.c.l.b16 %v2636
        %v2781 = vunpack.c.h.b16 %v2636
        %v2782 = vunpack.c.l.b16 %v2637
        %v2783 = vunpack.c.h.b16 %v2637
        %v2784 = vunpack.c.l.b16 %v2638
        %v2785 = vunpack.c.h.b16 %v2638
        %v2786 = vunpack.c.l.b16 %v2639
        %v2787 = vunpack.c.h.b16 %v2639
        %v2788 = vunpack.c.l.b16 %v2640
        %v2789 = vunpack.c.h.b16 %v2640
        %v2790 = vunpack.c.l.b16 %v2641
        %v2791 = vunpack.c.h.b16 %v2641
        %v2792 = vunpack.c.l.b16 %v2642
        %v2793 = vunpack.c.h.b16 %v2642
        %v2794 = vunpack.c.l.b16 %v2643
        %v2795 = vunpack.c.h.b16 %v2643
        %v2796 = vunpack.c.l.b16 %v2644
        %v2797 = vunpack.c.h.b16 %v2644
        %v2798 = vunpack.c.l.b16 %v2645
        %v2799 = vunpack.c.h.b16 %v2645
        %v2800 = vunpack.c.l.b16 %v2646
        %v2801 = vunpack.c.h.b16 %v2646
        %v2802 = vunpack.c.l.b16 %v2647
        %v2803 = vunpack.c.h.b16 %v2647
        %v2804 = vunpack.c.l.b16 %v2648
        %v2805 = vunpack.c.h.b16 %v2648
        %v2806 = vunpack.c.l.b16 %v2649
        %v2807 = vunpack.c.h.b16 %v2649
        %v2808 = vunpack.c.l.b16 %v2650
        %v2809 = vunpack.c.h.b16 %v2650
        %v2810 = vunpack.c.l.b16 %v2651
        %v2811 = vunpack.c.h.b16 %v2651
        %v2812 = vunpack.c.l.b16 %v2652
        %v2813 = vunpack.c.h.b16 %v2652
        %v2814 = vunpack.c.l.b16 %v2653
        %v2815 = vunpack.c.h.b16 %v2653
        %v2816 = vunpack.c.l.b16 %v2654
        %v2817 = vunpack.c.h.b16 %v2654
        %v2818 = vunpack.c.l.b16 %v2655
        %v2819 = vunpack.c.h.b16 %v2655
        %v2820 = vunpack.c.l.b16 %v2656
        %v2821 = vunpack.c.h.b16 %v2656
        %v2822 = vunpack.c.l.b16 %v2657
        %v2823 = vunpack.c.h.b16 %v2657
        %v2824 = vunpack.c.l.b16 %v2658
        %v2825 = vunpack.c.h.b16 %v2658
        %v2826 = vunpack.c.l.b16 %v2659
        %v2827 = vunpack.c.h.b16 %v2659
        %v2828 = vunpack.c.l.b16 %v2660
        %v2829 = vunpack.c.h.b16 %v2660
        %v2830 = vunpack.c.l.b16 %v2661
        %v2831 = vunpack.c.h.b16 %v2661
        %v2832 = vunpack.c.l.b16 %v2662
        %v2833 = vunpack.c.h.b16 %v2662
        %v2834 = vunpack.c.l.b16 %v2663
        %v2835 = vunpack.c.h.b16 %v2663
        %v2836 = vunpack.c.l.b16 %v2664
        %v2837 = vunpack.c.h.b16 %v2664
        %v2838 = vunpack.c.l.b16 %v2665
        %v2839 = vunpack.c.h.b16 %v2665
        %v2840 = vunpack.c.l.b16 %v2666
        %v2841 = vunpack.c.h.b16 %v2666
        %v2842 = vunpack.c.l.b16 %v2667
        %v2843 = vunpack.c.h.b16 %v2667
        %v2844 = vunpack.c.l.b16 %v2668
        %v2845 = vunpack.c.h.b16 %v2668
        %v2846 = vunpack.c.l.b16 %v2669
        %v2847 = vunpack.c.h.b16 %v2669
        %v2848 = vunpack.c.l.b16 %v2670
        %v2849 = vunpack.c.h.b16 %v2670
        %v2850 = vunpack.c.l.b16 %v2671
        %v2851 = vunpack.c.h.b16 %v2671
        %v2852 = vunpack.c.l.b16 %v2672
        %v2853 = vunpack.c.h.b16 %v2672
        %v2854 = vunpack.c.l.b16 %v2673
        %v2855 = vunpack.c.h.b16 %v2673
        %v2856 = vunpack.c.l.b16 %v2674
        %v2857 = vunpack.c.h.b16 %v2674
        %v2858 = vunpack.c.l.b16 %v2675
        %v2859 = vunpack.c.h.b16 %v2675
        %v2860 = vunpack.c.l.b16 %v2676
        %v2861 = vunpack.c.h.b16 %v2676
        %v2862 = vunpack.c.l.b16 %v2677
        %v2863 = vunpack.c.h.b16 %v2677
        %v2864 = vunpack.c.l.b16 %v2678
        %v2865 = vunpack.c.h.b16 %v2678
        %v2866 = vunpack.c.l.b16 %v2679
        %v2867 = vunpack.c.h.b16 %v2679
        %v2868 = vunpack.c.l.b16 %v2680
        %v2869 = vunpack.c.h.b16 %v2680
        %v2870 = vunpack.c.l.b16 %v2681
        %v2871 = vunpack.c.h.b16 %v2681
        %v2872 = vunpack.c.l.b16 %v2682
        %v2873 = vunpack.c.h.b16 %v2682
        %v2874 = vunpack.c.l.b16 %v2683
        %v2875 = vunpack.c.h.b16 %v2683
        %v2876 = vpack.c.b16 %v2752, %v2748
        %v2877 = vpack.c.b16 %v2753, %v2749
        %v2878 = vpack.c.b16 %v2754, %v2750
        %v2879 = vpack.c.b16 %v2755, %v2751
        %v2880 = vpack.c.b16 %v2760, %v2756
        %v2881 = vpack.c.b16 %v2761, %v2757
        %v2882 = vpack.c.b16 %v2762, %v2758
        %v2883 = vpack.c.b16 %v2763, %v2759
        %v2884 = vpack.c.b16 %v2768, %v2764
        %v2885 = vpack.c.b16 %v2769, %v2765
        %v2886 = vpack.c.b16 %v2770, %v2766
        %v2887 = vpack.c.b16 %v2771, %v2767
        %v2888 = vpack.c.b16 %v2776, %v2772
        %v2889 = vpack.c.b16 %v2777, %v2773
        %v2890 = vpack.c.b16 %v2778, %v2774
        %v2891 = vpack.c.b16 %v2779, %v2775
        %v2892 = vpack.c.b16 %v2784, %v2780
        %v2893 = vpack.c.b16 %v2785, %v2781
        %v2894 = vpack.c.b16 %v2786, %v2782
        %v2895 = vpack.c.b16 %v2787, %v2783
        %v2896 = vpack.c.b16 %v2792, %v2788
        %v2897 = vpack.c.b16 %v2793, %v2789
        %v2898 = vpack.c.b16 %v2794, %v2790
        %v2899 = vpack.c.b16 %v2795, %v2791
        %v2900 = vpack.c.b16 %v2800, %v2796
        %v2901 = vpack.c.b16 %v2801, %v2797
        %v2902 = vpack.c.b16 %v2802, %v2798
        %v2903 = vpack.c.b16 %v2803, %v2799
        %v2904 = vpack.c.b16 %v2808, %v2804
        %v2905 = vpack.c.b16 %v2809, %v2805
        %v2906 = vpack.c.b16 %v2810, %v2806
        %v2907 = vpack.c.b16 %v2811, %v2807
        %v2908 = vpack.c.b16 %v2816, %v2812
        %v2909 = vpack.c.b16 %v2817, %v2813
        %v2910 = vpack.c.b16 %v2818, %v2814
        %v2911 = vpack.c.b16 %v2819, %v2815
        %v2912 = vpack.c.b16 %v2824, %v2820
        %v2913 = vpack.c.b16 %v2825, %v2821
        %v2914 = vpack.c.b16 %v2826, %v2822
        %v2915 = vpack.c.b16 %v2827, %v2823
        %v2916 = vpack.c.b16 %v2832, %v2828
        %v2917 = vpack.c.b16 %v2833, %v2829
        %v2918 = vpack.c.b16 %v2834, %v2830
        %v2919 = vpack.c.b16 %v2835, %v2831
        %v2920 = vpack.c.b16 %v2840, %v2836
        %v2921 = vpack.c.b16 %v2841, %v2837
        %v2922 = vpack.c.b16 %v2842, %v2838
        %v2923 = vpack.c.b16 %v2843, %v2839
        %v2924 = vpack.c.b16 %v2848, %v2844
        %v2925 = vpack.c.b16 %v2849, %v2845
        %v2926 = vpack.c.b16 %v2850, %v2846
        %v2927 = vpack.c.b16 %v2851, %v2847
        %v2928 = vpack.c.b16 %v2856, %v2852
        %v2929 = vpack.c.b16 %v2857, %v2853
        %v2930 = vpack.c.b16 %v2858, %v2854
        %v2931 = vpack.c.b16 %v2859, %v2855
        %v2932 = vpack.c.b16 %v2864, %v2860
        %v2933 = vpack.c.b16 %v2865, %v2861
        %v2934 = vpack.c.b16 %v2866, %v2862
        %v2935 = vpack.c.b16 %v2867, %v2863
        %v2936 = vpack.c.b16 %v2872, %v2868
        %v2937 = vpack.c.b16 %v2873, %v2869
        %v2938 = vpack.c.b16 %v2874, %v2870
        %v2939 = vpack.c.b16 %v2875, %v2871
        %3004 = vmatpush.bf16.msra.mxu0 %v2904
        %3005 = vmatpush.bf16.msra.mxu0 %v2900
        %3006 = vmatpush.bf16.msra.mxu0 %v2896
        %3007 = vmatpush.bf16.msra.mxu0 %v2892
        %3008 = vmatpush.bf16.msra.mxu0 %v2888
        %3009 = vmatpush.bf16.msra.mxu0 %v2884
        %3010 = vmatpush.bf16.msra.mxu0 %v2880
        %3011 = vmatpush.bf16.msra.mxu0 %v2876
        %3012 = vmatmul.bf16.gmra.mxu0 %v2614
        %v3013 = vpop.f32.mrf.mxu0
        %v3014 = vadd.f32 0.0, %v3013
        %v3015 = vpop.f32.mrf.mxu0
        %3016 = vdwg.mxu0
        %3017 = vmatpush.bf16.msra.mxu0 %v2936
        %3018 = vmatpush.bf16.msra.mxu0 %v2932
        %3019 = vmatpush.bf16.msra.mxu0 %v2928
        %3020 = vmatpush.bf16.msra.mxu0 %v2924
        %3021 = vmatpush.bf16.msra.mxu0 %v2920
        %3022 = vmatpush.bf16.msra.mxu0 %v2916
        %3023 = vmatpush.bf16.msra.mxu0 %v2912
        %3024 = vmatpush.bf16.msra.mxu0 %v2908
        %3025 = vmatmul.bf16.gmra.mxu0 %v2512
        %v3026 = vpop.f32.mrf.mxu0
        %v3027 = vadd.f32 %v3014, %v3026
        %v3028 = vpop.f32.mrf.mxu0
        %3029 = vdwg.mxu0
        %3030 = vmatpush.bf16.msra.mxu0 %v2905
        %3031 = vmatpush.bf16.msra.mxu0 %v2901
        %3032 = vmatpush.bf16.msra.mxu0 %v2897
        %3033 = vmatpush.bf16.msra.mxu0 %v2893
        %3034 = vmatpush.bf16.msra.mxu0 %v2889
        %3035 = vmatpush.bf16.msra.mxu0 %v2885
        %3036 = vmatpush.bf16.msra.mxu0 %v2881
        %3037 = vmatpush.bf16.msra.mxu0 %v2877
        %3038 = vmatmul.bf16.gmra.mxu0 %v2614
        %v3039 = vpop.f32.mrf.mxu0
        %v3040 = vadd.f32 0.0, %v3039
        %v3041 = vpop.f32.mrf.mxu0
        %3042 = vdwg.mxu0
        %3043 = vmatpush.bf16.msra.mxu0 %v2937
        %3044 = vmatpush.bf16.msra.mxu0 %v2933
        %3045 = vmatpush.bf16.msra.mxu0 %v2929
        %3046 = vmatpush.bf16.msra.mxu0 %v2925
        %3047 = vmatpush.bf16.msra.mxu0 %v2921
        %3048 = vmatpush.bf16.msra.mxu0 %v2917
        %3049 = vmatpush.bf16.msra.mxu0 %v2913
        %3050 = vmatpush.bf16.msra.mxu0 %v2909
        %3051 = vmatmul.bf16.gmra.mxu0 %v2512
        %v3052 = vpop.f32.mrf.mxu0
        %v3053 = vadd.f32 %v3040, %v3052
        %v3054 = vpop.f32.mrf.mxu0
        %3055 = vdwg.mxu0
        %3056 = vmatpush.bf16.msra.mxu0 %v2906
        %3057 = vmatpush.bf16.msra.mxu0 %v2902
        %3058 = vmatpush.bf16.msra.mxu0 %v2898
        %3059 = vmatpush.bf16.msra.mxu0 %v2894
        %3060 = vmatpush.bf16.msra.mxu0 %v2890
        %3061 = vmatpush.bf16.msra.mxu0 %v2886
        %3062 = vmatpush.bf16.msra.mxu0 %v2882
        %3063 = vmatpush.bf16.msra.mxu0 %v2878
        %3064 = vmatmul.bf16.gmra.mxu0 %v2614
        %v3065 = vpop.f32.mrf.mxu0
        %v3066 = vadd.f32 0.0, %v3065
        %v3067 = vpop.f32.mrf.mxu0
        %3068 = vdwg.mxu0
        %3069 = vmatpush.bf16.msra.mxu0 %v2938
        %3070 = vmatpush.bf16.msra.mxu0 %v2934
        %3071 = vmatpush.bf16.msra.mxu0 %v2930
        %3072 = vmatpush.bf16.msra.mxu0 %v2926
        %3073 = vmatpush.bf16.msra.mxu0 %v2922
        %3074 = vmatpush.bf16.msra.mxu0 %v2918
        %3075 = vmatpush.bf16.msra.mxu0 %v2914
        %3076 = vmatpush.bf16.msra.mxu0 %v2910
        %3077 = vmatmul.bf16.gmra.mxu0 %v2512
        %v3078 = vpop.f32.mrf.mxu0
        %v3079 = vadd.f32 %v3066, %v3078
        %v3080 = vpop.f32.mrf.mxu0
        %3081 = vdwg.mxu0
        %3082 = vmatpush.bf16.msra.mxu0 %v2907
        %3083 = vmatpush.bf16.msra.mxu0 %v2903
        %3084 = vmatpush.bf16.msra.mxu0 %v2899
        %3085 = vmatpush.bf16.msra.mxu0 %v2895
        %3086 = vmatpush.bf16.msra.mxu0 %v2891
        %3087 = vmatpush.bf16.msra.mxu0 %v2887
        %3088 = vmatpush.bf16.msra.mxu0 %v2883
        %3089 = vmatpush.bf16.msra.mxu0 %v2879
        %3090 = vmatmul.bf16.gmra.mxu0 %v2614
        %v3091 = vpop.f32.mrf.mxu0
        %v3092 = vadd.f32 0.0, %v3091
        %v3093 = vpop.f32.mrf.mxu0
        %3094 = vdwg.mxu0
        %3095 = vmatpush.bf16.msra.mxu0 %v2939
        %3096 = vmatpush.bf16.msra.mxu0 %v2935
        %3097 = vmatpush.bf16.msra.mxu0 %v2931
        %3098 = vmatpush.bf16.msra.mxu0 %v2927
        %3099 = vmatpush.bf16.msra.mxu0 %v2923
        %3100 = vmatpush.bf16.msra.mxu0 %v2919
        %3101 = vmatpush.bf16.msra.mxu0 %v2915
        %3102 = vmatpush.bf16.msra.mxu0 %v2911
        %3103 = vmatmul.bf16.gmra.mxu0 %v2512
        %v3104 = vpop.f32.mrf.mxu0
        %v3105 = vadd.f32 %v3092, %v3104
        %v3106 = vpop.f32.mrf.mxu0
        %3107 = vdwg.mxu0
        %v3108 = vadd.f32 %v2616, %v3027
        %v3109 = vadd.f32 %v2617, %v3053
        %v3110 = vadd.f32 %v2618, %v3079
        %v3111 = vadd.f32 %v2619, %v3105
        %v3112 = vxor.u32 %v3108, 2147483648
        %v3113 = vmul.f32 %v3112, 1.442695
        %v3114 = vpow.pop %v3113
        %v3115 = vadd.f32 %v3114, 1.0
        %v3116 = vrcp.pop %v3115
        %v3117 = vmul.f32 %v3115, %v3116
        %v3118 = vsub.f32 1.0, %v3117
        %v3119 = vmul.f32 %v3116, %v3118
        %v3120 = vadd.f32 %v3116, %v3119
        %vm3121 = vweird.f32 %v3115
        %vm3122 = vweird.f32 %v3116
        %vm3123 = vmor %vm3121, %vm3122
        %v3124 = vsel %vm3123, %v3116, %v3120
        %v3125 = vand.u32 2147483647, %v3115
        %vm3126 = vcmp.eq.f32.partialorder %v3125, 8.507059e+37
        %v3127 = vand.u32 %v3115, 2147483648
        %v3128 = vor.u32 1.1754944e-38, %v3127
        %v3129 = vsel %vm3126, %v3128, %v3124
        %v3130 = vmul.f32 1.0, %v3129
        %v3131 = vxor.u32 %v3109, 2147483648
        %v3132 = vmul.f32 %v3131, 1.442695
        %v3133 = vpow.pop %v3132
        %v3134 = vadd.f32 %v3133, 1.0
        %v3135 = vrcp.pop %v3134
        %v3136 = vmul.f32 %v3134, %v3135
        %v3137 = vsub.f32 1.0, %v3136
        %v3138 = vmul.f32 %v3135, %v3137
        %v3139 = vadd.f32 %v3135, %v3138
        %vm3140 = vweird.f32 %v3134
        %vm3141 = vweird.f32 %v3135
        %vm3142 = vmor %vm3140, %vm3141
        %v3143 = vsel %vm3142, %v3135, %v3139
        %v3144 = vand.u32 2147483647, %v3134
        %vm3145 = vcmp.eq.f32.partialorder %v3144, 8.507059e+37
        %v3146 = vand.u32 %v3134, 2147483648
        %v3147 = vor.u32 1.1754944e-38, %v3146
        %v3148 = vsel %vm3145, %v3147, %v3143
        %v3149 = vmul.f32 1.0, %v3148
        %v3150 = vtanh.pop %v3110
        %v3151 = vxor.u32 %v3111, 2147483648
        %v3152 = vmul.f32 %v3151, 1.442695
        %v3153 = vpow.pop %v3152
        %v3154 = vadd.f32 %v3153, 1.0
        %v3155 = vrcp.pop %v3154
        %v3156 = vmul.f32 %v3154, %v3155
        %v3157 = vsub.f32 1.0, %v3156
        %v3158 = vmul.f32 %v3155, %v3157
        %v3159 = vadd.f32 %v3155, %v3158
        %vm3160 = vweird.f32 %v3154
        %vm3161 = vweird.f32 %v3155
        %vm3162 = vmor %vm3160, %vm3161
        %v3163 = vsel %vm3162, %v3155, %v3159
        %v3164 = vand.u32 2147483647, %v3154
        %vm3165 = vcmp.eq.f32.partialorder %v3164, 8.507059e+37
        %v3166 = vand.u32 %v3154, 2147483648
        %v3167 = vor.u32 1.1754944e-38, %v3166
        %v3168 = vsel %vm3165, %v3167, %v3163
        %v3169 = vmul.f32 1.0, %v3168
        %v3170 = vmul.f32 %v3149, %v2511
        %v3171 = vmul.f32 %v3130, %v3150
        %v3172 = vadd.f32 %v3170, %v3171
        %v3173 = vtanh.pop %v3172
        %v3174 = vmul.f32 %v3169, %v3173
        %v3175 = vsel %vm2509, 1, 0
        %3176 = vset.pattern.permute.xlu0 0
        %3177 = vperm.xlu0 %3176, %v3175
        %v3178 = vpop.permute.xlu0 %3177
        %vm3179 = vcmp.eq.s32.totalorder %v3178, 1
        %v3180 = vsel %vm3179, %v3174, %v2510
        %3181 = vst [vmem:[#allocation2] sm:$0xff] %v3180
        %v3182 = vsel %vm3179, %v3172, %v2511
        %3183 = vst [vmem:[#allocation3] sm:$0xff] %v3182
        %s3184 = scalar_lea.vmem [#allocation4], 24
        %3185 = vst [vmem:[%s3184] sm:$0xff] %v3174
        %v3186 = vld [vmem:[#allocation4] sm:$0xff]
        %v3187 = vld [vmem:[#allocation4 + $0x8] sm:$0xff]
        %v3188 = vld [vmem:[#allocation4 + $0x10] sm:$0xff]
        %v3189 = vld [vmem:[#allocation4 + $0x18] sm:$0xff]
        %v3190 = vpack.c.bf16 %v3187, %v3186
        %v3191 = vpack.c.bf16 %v3189, %v3188
        %v3192 = vld [vmem:[#allocation14] sm:$0xff]
        %v3193 = vld [vmem:[#allocation14 + $0x8] sm:$0xff]
        %v3194 = vld [vmem:[#allocation14 + $0x10] sm:$0xff]
        %v3195 = vld [vmem:[#allocation14 + $0x18] sm:$0xff]
        %v3196 = vld [vmem:[#allocation14 + $0x20] sm:$0xff]
        %v3197 = vld [vmem:[#allocation14 + $0x28] sm:$0xff]
        %v3198 = vld [vmem:[#allocation14 + $0x30] sm:$0xff]
        %v3199 = vld [vmem:[#allocation14 + $0x38] sm:$0xff]
        %v3200 = vld [vmem:[#allocation14 + $0x40] sm:$0xff]
        %v3201 = vld [vmem:[#allocation14 + $0x48] sm:$0xff]
        %v3202 = vld [vmem:[#allocation14 + $0x50] sm:$0xff]
        %v3203 = vld [vmem:[#allocation14 + $0x58] sm:$0xff]
        %v3204 = vld [vmem:[#allocation14 + $0x60] sm:$0xff]
        %v3205 = vld [vmem:[#allocation14 + $0x68] sm:$0xff]
        %v3206 = vld [vmem:[#allocation14 + $0x70] sm:$0xff]
        %v3207 = vld [vmem:[#allocation14 + $0x78] sm:$0xff]
        %v3208 = vld [vmem:[%s9] sm:$0x3]
        %v3210 = vperm.slane %v3208, 0
        %v3211 = vperm.slane %v3208, 1
        %v3230 = vunpack.c.l.b16 %v3192
        %v3231 = vunpack.c.h.b16 %v3192
        %v3232 = vunpack.c.l.b16 %v3193
        %v3233 = vunpack.c.h.b16 %v3193
        %v3234 = vunpack.c.l.b16 %v3194
        %v3235 = vunpack.c.h.b16 %v3194
        %v3236 = vunpack.c.l.b16 %v3195
        %v3237 = vunpack.c.h.b16 %v3195
        %v3238 = vunpack.c.l.b16 %v3196
        %v3239 = vunpack.c.h.b16 %v3196
        %v3240 = vunpack.c.l.b16 %v3197
        %v3241 = vunpack.c.h.b16 %v3197
        %v3242 = vunpack.c.l.b16 %v3198
        %v3243 = vunpack.c.h.b16 %v3198
        %v3244 = vunpack.c.l.b16 %v3199
        %v3245 = vunpack.c.h.b16 %v3199
        %v3246 = vunpack.c.l.b16 %v3200
        %v3247 = vunpack.c.h.b16 %v3200
        %v3248 = vunpack.c.l.b16 %v3201
        %v3249 = vunpack.c.h.b16 %v3201
        %v3250 = vunpack.c.l.b16 %v3202
        %v3251 = vunpack.c.h.b16 %v3202
        %v3252 = vunpack.c.l.b16 %v3203
        %v3253 = vunpack.c.h.b16 %v3203
        %v3254 = vunpack.c.l.b16 %v3204
        %v3255 = vunpack.c.h.b16 %v3204
        %v3256 = vunpack.c.l.b16 %v3205
        %v3257 = vunpack.c.h.b16 %v3205
        %v3258 = vunpack.c.l.b16 %v3206
        %v3259 = vunpack.c.h.b16 %v3206
        %v3260 = vunpack.c.l.b16 %v3207
        %v3261 = vunpack.c.h.b16 %v3207
        %v3262 = vpack.c.b16 %v3232, %v3230
        %v3263 = vpack.c.b16 %v3233, %v3231
        %v3264 = vpack.c.b16 %v3236, %v3234
        %v3265 = vpack.c.b16 %v3237, %v3235
        %v3266 = vpack.c.b16 %v3240, %v3238
        %v3267 = vpack.c.b16 %v3241, %v3239
        %v3268 = vpack.c.b16 %v3244, %v3242
        %v3269 = vpack.c.b16 %v3245, %v3243
        %v3270 = vpack.c.b16 %v3248, %v3246
        %v3271 = vpack.c.b16 %v3249, %v3247
        %v3272 = vpack.c.b16 %v3252, %v3250
        %v3273 = vpack.c.b16 %v3253, %v3251
        %v3274 = vpack.c.b16 %v3256, %v3254
        %v3275 = vpack.c.b16 %v3257, %v3255
        %v3276 = vpack.c.b16 %v3260, %v3258
        %v3277 = vpack.c.b16 %v3261, %v3259
        %3294 = vmatpush.bf16.msra.mxu0 %v3276
        %3295 = vmatpush.bf16.msra.mxu0 %v3274
        %3296 = vmatpush.bf16.msra.mxu0 %v3272
        %3297 = vmatpush.bf16.msra.mxu0 %v3270
        %3298 = vmatpush.bf16.msra.mxu0 %v3268
        %3299 = vmatpush.bf16.msra.mxu0 %v3266
        %3300 = vmatpush.bf16.msra.mxu0 %v3264
        %3301 = vmatpush.bf16.msra.mxu0 %v3262
        %3302 = vmatmul.bf16.gmra.mxu0 %v3190
        %v3303 = vpop.f32.mrf.mxu0
        %v3304 = vadd.f32 %v3210, %v3303
        %v3305 = vpop.f32.mrf.mxu0
        %v3306 = vadd.f32 %v3210, %v3305
        %3307 = vmatmul.bf16.gmra.mxu0 %v3191
        %v3308 = vpop.f32.mrf.mxu0
        %v3309 = vadd.f32 %v3210, %v3308
        %v3310 = vpop.f32.mrf.mxu0
        %v3311 = vadd.f32 %v3210, %v3310
        %3312 = vdwg.mxu0
        %3313 = vmatpush.bf16.msra.mxu0 %v3277
        %3314 = vmatpush.bf16.msra.mxu0 %v3275
        %3315 = vmatpush.bf16.msra.mxu0 %v3273
        %3316 = vmatpush.bf16.msra.mxu0 %v3271
        %3317 = vmatpush.bf16.msra.mxu0 %v3269
        %3318 = vmatpush.bf16.msra.mxu0 %v3267
        %3319 = vmatpush.bf16.msra.mxu0 %v3265
        %3320 = vmatpush.bf16.msra.mxu0 %v3263
        %3321 = vmatmul.bf16.gmra.mxu0 %v3190
        %v3322 = vpop.f32.mrf.mxu0
        %v3323 = vadd.f32 %v3211, %v3322
        %v3324 = vpop.f32.mrf.mxu0
        %v3325 = vadd.f32 %v3211, %v3324
        %3326 = vmatmul.bf16.gmra.mxu0 %v3191
        %v3327 = vpop.f32.mrf.mxu0
        %v3328 = vadd.f32 %v3211, %v3327
        %v3329 = vpop.f32.mrf.mxu0
        %v3330 = vadd.f32 %v3211, %v3329
        %3331 = vdwg.mxu0
        %v3332 = vadd.s32 %v473, 1
        %v3333 = vadd.s32 %v473, 2
        %v3334 = vadd.s32 %v473, 3
        %vm3335 = vcmp.gt.s32.totalorder %v471, %v3332
        %vm3336 = vcmp.gt.s32.totalorder %v471, %v3333
        %vm3337 = vcmp.gt.s32.totalorder %v471, %v3334
        %v3338 = vsel %vm3335, 1, 0
        %v3339 = vsel %vm3336, 1, 0
        %v3340 = vsel %vm3337, 1, 0
        %3341 = vset.pattern.permute.xlu0 0
        %3342 = vperm.xlu0 %3341, %v3338
        %v3343 = vpop.permute.xlu0 %3342
        %3344 = vset.pattern.permute.xlu0 0
        %3345 = vperm.xlu0 %3344, %v3339
        %v3346 = vpop.permute.xlu0 %3345
        %3347 = vset.pattern.permute.xlu0 0
        %3348 = vperm.xlu0 %3347, %v3340
        %v3349 = vpop.permute.xlu0 %3348
        %vm3350 = vcmp.eq.s32.totalorder %v3343, 1
        %vm3351 = vcmp.eq.s32.totalorder %v3346, 1
        %vm3352 = vcmp.eq.s32.totalorder %v3349, 1
        %v3353 = vsel %vm1143, %v3304, 0.0
        %v3354 = vsel %vm1143, %v3323, 0.0
        %v3355 = vsel %vm3350, %v3306, 0.0
        %v3356 = vsel %vm3350, %v3325, 0.0
        %v3357 = vsel %vm3351, %v3309, 0.0
        %v3358 = vsel %vm3351, %v3328, 0.0
        %v3359 = vsel %vm3352, %v3311, 0.0
        %v3360 = vsel %vm3352, %v3330, 0.0
        %3361 = vst [vmem:[%s459] sm:$0xff] %v3353
        %3362 = vst [vmem:[%s459 + $0x8] sm:$0xff] %v3354
        %3363 = vst [vmem:[%s459 + $0x10] sm:$0xff] %v3355
        %3364 = vst [vmem:[%s459 + $0x18] sm:$0xff] %v3356
        %3365 = vst [vmem:[%s459 + $0x20] sm:$0xff] %v3357
        %3366 = vst [vmem:[%s459 + $0x28] sm:$0xff] %v3358
        %3367 = vst [vmem:[%s459 + $0x30] sm:$0xff] %v3359
        %3368 = vst [vmem:[%s459 + $0x38] sm:$0xff] %v3360
        %s3369 = sand.u32 %s253, 1
        %s3370 = scalar_lea.sflag [#allocation7], %s3369
        %s3371 = sand.u32 %s253, 1
        %s3372 = smul.addr %s3371, 64
        %s3373 = scalar_lea.vmem [#allocation16], %s3372
        // Predicated region
        $region89: #{tpu_custom_call.1} parent=59 // pred_check
          %p3374 = pneg %p263
        $region90: #{tpu_custom_call.1} parent=59 // pred_check_branch
          %3376 = sbr.rel (%p3374) target = $region92
        $region91: #{tpu_custom_call.1} parent=59 // pred_region
          %s3377 = smul.u32 4, %s30
          %3379 = vsyncadd %s3370, 0
          %s3380 = smul.addr %s3377, 2
          %s3381 = smul.addr %s3380, 8
          %s3382 = scalar_lea.hbm %s10, %s3381
          %s3383 = sshll.u32 %s3373, 4
          %s3384 = int_to_ptr.vmem [resolvable:$true] %s3383
          %s3385 = sshll.u32 %s3382, 4
          %s3386 = int_to_ptr.hbm [resolvable:$true] %s3385
          %3391 = dma.vmem_to_hbm [thread:$0]  %s3384, 1024, %s3386, %s3370, 256, 256, 16
        $region92: #{tpu_custom_call.1} parent=59 // pred_fallthru
          _
      $region60: #{tpu_custom_call.1} parent=5 // pred_fallthru
        _
      %p3392 = scmp.le.s32.totalorder 2, %s25
      // Predicated region
      $region93: #{tpu_custom_call.1} parent=5 // pred_check
        %p3393 = pneg %p3392
      $region94: #{tpu_custom_call.1} parent=5 // pred_check_branch
        %3395 = sbr.rel (%p3393) target = $region96
      $region95: #{tpu_custom_call.1} parent=5 // pred_region
        %s3396 = ssub.s32 %s25, 2
        // Predicated region
        $region97: #{tpu_custom_call.1} parent=95 // pred_check
          %p3397 = pneg %p269
        $region98: #{tpu_custom_call.1} parent=95 // pred_check_branch
          %3399 = sbr.rel (%p3397) target = $region100
        $region99: #{tpu_custom_call.1} parent=95 // pred_region
          %s3400 = sand.u32 %s254, 1
          %s3401 = scalar_lea.sflag [#allocation7], %s3400
          %s3402 = sand.u32 %s254, 1
          %s3403 = smul.addr %s3402, 64
          %s3404 = scalar_lea.vmem [#allocation16], %s3403
          %3406 = dma.done %s3401, 1024
        $region100: #{tpu_custom_call.1} parent=95 // pred_fallthru
          _
      $region96: #{tpu_custom_call.1} parent=5 // pred_fallthru
        _
    $region6: #{tpu_custom_call.1} parent=1 // loop_footer
      %s29 = sadd.s32 1, %s25
    $region7: #{tpu_custom_call.1} parent=1 // loop_footer_branch
      %24 = sbr.rel target = $region3
    $region8: #{tpu_custom_call.1} parent=1 // loop_exit
      _
    %3407 = vsyncpa [#allocation6], 1
    %s3408 = scalar_lea.sflag [#allocation6], 1
    %3409 = vsyncpa %s3408, 1
    %3410 = vsyncpa [#allocation9], 1
    %3411 = vsyncpa [#allocation12], 1
    %3412 = vsyncpa [#allocation15], 1
    %3413 = vsyncpa [#allocation7], 1
    %s3414 = scalar_lea.sflag [#allocation7], 1
    %3415 = vsyncpa %s3414, 1

// kernel: tpu_custom_call.1
$region0: #{tpu_custom_call.1}
  #allocation0 [shape = 'u32[]', space=smem, size = 0x4, offset = 0x4, fixed_abs, tag = 'smem constant byte address 0x4 - core index']
  #allocation1 [shape = 'u32[72,128]{1,0:T(1,128)}', space=vmem, size = 0x9000, scoped, tag = 'internal scratch']
  #allocation2 [shape = 'f32[8,128]{1,0:T(8,128)}', space=vmem, size = 0x1000, scoped, tag = 'scratch operand']
  #allocation3 [shape = 'f32[8,128]{1,0:T(8,128)}', space=vmem, size = 0x1000, scoped, tag = 'scratch operand']
  #allocation4 [shape = 'f32[4,8,128]{2,1,0:T(8,128)}', space=vmem, size = 0x4000, scoped, tag = 'scratch operand']
  %s0 = inlined_call_operand.hbm [shape: f32[12,8,512], index: 0, kind: input, shape index: {}]
  %s1 = inlined_call_operand.vmem [shape: f32[8,128], index: 1, kind: input, shape index: {}]
  %s2 = inlined_call_operand.vmem [shape: s32[8,1], index: 2, kind: input, shape index: {}]
  %s3 = inlined_call_operand.hbm [shape: f32[8,128], index: 3, kind: input, shape index: {}]
  %s4 = inlined_call_operand.hbm [shape: f32[8,128], index: 4, kind: input, shape index: {}]
  %s5 = inlined_call_operand.hbm [shape: bf16[128,128], index: 5, kind: input, shape index: {}]
  %s6 = inlined_call_operand.vmem [shape: f32[1,128], index: 6, kind: input, shape index: {}]
  %s7 = inlined_call_operand.hbm [shape: bf16[256,512], index: 7, kind: input, shape index: {}]
  %s8 = inlined_call_operand.hbm [shape: bf16[128,256], index: 8, kind: input, shape index: {}]
  %s9 = inlined_call_operand.vmem [shape: f32[1,256], index: 9, kind: input, shape index: {}]
  %s10 = inlined_call_operand.hbm [shape: f32[12,8,256], index: 10, kind: output, shape index: {}]
  %s11 = sld [smem:[#allocation0]]
  $region101: #{tpu_custom_call.1} parent=0
    _
  %s13 = ssub.s32 1, %s11
  %s14 = scalar_select 0, %s13, %s11
  $region1: #{tpu_custom_call.1} parent=0
    #allocation5 [shape = 'u8[131072]{0}', space=vmem, size = 0x20000, scoped, tag = 'input window, operand 0']
    #allocation6 [shape = 's32[2]{0}', space=sflag, size = 0x8, scoped, tag = 'scoped memory for tpu_custom_call.1']
    #allocation7 [shape = 's32[2]{0}', space=sflag, size = 0x8, scoped, tag = 'scoped memory for tpu_custom_call.1']
    #allocation8 [shape = 'u8[4096]{0}', space=vmem, size = 0x1000, scoped, tag = 'input window, operand 3, single buffered']
    #allocation9 [shape = 's32[1]{0}', space=sflag, size = 0x4, scoped, tag = 'scoped memory for tpu_custom_call.1']
    #allocation10 [shape = 'u8[4096]{0}', space=vmem, size = 0x1000, scoped, tag = 'input window, operand 4, single buffered']
    #allocation11 [shape = 'u8[32768]{0}', space=vmem, size = 0x8000, scoped, tag = 'input window, operand 5, single buffered']
    #allocation12 [shape = 's32[1]{0}', space=sflag, size = 0x4, scoped, tag = 'scoped memory for tpu_custom_call.1']
    #allocation13 [shape = 'u8[262144]{0}', space=vmem, size = 0x40000, scoped, tag = 'input window, operand 7, single buffered']
    #allocation14 [shape = 'u8[65536]{0}', space=vmem, size = 0x10000, scoped, tag = 'input window, operand 8, single buffered']
    #allocation15 [shape = 's32[1]{0}', space=sflag, size = 0x4, scoped, tag = 'scoped memory for tpu_custom_call.1']
    #allocation16 [shape = 'u8[65536]{0}', space=vmem, size = 0x10000, scoped, tag = 'output window, operand 0']
    %15 = vsyncpa [#allocation6], 0
    %s16 = scalar_lea.sflag [#allocation6], 1
    %17 = vsyncpa %s16, 0
    %18 = vsyncpa [#allocation9], 0
    %19 = vsyncpa [#allocation12], 0
    %20 = vsyncpa [#allocation15], 0
    %21 = vsyncpa [#allocation7], 0
    %s22 = scalar_lea.sflag [#allocation7], 1
    %23 = vsyncpa %s22, 0
    loop: start=0, step=1, limit=5
    $region2: #{tpu_custom_call.1} parent=1 // loop_pre_header
      _
    $region3: #{tpu_custom_call.1} parent=1 // loop_header
      %s25 = sphi 0, %s29
      %p26 = scmp.ge.s32.totalorder %s25, 5
      %s35 = sphi 0, %s37
      %s38 = sphi 0, %s35
      %s39 = sphi 0, %s38
      %s55 = sphi 0, %s39
      %s59 = sphi 0, %s59
      %s61 = sphi 0, %s59
      %s62 = sphi 0, %s61
      %s76 = sphi 0, %s62
      %s80 = sphi 0, %s80
      %s82 = sphi 0, %s80
      %s83 = sphi 0, %s82
      %s97 = sphi 0, %s83
      %s101 = sphi 0, %s101
      %s103 = sphi 0, %s101
      %s104 = sphi 0, %s103
      %s118 = sphi 0, %s104
      %s122 = sphi 0, %s122
      %s124 = sphi 0, %s122
      %s125 = sphi 0, %s124
      %s139 = sphi 0, %s125
      %s143 = sphi 0, %s143
      %s145 = sphi 0, %s143
      %s146 = sphi 0, %s145
      %s160 = sphi 0, %s146
      %s164 = sphi 0, %s164
      %s166 = sphi 0, %s164
      %s167 = sphi 0, %s166
      %s181 = sphi 0, %s167
      %s185 = sphi 0, %s185
      %s187 = sphi 0, %s185
      %s188 = sphi 0, %s187
      %s202 = sphi 0, %s188
      %s206 = sphi 0, %s206
      %s208 = sphi 0, %s206
      %s209 = sphi 0, %s208
      %s223 = sphi 0, %s209
      %s227 = sphi 0, %s227
      %s229 = sphi 0, %s227
      %s230 = sphi 0, %s229
      %s244 = sphi 0, %s230
      %s250 = sphi 0, %s252
      %s253 = sphi 0, %s250
      %s254 = sphi 0, %s253
      %s270 = sphi 0, %s254
    $region4: #{tpu_custom_call.1} parent=1 // loop_header_branch
      %28 = sbr.rel (%p26) target = $region8
    $region5: #{tpu_custom_call.1} parent=1 // loop_body
      %s30 = ssub.s32 %s25, 1
      %s31 = ssub.s32 %s25, 2
      %s32 = sadd.s32 %s25, 1
      %s33 = ssub.s32 %s25, %s32
      %p34 = scmp.eq.s32.totalorder %s33, 0
      %s36 = sadd.s32 %s35, 1
      %s37 = scalar_select %p34, %s35, %s36
      %p40 = pneg %p34
      %p41 = scmp.eq.s32.totalorder %s25, 2
      %p42 = por %p40, %p41
      %p43 = scmp.ne.s32.totalorder %s35, %s38
      %p44 = scmp.eq.s32.totalorder %s25, 0
      %p45 = por %p43, %p44
      %p46 = scmp.ne.s32.totalorder %s35, %s38
      %p47 = scmp.eq.s32.totalorder %s30, 2
      %p48 = por %p46, %p47
      %p49 = scmp.ne.s32.totalorder %s38, %s39
      %p50 = scmp.eq.s32.totalorder %s30, 0
      %p51 = por %p49, %p50
      %p52 = scmp.ne.s32.totalorder %s38, %s39
      %p53 = scmp.eq.s32.totalorder %s31, 2
      %p54 = por %p52, %p53
      %p56 = scmp.ne.s32.totalorder %s39, %s55
      %p57 = scmp.eq.s32.totalorder %s31, 0
      %p58 = por %p56, %p57
      %s60 = sadd.s32 %s59, 1
      %p63 = scmp.eq.s32.totalorder %s25, 2
      %p64 = scmp.ne.s32.totalorder %s59, %s61
      %p65 = scmp.eq.s32.totalorder %s25, 0
      %p66 = por %p64, %p65
      %p67 = scmp.ne.s32.totalorder %s59, %s61
      %p68 = scmp.eq.s32.totalorder %s30, 2
      %p69 = por %p67, %p68
      %p70 = scmp.ne.s32.totalorder %s61, %s62
      %p71 = scmp.eq.s32.totalorder %s30, 0
      %p72 = por %p70, %p71
      %p73 = scmp.ne.s32.totalorder %s61, %s62
      %p74 = scmp.eq.s32.totalorder %s31, 2
      %p75 = por %p73, %p74
      %p77 = scmp.ne.s32.totalorder %s62, %s76
      %p78 = scmp.eq.s32.totalorder %s31, 0
      %p79 = por %p77, %p78
      %s81 = sadd.s32 %s80, 1
      %p84 = scmp.eq.s32.totalorder %s25, 2
      %p85 = scmp.ne.s32.totalorder %s80, %s82
      %p86 = scmp.eq.s32.totalorder %s25, 0
      %p87 = por %p85, %p86
      %p88 = scmp.ne.s32.totalorder %s80, %s82
      %p89 = scmp.eq.s32.totalorder %s30, 2
      %p90 = por %p88, %p89
      %p91 = scmp.ne.s32.totalorder %s82, %s83
      %p92 = scmp.eq.s32.totalorder %s30, 0
      %p93 = por %p91, %p92
      %p94 = scmp.ne.s32.totalorder %s82, %s83
      %p95 = scmp.eq.s32.totalorder %s31, 2
      %p96 = por %p94, %p95
      %p98 = scmp.ne.s32.totalorder %s83, %s97
      %p99 = scmp.eq.s32.totalorder %s31, 0
      %p100 = por %p98, %p99
      %s102 = sadd.s32 %s101, 1
      %p105 = scmp.eq.s32.totalorder %s25, 2
      %p106 = scmp.ne.s32.totalorder %s101, %s103
      %p107 = scmp.eq.s32.totalorder %s25, 0
      %p108 = por %p106, %p107
      %p109 = scmp.ne.s32.totalorder %s101, %s103
      %p110 = scmp.eq.s32.totalorder %s30, 2
      %p111 = por %p109, %p110
      %p112 = scmp.ne.s32.totalorder %s103, %s104
      %p113 = scmp.eq.s32.totalorder %s30, 0
      %p114 = por %p112, %p113
      %p115 = scmp.ne.s32.totalorder %s103, %s104
      %p116 = scmp.eq.s32.totalorder %s31, 2
      %p117 = por %p115, %p116
      %p119 = scmp.ne.s32.totalorder %s104, %s118
      %p120 = scmp.eq.s32.totalorder %s31, 0
      %p121 = por %p119, %p120
      %s123 = sadd.s32 %s122, 1
      %p126 = scmp.eq.s32.totalorder %s25, 2
      %p127 = scmp.ne.s32.totalorder %s122, %s124
      %p128 = scmp.eq.s32.totalorder %s25, 0
      %p129 = por %p127, %p128
      %p130 = scmp.ne.s32.totalorder %s122, %s124
      %p131 = scmp.eq.s32.totalorder %s30, 2
      %p132 = por %p130, %p131
      %p133 = scmp.ne.s32.totalorder %s124, %s125
      %p134 = scmp.eq.s32.totalorder %s30, 0
      %p135 = por %p133, %p134
      %p136 = scmp.ne.s32.totalorder %s124, %s125
      %p137 = scmp.eq.s32.totalorder %s31, 2
      %p138 = por %p136, %p137
      %p140 = scmp.ne.s32.totalorder %s125, %s139
      %p141 = scmp.eq.s32.totalorder %s31, 0
      %p142 = por %p140, %p141
      %s144 = sadd.s32 %s143, 1
      %p147 = scmp.eq.s32.totalorder %s25, 2
      %p148 = scmp.ne.s32.totalorder %s143, %s145
      %p149 = scmp.eq.s32.totalorder %s25, 0
      %p150 = por %p148, %p149
      %p151 = scmp.ne.s32.totalorder %s143, %s145
      %p152 = scmp.eq.s32.totalorder %s30, 2
      %p153 = por %p151, %p152
      %p154 = scmp.ne.s32.totalorder %s145, %s146
      %p155 = scmp.eq.s32.totalorder %s30, 0
      %p156 = por %p154, %p155
      %p157 = scmp.ne.s32.totalorder %s145, %s146
      %p158 = scmp.eq.s32.totalorder %s31, 2
      %p159 = por %p157, %p158
      %p161 = scmp.ne.s32.totalorder %s146, %s160
      %p162 = scmp.eq.s32.totalorder %s31, 0
      %p163 = por %p161, %p162
      %s165 = sadd.s32 %s164, 1
      %p168 = scmp.eq.s32.totalorder %s25, 2
      %p169 = scmp.ne.s32.totalorder %s164, %s166
      %p170 = scmp.eq.s32.totalorder %s25, 0
      %p171 = por %p169, %p170
      %p172 = scmp.ne.s32.totalorder %s164, %s166
      %p173 = scmp.eq.s32.totalorder %s30, 2
      %p174 = por %p172, %p173
      %p175 = scmp.ne.s32.totalorder %s166, %s167
      %p176 = scmp.eq.s32.totalorder %s30, 0
      %p177 = por %p175, %p176
      %p178 = scmp.ne.s32.totalorder %s166, %s167
      %p179 = scmp.eq.s32.totalorder %s31, 2
      %p180 = por %p178, %p179
      %p182 = scmp.ne.s32.totalorder %s167, %s181
      %p183 = scmp.eq.s32.totalorder %s31, 0
      %p184 = por %p182, %p183
      %s186 = sadd.s32 %s185, 1
      %p189 = scmp.eq.s32.totalorder %s25, 2
      %p190 = scmp.ne.s32.totalorder %s185, %s187
      %p191 = scmp.eq.s32.totalorder %s25, 0
      %p192 = por %p190, %p191
      %p193 = scmp.ne.s32.totalorder %s185, %s187
      %p194 = scmp.eq.s32.totalorder %s30, 2
      %p195 = por %p193, %p194
      %p196 = scmp.ne.s32.totalorder %s187, %s188
      %p197 = scmp.eq.s32.totalorder %s30, 0
      %p198 = por %p196, %p197
      %p199 = scmp.ne.s32.totalorder %s187, %s188
      %p200 = scmp.eq.s32.totalorder %s31, 2
      %p201 = por %p199, %p200
      %p203 = scmp.ne.s32.totalorder %s188, %s202
      %p204 = scmp.eq.s32.totalorder %s31, 0
      %p205 = por %p203, %p204
      %s207 = sadd.s32 %s206, 1
      %p210 = scmp.eq.s32.totalorder %s25, 2
      %p211 = scmp.ne.s32.totalorder %s206, %s208
      %p212 = scmp.eq.s32.totalorder %s25, 0
      %p213 = por %p211, %p212
      %p214 = scmp.ne.s32.totalorder %s206, %s208
      %p215 = scmp.eq.s32.totalorder %s30, 2
      %p216 = por %p214, %p215
      %p217 = scmp.ne.s32.totalorder %s208, %s209
      %p218 = scmp.eq.s32.totalorder %s30, 0
      %p219 = por %p217, %p218
      %p220 = scmp.ne.s32.totalorder %s208, %s209
      %p221 = scmp.eq.s32.totalorder %s31, 2
      %p222 = por %p220, %p221
      %p224 = scmp.ne.s32.totalorder %s209, %s223
      %p225 = scmp.eq.s32.totalorder %s31, 0
      %p226 = por %p224, %p225
      %s228 = sadd.s32 %s227, 1
      %p231 = scmp.eq.s32.totalorder %s25, 2
      %p232 = scmp.ne.s32.totalorder %s227, %s229
      %p233 = scmp.eq.s32.totalorder %s25, 0
      %p234 = por %p232, %p233
      %p235 = scmp.ne.s32.totalorder %s227, %s229
      %p236 = scmp.eq.s32.totalorder %s30, 2
      %p237 = por %p235, %p236
      %p238 = scmp.ne.s32.totalorder %s229, %s230
      %p239 = scmp.eq.s32.totalorder %s30, 0
      %p240 = por %p238, %p239
      %p241 = scmp.ne.s32.totalorder %s229, %s230
      %p242 = scmp.eq.s32.totalorder %s31, 2
      %p243 = por %p241, %p242
      %p245 = scmp.ne.s32.totalorder %s230, %s244
      %p246 = scmp.eq.s32.totalorder %s31, 0
      %p247 = por %p245, %p246
      %s248 = ssub.s32 %s25, %s32
      %p249 = scmp.eq.s32.totalorder %s248, 0
      %s251 = sadd.s32 %s250, 1
      %s252 = scalar_select %p249, %s250, %s251
      %p255 = pneg %p249
      %p256 = scmp.eq.s32.totalorder %s25, 2
      %p257 = por %p255, %p256
      %p258 = scmp.ne.s32.totalorder %s250, %s253
      %p259 = scmp.eq.s32.totalorder %s25, 0
      %p260 = por %p258, %p259
      %p261 = scmp.ne.s32.totalorder %s250, %s253
      %p262 = scmp.eq.s32.totalorder %s30, 2
      %p263 = por %p261, %p262
      %p264 = scmp.ne.s32.totalorder %s253, %s254
      %p265 = scmp.eq.s32.totalorder %s30, 0
      %p266 = por %p264, %p265
      %p267 = scmp.ne.s32.totalorder %s253, %s254
      %p268 = scmp.eq.s32.totalorder %s31, 2
      %p269 = por %p267, %p268
      %p271 = scmp.ne.s32.totalorder %s254, %s270
      %p272 = scmp.eq.s32.totalorder %s31, 0
      %p273 = por %p271, %p272
      %p274 = scmp.le.s32.totalorder 1, %s25
      %p275 = scmp.lt.s32.totalorder %s25, 4
      %p276 = pnand %p274, %p275
      %p277 = pneg %p276
      // Predicated region
      $region9: #{tpu_custom_call.1} parent=5 // pred_check
        _
      $region10: #{tpu_custom_call.1} parent=5 // pred_check_branch
        %279 = sbr.rel (%p276) target = $region12
      $region11: #{tpu_custom_call.1} parent=5 // pred_region
        %s280 = ssub.s32 %s25, 1
        // Predicated region
        $region13: #{tpu_custom_call.1} parent=11 // pred_check
          %p281 = pneg %p72
        $region14: #{tpu_custom_call.1} parent=11 // pred_check_branch
          %283 = sbr.rel (%p281) target = $region16
        $region15: #{tpu_custom_call.1} parent=11 // pred_region
          _
        $region16: #{tpu_custom_call.1} parent=11 // pred_fallthru
          _
        // Predicated region
        $region17: #{tpu_custom_call.1} parent=11 // pred_check
          %p284 = pneg %p93
        $region18: #{tpu_custom_call.1} parent=11 // pred_check_branch
          %286 = sbr.rel (%p284) target = $region20
        $region19: #{tpu_custom_call.1} parent=11 // pred_region
          _
        $region20: #{tpu_custom_call.1} parent=11 // pred_fallthru
          _
        // Predicated region
        $region21: #{tpu_custom_call.1} parent=11 // pred_check
          %p287 = pneg %p114
        $region22: #{tpu_custom_call.1} parent=11 // pred_check_branch
          %289 = sbr.rel (%p287) target = $region24
        $region23: #{tpu_custom_call.1} parent=11 // pred_region
          %291 = vsyncadd [#allocation9], 0
          %s293 = sshll.u32 %s3, 4
          %s294 = int_to_ptr.hbm [resolvable:$true] %s293
          %s295 = sshll.u32 [#allocation8], 4
          %s296 = int_to_ptr.vmem [resolvable:$true] %s295
          %298 = dma.hbm_to_vmem [thread:$0]  %s294, 128, %s296, [#allocation9]
        $region24: #{tpu_custom_call.1} parent=11 // pred_fallthru
          _
        // Predicated region
        $region25: #{tpu_custom_call.1} parent=11 // pred_check
          %p299 = pneg %p135
        $region26: #{tpu_custom_call.1} parent=11 // pred_check_branch
          %301 = sbr.rel (%p299) target = $region28
        $region27: #{tpu_custom_call.1} parent=11 // pred_region
          %303 = vsyncadd [#allocation9], 0
          %s305 = sshll.u32 %s4, 4
          %s306 = int_to_ptr.hbm [resolvable:$true] %s305
          %s307 = sshll.u32 [#allocation10], 4
          %s308 = int_to_ptr.vmem [resolvable:$true] %s307
          %310 = dma.hbm_to_vmem [thread:$0]  %s306, 128, %s308, [#allocation9]
        $region28: #{tpu_custom_call.1} parent=11 // pred_fallthru
          _
        // Predicated region
        $region29: #{tpu_custom_call.1} parent=11 // pred_check
          %p311 = pneg %p156
        $region30: #{tpu_custom_call.1} parent=11 // pred_check_branch
          %313 = sbr.rel (%p311) target = $region32
        $region31: #{tpu_custom_call.1} parent=11 // pred_region
          %315 = vsyncadd [#allocation12], 0
          %s316 = sshll.u32 %s5, 4
          %s317 = int_to_ptr.hbm [resolvable:$true] %s316
          %s318 = sshll.u32 [#allocation11], 4
          %s319 = int_to_ptr.vmem [resolvable:$true] %s318
          %324 = dma.hbm_to_vmem [thread:$0]  %s317, 1024, %s319, [#allocation12], 64, 64, 4
        $region32: #{tpu_custom_call.1} parent=11 // pred_fallthru
          _
        // Predicated region
        $region33: #{tpu_custom_call.1} parent=11 // pred_check
          %p325 = pneg %p177
        $region34: #{tpu_custom_call.1} parent=11 // pred_check_branch
          %327 = sbr.rel (%p325) target = $region36
        $region35: #{tpu_custom_call.1} parent=11 // pred_region
          _
        $region36: #{tpu_custom_call.1} parent=11 // pred_fallthru
          _
        // Predicated region
        $region37: #{tpu_custom_call.1} parent=11 // pred_check
          %p328 = pneg %p198
        $region38: #{tpu_custom_call.1} parent=11 // pred_check_branch
          %330 = sbr.rel (%p328) target = $region40
        $region39: #{tpu_custom_call.1} parent=11 // pred_region
          %332 = vsyncadd [#allocation12], 0
          %s333 = sshll.u32 %s7, 4
          %s334 = int_to_ptr.hbm [resolvable:$true] %s333
          %s335 = sshll.u32 [#allocation13], 4
          %s336 = int_to_ptr.vmem [resolvable:$true] %s335
          %341 = dma.hbm_to_vmem [thread:$0]  %s334, 8192, %s336, [#allocation12], 256, 256, 16
        $region40: #{tpu_custom_call.1} parent=11 // pred_fallthru
          _
        // Predicated region
        $region41: #{tpu_custom_call.1} parent=11 // pred_check
          %p342 = pneg %p219
        $region42: #{tpu_custom_call.1} parent=11 // pred_check_branch
          %344 = sbr.rel (%p342) target = $region44
        $region43: #{tpu_custom_call.1} parent=11 // pred_region
          %346 = vsyncadd [#allocation15], 0
          %s347 = sshll.u32 %s8, 4
          %s348 = int_to_ptr.hbm [resolvable:$true] %s347
          %s349 = sshll.u32 [#allocation14], 4
          %s350 = int_to_ptr.vmem [resolvable:$true] %s349
          %355 = dma.hbm_to_vmem [thread:$0]  %s348, 2048, %s350, [#allocation15], 128, 128, 8
        $region44: #{tpu_custom_call.1} parent=11 // pred_fallthru
          _
        // Predicated region
        $region45: #{tpu_custom_call.1} parent=11 // pred_check
          %p356 = pneg %p240
        $region46: #{tpu_custom_call.1} parent=11 // pred_check_branch
          %358 = sbr.rel (%p356) target = $region48
        $region47: #{tpu_custom_call.1} parent=11 // pred_region
          _
        $region48: #{tpu_custom_call.1} parent=11 // pred_fallthru
          _
      $region12: #{tpu_custom_call.1} parent=5 // pred_fallthru
        _
      %p359 = scmp.lt.s32.totalorder %s25, 3
      // Predicated region
      $region49: #{tpu_custom_call.1} parent=5 // pred_check
        %p360 = pneg %p359
      $region50: #{tpu_custom_call.1} parent=5 // pred_check_branch
        %362 = sbr.rel (%p360) target = $region52
      $region51: #{tpu_custom_call.1} parent=5 // pred_region
        // Predicated region
        $region53: #{tpu_custom_call.1} parent=51 // pred_check
          %p363 = pneg %p45
        $region54: #{tpu_custom_call.1} parent=51 // pred_check_branch
          %365 = sbr.rel (%p363) target = $region56
        $region55: #{tpu_custom_call.1} parent=51 // pred_region
          %s366 = sand.u32 %s35, 1
          %s367 = scalar_lea.sflag [#allocation6], %s366
          %s368 = sand.u32 %s35, 1
          %s369 = smul.addr %s368, 128
          %s370 = scalar_lea.vmem [#allocation5], %s369
          %s371 = smul.u32 4, %s25
          %373 = vsyncadd %s367, 0
          %s374 = smul.addr %s371, 4
          %s375 = smul.addr %s374, 8
          %s376 = scalar_lea.hbm %s0, %s375
          %s377 = sshll.u32 %s376, 4
          %s378 = int_to_ptr.hbm [resolvable:$true] %s377
          %s379 = sshll.u32 %s370, 4
          %s380 = int_to_ptr.vmem [resolvable:$true] %s379
          %385 = dma.hbm_to_vmem [thread:$0]  %s378, 2048, %s380, %s367, 512, 512, 32
        $region56: #{tpu_custom_call.1} parent=51 // pred_fallthru
          _
      $region52: #{tpu_custom_call.1} parent=5 // pred_fallthru
        _
      %p386 = scmp.le.s32.totalorder 1, %s25
      %p387 = scmp.lt.s32.totalorder %s25, 4
      %p388 = pnand %p386, %p387
      %p389 = pneg %p388
      // Predicated region
      $region57: #{tpu_custom_call.1} parent=5 // pred_check
        _
      $region58: #{tpu_custom_call.1} parent=5 // pred_check_branch
        %391 = sbr.rel (%p388) target = $region60
      $region59: #{tpu_custom_call.1} parent=5 // pred_region
        %s392 = ssub.s32 %s25, 1
        %s393 = sand.u32 %s38, 1
        %s394 = scalar_lea.sflag [#allocation6], %s393
        %s395 = sand.u32 %s38, 1
        %s396 = smul.addr %s395, 128
        %s397 = scalar_lea.vmem [#allocation5], %s396
        // Predicated region
        $region61: #{tpu_custom_call.1} parent=59 // pred_check
          %p398 = pneg %p51
        $region62: #{tpu_custom_call.1} parent=59 // pred_check_branch
          %400 = sbr.rel (%p398) target = $region64
        $region63: #{tpu_custom_call.1} parent=59 // pred_region
          %402 = dma.done %s394, 2048
        $region64: #{tpu_custom_call.1} parent=59 // pred_fallthru
          _
        // Predicated region
        $region65: #{tpu_custom_call.1} parent=59 // pred_check
          %p403 = pneg %p114
        $region66: #{tpu_custom_call.1} parent=59 // pred_check_branch
          %405 = sbr.rel (%p403) target = $region68
        $region67: #{tpu_custom_call.1} parent=59 // pred_region
          %407 = dma.done [#allocation9], 128
        $region68: #{tpu_custom_call.1} parent=59 // pred_fallthru
          _
        // Predicated region
        $region69: #{tpu_custom_call.1} parent=59 // pred_check
          %p408 = pneg %p135
        $region70: #{tpu_custom_call.1} parent=59 // pred_check_branch
          %410 = sbr.rel (%p408) target = $region72
        $region71: #{tpu_custom_call.1} parent=59 // pred_region
          %412 = dma.done [#allocation9], 128
        $region72: #{tpu_custom_call.1} parent=59 // pred_fallthru
          _
        // Predicated region
        $region73: #{tpu_custom_call.1} parent=59 // pred_check
          %p413 = pneg %p156
        $region74: #{tpu_custom_call.1} parent=59 // pred_check_branch
          %415 = sbr.rel (%p413) target = $region76
        $region75: #{tpu_custom_call.1} parent=59 // pred_region
          %417 = dma.done [#allocation12], 1024
        $region76: #{tpu_custom_call.1} parent=59 // pred_fallthru
          _
        // Predicated region
        $region77: #{tpu_custom_call.1} parent=59 // pred_check
          %p418 = pneg %p198
        $region78: #{tpu_custom_call.1} parent=59 // pred_check_branch
          %420 = sbr.rel (%p418) target = $region80
        $region79: #{tpu_custom_call.1} parent=59 // pred_region
          %422 = dma.done [#allocation12], 8192
        $region80: #{tpu_custom_call.1} parent=59 // pred_fallthru
          _
        // Predicated region
        $region81: #{tpu_custom_call.1} parent=59 // pred_check
          %p423 = pneg %p219
        $region82: #{tpu_custom_call.1} parent=59 // pred_check_branch
          %425 = sbr.rel (%p423) target = $region84
        $region83: #{tpu_custom_call.1} parent=59 // pred_region
          %427 = dma.done [#allocation15], 2048
        $region84: #{tpu_custom_call.1} parent=59 // pred_fallthru
          _
        %s428 = sand.u32 %s38, 1
        %s429 = scalar_lea.sflag [#allocation6], %s428
        %s430 = sand.u32 %s38, 1
        %s431 = smul.addr %s430, 128
        %s432 = scalar_lea.vmem [#allocation5], %s431
        %p433 = pneg %p51
        %p434 = pneg %p48
        %p435 = pneg %p72
        %p436 = pneg %p69
        %p437 = pneg %p93
        %p438 = pneg %p90
        %p439 = pneg %p114
        %p440 = pneg %p111
        %p441 = pneg %p135
        %p442 = pneg %p132
        %p443 = pneg %p156
        %p444 = pneg %p153
        %p445 = pneg %p177
        %p446 = pneg %p174
        %p447 = pneg %p198
        %p448 = pneg %p195
        %p449 = pneg %p219
        %p450 = pneg %p216
        %p451 = pneg %p240
        %p452 = pneg %p237
        %p453 = pneg %p266
        %p454 = pneg %p263
        %s455 = sand.u32 %s253, 1
        %s456 = scalar_lea.sflag [#allocation7], %s455
        %s457 = sand.u32 %s253, 1
        %s458 = smul.addr %s457, 64
        %s459 = scalar_lea.vmem [#allocation16], %s458
        %s460 = smul.u32 4, %s30
        %s461 = smul.u32 4, %s30
        %p462 = scmp.eq.s32.totalorder %s30, 0
        // Predicated region
        $region85: #{tpu_custom_call.1} parent=59 // pred_check
          %p463 = pneg %p462
        $region86: #{tpu_custom_call.1} parent=59 // pred_check_branch
          %465 = sbr.rel (%p463) target = $region88
        $region87: #{tpu_custom_call.1} parent=59 // pred_region
          %v466 = vld [vmem:[#allocation8] sm:$0xff]
          %467 = vst [vmem:[#allocation2] sm:$0xff] %v466
          %v468 = vld [vmem:[#allocation10] sm:$0xff]
          %469 = vst [vmem:[#allocation3] sm:$0xff] %v468
        $region88: #{tpu_custom_call.1} parent=59 // pred_fallthru
          _
        %v470 = vld [vmem:[%s1] sm:$0xff]
        %v471 = vld [vmem:[%s2] sm:$0xff]
        %s472 = smul.u32 %s30, 4
        %v473 = vstv %s472
        %vm474 = vcmp.gt.s32.totalorder %v471, %v473
        %v475 = vld [vmem:[#allocation2] sm:$0xff]
        %v476 = vld [vmem:[#allocation3] sm:$0xff]
        %v477 = vpack.c.bf16 %v475, %v475
        %v478 = vld [vmem:[#allocation11] sm:$0xf]
        %v479 = vld [vmem:[#allocation11 + $0x4] sm:$0xf]
        %v480 = vld [vmem:[#allocation11 + $0x8] sm:$0xf]
        %v481 = vld [vmem:[#allocation11 + $0xc] sm:$0xf]
        %v482 = vld [vmem:[#allocation11 + $0x10] sm:$0xf]
        %v483 = vld [vmem:[#allocation11 + $0x14] sm:$0xf]
        %v484 = vld [vmem:[#allocation11 + $0x18] sm:$0xf]
        %v485 = vld [vmem:[#allocation11 + $0x1c] sm:$0xf]
        %v486 = vld [vmem:[#allocation11 + $0x20] sm:$0xf]
        %v487 = vld [vmem:[#allocation11 + $0x24] sm:$0xf]
        %v488 = vld [vmem:[#allocation11 + $0x28] sm:$0xf]
        %v489 = vld [vmem:[#allocation11 + $0x2c] sm:$0xf]
        %v490 = vld [vmem:[#allocation11 + $0x30] sm:$0xf]
        %v491 = vld [vmem:[#allocation11 + $0x34] sm:$0xf]
        %v492 = vld [vmem:[#allocation11 + $0x38] sm:$0xf]
        %v493 = vld [vmem:[#allocation11 + $0x3c] sm:$0xf]
        %v494 = vld [vmem:[%s6] sm:$0x1]
        %v496 = vperm.slane %v494, 0
        %v514 = vunpack.c.l.b16 %v478
        %v515 = vunpack.c.l.b16 %v479
        %v516 = vunpack.c.l.b16 %v480
        %v517 = vunpack.c.l.b16 %v481
        %v518 = vunpack.c.l.b16 %v482
        %v519 = vunpack.c.l.b16 %v483
        %v520 = vunpack.c.l.b16 %v484
        %v521 = vunpack.c.l.b16 %v485
        %v522 = vunpack.c.l.b16 %v486
        %v523 = vunpack.c.l.b16 %v487
        %v524 = vunpack.c.l.b16 %v488
        %v525 = vunpack.c.l.b16 %v489
        %v526 = vunpack.c.l.b16 %v490
        %v527 = vunpack.c.l.b16 %v491
        %v528 = vunpack.c.l.b16 %v492
        %v529 = vunpack.c.l.b16 %v493
        %v530 = vpack.c.b16 %v515, %v514
        %v531 = vpack.c.b16 %v517, %v516
        %v532 = vpack.c.b16 %v519, %v518
        %v533 = vpack.c.b16 %v521, %v520
        %v534 = vpack.c.b16 %v523, %v522
        %v535 = vpack.c.b16 %v525, %v524
        %v536 = vpack.c.b16 %v527, %v526
        %v537 = vpack.c.b16 %v529, %v528
        %546 = vmatpush.bf16.msra.mxu0 %v537
        %547 = vmatpush.bf16.msra.mxu0 %v536
        %548 = vmatpush.bf16.msra.mxu0 %v535
        %549 = vmatpush.bf16.msra.mxu0 %v534
        %550 = vmatpush.bf16.msra.mxu0 %v533
        %551 = vmatpush.bf16.msra.mxu0 %v532
        %552 = vmatpush.bf16.msra.mxu0 %v531
        %553 = vmatpush.bf16.msra.mxu0 %v530
        %554 = vmatmul.bf16.gmra.mxu0 %v477
        %v555 = vpop.f32.mrf.mxu0
        %v556 = vadd.f32 %v496, %v555
        %v557 = vpop.f32.mrf.mxu0
        %558 = vdwg.mxu0
        %v559 = vxor.u32 %v556, 2147483648
        %v560 = vmul.f32 %v559, 1.442695
        %v561 = vpow.pop %v560
        %v562 = vadd.f32 %v561, 1.0
        %v563 = vrcp.pop %v562
        %v564 = vmul.f32 %v562, %v563
        %v565 = vsub.f32 1.0, %v564
        %v566 = vmul.f32 %v563, %v565
        %v567 = vadd.f32 %v563, %v566
        %vm568 = vweird.f32 %v562
        %vm569 = vweird.f32 %v563
        %vm570 = vmor %vm568, %vm569
        %v571 = vsel %vm570, %v563, %v567
        %v572 = vand.u32 2147483647, %v562
        %vm573 = vcmp.eq.f32.partialorder %v572, 8.507059e+37
        %v574 = vand.u32 %v562, 2147483648
        %v575 = vor.u32 1.1754944e-38, %v574
        %v576 = vsel %vm573, %v575, %v571
        %v577 = vmul.f32 1.0, %v576
        %v578 = vmul.f32 %v577, %v470
        %v579 = vpack.c.bf16 %v578, %v578
        %v580 = vld [vmem:[%s397] sm:$0xff]
        %v581 = vld [vmem:[%s397 + $0x8] sm:$0xff]
        %v582 = vld [vmem:[%s397 + $0x10] sm:$0xff]
        %v583 = vld [vmem:[%s397 + $0x18] sm:$0xff]
        %v584 = vld [vmem:[#allocation13] sm:$0xff]
        %v585 = vld [vmem:[#allocation13 + $0x8] sm:$0xff]
        %v586 = vld [vmem:[#allocation13 + $0x10] sm:$0xff]
        %v587 = vld [vmem:[#allocation13 + $0x18] sm:$0xff]
        %v588 = vld [vmem:[#allocation13 + $0x20] sm:$0xff]
        %v589 = vld [vmem:[#allocation13 + $0x28] sm:$0xff]
        %v590 = vld [vmem:[#allocation13 + $0x30] sm:$0xff]
        %v591 = vld [vmem:[#allocation13 + $0x38] sm:$0xff]
        %v592 = vld [vmem:[#allocation13 + $0x40] sm:$0xff]
        %v593 = vld [vmem:[#allocation13 + $0x48] sm:$0xff]
        %v594 = vld [vmem:[#allocation13 + $0x50] sm:$0xff]
        %v595 = vld [vmem:[#allocation13 + $0x58] sm:$0xff]
        %v596 = vld [vmem:[#allocation13 + $0x60] sm:$0xff]
        %v597 = vld [vmem:[#allocation13 + $0x68] sm:$0xff]
        %v598 = vld [vmem:[#allocation13 + $0x70] sm:$0xff]
        %v599 = vld [vmem:[#allocation13 + $0x78] sm:$0xff]
        %v600 = vld [vmem:[#allocation13 + $0x80] sm:$0xff]
        %v601 = vld [vmem:[#allocation13 + $0x88] sm:$0xff]
        %v602 = vld [vmem:[#allocation13 + $0x90] sm:$0xff]
        %v603 = vld [vmem:[#allocation13 + $0x98] sm:$0xff]
        %v604 = vld [vmem:[#allocation13 + $0xa0] sm:$0xff]
        %v605 = vld [vmem:[#allocation13 + $0xa8] sm:$0xff]
        %v606 = vld [vmem:[#allocation13 + $0xb0] sm:$0xff]
        %v607 = vld [vmem:[#allocation13 + $0xb8] sm:$0xff]
        %v608 = vld [vmem:[#allocation13 + $0xc0] sm:$0xff]
        %v609 = vld [vmem:[#allocation13 + $0xc8] sm:$0xff]
        %v610 = vld [vmem:[#allocation13 + $0xd0] sm:$0xff]
        %v611 = vld [vmem:[#allocation13 + $0xd8] sm:$0xff]
        %v612 = vld [vmem:[#allocation13 + $0xe0] sm:$0xff]
        %v613 = vld [vmem:[#allocation13 + $0xe8] sm:$0xff]
        %v614 = vld [vmem:[#allocation13 + $0xf0] sm:$0xff]
        %v615 = vld [vmem:[#allocation13 + $0xf8] sm:$0xff]
        %v616 = vld [vmem:[#allocation13 + $0x100] sm:$0xff]
        %v617 = vld [vmem:[#allocation13 + $0x108] sm:$0xff]
        %v618 = vld [vmem:[#allocation13 + $0x110] sm:$0xff]
        %v619 = vld [vmem:[#allocation13 + $0x118] sm:$0xff]
        %v620 = vld [vmem:[#allocation13 + $0x120] sm:$0xff]
        %v621 = vld [vmem:[#allocation13 + $0x128] sm:$0xff]
        %v622 = vld [vmem:[#allocation13 + $0x130] sm:$0xff]
        %v623 = vld [vmem:[#allocation13 + $0x138] sm:$0xff]
        %v624 = vld [vmem:[#allocation13 + $0x140] sm:$0xff]
        %v625 = vld [vmem:[#allocation13 + $0x148] sm:$0xff]
        %v626 = vld [vmem:[#allocation13 + $0x150] sm:$0xff]
        %v627 = vld [vmem:[#allocation13 + $0x158] sm:$0xff]
        %v628 = vld [vmem:[#allocation13 + $0x160] sm:$0xff]
        %v629 = vld [vmem:[#allocation13 + $0x168] sm:$0xff]
        %v630 = vld [vmem:[#allocation13 + $0x170] sm:$0xff]
        %v631 = vld [vmem:[#allocation13 + $0x178] sm:$0xff]
        %v632 = vld [vmem:[#allocation13 + $0x180] sm:$0xff]
        %v633 = vld [vmem:[#allocation13 + $0x188] sm:$0xff]
        %v634 = vld [vmem:[#allocation13 + $0x190] sm:$0xff]
        %v635 = vld [vmem:[#allocation13 + $0x198] sm:$0xff]
        %v636 = vld [vmem:[#allocation13 + $0x1a0] sm:$0xff]
        %v637 = vld [vmem:[#allocation13 + $0x1a8] sm:$0xff]
        %v638 = vld [vmem:[#allocation13 + $0x1b0] sm:$0xff]
        %v639 = vld [vmem:[#allocation13 + $0x1b8] sm:$0xff]
        %v640 = vld [vmem:[#allocation13 + $0x1c0] sm:$0xff]
        %v641 = vld [vmem:[#allocation13 + $0x1c8] sm:$0xff]
        %v642 = vld [vmem:[#allocation13 + $0x1d0] sm:$0xff]
        %v643 = vld [vmem:[#allocation13 + $0x1d8] sm:$0xff]
        %v644 = vld [vmem:[#allocation13 + $0x1e0] sm:$0xff]
        %v645 = vld [vmem:[#allocation13 + $0x1e8] sm:$0xff]
        %v646 = vld [vmem:[#allocation13 + $0x1f0] sm:$0xff]
        %v647 = vld [vmem:[#allocation13 + $0x1f8] sm:$0xff]
        %v712 = vunpack.c.l.b16 %v584
        %v713 = vunpack.c.h.b16 %v584
        %v714 = vunpack.c.l.b16 %v585
        %v715 = vunpack.c.h.b16 %v585
        %v716 = vunpack.c.l.b16 %v586
        %v717 = vunpack.c.h.b16 %v586
        %v718 = vunpack.c.l.b16 %v587
        %v719 = vunpack.c.h.b16 %v587
        %v720 = vunpack.c.l.b16 %v588
        %v721 = vunpack.c.h.b16 %v588
        %v722 = vunpack.c.l.b16 %v589
        %v723 = vunpack.c.h.b16 %v589
        %v724 = vunpack.c.l.b16 %v590
        %v725 = vunpack.c.h.b16 %v590
        %v726 = vunpack.c.l.b16 %v591
        %v727 = vunpack.c.h.b16 %v591
        %v728 = vunpack.c.l.b16 %v592
        %v729 = vunpack.c.h.b16 %v592
        %v730 = vunpack.c.l.b16 %v593
        %v731 = vunpack.c.h.b16 %v593
        %v732 = vunpack.c.l.b16 %v594
        %v733 = vunpack.c.h.b16 %v594
        %v734 = vunpack.c.l.b16 %v595
        %v735 = vunpack.c.h.b16 %v595
        %v736 = vunpack.c.l.b16 %v596
        %v737 = vunpack.c.h.b16 %v596
        %v738 = vunpack.c.l.b16 %v597
        %v739 = vunpack.c.h.b16 %v597
        %v740 = vunpack.c.l.b16 %v598
        %v741 = vunpack.c.h.b16 %v598
        %v742 = vunpack.c.l.b16 %v599
        %v743 = vunpack.c.h.b16 %v599
        %v744 = vunpack.c.l.b16 %v600
        %v745 = vunpack.c.h.b16 %v600
        %v746 = vunpack.c.l.b16 %v601
        %v747 = vunpack.c.h.b16 %v601
        %v748 = vunpack.c.l.b16 %v602
        %v749 = vunpack.c.h.b16 %v602
        %v750 = vunpack.c.l.b16 %v603
        %v751 = vunpack.c.h.b16 %v603
        %v752 = vunpack.c.l.b16 %v604
        %v753 = vunpack.c.h.b16 %v604
        %v754 = vunpack.c.l.b16 %v605
        %v755 = vunpack.c.h.b16 %v605
        %v756 = vunpack.c.l.b16 %v606
        %v757 = vunpack.c.h.b16 %v606
        %v758 = vunpack.c.l.b16 %v607
        %v759 = vunpack.c.h.b16 %v607
        %v760 = vunpack.c.l.b16 %v608
        %v761 = vunpack.c.h.b16 %v608
        %v762 = vunpack.c.l.b16 %v609
        %v763 = vunpack.c.h.b16 %v609
        %v764 = vunpack.c.l.b16 %v610
        %v765 = vunpack.c.h.b16 %v610
        %v766 = vunpack.c.l.b16 %v611
        %v767 = vunpack.c.h.b16 %v611
        %v768 = vunpack.c.l.b16 %v612
        %v769 = vunpack.c.h.b16 %v612
        %v770 = vunpack.c.l.b16 %v613
        %v771 = vunpack.c.h.b16 %v613
        %v772 = vunpack.c.l.b16 %v614
        %v773 = vunpack.c.h.b16 %v614
        %v774 = vunpack.c.l.b16 %v615
        %v775 = vunpack.c.h.b16 %v615
        %v776 = vunpack.c.l.b16 %v616
        %v777 = vunpack.c.h.b16 %v616
        %v778 = vunpack.c.l.b16 %v617
        %v779 = vunpack.c.h.b16 %v617
        %v780 = vunpack.c.l.b16 %v618
        %v781 = vunpack.c.h.b16 %v618
        %v782 = vunpack.c.l.b16 %v619
        %v783 = vunpack.c.h.b16 %v619
        %v784 = vunpack.c.l.b16 %v620
        %v785 = vunpack.c.h.b16 %v620
        %v786 = vunpack.c.l.b16 %v621
        %v787 = vunpack.c.h.b16 %v621
        %v788 = vunpack.c.l.b16 %v622
        %v789 = vunpack.c.h.b16 %v622
        %v790 = vunpack.c.l.b16 %v623
        %v791 = vunpack.c.h.b16 %v623
        %v792 = vunpack.c.l.b16 %v624
        %v793 = vunpack.c.h.b16 %v624
        %v794 = vunpack.c.l.b16 %v625
        %v795 = vunpack.c.h.b16 %v625
        %v796 = vunpack.c.l.b16 %v626
        %v797 = vunpack.c.h.b16 %v626
        %v798 = vunpack.c.l.b16 %v627
        %v799 = vunpack.c.h.b16 %v627
        %v800 = vunpack.c.l.b16 %v628
        %v801 = vunpack.c.h.b16 %v628
        %v802 = vunpack.c.l.b16 %v629
        %v803 = vunpack.c.h.b16 %v629
        %v804 = vunpack.c.l.b16 %v630
        %v805 = vunpack.c.h.b16 %v630
        %v806 = vunpack.c.l.b16 %v631
        %v807 = vunpack.c.h.b16 %v631
        %v808 = vunpack.c.l.b16 %v632
        %v809 = vunpack.c.h.b16 %v632
        %v810 = vunpack.c.l.b16 %v633
        %v811 = vunpack.c.h.b16 %v633
        %v812 = vunpack.c.l.b16 %v634
        %v813 = vunpack.c.h.b16 %v634
        %v814 = vunpack.c.l.b16 %v635
        %v815 = vunpack.c.h.b16 %v635
        %v816 = vunpack.c.l.b16 %v636
        %v817 = vunpack.c.h.b16 %v636
        %v818 = vunpack.c.l.b16 %v637
        %v819 = vunpack.c.h.b16 %v637
        %v820 = vunpack.c.l.b16 %v638
        %v821 = vunpack.c.h.b16 %v638
        %v822 = vunpack.c.l.b16 %v639
        %v823 = vunpack.c.h.b16 %v639
        %v824 = vunpack.c.l.b16 %v640
        %v825 = vunpack.c.h.b16 %v640
        %v826 = vunpack.c.l.b16 %v641
        %v827 = vunpack.c.h.b16 %v641
        %v828 = vunpack.c.l.b16 %v642
        %v829 = vunpack.c.h.b16 %v642
        %v830 = vunpack.c.l.b16 %v643
        %v831 = vunpack.c.h.b16 %v643
        %v832 = vunpack.c.l.b16 %v644
        %v833 = vunpack.c.h.b16 %v644
        %v834 = vunpack.c.l.b16 %v645
        %v835 = vunpack.c.h.b16 %v645
        %v836 = vunpack.c.l.b16 %v646
        %v837 = vunpack.c.h.b16 %v646
        %v838 = vunpack.c.l.b16 %v647
        %v839 = vunpack.c.h.b16 %v647
        %v840 = vpack.c.b16 %v716, %v712
        %v841 = vpack.c.b16 %v717, %v713
        %v842 = vpack.c.b16 %v718, %v714
        %v843 = vpack.c.b16 %v719, %v715
        %v844 = vpack.c.b16 %v724, %v720
        %v845 = vpack.c.b16 %v725, %v721
        %v846 = vpack.c.b16 %v726, %v722
        %v847 = vpack.c.b16 %v727, %v723
        %v848 = vpack.c.b16 %v732, %v728
        %v849 = vpack.c.b16 %v733, %v729
        %v850 = vpack.c.b16 %v734, %v730
        %v851 = vpack.c.b16 %v735, %v731
        %v852 = vpack.c.b16 %v740, %v736
        %v853 = vpack.c.b16 %v741, %v737
        %v854 = vpack.c.b16 %v742, %v738
        %v855 = vpack.c.b16 %v743, %v739
        %v856 = vpack.c.b16 %v748, %v744
        %v857 = vpack.c.b16 %v749, %v745
        %v858 = vpack.c.b16 %v750, %v746
        %v859 = vpack.c.b16 %v751, %v747
        %v860 = vpack.c.b16 %v756, %v752
        %v861 = vpack.c.b16 %v757, %v753
        %v862 = vpack.c.b16 %v758, %v754
        %v863 = vpack.c.b16 %v759, %v755
        %v864 = vpack.c.b16 %v764, %v760
        %v865 = vpack.c.b16 %v765, %v761
        %v866 = vpack.c.b16 %v766, %v762
        %v867 = vpack.c.b16 %v767, %v763
        %v868 = vpack.c.b16 %v772, %v768
        %v869 = vpack.c.b16 %v773, %v769
        %v870 = vpack.c.b16 %v774, %v770
        %v871 = vpack.c.b16 %v775, %v771
        %v872 = vpack.c.b16 %v780, %v776
        %v873 = vpack.c.b16 %v781, %v777
        %v874 = vpack.c.b16 %v782, %v778
        %v875 = vpack.c.b16 %v783, %v779
        %v876 = vpack.c.b16 %v788, %v784
        %v877 = vpack.c.b16 %v789, %v785
        %v878 = vpack.c.b16 %v790, %v786
        %v879 = vpack.c.b16 %v791, %v787
        %v880 = vpack.c.b16 %v796, %v792
        %v881 = vpack.c.b16 %v797, %v793
        %v882 = vpack.c.b16 %v798, %v794
        %v883 = vpack.c.b16 %v799, %v795
        %v884 = vpack.c.b16 %v804, %v800
        %v885 = vpack.c.b16 %v805, %v801
        %v886 = vpack.c.b16 %v806, %v802
        %v887 = vpack.c.b16 %v807, %v803
        %v888 = vpack.c.b16 %v812, %v808
        %v889 = vpack.c.b16 %v813, %v809
        %v890 = vpack.c.b16 %v814, %v810
        %v891 = vpack.c.b16 %v815, %v811
        %v892 = vpack.c.b16 %v820, %v816
        %v893 = vpack.c.b16 %v821, %v817
        %v894 = vpack.c.b16 %v822, %v818
        %v895 = vpack.c.b16 %v823, %v819
        %v896 = vpack.c.b16 %v828, %v824
        %v897 = vpack.c.b16 %v829, %v825
        %v898 = vpack.c.b16 %v830, %v826
        %v899 = vpack.c.b16 %v831, %v827
        %v900 = vpack.c.b16 %v836, %v832
        %v901 = vpack.c.b16 %v837, %v833
        %v902 = vpack.c.b16 %v838, %v834
        %v903 = vpack.c.b16 %v839, %v835
        %968 = vmatpush.bf16.msra.mxu0 %v868
        %969 = vmatpush.bf16.msra.mxu0 %v864
        %970 = vmatpush.bf16.msra.mxu0 %v860
        %971 = vmatpush.bf16.msra.mxu0 %v856
        %972 = vmatpush.bf16.msra.mxu0 %v852
        %973 = vmatpush.bf16.msra.mxu0 %v848
        %974 = vmatpush.bf16.msra.mxu0 %v844
        %975 = vmatpush.bf16.msra.mxu0 %v840
        %976 = vmatmul.bf16.gmra.mxu0 %v579
        %v977 = vpop.f32.mrf.mxu0
        %v978 = vadd.f32 0.0, %v977
        %v979 = vpop.f32.mrf.mxu0
        %980 = vdwg.mxu0
        %981 = vmatpush.bf16.msra.mxu0 %v900
        %982 = vmatpush.bf16.msra.mxu0 %v896
        %983 = vmatpush.bf16.msra.mxu0 %v892
        %984 = vmatpush.bf16.msra.mxu0 %v888
        %985 = vmatpush.bf16.msra.mxu0 %v884
        %986 = vmatpush.bf16.msra.mxu0 %v880
        %987 = vmatpush.bf16.msra.mxu0 %v876
        %988 = vmatpush.bf16.msra.mxu0 %v872
        %989 = vmatmul.bf16.gmra.mxu0 %v477
        %v990 = vpop.f32.mrf.mxu0
        %v991 = vadd.f32 %v978, %v990
        %v992 = vpop.f32.mrf.mxu0
        %993 = vdwg.mxu0
        %994 = vmatpush.bf16.msra.mxu0 %v869
        %995 = vmatpush.bf16.msra.mxu0 %v865
        %996 = vmatpush.bf16.msra.mxu0 %v861
        %997 = vmatpush.bf16.msra.mxu0 %v857
        %998 = vmatpush.bf16.msra.mxu0 %v853
        %999 = vmatpush.bf16.msra.mxu0 %v849
        %1000 = vmatpush.bf16.msra.mxu0 %v845
        %1001 = vmatpush.bf16.msra.mxu0 %v841
        %1002 = vmatmul.bf16.gmra.mxu0 %v579
        %v1003 = vpop.f32.mrf.mxu0
        %v1004 = vadd.f32 0.0, %v1003
        %v1005 = vpop.f32.mrf.mxu0
        %1006 = vdwg.mxu0
        %1007 = vmatpush.bf16.msra.mxu0 %v901
        %1008 = vmatpush.bf16.msra.mxu0 %v897
        %1009 = vmatpush.bf16.msra.mxu0 %v893
        %1010 = vmatpush.bf16.msra.mxu0 %v889
        %1011 = vmatpush.bf16.msra.mxu0 %v885
        %1012 = vmatpush.bf16.msra.mxu0 %v881
        %1013 = vmatpush.bf16.msra.mxu0 %v877
        %1014 = vmatpush.bf16.msra.mxu0 %v873
        %1015 = vmatmul.bf16.gmra.mxu0 %v477
        %v1016 = vpop.f32.mrf.mxu0
        %v1017 = vadd.f32 %v1004, %v1016
        %v1018 = vpop.f32.mrf.mxu0
        %1019 = vdwg.mxu0
        %1020 = vmatpush.bf16.msra.mxu0 %v870
        %1021 = vmatpush.bf16.msra.mxu0 %v866
        %1022 = vmatpush.bf16.msra.mxu0 %v862
        %1023 = vmatpush.bf16.msra.mxu0 %v858
        %1024 = vmatpush.bf16.msra.mxu0 %v854
        %1025 = vmatpush.bf16.msra.mxu0 %v850
        %1026 = vmatpush.bf16.msra.mxu0 %v846
        %1027 = vmatpush.bf16.msra.mxu0 %v842
        %1028 = vmatmul.bf16.gmra.mxu0 %v579
        %v1029 = vpop.f32.mrf.mxu0
        %v1030 = vadd.f32 0.0, %v1029
        %v1031 = vpop.f32.mrf.mxu0
        %1032 = vdwg.mxu0
        %1033 = vmatpush.bf16.msra.mxu0 %v902
        %1034 = vmatpush.bf16.msra.mxu0 %v898
        %1035 = vmatpush.bf16.msra.mxu0 %v894
        %1036 = vmatpush.bf16.msra.mxu0 %v890
        %1037 = vmatpush.bf16.msra.mxu0 %v886
        %1038 = vmatpush.bf16.msra.mxu0 %v882
        %1039 = vmatpush.bf16.msra.mxu0 %v878
        %1040 = vmatpush.bf16.msra.mxu0 %v874
        %1041 = vmatmul.bf16.gmra.mxu0 %v477
        %v1042 = vpop.f32.mrf.mxu0
        %v1043 = vadd.f32 %v1030, %v1042
        %v1044 = vpop.f32.mrf.mxu0
        %1045 = vdwg.mxu0
        %1046 = vmatpush.bf16.msra.mxu0 %v871
        %1047 = vmatpush.bf16.msra.mxu0 %v867
        %1048 = vmatpush.bf16.msra.mxu0 %v863
        %1049 = vmatpush.bf16.msra.mxu0 %v859
        %1050 = vmatpush.bf16.msra.mxu0 %v855
        %1051 = vmatpush.bf16.msra.mxu0 %v851
        %1052 = vmatpush.bf16.msra.mxu0 %v847
        %1053 = vmatpush.bf16.msra.mxu0 %v843
        %1054 = vmatmul.bf16.gmra.mxu0 %v579
        %v1055 = vpop.f32.mrf.mxu0
        %v1056 = vadd.f32 0.0, %v1055
        %v1057 = vpop.f32.mrf.mxu0
        %1058 = vdwg.mxu0
        %1059 = vmatpush.bf16.msra.mxu0 %v903
        %1060 = vmatpush.bf16.msra.mxu0 %v899
        %1061 = vmatpush.bf16.msra.mxu0 %v895
        %1062 = vmatpush.bf16.msra.mxu0 %v891
        %1063 = vmatpush.bf16.msra.mxu0 %v887
        %1064 = vmatpush.bf16.msra.mxu0 %v883
        %1065 = vmatpush.bf16.msra.mxu0 %v879
        %1066 = vmatpush.bf16.msra.mxu0 %v875
        %1067 = vmatmul.bf16.gmra.mxu0 %v477
        %v1068 = vpop.f32.mrf.mxu0
        %v1069 = vadd.f32 %v1056, %v1068
        %v1070 = vpop.f32.mrf.mxu0
        %1071 = vdwg.mxu0
        %v1072 = vadd.f32 %v580, %v991
        %v1073 = vadd.f32 %v581, %v1017
        %v1074 = vadd.f32 %v582, %v1043
        %v1075 = vadd.f32 %v583, %v1069
        %v1076 = vxor.u32 %v1072, 2147483648
        %v1077 = vmul.f32 %v1076, 1.442695
        %v1078 = vpow.pop %v1077
        %v1079 = vadd.f32 %v1078, 1.0
        %v1080 = vrcp.pop %v1079
        %v1081 = vmul.f32 %v1079, %v1080
        %v1082 = vsub.f32 1.0, %v1081
        %v1083 = vmul.f32 %v1080, %v1082
        %v1084 = vadd.f32 %v1080, %v1083
        %vm1085 = vweird.f32 %v1079
        %vm1086 = vweird.f32 %v1080
        %vm1087 = vmor %vm1085, %vm1086
        %v1088 = vsel %vm1087, %v1080, %v1084
        %v1089 = vand.u32 2147483647, %v1079
        %vm1090 = vcmp.eq.f32.partialorder %v1089, 8.507059e+37
        %v1091 = vand.u32 %v1079, 2147483648
        %v1092 = vor.u32 1.1754944e-38, %v1091
        %v1093 = vsel %vm1090, %v1092, %v1088
        %v1094 = vmul.f32 1.0, %v1093
        %v1095 = vxor.u32 %v1073, 2147483648
        %v1096 = vmul.f32 %v1095, 1.442695
        %v1097 = vpow.pop %v1096
        %v1098 = vadd.f32 %v1097, 1.0
        %v1099 = vrcp.pop %v1098
        %v1100 = vmul.f32 %v1098, %v1099
        %v1101 = vsub.f32 1.0, %v1100
        %v1102 = vmul.f32 %v1099, %v1101
        %v1103 = vadd.f32 %v1099, %v1102
        %vm1104 = vweird.f32 %v1098
        %vm1105 = vweird.f32 %v1099
        %vm1106 = vmor %vm1104, %vm1105
        %v1107 = vsel %vm1106, %v1099, %v1103
        %v1108 = vand.u32 2147483647, %v1098
        %vm1109 = vcmp.eq.f32.partialorder %v1108, 8.507059e+37
        %v1110 = vand.u32 %v1098, 2147483648
        %v1111 = vor.u32 1.1754944e-38, %v1110
        %v1112 = vsel %vm1109, %v1111, %v1107
        %v1113 = vmul.f32 1.0, %v1112
        %v1114 = vtanh.pop %v1074
        %v1115 = vxor.u32 %v1075, 2147483648
        %v1116 = vmul.f32 %v1115, 1.442695
        %v1117 = vpow.pop %v1116
        %v1118 = vadd.f32 %v1117, 1.0
        %v1119 = vrcp.pop %v1118
        %v1120 = vmul.f32 %v1118, %v1119
        %v1121 = vsub.f32 1.0, %v1120
        %v1122 = vmul.f32 %v1119, %v1121
        %v1123 = vadd.f32 %v1119, %v1122
        %vm1124 = vweird.f32 %v1118
        %vm1125 = vweird.f32 %v1119
        %vm1126 = vmor %vm1124, %vm1125
        %v1127 = vsel %vm1126, %v1119, %v1123
        %v1128 = vand.u32 2147483647, %v1118
        %vm1129 = vcmp.eq.f32.partialorder %v1128, 8.507059e+37
        %v1130 = vand.u32 %v1118, 2147483648
        %v1131 = vor.u32 1.1754944e-38, %v1130
        %v1132 = vsel %vm1129, %v1131, %v1127
        %v1133 = vmul.f32 1.0, %v1132
        %v1134 = vmul.f32 %v1113, %v476
        %v1135 = vmul.f32 %v1094, %v1114
        %v1136 = vadd.f32 %v1134, %v1135
        %v1137 = vtanh.pop %v1136
        %v1138 = vmul.f32 %v1133, %v1137
        %v1139 = vsel %vm474, 1, 0
        %1140 = vset.pattern.permute.xlu0 0
        %1141 = vperm.xlu0 %1140, %v1139
        %v1142 = vpop.permute.xlu0 %1141
        %vm1143 = vcmp.eq.s32.totalorder %v1142, 1
        %v1144 = vsel %vm1143, %v1138, %v475
        %1145 = vst [vmem:[#allocation2] sm:$0xff] %v1144
        %v1146 = vsel %vm1143, %v1136, %v476
        %1147 = vst [vmem:[#allocation3] sm:$0xff] %v1146
        %1148 = vst [vmem:[#allocation4] sm:$0xff] %v1138
        %s1149 = sadd.s32 %s472, 1
        %v1150 = vstv %s1149
        %vm1151 = vcmp.gt.s32.totalorder %v471, %v1150
        %v1152 = vld [vmem:[#allocation2] sm:$0xff]
        %v1153 = vld [vmem:[#allocation3] sm:$0xff]
        %v1154 = vpack.c.bf16 %v1152, %v1152
        %v1155 = vld [vmem:[#allocation11] sm:$0xf]
        %v1156 = vld [vmem:[#allocation11 + $0x4] sm:$0xf]
        %v1157 = vld [vmem:[#allocation11 + $0x8] sm:$0xf]
        %v1158 = vld [vmem:[#allocation11 + $0xc] sm:$0xf]
        %v1159 = vld [vmem:[#allocation11 + $0x10] sm:$0xf]
        %v1160 = vld [vmem:[#allocation11 + $0x14] sm:$0xf]
        %v1161 = vld [vmem:[#allocation11 + $0x18] sm:$0xf]
        %v1162 = vld [vmem:[#allocation11 + $0x1c] sm:$0xf]
        %v1163 = vld [vmem:[#allocation11 + $0x20] sm:$0xf]
        %v1164 = vld [vmem:[#allocation11 + $0x24] sm:$0xf]
        %v1165 = vld [vmem:[#allocation11 + $0x28] sm:$0xf]
        %v1166 = vld [vmem:[#allocation11 + $0x2c] sm:$0xf]
        %v1167 = vld [vmem:[#allocation11 + $0x30] sm:$0xf]
        %v1168 = vld [vmem:[#allocation11 + $0x34] sm:$0xf]
        %v1169 = vld [vmem:[#allocation11 + $0x38] sm:$0xf]
        %v1170 = vld [vmem:[#allocation11 + $0x3c] sm:$0xf]
        %v1171 = vld [vmem:[%s6] sm:$0x1]
        %v1173 = vperm.slane %v1171, 0
        %v1191 = vunpack.c.l.b16 %v1155
        %v1192 = vunpack.c.l.b16 %v1156
        %v1193 = vunpack.c.l.b16 %v1157
        %v1194 = vunpack.c.l.b16 %v1158
        %v1195 = vunpack.c.l.b16 %v1159
        %v1196 = vunpack.c.l.b16 %v1160
        %v1197 = vunpack.c.l.b16 %v1161
        %v1198 = vunpack.c.l.b16 %v1162
        %v1199 = vunpack.c.l.b16 %v1163
        %v1200 = vunpack.c.l.b16 %v1164
        %v1201 = vunpack.c.l.b16 %v1165
        %v1202 = vunpack.c.l.b16 %v1166
        %v1203 = vunpack.c.l.b16 %v1167
        %v1204 = vunpack.c.l.b16 %v1168
        %v1205 = vunpack.c.l.b16 %v1169
        %v1206 = vunpack.c.l.b16 %v1170
        %v1207 = vpack.c.b16 %v1192, %v1191
        %v1208 = vpack.c.b16 %v1194, %v1193
        %v1209 = vpack.c.b16 %v1196, %v1195
        %v1210 = vpack.c.b16 %v1198, %v1197
        %v1211 = vpack.c.b16 %v1200, %v1199
        %v1212 = vpack.c.b16 %v1202, %v1201
        %v1213 = vpack.c.b16 %v1204, %v1203
        %v1214 = vpack.c.b16 %v1206, %v1205
        %1223 = vmatpush.bf16.msra.mxu0 %v1214
        %1224 = vmatpush.bf16.msra.mxu0 %v1213
        %1225 = vmatpush.bf16.msra.mxu0 %v1212
        %1226 = vmatpush.bf16.msra.mxu0 %v1211
        %1227 = vmatpush.bf16.msra.mxu0 %v1210
        %1228 = vmatpush.bf16.msra.mxu0 %v1209
        %1229 = vmatpush.bf16.msra.mxu0 %v1208
        %1230 = vmatpush.bf16.msra.mxu0 %v1207
        %1231 = vmatmul.bf16.gmra.mxu0 %v1154
        %v1232 = vpop.f32.mrf.mxu0
        %v1233 = vadd.f32 %v1173, %v1232
        %v1234 = vpop.f32.mrf.mxu0
        %1235 = vdwg.mxu0
        %v1236 = vxor.u32 %v1233, 2147483648
        %v1237 = vmul.f32 %v1236, 1.442695
        %v1238 = vpow.pop %v1237
        %v1239 = vadd.f32 %v1238, 1.0
        %v1240 = vrcp.pop %v1239
        %v1241 = vmul.f32 %v1239, %v1240
        %v1242 = vsub.f32 1.0, %v1241
        %v1243 = vmul.f32 %v1240, %v1242
        %v1244 = vadd.f32 %v1240, %v1243
        %vm1245 = vweird.f32 %v1239
        %vm1246 = vweird.f32 %v1240
        %vm1247 = vmor %vm1245, %vm1246
        %v1248 = vsel %vm1247, %v1240, %v1244
        %v1249 = vand.u32 2147483647, %v1239
        %vm1250 = vcmp.eq.f32.partialorder %v1249, 8.507059e+37
        %v1251 = vand.u32 %v1239, 2147483648
        %v1252 = vor.u32 1.1754944e-38, %v1251
        %v1253 = vsel %vm1250, %v1252, %v1248
        %v1254 = vmul.f32 1.0, %v1253
        %v1255 = vmul.f32 %v1254, %v470
        %v1256 = vpack.c.bf16 %v1255, %v1255
        %s1257 = scalar_lea.vmem %s397, 32 [#allocation5]
        %v1258 = vld [vmem:[%s1257] sm:$0xff]
        %v1259 = vld [vmem:[%s1257 + $0x8] sm:$0xff]
        %v1260 = vld [vmem:[%s1257 + $0x10] sm:$0xff]
        %v1261 = vld [vmem:[%s1257 + $0x18] sm:$0xff]
        %v1262 = vld [vmem:[#allocation13] sm:$0xff]
        %v1263 = vld [vmem:[#allocation13 + $0x8] sm:$0xff]
        %v1264 = vld [vmem:[#allocation13 + $0x10] sm:$0xff]
        %v1265 = vld [vmem:[#allocation13 + $0x18] sm:$0xff]
        %v1266 = vld [vmem:[#allocation13 + $0x20] sm:$0xff]
        %v1267 = vld [vmem:[#allocation13 + $0x28] sm:$0xff]
        %v1268 = vld [vmem:[#allocation13 + $0x30] sm:$0xff]
        %v1269 = vld [vmem:[#allocation13 + $0x38] sm:$0xff]
        %v1270 = vld [vmem:[#allocation13 + $0x40] sm:$0xff]
        %v1271 = vld [vmem:[#allocation13 + $0x48] sm:$0xff]
        %v1272 = vld [vmem:[#allocation13 + $0x50] sm:$0xff]
        %v1273 = vld [vmem:[#allocation13 + $0x58] sm:$0xff]
        %v1274 = vld [vmem:[#allocation13 + $0x60] sm:$0xff]
        %v1275 = vld [vmem:[#allocation13 + $0x68] sm:$0xff]
        %v1276 = vld [vmem:[#allocation13 + $0x70] sm:$0xff]
        %v1277 = vld [vmem:[#allocation13 + $0x78] sm:$0xff]
        %v1278 = vld [vmem:[#allocation13 + $0x80] sm:$0xff]
        %v1279 = vld [vmem:[#allocation13 + $0x88] sm:$0xff]
        %v1280 = vld [vmem:[#allocation13 + $0x90] sm:$0xff]
        %v1281 = vld [vmem:[#allocation13 + $0x98] sm:$0xff]
        %v1282 = vld [vmem:[#allocation13 + $0xa0] sm:$0xff]
        %v1283 = vld [vmem:[#allocation13 + $0xa8] sm:$0xff]
        %v1284 = vld [vmem:[#allocation13 + $0xb0] sm:$0xff]
        %v1285 = vld [vmem:[#allocation13 + $0xb8] sm:$0xff]
        %v1286 = vld [vmem:[#allocation13 + $0xc0] sm:$0xff]
        %v1287 = vld [vmem:[#allocation13 + $0xc8] sm:$0xff]
        %v1288 = vld [vmem:[#allocation13 + $0xd0] sm:$0xff]
        %v1289 = vld [vmem:[#allocation13 + $0xd8] sm:$0xff]
        %v1290 = vld [vmem:[#allocation13 + $0xe0] sm:$0xff]
        %v1291 = vld [vmem:[#allocation13 + $0xe8] sm:$0xff]
        %v1292 = vld [vmem:[#allocation13 + $0xf0] sm:$0xff]
        %v1293 = vld [vmem:[#allocation13 + $0xf8] sm:$0xff]
        %v1294 = vld [vmem:[#allocation13 + $0x100] sm:$0xff]
        %v1295 = vld [vmem:[#allocation13 + $0x108] sm:$0xff]
        %v1296 = vld [vmem:[#allocation13 + $0x110] sm:$0xff]
        %v1297 = vld [vmem:[#allocation13 + $0x118] sm:$0xff]
        %v1298 = vld [vmem:[#allocation13 + $0x120] sm:$0xff]
        %v1299 = vld [vmem:[#allocation13 + $0x128] sm:$0xff]
        %v1300 = vld [vmem:[#allocation13 + $0x130] sm:$0xff]
        %v1301 = vld [vmem:[#allocation13 + $0x138] sm:$0xff]
        %v1302 = vld [vmem:[#allocation13 + $0x140] sm:$0xff]
        %v1303 = vld [vmem:[#allocation13 + $0x148] sm:$0xff]
        %v1304 = vld [vmem:[#allocation13 + $0x150] sm:$0xff]
        %v1305 = vld [vmem:[#allocation13 + $0x158] sm:$0xff]
        %v1306 = vld [vmem:[#allocation13 + $0x160] sm:$0xff]
        %v1307 = vld [vmem:[#allocation13 + $0x168] sm:$0xff]
        %v1308 = vld [vmem:[#allocation13 + $0x170] sm:$0xff]
        %v1309 = vld [vmem:[#allocation13 + $0x178] sm:$0xff]
        %v1310 = vld [vmem:[#allocation13 + $0x180] sm:$0xff]
        %v1311 = vld [vmem:[#allocation13 + $0x188] sm:$0xff]
        %v1312 = vld [vmem:[#allocation13 + $0x190] sm:$0xff]
        %v1313 = vld [vmem:[#allocation13 + $0x198] sm:$0xff]
        %v1314 = vld [vmem:[#allocation13 + $0x1a0] sm:$0xff]
        %v1315 = vld [vmem:[#allocation13 + $0x1a8] sm:$0xff]
        %v1316 = vld [vmem:[#allocation13 + $0x1b0] sm:$0xff]
        %v1317 = vld [vmem:[#allocation13 + $0x1b8] sm:$0xff]
        %v1318 = vld [vmem:[#allocation13 + $0x1c0] sm:$0xff]
        %v1319 = vld [vmem:[#allocation13 + $0x1c8] sm:$0xff]
        %v1320 = vld [vmem:[#allocation13 + $0x1d0] sm:$0xff]
        %v1321 = vld [vmem:[#allocation13 + $0x1d8] sm:$0xff]
        %v1322 = vld [vmem:[#allocation13 + $0x1e0] sm:$0xff]
        %v1323 = vld [vmem:[#allocation13 + $0x1e8] sm:$0xff]
        %v1324 = vld [vmem:[#allocation13 + $0x1f0] sm:$0xff]
        %v1325 = vld [vmem:[#allocation13 + $0x1f8] sm:$0xff]
        %v1390 = vunpack.c.l.b16 %v1262
        %v1391 = vunpack.c.h.b16 %v1262
        %v1392 = vunpack.c.l.b16 %v1263
        %v1393 = vunpack.c.h.b16 %v1263
        %v1394 = vunpack.c.l.b16 %v1264
        %v1395 = vunpack.c.h.b16 %v1264
        %v1396 = vunpack.c.l.b16 %v1265
        %v1397 = vunpack.c.h.b16 %v1265
        %v1398 = vunpack.c.l.b16 %v1266
        %v1399 = vunpack.c.h.b16 %v1266
        %v1400 = vunpack.c.l.b16 %v1267
        %v1401 = vunpack.c.h.b16 %v1267
        %v1402 = vunpack.c.l.b16 %v1268
        %v1403 = vunpack.c.h.b16 %v1268
        %v1404 = vunpack.c.l.b16 %v1269
        %v1405 = vunpack.c.h.b16 %v1269
        %v1406 = vunpack.c.l.b16 %v1270
        %v1407 = vunpack.c.h.b16 %v1270
        %v1408 = vunpack.c.l.b16 %v1271
        %v1409 = vunpack.c.h.b16 %v1271
        %v1410 = vunpack.c.l.b16 %v1272
        %v1411 = vunpack.c.h.b16 %v1272
        %v1412 = vunpack.c.l.b16 %v1273
        %v1413 = vunpack.c.h.b16 %v1273
        %v1414 = vunpack.c.l.b16 %v1274
        %v1415 = vunpack.c.h.b16 %v1274
        %v1416 = vunpack.c.l.b16 %v1275
        %v1417 = vunpack.c.h.b16 %v1275
        %v1418 = vunpack.c.l.b16 %v1276
        %v1419 = vunpack.c.h.b16 %v1276
        %v1420 = vunpack.c.l.b16 %v1277
        %v1421 = vunpack.c.h.b16 %v1277
        %v1422 = vunpack.c.l.b16 %v1278
        %v1423 = vunpack.c.h.b16 %v1278
        %v1424 = vunpack.c.l.b16 %v1279
        %v1425 = vunpack.c.h.b16 %v1279
        %v1426 = vunpack.c.l.b16 %v1280
        %v1427 = vunpack.c.h.b16 %v1280
        %v1428 = vunpack.c.l.b16 %v1281
        %v1429 = vunpack.c.h.b16 %v1281
        %v1430 = vunpack.c.l.b16 %v1282
        %v1431 = vunpack.c.h.b16 %v1282
        %v1432 = vunpack.c.l.b16 %v1283
        %v1433 = vunpack.c.h.b16 %v1283
        %v1434 = vunpack.c.l.b16 %v1284
        %v1435 = vunpack.c.h.b16 %v1284
        %v1436 = vunpack.c.l.b16 %v1285
        %v1437 = vunpack.c.h.b16 %v1285
        %v1438 = vunpack.c.l.b16 %v1286
        %v1439 = vunpack.c.h.b16 %v1286
        %v1440 = vunpack.c.l.b16 %v1287
        %v1441 = vunpack.c.h.b16 %v1287
        %v1442 = vunpack.c.l.b16 %v1288
        %v1443 = vunpack.c.h.b16 %v1288
        %v1444 = vunpack.c.l.b16 %v1289
        %v1445 = vunpack.c.h.b16 %v1289
        %v1446 = vunpack.c.l.b16 %v1290
        %v1447 = vunpack.c.h.b16 %v1290
        %v1448 = vunpack.c.l.b16 %v1291
        %v1449 = vunpack.c.h.b16 %v1291
        %v1450 = vunpack.c.l.b16 %v1292
        %v1451 = vunpack.c.h.b16 %v1292
        %v1452 = vunpack.c.l.b16 %v1293
        %v1453 = vunpack.c.h.b16 %v1293
        %v1454 = vunpack.c.l.b16 %v1294
        %v1455 = vunpack.c.h.b16 %v1294
        %v1456 = vunpack.c.l.b16 %v1295
        %v1457 = vunpack.c.h.b16 %v1295
        %v1458 = vunpack.c.l.b16 %v1296
        %v1459 = vunpack.c.h.b16 %v1296
        %v1460 = vunpack.c.l.b16 %v1297
        %v1461 = vunpack.c.h.b16 %v1297
        %v1462 = vunpack.c.l.b16 %v1298
        %v1463 = vunpack.c.h.b16 %v1298
        %v1464 = vunpack.c.l.b16 %v1299
        %v1465 = vunpack.c.h.b16 %v1299
        %v1466 = vunpack.c.l.b16 %v1300
        %v1467 = vunpack.c.h.b16 %v1300
        %v1468 = vunpack.c.l.b16 %v1301
        %v1469 = vunpack.c.h.b16 %v1301
        %v1470 = vunpack.c.l.b16 %v1302
        %v1471 = vunpack.c.h.b16 %v1302
        %v1472 = vunpack.c.l.b16 %v1303
        %v1473 = vunpack.c.h.b16 %v1303
        %v1474 = vunpack.c.l.b16 %v1304
        %v1475 = vunpack.c.h.b16 %v1304
        %v1476 = vunpack.c.l.b16 %v1305
        %v1477 = vunpack.c.h.b16 %v1305
        %v1478 = vunpack.c.l.b16 %v1306
        %v1479 = vunpack.c.h.b16 %v1306
        %v1480 = vunpack.c.l.b16 %v1307
        %v1481 = vunpack.c.h.b16 %v1307
        %v1482 = vunpack.c.l.b16 %v1308
        %v1483 = vunpack.c.h.b16 %v1308
        %v1484 = vunpack.c.l.b16 %v1309
        %v1485 = vunpack.c.h.b16 %v1309
        %v1486 = vunpack.c.l.b16 %v1310
        %v1487 = vunpack.c.h.b16 %v1310
        %v1488 = vunpack.c.l.b16 %v1311
        %v1489 = vunpack.c.h.b16 %v1311
        %v1490 = vunpack.c.l.b16 %v1312
        %v1491 = vunpack.c.h.b16 %v1312
        %v1492 = vunpack.c.l.b16 %v1313
        %v1493 = vunpack.c.h.b16 %v1313
        %v1494 = vunpack.c.l.b16 %v1314
        %v1495 = vunpack.c.h.b16 %v1314
        %v1496 = vunpack.c.l.b16 %v1315
        %v1497 = vunpack.c.h.b16 %v1315
        %v1498 = vunpack.c.l.b16 %v1316
        %v1499 = vunpack.c.h.b16 %v1316
        %v1500 = vunpack.c.l.b16 %v1317
        %v1501 = vunpack.c.h.b16 %v1317
        %v1502 = vunpack.c.l.b16 %v1318
        %v1503 = vunpack.c.h.b16 %v1318
        %v1504 = vunpack.c.l.b16 %v1319
        %v1505 = vunpack.c.h.b16 %v1319
        %v1506 = vunpack.c.l.b16 %v1320
        %v1507 = vunpack.c.h.b16 %v1320
        %v1508 = vunpack.c.l.b16 %v1321
        %v1509 = vunpack.c.h.b16 %v1321
        %v1510 = vunpack.c.l.b16 %v1322
        %v1511 = vunpack.c.h.b16 %v1322
        %v1512 = vunpack.c.l.b16 %v1323
        %v1513 = vunpack.c.h.b16 %v1323
        %v1514 = vunpack.c.l.b16 %v1324
        %v1515 = vunpack.c.h.b16 %v1324
        %v1516 = vunpack.c.l.b16 %v1325
        %v1517 = vunpack.c.h.b16 %v1325
        %v1518 = vpack.c.b16 %v1394, %v1390
        %v1519 = vpack.c.b16 %v1395, %v1391
        %v1520 = vpack.c.b16 %v1396, %v1392
        %v1521 = vpack.c.b16 %v1397, %v1393
        %v1522 = vpack.c.b16 %v1402, %v1398
        %v1523 = vpack.c.b16 %v1403, %v1399
        %v1524 = vpack.c.b16 %v1404, %v1400
        %v1525 = vpack.c.b16 %v1405, %v1401
        %v1526 = vpack.c.b16 %v1410, %v1406
        %v1527 = vpack.c.b16 %v1411, %v1407
        %v1528 = vpack.c.b16 %v1412, %v1408
        %v1529 = vpack.c.b16 %v1413, %v1409
        %v1530 = vpack.c.b16 %v1418, %v1414
        %v1531 = vpack.c.b16 %v1419, %v1415
        %v1532 = vpack.c.b16 %v1420, %v1416
        %v1533 = vpack.c.b16 %v1421, %v1417
        %v1534 = vpack.c.b16 %v1426, %v1422
        %v1535 = vpack.c.b16 %v1427, %v1423
        %v1536 = vpack.c.b16 %v1428, %v1424
        %v1537 = vpack.c.b16 %v1429, %v1425
        %v1538 = vpack.c.b16 %v1434, %v1430
        %v1539 = vpack.c.b16 %v1435, %v1431
        %v1540 = vpack.c.b16 %v1436, %v1432
        %v1541 = vpack.c.b16 %v1437, %v1433
        %v1542 = vpack.c.b16 %v1442, %v1438
        %v1543 = vpack.c.b16 %v1443, %v1439
        %v1544 = vpack.c.b16 %v1444, %v1440
        %v1545 = vpack.c.b16 %v1445, %v1441
        %v1546 = vpack.c.b16 %v1450, %v1446
        %v1547 = vpack.c.b16 %v1451, %v1447
        %v1548 = vpack.c.b16 %v1452, %v1448
        %v1549 = vpack.c.b16 %v1453, %v1449
        %v1550 = vpack.c.b16 %v1458, %v1454
        %v1551 = vpack.c.b16 %v1459, %v1455
        %v1552 = vpack.c.b16 %v1460, %v1456
        %v1553 = vpack.c.b16 %v1461, %v1457
        %v1554 = vpack.c.b16 %v1466, %v1462
        %v1555 = vpack.c.b16 %v1467, %v1463
        %v1556 = vpack.c.b16 %v1468, %v1464
        %v1557 = vpack.c.b16 %v1469, %v1465
        %v1558 = vpack.c.b16 %v1474, %v1470
        %v1559 = vpack.c.b16 %v1475, %v1471
        %v1560 = vpack.c.b16 %v1476, %v1472
        %v1561 = vpack.c.b16 %v1477, %v1473
        %v1562 = vpack.c.b16 %v1482, %v1478
        %v1563 = vpack.c.b16 %v1483, %v1479
        %v1564 = vpack.c.b16 %v1484, %v1480
        %v1565 = vpack.c.b16 %v1485, %v1481
        %v1566 = vpack.c.b16 %v1490, %v1486
        %v1567 = vpack.c.b16 %v1491, %v1487
        %v1568 = vpack.c.b16 %v1492, %v1488
        %v1569 = vpack.c.b16 %v1493, %v1489
        %v1570 = vpack.c.b16 %v1498, %v1494
        %v1571 = vpack.c.b16 %v1499, %v1495
        %v1572 = vpack.c.b16 %v1500, %v1496
        %v1573 = vpack.c.b16 %v1501, %v1497
        %v1574 = vpack.c.b16 %v1506, %v1502
        %v1575 = vpack.c.b16 %v1507, %v1503
        %v1576 = vpack.c.b16 %v1508, %v1504
        %v1577 = vpack.c.b16 %v1509, %v1505
        %v1578 = vpack.c.b16 %v1514, %v1510
        %v1579 = vpack.c.b16 %v1515, %v1511
        %v1580 = vpack.c.b16 %v1516, %v1512
        %v1581 = vpack.c.b16 %v1517, %v1513
        %1646 = vmatpush.bf16.msra.mxu0 %v1546
        %1647 = vmatpush.bf16.msra.mxu0 %v1542
        %1648 = vmatpush.bf16.msra.mxu0 %v1538
        %1649 = vmatpush.bf16.msra.mxu0 %v1534
        %1650 = vmatpush.bf16.msra.mxu0 %v1530
        %1651 = vmatpush.bf16.msra.mxu0 %v1526
        %1652 = vmatpush.bf16.msra.mxu0 %v1522
        %1653 = vmatpush.bf16.msra.mxu0 %v1518
        %1654 = vmatmul.bf16.gmra.mxu0 %v1256
        %v1655 = vpop.f32.mrf.mxu0
        %v1656 = vadd.f32 0.0, %v1655
        %v1657 = vpop.f32.mrf.mxu0
        %1658 = vdwg.mxu0
        %1659 = vmatpush.bf16.msra.mxu0 %v1578
        %1660 = vmatpush.bf16.msra.mxu0 %v1574
        %1661 = vmatpush.bf16.msra.mxu0 %v1570
        %1662 = vmatpush.bf16.msra.mxu0 %v1566
        %1663 = vmatpush.bf16.msra.mxu0 %v1562
        %1664 = vmatpush.bf16.msra.mxu0 %v1558
        %1665 = vmatpush.bf16.msra.mxu0 %v1554
        %1666 = vmatpush.bf16.msra.mxu0 %v1550
        %1667 = vmatmul.bf16.gmra.mxu0 %v1154
        %v1668 = vpop.f32.mrf.mxu0
        %v1669 = vadd.f32 %v1656, %v1668
        %v1670 = vpop.f32.mrf.mxu0
        %1671 = vdwg.mxu0
        %1672 = vmatpush.bf16.msra.mxu0 %v1547
        %1673 = vmatpush.bf16.msra.mxu0 %v1543
        %1674 = vmatpush.bf16.msra.mxu0 %v1539
        %1675 = vmatpush.bf16.msra.mxu0 %v1535
        %1676 = vmatpush.bf16.msra.mxu0 %v1531
        %1677 = vmatpush.bf16.msra.mxu0 %v1527
        %1678 = vmatpush.bf16.msra.mxu0 %v1523
        %1679 = vmatpush.bf16.msra.mxu0 %v1519
        %1680 = vmatmul.bf16.gmra.mxu0 %v1256
        %v1681 = vpop.f32.mrf.mxu0
        %v1682 = vadd.f32 0.0, %v1681
        %v1683 = vpop.f32.mrf.mxu0
        %1684 = vdwg.mxu0
        %1685 = vmatpush.bf16.msra.mxu0 %v1579
        %1686 = vmatpush.bf16.msra.mxu0 %v1575
        %1687 = vmatpush.bf16.msra.mxu0 %v1571
        %1688 = vmatpush.bf16.msra.mxu0 %v1567
        %1689 = vmatpush.bf16.msra.mxu0 %v1563
        %1690 = vmatpush.bf16.msra.mxu0 %v1559
        %1691 = vmatpush.bf16.msra.mxu0 %v1555
        %1692 = vmatpush.bf16.msra.mxu0 %v1551
        %1693 = vmatmul.bf16.gmra.mxu0 %v1154
        %v1694 = vpop.f32.mrf.mxu0
        %v1695 = vadd.f32 %v1682, %v1694
        %v1696 = vpop.f32.mrf.mxu0
        %1697 = vdwg.mxu0
        %1698 = vmatpush.bf16.msra.mxu0 %v1548
        %1699 = vmatpush.bf16.msra.mxu0 %v1544
        %1700 = vmatpush.bf16.msra.mxu0 %v1540
        %1701 = vmatpush.bf16.msra.mxu0 %v1536
        %1702 = vmatpush.bf16.msra.mxu0 %v1532
        %1703 = vmatpush.bf16.msra.mxu0 %v1528
        %1704 = vmatpush.bf16.msra.mxu0 %v1524
        %1705 = vmatpush.bf16.msra.mxu0 %v1520
        %1706 = vmatmul.bf16.gmra.mxu0 %v1256
        %v1707 = vpop.f32.mrf.mxu0
        %v1708 = vadd.f32 0.0, %v1707
        %v1709 = vpop.f32.mrf.mxu0
        %1710 = vdwg.mxu0
        %1711 = vmatpush.bf16.msra.mxu0 %v1580
        %1712 = vmatpush.bf16.msra.mxu0 %v1576
        %1713 = vmatpush.bf16.msra.mxu0 %v1572
        %1714 = vmatpush.bf16.msra.mxu0 %v1568
        %1715 = vmatpush.bf16.msra.mxu0 %v1564
        %1716 = vmatpush.bf16.msra.mxu0 %v1560
        %1717 = vmatpush.bf16.msra.mxu0 %v1556
        %1718 = vmatpush.bf16.msra.mxu0 %v1552
        %1719 = vmatmul.bf16.gmra.mxu0 %v1154
        %v1720 = vpop.f32.mrf.mxu0
        %v1721 = vadd.f32 %v1708, %v1720
        %v1722 = vpop.f32.mrf.mxu0
        %1723 = vdwg.mxu0
        %1724 = vmatpush.bf16.msra.mxu0 %v1549
        %1725 = vmatpush.bf16.msra.mxu0 %v1545
        %1726 = vmatpush.bf16.msra.mxu0 %v1541
        %1727 = vmatpush.bf16.msra.mxu0 %v1537
        %1728 = vmatpush.bf16.msra.mxu0 %v1533
        %1729 = vmatpush.bf16.msra.mxu0 %v1529
        %1730 = vmatpush.bf16.msra.mxu0 %v1525
        %1731 = vmatpush.bf16.msra.mxu0 %v1521
        %1732 = vmatmul.bf16.gmra.mxu0 %v1256
        %v1733 = vpop.f32.mrf.mxu0
        %v1734 = vadd.f32 0.0, %v1733
        %v1735 = vpop.f32.mrf.mxu0
        %1736 = vdwg.mxu0
        %1737 = vmatpush.bf16.msra.mxu0 %v1581
        %1738 = vmatpush.bf16.msra.mxu0 %v1577
        %1739 = vmatpush.bf16.msra.mxu0 %v1573
        %1740 = vmatpush.bf16.msra.mxu0 %v1569
        %1741 = vmatpush.bf16.msra.mxu0 %v1565
        %1742 = vmatpush.bf16.msra.mxu0 %v1561
        %1743 = vmatpush.bf16.msra.mxu0 %v1557
        %1744 = vmatpush.bf16.msra.mxu0 %v1553
        %1745 = vmatmul.bf16.gmra.mxu0 %v1154
        %v1746 = vpop.f32.mrf.mxu0
        %v1747 = vadd.f32 %v1734, %v1746
        %v1748 = vpop.f32.mrf.mxu0
        %1749 = vdwg.mxu0
        %v1750 = vadd.f32 %v1258, %v1669
        %v1751 = vadd.f32 %v1259, %v1695
        %v1752 = vadd.f32 %v1260, %v1721
        %v1753 = vadd.f32 %v1261, %v1747
        %v1754 = vxor.u32 %v1750, 2147483648
        %v1755 = vmul.f32 %v1754, 1.442695
        %v1756 = vpow.pop %v1755
        %v1757 = vadd.f32 %v1756, 1.0
        %v1758 = vrcp.pop %v1757
        %v1759 = vmul.f32 %v1757, %v1758
        %v1760 = vsub.f32 1.0, %v1759
        %v1761 = vmul.f32 %v1758, %v1760
        %v1762 = vadd.f32 %v1758, %v1761
        %vm1763 = vweird.f32 %v1757
        %vm1764 = vweird.f32 %v1758
        %vm1765 = vmor %vm1763, %vm1764
        %v1766 = vsel %vm1765, %v1758, %v1762
        %v1767 = vand.u32 2147483647, %v1757
        %vm1768 = vcmp.eq.f32.partialorder %v1767, 8.507059e+37
        %v1769 = vand.u32 %v1757, 2147483648
        %v1770 = vor.u32 1.1754944e-38, %v1769
        %v1771 = vsel %vm1768, %v1770, %v1766
        %v1772 = vmul.f32 1.0, %v1771
        %v1773 = vxor.u32 %v1751, 2147483648
        %v1774 = vmul.f32 %v1773, 1.442695
        %v1775 = vpow.pop %v1774
        %v1776 = vadd.f32 %v1775, 1.0
        %v1777 = vrcp.pop %v1776
        %v1778 = vmul.f32 %v1776, %v1777
        %v1779 = vsub.f32 1.0, %v1778
        %v1780 = vmul.f32 %v1777, %v1779
        %v1781 = vadd.f32 %v1777, %v1780
        %vm1782 = vweird.f32 %v1776
        %vm1783 = vweird.f32 %v1777
        %vm1784 = vmor %vm1782, %vm1783
        %v1785 = vsel %vm1784, %v1777, %v1781
        %v1786 = vand.u32 2147483647, %v1776
        %vm1787 = vcmp.eq.f32.partialorder %v1786, 8.507059e+37
        %v1788 = vand.u32 %v1776, 2147483648
        %v1789 = vor.u32 1.1754944e-38, %v1788
        %v1790 = vsel %vm1787, %v1789, %v1785
        %v1791 = vmul.f32 1.0, %v1790
        %v1792 = vtanh.pop %v1752
        %v1793 = vxor.u32 %v1753, 2147483648
        %v1794 = vmul.f32 %v1793, 1.442695
        %v1795 = vpow.pop %v1794
        %v1796 = vadd.f32 %v1795, 1.0
        %v1797 = vrcp.pop %v1796
        %v1798 = vmul.f32 %v1796, %v1797
        %v1799 = vsub.f32 1.0, %v1798
        %v1800 = vmul.f32 %v1797, %v1799
        %v1801 = vadd.f32 %v1797, %v1800
        %vm1802 = vweird.f32 %v1796
        %vm1803 = vweird.f32 %v1797
        %vm1804 = vmor %vm1802, %vm1803
        %v1805 = vsel %vm1804, %v1797, %v1801
        %v1806 = vand.u32 2147483647, %v1796
        %vm1807 = vcmp.eq.f32.partialorder %v1806, 8.507059e+37
        %v1808 = vand.u32 %v1796, 2147483648
        %v1809 = vor.u32 1.1754944e-38, %v1808
        %v1810 = vsel %vm1807, %v1809, %v1805
        %v1811 = vmul.f32 1.0, %v1810
        %v1812 = vmul.f32 %v1791, %v1153
        %v1813 = vmul.f32 %v1772, %v1792
        %v1814 = vadd.f32 %v1812, %v1813
        %v1815 = vtanh.pop %v1814
        %v1816 = vmul.f32 %v1811, %v1815
        %v1817 = vsel %vm1151, 1, 0
        %1818 = vset.pattern.permute.xlu0 0
        %1819 = vperm.xlu0 %1818, %v1817
        %v1820 = vpop.permute.xlu0 %1819
        %vm1821 = vcmp.eq.s32.totalorder %v1820, 1
        %v1822 = vsel %vm1821, %v1816, %v1152
        %1823 = vst [vmem:[#allocation2] sm:$0xff] %v1822
        %v1824 = vsel %vm1821, %v1814, %v1153
        %1825 = vst [vmem:[#allocation3] sm:$0xff] %v1824
        %s1826 = scalar_lea.vmem [#allocation4], 8
        %1827 = vst [vmem:[%s1826] sm:$0xff] %v1816
        %s1828 = sadd.s32 %s472, 2
        %v1829 = vstv %s1828
        %vm1830 = vcmp.gt.s32.totalorder %v471, %v1829
        %v1831 = vld [vmem:[#allocation2] sm:$0xff]
        %v1832 = vld [vmem:[#allocation3] sm:$0xff]
        %v1833 = vpack.c.bf16 %v1831, %v1831
        %v1834 = vld [vmem:[#allocation11] sm:$0xf]
        %v1835 = vld [vmem:[#allocation11 + $0x4] sm:$0xf]
        %v1836 = vld [vmem:[#allocation11 + $0x8] sm:$0xf]
        %v1837 = vld [vmem:[#allocation11 + $0xc] sm:$0xf]
        %v1838 = vld [vmem:[#allocation11 + $0x10] sm:$0xf]
        %v1839 = vld [vmem:[#allocation11 + $0x14] sm:$0xf]
        %v1840 = vld [vmem:[#allocation11 + $0x18] sm:$0xf]
        %v1841 = vld [vmem:[#allocation11 + $0x1c] sm:$0xf]
        %v1842 = vld [vmem:[#allocation11 + $0x20] sm:$0xf]
        %v1843 = vld [vmem:[#allocation11 + $0x24] sm:$0xf]
        %v1844 = vld [vmem:[#allocation11 + $0x28] sm:$0xf]
        %v1845 = vld [vmem:[#allocation11 + $0x2c] sm:$0xf]
        %v1846 = vld [vmem:[#allocation11 + $0x30] sm:$0xf]
        %v1847 = vld [vmem:[#allocation11 + $0x34] sm:$0xf]
        %v1848 = vld [vmem:[#allocation11 + $0x38] sm:$0xf]
        %v1849 = vld [vmem:[#allocation11 + $0x3c] sm:$0xf]
        %v1850 = vld [vmem:[%s6] sm:$0x1]
        %v1852 = vperm.slane %v1850, 0
        %v1870 = vunpack.c.l.b16 %v1834
        %v1871 = vunpack.c.l.b16 %v1835
        %v1872 = vunpack.c.l.b16 %v1836
        %v1873 = vunpack.c.l.b16 %v1837
        %v1874 = vunpack.c.l.b16 %v1838
        %v1875 = vunpack.c.l.b16 %v1839
        %v1876 = vunpack.c.l.b16 %v1840
        %v1877 = vunpack.c.l.b16 %v1841
        %v1878 = vunpack.c.l.b16 %v1842
        %v1879 = vunpack.c.l.b16 %v1843
        %v1880 = vunpack.c.l.b16 %v1844
        %v1881 = vunpack.c.l.b16 %v1845
        %v1882 = vunpack.c.l.b16 %v1846
        %v1883 = vunpack.c.l.b16 %v1847
        %v1884 = vunpack.c.l.b16 %v1848
        %v1885 = vunpack.c.l.b16 %v1849
        %v1886 = vpack.c.b16 %v1871, %v1870
        %v1887 = vpack.c.b16 %v1873, %v1872
        %v1888 = vpack.c.b16 %v1875, %v1874
        %v1889 = vpack.c.b16 %v1877, %v1876
        %v1890 = vpack.c.b16 %v1879, %v1878
        %v1891 = vpack.c.b16 %v1881, %v1880
        %v1892 = vpack.c.b16 %v1883, %v1882
        %v1893 = vpack.c.b16 %v1885, %v1884
        %1902 = vmatpush.bf16.msra.mxu0 %v1893
        %1903 = vmatpush.bf16.msra.mxu0 %v1892
        %1904 = vmatpush.bf16.msra.mxu0 %v1891
        %1905 = vmatpush.bf16.msra.mxu0 %v1890
        %1906 = vmatpush.bf16.msra.mxu0 %v1889
        %1907 = vmatpush.bf16.msra.mxu0 %v1888
        %1908 = vmatpush.bf16.msra.mxu0 %v1887
        %1909 = vmatpush.bf16.msra.mxu0 %v1886
        %1910 = vmatmul.bf16.gmra.mxu0 %v1833
        %v1911 = vpop.f32.mrf.mxu0
        %v1912 = vadd.f32 %v1852, %v1911
        %v1913 = vpop.f32.mrf.mxu0
        %1914 = vdwg.mxu0
        %v1915 = vxor.u32 %v1912, 2147483648
        %v1916 = vmul.f32 %v1915, 1.442695
        %v1917 = vpow.pop %v1916
        %v1918 = vadd.f32 %v1917, 1.0
        %v1919 = vrcp.pop %v1918
        %v1920 = vmul.f32 %v1918, %v1919
        %v1921 = vsub.f32 1.0, %v1920
        %v1922 = vmul.f32 %v1919, %v1921
        %v1923 = vadd.f32 %v1919, %v1922
        %vm1924 = vweird.f32 %v1918
        %vm1925 = vweird.f32 %v1919
        %vm1926 = vmor %vm1924, %vm1925
        %v1927 = vsel %vm1926, %v1919, %v1923
        %v1928 = vand.u32 2147483647, %v1918
        %vm1929 = vcmp.eq.f32.partialorder %v1928, 8.507059e+37
        %v1930 = vand.u32 %v1918, 2147483648
        %v1931 = vor.u32 1.1754944e-38, %v1930
        %v1932 = vsel %vm1929, %v1931, %v1927
        %v1933 = vmul.f32 1.0, %v1932
        %v1934 = vmul.f32 %v1933, %v470
        %v1935 = vpack.c.bf16 %v1934, %v1934
        %s1936 = scalar_lea.vmem %s397, 64 [#allocation5]
        %v1937 = vld [vmem:[%s1936] sm:$0xff]
        %v1938 = vld [vmem:[%s1936 + $0x8] sm:$0xff]
        %v1939 = vld [vmem:[%s1936 + $0x10] sm:$0xff]
        %v1940 = vld [vmem:[%s1936 + $0x18] sm:$0xff]
        %v1941 = vld [vmem:[#allocation13] sm:$0xff]
        %v1942 = vld [vmem:[#allocation13 + $0x8] sm:$0xff]
        %v1943 = vld [vmem:[#allocation13 + $0x10] sm:$0xff]
        %v1944 = vld [vmem:[#allocation13 + $0x18] sm:$0xff]
        %v1945 = vld [vmem:[#allocation13 + $0x20] sm:$0xff]
        %v1946 = vld [vmem:[#allocation13 + $0x28] sm:$0xff]
        %v1947 = vld [vmem:[#allocation13 + $0x30] sm:$0xff]
        %v1948 = vld [vmem:[#allocation13 + $0x38] sm:$0xff]
        %v1949 = vld [vmem:[#allocation13 + $0x40] sm:$0xff]
        %v1950 = vld [vmem:[#allocation13 + $0x48] sm:$0xff]
        %v1951 = vld [vmem:[#allocation13 + $0x50] sm:$0xff]
        %v1952 = vld [vmem:[#allocation13 + $0x58] sm:$0xff]
        %v1953 = vld [vmem:[#allocation13 + $0x60] sm:$0xff]
        %v1954 = vld [vmem:[#allocation13 + $0x68] sm:$0xff]
        %v1955 = vld [vmem:[#allocation13 + $0x70] sm:$0xff]
        %v1956 = vld [vmem:[#allocation13 + $0x78] sm:$0xff]
        %v1957 = vld [vmem:[#allocation13 + $0x80] sm:$0xff]
        %v1958 = vld [vmem:[#allocation13 + $0x88] sm:$0xff]
        %v1959 = vld [vmem:[#allocation13 + $0x90] sm:$0xff]
        %v1960 = vld [vmem:[#allocation13 + $0x98] sm:$0xff]
        %v1961 = vld [vmem:[#allocation13 + $0xa0] sm:$0xff]
        %v1962 = vld [vmem:[#allocation13 + $0xa8] sm:$0xff]
        %v1963 = vld [vmem:[#allocation13 + $0xb0] sm:$0xff]
        %v1964 = vld [vmem:[#allocation13 + $0xb8] sm:$0xff]
        %v1965 = vld [vmem:[#allocation13 + $0xc0] sm:$0xff]
        %v1966 = vld [vmem:[#allocation13 + $0xc8] sm:$0xff]
        %v1967 = vld [vmem:[#allocation13 + $0xd0] sm:$0xff]
        %v1968 = vld [vmem:[#allocation13 + $0xd8] sm:$0xff]
        %v1969 = vld [vmem:[#allocation13 + $0xe0] sm:$0xff]
        %v1970 = vld [vmem:[#allocation13 + $0xe8] sm:$0xff]
        %v1971 = vld [vmem:[#allocation13 + $0xf0] sm:$0xff]
        %v1972 = vld [vmem:[#allocation13 + $0xf8] sm:$0xff]
        %v1973 = vld [vmem:[#allocation13 + $0x100] sm:$0xff]
        %v1974 = vld [vmem:[#allocation13 + $0x108] sm:$0xff]
        %v1975 = vld [vmem:[#allocation13 + $0x110] sm:$0xff]
        %v1976 = vld [vmem:[#allocation13 + $0x118] sm:$0xff]
        %v1977 = vld [vmem:[#allocation13 + $0x120] sm:$0xff]
        %v1978 = vld [vmem:[#allocation13 + $0x128] sm:$0xff]
        %v1979 = vld [vmem:[#allocation13 + $0x130] sm:$0xff]
        %v1980 = vld [vmem:[#allocation13 + $0x138] sm:$0xff]
        %v1981 = vld [vmem:[#allocation13 + $0x140] sm:$0xff]
        %v1982 = vld [vmem:[#allocation13 + $0x148] sm:$0xff]
        %v1983 = vld [vmem:[#allocation13 + $0x150] sm:$0xff]
        %v1984 = vld [vmem:[#allocation13 + $0x158] sm:$0xff]
        %v1985 = vld [vmem:[#allocation13 + $0x160] sm:$0xff]
        %v1986 = vld [vmem:[#allocation13 + $0x168] sm:$0xff]
        %v1987 = vld [vmem:[#allocation13 + $0x170] sm:$0xff]
        %v1988 = vld [vmem:[#allocation13 + $0x178] sm:$0xff]
        %v1989 = vld [vmem:[#allocation13 + $0x180] sm:$0xff]
        %v1990 = vld [vmem:[#allocation13 + $0x188] sm:$0xff]
        %v1991 = vld [vmem:[#allocation13 + $0x190] sm:$0xff]
        %v1992 = vld [vmem:[#allocation13 + $0x198] sm:$0xff]
        %v1993 = vld [vmem:[#allocation13 + $0x1a0] sm:$0xff]
        %v1994 = vld [vmem:[#allocation13 + $0x1a8] sm:$0xff]
        %v1995 = vld [vmem:[#allocation13 + $0x1b0] sm:$0xff]
        %v1996 = vld [vmem:[#allocation13 + $0x1b8] sm:$0xff]
        %v1997 = vld [vmem:[#allocation13 + $0x1c0] sm:$0xff]
        %v1998 = vld [vmem:[#allocation13 + $0x1c8] sm:$0xff]
        %v1999 = vld [vmem:[#allocation13 + $0x1d0] sm:$0xff]
        %v2000 = vld [vmem:[#allocation13 + $0x1d8] sm:$0xff]
        %v2001 = vld [vmem:[#allocation13 + $0x1e0] sm:$0xff]
        %v2002 = vld [vmem:[#allocation13 + $0x1e8] sm:$0xff]
        %v2003 = vld [vmem:[#allocation13 + $0x1f0] sm:$0xff]
        %v2004 = vld [vmem:[#allocation13 + $0x1f8] sm:$0xff]
        %v2069 = vunpack.c.l.b16 %v1941
        %v2070 = vunpack.c.h.b16 %v1941
        %v2071 = vunpack.c.l.b16 %v1942
        %v2072 = vunpack.c.h.b16 %v1942
        %v2073 = vunpack.c.l.b16 %v1943
        %v2074 = vunpack.c.h.b16 %v1943
        %v2075 = vunpack.c.l.b16 %v1944
        %v2076 = vunpack.c.h.b16 %v1944
        %v2077 = vunpack.c.l.b16 %v1945
        %v2078 = vunpack.c.h.b16 %v1945
        %v2079 = vunpack.c.l.b16 %v1946
        %v2080 = vunpack.c.h.b16 %v1946
        %v2081 = vunpack.c.l.b16 %v1947
        %v2082 = vunpack.c.h.b16 %v1947
        %v2083 = vunpack.c.l.b16 %v1948
        %v2084 = vunpack.c.h.b16 %v1948
        %v2085 = vunpack.c.l.b16 %v1949
        %v2086 = vunpack.c.h.b16 %v1949
        %v2087 = vunpack.c.l.b16 %v1950
        %v2088 = vunpack.c.h.b16 %v1950
        %v2089 = vunpack.c.l.b16 %v1951
        %v2090 = vunpack.c.h.b16 %v1951
        %v2091 = vunpack.c.l.b16 %v1952
        %v2092 = vunpack.c.h.b16 %v1952
        %v2093 = vunpack.c.l.b16 %v1953
        %v2094 = vunpack.c.h.b16 %v1953
        %v2095 = vunpack.c.l.b16 %v1954
        %v2096 = vunpack.c.h.b16 %v1954
        %v2097 = vunpack.c.l.b16 %v1955
        %v2098 = vunpack.c.h.b16 %v1955
        %v2099 = vunpack.c.l.b16 %v1956
        %v2100 = vunpack.c.h.b16 %v1956
        %v2101 = vunpack.c.l.b16 %v1957
        %v2102 = vunpack.c.h.b16 %v1957
        %v2103 = vunpack.c.l.b16 %v1958
        %v2104 = vunpack.c.h.b16 %v1958
        %v2105 = vunpack.c.l.b16 %v1959
        %v2106 = vunpack.c.h.b16 %v1959
        %v2107 = vunpack.c.l.b16 %v1960
        %v2108 = vunpack.c.h.b16 %v1960
        %v2109 = vunpack.c.l.b16 %v1961
        %v2110 = vunpack.c.h.b16 %v1961
        %v2111 = vunpack.c.l.b16 %v1962
        %v2112 = vunpack.c.h.b16 %v1962
        %v2113 = vunpack.c.l.b16 %v1963
        %v2114 = vunpack.c.h.b16 %v1963
        %v2115 = vunpack.c.l.b16 %v1964
        %v2116 = vunpack.c.h.b16 %v1964
        %v2117 = vunpack.c.l.b16 %v1965
        %v2118 = vunpack.c.h.b16 %v1965
        %v2119 = vunpack.c.l.b16 %v1966
        %v2120 = vunpack.c.h.b16 %v1966
        %v2121 = vunpack.c.l.b16 %v1967
        %v2122 = vunpack.c.h.b16 %v1967
        %v2123 = vunpack.c.l.b16 %v1968
        %v2124 = vunpack.c.h.b16 %v1968
        %v2125 = vunpack.c.l.b16 %v1969
        %v2126 = vunpack.c.h.b16 %v1969
        %v2127 = vunpack.c.l.b16 %v1970
        %v2128 = vunpack.c.h.b16 %v1970
        %v2129 = vunpack.c.l.b16 %v1971
        %v2130 = vunpack.c.h.b16 %v1971
        %v2131 = vunpack.c.l.b16 %v1972
        %v2132 = vunpack.c.h.b16 %v1972
        %v2133 = vunpack.c.l.b16 %v1973
        %v2134 = vunpack.c.h.b16 %v1973
        %v2135 = vunpack.c.l.b16 %v1974
        %v2136 = vunpack.c.h.b16 %v1974
        %v2137 = vunpack.c.l.b16 %v1975
        %v2138 = vunpack.c.h.b16 %v1975
        %v2139 = vunpack.c.l.b16 %v1976
        %v2140 = vunpack.c.h.b16 %v1976
        %v2141 = vunpack.c.l.b16 %v1977
        %v2142 = vunpack.c.h.b16 %v1977
        %v2143 = vunpack.c.l.b16 %v1978
        %v2144 = vunpack.c.h.b16 %v1978
        %v2145 = vunpack.c.l.b16 %v1979
        %v2146 = vunpack.c.h.b16 %v1979
        %v2147 = vunpack.c.l.b16 %v1980
        %v2148 = vunpack.c.h.b16 %v1980
        %v2149 = vunpack.c.l.b16 %v1981
        %v2150 = vunpack.c.h.b16 %v1981
        %v2151 = vunpack.c.l.b16 %v1982
        %v2152 = vunpack.c.h.b16 %v1982
        %v2153 = vunpack.c.l.b16 %v1983
        %v2154 = vunpack.c.h.b16 %v1983
        %v2155 = vunpack.c.l.b16 %v1984
        %v2156 = vunpack.c.h.b16 %v1984
        %v2157 = vunpack.c.l.b16 %v1985
        %v2158 = vunpack.c.h.b16 %v1985
        %v2159 = vunpack.c.l.b16 %v1986
        %v2160 = vunpack.c.h.b16 %v1986
        %v2161 = vunpack.c.l.b16 %v1987
        %v2162 = vunpack.c.h.b16 %v1987
        %v2163 = vunpack.c.l.b16 %v1988
        %v2164 = vunpack.c.h.b16 %v1988
        %v2165 = vunpack.c.l.b16 %v1989
        %v2166 = vunpack.c.h.b16 %v1989
        %v2167 = vunpack.c.l.b16 %v1990
        %v2168 = vunpack.c.h.b16 %v1990
        %v2169 = vunpack.c.l.b16 %v1991
        %v2170 = vunpack.c.h.b16 %v1991
        %v2171 = vunpack.c.l.b16 %v1992
        %v2172 = vunpack.c.h.b16 %v1992
        %v2173 = vunpack.c.l.b16 %v1993
        %v2174 = vunpack.c.h.b16 %v1993
        %v2175 = vunpack.c.l.b16 %v1994
        %v2176 = vunpack.c.h.b16 %v1994
        %v2177 = vunpack.c.l.b16 %v1995
        %v2178 = vunpack.c.h.b16 %v1995
        %v2179 = vunpack.c.l.b16 %v1996
        %v2180 = vunpack.c.h.b16 %v1996
        %v2181 = vunpack.c.l.b16 %v1997
        %v2182 = vunpack.c.h.b16 %v1997
        %v2183 = vunpack.c.l.b16 %v1998
        %v2184 = vunpack.c.h.b16 %v1998
        %v2185 = vunpack.c.l.b16 %v1999
        %v2186 = vunpack.c.h.b16 %v1999
        %v2187 = vunpack.c.l.b16 %v2000
        %v2188 = vunpack.c.h.b16 %v2000
        %v2189 = vunpack.c.l.b16 %v2001
        %v2190 = vunpack.c.h.b16 %v2001
        %v2191 = vunpack.c.l.b16 %v2002
        %v2192 = vunpack.c.h.b16 %v2002
        %v2193 = vunpack.c.l.b16 %v2003
        %v2194 = vunpack.c.h.b16 %v2003
        %v2195 = vunpack.c.l.b16 %v2004
        %v2196 = vunpack.c.h.b16 %v2004
        %v2197 = vpack.c.b16 %v2073, %v2069
        %v2198 = vpack.c.b16 %v2074, %v2070
        %v2199 = vpack.c.b16 %v2075, %v2071
        %v2200 = vpack.c.b16 %v2076, %v2072
        %v2201 = vpack.c.b16 %v2081, %v2077
        %v2202 = vpack.c.b16 %v2082, %v2078
        %v2203 = vpack.c.b16 %v2083, %v2079
        %v2204 = vpack.c.b16 %v2084, %v2080
        %v2205 = vpack.c.b16 %v2089, %v2085
        %v2206 = vpack.c.b16 %v2090, %v2086
        %v2207 = vpack.c.b16 %v2091, %v2087
        %v2208 = vpack.c.b16 %v2092, %v2088
        %v2209 = vpack.c.b16 %v2097, %v2093
        %v2210 = vpack.c.b16 %v2098, %v2094
        %v2211 = vpack.c.b16 %v2099, %v2095
        %v2212 = vpack.c.b16 %v2100, %v2096
        %v2213 = vpack.c.b16 %v2105, %v2101
        %v2214 = vpack.c.b16 %v2106, %v2102
        %v2215 = vpack.c.b16 %v2107, %v2103
        %v2216 = vpack.c.b16 %v2108, %v2104
        %v2217 = vpack.c.b16 %v2113, %v2109
        %v2218 = vpack.c.b16 %v2114, %v2110
        %v2219 = vpack.c.b16 %v2115, %v2111
        %v2220 = vpack.c.b16 %v2116, %v2112
        %v2221 = vpack.c.b16 %v2121, %v2117
        %v2222 = vpack.c.b16 %v2122, %v2118
        %v2223 = vpack.c.b16 %v2123, %v2119
        %v2224 = vpack.c.b16 %v2124, %v2120
        %v2225 = vpack.c.b16 %v2129, %v2125
        %v2226 = vpack.c.b16 %v2130, %v2126
        %v2227 = vpack.c.b16 %v2131, %v2127
        %v2228 = vpack.c.b16 %v2132, %v2128
        %v2229 = vpack.c.b16 %v2137, %v2133
        %v2230 = vpack.c.b16 %v2138, %v2134
        %v2231 = vpack.c.b16 %v2139, %v2135
        %v2232 = vpack.c.b16 %v2140, %v2136
        %v2233 = vpack.c.b16 %v2145, %v2141
        %v2234 = vpack.c.b16 %v2146, %v2142
        %v2235 = vpack.c.b16 %v2147, %v2143
        %v2236 = vpack.c.b16 %v2148, %v2144
        %v2237 = vpack.c.b16 %v2153, %v2149
        %v2238 = vpack.c.b16 %v2154, %v2150
        %v2239 = vpack.c.b16 %v2155, %v2151
        %v2240 = vpack.c.b16 %v2156, %v2152
        %v2241 = vpack.c.b16 %v2161, %v2157
        %v2242 = vpack.c.b16 %v2162, %v2158
        %v2243 = vpack.c.b16 %v2163, %v2159
        %v2244 = vpack.c.b16 %v2164, %v2160
        %v2245 = vpack.c.b16 %v2169, %v2165
        %v2246 = vpack.c.b16 %v2170, %v2166
        %v2247 = vpack.c.b16 %v2171, %v2167
        %v2248 = vpack.c.b16 %v2172, %v2168
        %v2249 = vpack.c.b16 %v2177, %v2173
        %v2250 = vpack.c.b16 %v2178, %v2174
        %v2251 = vpack.c.b16 %v2179, %v2175
        %v2252 = vpack.c.b16 %v2180, %v2176
        %v2253 = vpack.c.b16 %v2185, %v2181
        %v2254 = vpack.c.b16 %v2186, %v2182
        %v2255 = vpack.c.b16 %v2187, %v2183
        %v2256 = vpack.c.b16 %v2188, %v2184
        %v2257 = vpack.c.b16 %v2193, %v2189
        %v2258 = vpack.c.b16 %v2194, %v2190
        %v2259 = vpack.c.b16 %v2195, %v2191
        %v2260 = vpack.c.b16 %v2196, %v2192
        %2325 = vmatpush.bf16.msra.mxu0 %v2225
        %2326 = vmatpush.bf16.msra.mxu0 %v2221
        %2327 = vmatpush.bf16.msra.mxu0 %v2217
        %2328 = vmatpush.bf16.msra.mxu0 %v2213
        %2329 = vmatpush.bf16.msra.mxu0 %v2209
        %2330 = vmatpush.bf16.msra.mxu0 %v2205
        %2331 = vmatpush.bf16.msra.mxu0 %v2201
        %2332 = vmatpush.bf16.msra.mxu0 %v2197
        %2333 = vmatmul.bf16.gmra.mxu0 %v1935
        %v2334 = vpop.f32.mrf.mxu0
        %v2335 = vadd.f32 0.0, %v2334
        %v2336 = vpop.f32.mrf.mxu0
        %2337 = vdwg.mxu0
        %2338 = vmatpush.bf16.msra.mxu0 %v2257
        %2339 = vmatpush.bf16.msra.mxu0 %v2253
        %2340 = vmatpush.bf16.msra.mxu0 %v2249
        %2341 = vmatpush.bf16.msra.mxu0 %v2245
        %2342 = vmatpush.bf16.msra.mxu0 %v2241
        %2343 = vmatpush.bf16.msra.mxu0 %v2237
        %2344 = vmatpush.bf16.msra.mxu0 %v2233
        %2345 = vmatpush.bf16.msra.mxu0 %v2229
        %2346 = vmatmul.bf16.gmra.mxu0 %v1833
        %v2347 = vpop.f32.mrf.mxu0
        %v2348 = vadd.f32 %v2335, %v2347
        %v2349 = vpop.f32.mrf.mxu0
        %2350 = vdwg.mxu0
        %2351 = vmatpush.bf16.msra.mxu0 %v2226
        %2352 = vmatpush.bf16.msra.mxu0 %v2222
        %2353 = vmatpush.bf16.msra.mxu0 %v2218
        %2354 = vmatpush.bf16.msra.mxu0 %v2214
        %2355 = vmatpush.bf16.msra.mxu0 %v2210
        %2356 = vmatpush.bf16.msra.mxu0 %v2206
        %2357 = vmatpush.bf16.msra.mxu0 %v2202
        %2358 = vmatpush.bf16.msra.mxu0 %v2198
        %2359 = vmatmul.bf16.gmra.mxu0 %v1935
        %v2360 = vpop.f32.mrf.mxu0
        %v2361 = vadd.f32 0.0, %v2360
        %v2362 = vpop.f32.mrf.mxu0
        %2363 = vdwg.mxu0
        %2364 = vmatpush.bf16.msra.mxu0 %v2258
        %2365 = vmatpush.bf16.msra.mxu0 %v2254
        %2366 = vmatpush.bf16.msra.mxu0 %v2250
        %2367 = vmatpush.bf16.msra.mxu0 %v2246
        %2368 = vmatpush.bf16.msra.mxu0 %v2242
        %2369 = vmatpush.bf16.msra.mxu0 %v2238
        %2370 = vmatpush.bf16.msra.mxu0 %v2234
        %2371 = vmatpush.bf16.msra.mxu0 %v2230
        %2372 = vmatmul.bf16.gmra.mxu0 %v1833
        %v2373 = vpop.f32.mrf.mxu0
        %v2374 = vadd.f32 %v2361, %v2373
        %v2375 = vpop.f32.mrf.mxu0
        %2376 = vdwg.mxu0
        %2377 = vmatpush.bf16.msra.mxu0 %v2227
        %2378 = vmatpush.bf16.msra.mxu0 %v2223
        %2379 = vmatpush.bf16.msra.mxu0 %v2219
        %2380 = vmatpush.bf16.msra.mxu0 %v2215
        %2381 = vmatpush.bf16.msra.mxu0 %v2211
        %2382 = vmatpush.bf16.msra.mxu0 %v2207
        %2383 = vmatpush.bf16.msra.mxu0 %v2203
        %2384 = vmatpush.bf16.msra.mxu0 %v2199
        %2385 = vmatmul.bf16.gmra.mxu0 %v1935
        %v2386 = vpop.f32.mrf.mxu0
        %v2387 = vadd.f32 0.0, %v2386
        %v2388 = vpop.f32.mrf.mxu0
        %2389 = vdwg.mxu0
        %2390 = vmatpush.bf16.msra.mxu0 %v2259
        %2391 = vmatpush.bf16.msra.mxu0 %v2255
        %2392 = vmatpush.bf16.msra.mxu0 %v2251
        %2393 = vmatpush.bf16.msra.mxu0 %v2247
        %2394 = vmatpush.bf16.msra.mxu0 %v2243
        %2395 = vmatpush.bf16.msra.mxu0 %v2239
        %2396 = vmatpush.bf16.msra.mxu0 %v2235
        %2397 = vmatpush.bf16.msra.mxu0 %v2231
        %2398 = vmatmul.bf16.gmra.mxu0 %v1833
        %v2399 = vpop.f32.mrf.mxu0
        %v2400 = vadd.f32 %v2387, %v2399
        %v2401 = vpop.f32.mrf.mxu0
        %2402 = vdwg.mxu0
        %2403 = vmatpush.bf16.msra.mxu0 %v2228
        %2404 = vmatpush.bf16.msra.mxu0 %v2224
        %2405 = vmatpush.bf16.msra.mxu0 %v2220
        %2406 = vmatpush.bf16.msra.mxu0 %v2216
        %2407 = vmatpush.bf16.msra.mxu0 %v2212
        %2408 = vmatpush.bf16.msra.mxu0 %v2208
        %2409 = vmatpush.bf16.msra.mxu0 %v2204
        %2410 = vmatpush.bf16.msra.mxu0 %v2200
        %2411 = vmatmul.bf16.gmra.mxu0 %v1935
        %v2412 = vpop.f32.mrf.mxu0
        %v2413 = vadd.f32 0.0, %v2412
        %v2414 = vpop.f32.mrf.mxu0
        %2415 = vdwg.mxu0
        %2416 = vmatpush.bf16.msra.mxu0 %v2260
        %2417 = vmatpush.bf16.msra.mxu0 %v2256
        %2418 = vmatpush.bf16.msra.mxu0 %v2252
        %2419 = vmatpush.bf16.msra.mxu0 %v2248
        %2420 = vmatpush.bf16.msra.mxu0 %v2244
        %2421 = vmatpush.bf16.msra.mxu0 %v2240
        %2422 = vmatpush.bf16.msra.mxu0 %v2236
        %2423 = vmatpush.bf16.msra.mxu0 %v2232
        %2424 = vmatmul.bf16.gmra.mxu0 %v1833
        %v2425 = vpop.f32.mrf.mxu0
        %v2426 = vadd.f32 %v2413, %v2425
        %v2427 = vpop.f32.mrf.mxu0
        %2428 = vdwg.mxu0
        %v2429 = vadd.f32 %v1937, %v2348
        %v2430 = vadd.f32 %v1938, %v2374
        %v2431 = vadd.f32 %v1939, %v2400
        %v2432 = vadd.f32 %v1940, %v2426
        %v2433 = vxor.u32 %v2429, 2147483648
        %v2434 = vmul.f32 %v2433, 1.442695
        %v2435 = vpow.pop %v2434
        %v2436 = vadd.f32 %v2435, 1.0
        %v2437 = vrcp.pop %v2436
        %v2438 = vmul.f32 %v2436, %v2437
        %v2439 = vsub.f32 1.0, %v2438
        %v2440 = vmul.f32 %v2437, %v2439
        %v2441 = vadd.f32 %v2437, %v2440
        %vm2442 = vweird.f32 %v2436
        %vm2443 = vweird.f32 %v2437
        %vm2444 = vmor %vm2442, %vm2443
        %v2445 = vsel %vm2444, %v2437, %v2441
        %v2446 = vand.u32 2147483647, %v2436
        %vm2447 = vcmp.eq.f32.partialorder %v2446, 8.507059e+37
        %v2448 = vand.u32 %v2436, 2147483648
        %v2449 = vor.u32 1.1754944e-38, %v2448
        %v2450 = vsel %vm2447, %v2449, %v2445
        %v2451 = vmul.f32 1.0, %v2450
        %v2452 = vxor.u32 %v2430, 2147483648
        %v2453 = vmul.f32 %v2452, 1.442695
        %v2454 = vpow.pop %v2453
        %v2455 = vadd.f32 %v2454, 1.0
        %v2456 = vrcp.pop %v2455
        %v2457 = vmul.f32 %v2455, %v2456
        %v2458 = vsub.f32 1.0, %v2457
        %v2459 = vmul.f32 %v2456, %v2458
        %v2460 = vadd.f32 %v2456, %v2459
        %vm2461 = vweird.f32 %v2455
        %vm2462 = vweird.f32 %v2456
        %vm2463 = vmor %vm2461, %vm2462
        %v2464 = vsel %vm2463, %v2456, %v2460
        %v2465 = vand.u32 2147483647, %v2455
        %vm2466 = vcmp.eq.f32.partialorder %v2465, 8.507059e+37
        %v2467 = vand.u32 %v2455, 2147483648
        %v2468 = vor.u32 1.1754944e-38, %v2467
        %v2469 = vsel %vm2466, %v2468, %v2464
        %v2470 = vmul.f32 1.0, %v2469
        %v2471 = vtanh.pop %v2431
        %v2472 = vxor.u32 %v2432, 2147483648
        %v2473 = vmul.f32 %v2472, 1.442695
        %v2474 = vpow.pop %v2473
        %v2475 = vadd.f32 %v2474, 1.0
        %v2476 = vrcp.pop %v2475
        %v2477 = vmul.f32 %v2475, %v2476
        %v2478 = vsub.f32 1.0, %v2477
        %v2479 = vmul.f32 %v2476, %v2478
        %v2480 = vadd.f32 %v2476, %v2479
        %vm2481 = vweird.f32 %v2475
        %vm2482 = vweird.f32 %v2476
        %vm2483 = vmor %vm2481, %vm2482
        %v2484 = vsel %vm2483, %v2476, %v2480
        %v2485 = vand.u32 2147483647, %v2475
        %vm2486 = vcmp.eq.f32.partialorder %v2485, 8.507059e+37
        %v2487 = vand.u32 %v2475, 2147483648
        %v2488 = vor.u32 1.1754944e-38, %v2487
        %v2489 = vsel %vm2486, %v2488, %v2484
        %v2490 = vmul.f32 1.0, %v2489
        %v2491 = vmul.f32 %v2470, %v1832
        %v2492 = vmul.f32 %v2451, %v2471
        %v2493 = vadd.f32 %v2491, %v2492
        %v2494 = vtanh.pop %v2493
        %v2495 = vmul.f32 %v2490, %v2494
        %v2496 = vsel %vm1830, 1, 0
        %2497 = vset.pattern.permute.xlu0 0
        %2498 = vperm.xlu0 %2497, %v2496
        %v2499 = vpop.permute.xlu0 %2498
        %vm2500 = vcmp.eq.s32.totalorder %v2499, 1
        %v2501 = vsel %vm2500, %v2495, %v1831
        %2502 = vst [vmem:[#allocation2] sm:$0xff] %v2501
        %v2503 = vsel %vm2500, %v2493, %v1832
        %2504 = vst [vmem:[#allocation3] sm:$0xff] %v2503
        %s2505 = scalar_lea.vmem [#allocation4], 16
        %2506 = vst [vmem:[%s2505] sm:$0xff] %v2495
        %s2507 = sadd.s32 %s472, 3
        %v2508 = vstv %s2507
        %vm2509 = vcmp.gt.s32.totalorder %v471, %v2508
        %v2510 = vld [vmem:[#allocation2] sm:$0xff]
        %v2511 = vld [vmem:[#allocation3] sm:$0xff]
        %v2512 = vpack.c.bf16 %v2510, %v2510
        %v2513 = vld [vmem:[#allocation11] sm:$0xf]
        %v2514 = vld [vmem:[#allocation11 + $0x4] sm:$0xf]
        %v2515 = vld [vmem:[#allocation11 + $0x8] sm:$0xf]
        %v2516 = vld [vmem:[#allocation11 + $0xc] sm:$0xf]
        %v2517 = vld [vmem:[#allocation11 + $0x10] sm:$0xf]
        %v2518 = vld [vmem:[#allocation11 + $0x14] sm:$0xf]
        %v2519 = vld [vmem:[#allocation11 + $0x18] sm:$0xf]
        %v2520 = vld [vmem:[#allocation11 + $0x1c] sm:$0xf]
        %v2521 = vld [vmem:[#allocation11 + $0x20] sm:$0xf]
        %v2522 = vld [vmem:[#allocation11 + $0x24] sm:$0xf]
        %v2523 = vld [vmem:[#allocation11 + $0x28] sm:$0xf]
        %v2524 = vld [vmem:[#allocation11 + $0x2c] sm:$0xf]
        %v2525 = vld [vmem:[#allocation11 + $0x30] sm:$0xf]
        %v2526 = vld [vmem:[#allocation11 + $0x34] sm:$0xf]
        %v2527 = vld [vmem:[#allocation11 + $0x38] sm:$0xf]
        %v2528 = vld [vmem:[#allocation11 + $0x3c] sm:$0xf]
        %v2529 = vld [vmem:[%s6] sm:$0x1]
        %v2531 = vperm.slane %v2529, 0
        %v2549 = vunpack.c.l.b16 %v2513
        %v2550 = vunpack.c.l.b16 %v2514
        %v2551 = vunpack.c.l.b16 %v2515
        %v2552 = vunpack.c.l.b16 %v2516
        %v2553 = vunpack.c.l.b16 %v2517
        %v2554 = vunpack.c.l.b16 %v2518
        %v2555 = vunpack.c.l.b16 %v2519
        %v2556 = vunpack.c.l.b16 %v2520
        %v2557 = vunpack.c.l.b16 %v2521
        %v2558 = vunpack.c.l.b16 %v2522
        %v2559 = vunpack.c.l.b16 %v2523
        %v2560 = vunpack.c.l.b16 %v2524
        %v2561 = vunpack.c.l.b16 %v2525
        %v2562 = vunpack.c.l.b16 %v2526
        %v2563 = vunpack.c.l.b16 %v2527
        %v2564 = vunpack.c.l.b16 %v2528
        %v2565 = vpack.c.b16 %v2550, %v2549
        %v2566 = vpack.c.b16 %v2552, %v2551
        %v2567 = vpack.c.b16 %v2554, %v2553
        %v2568 = vpack.c.b16 %v2556, %v2555
        %v2569 = vpack.c.b16 %v2558, %v2557
        %v2570 = vpack.c.b16 %v2560, %v2559
        %v2571 = vpack.c.b16 %v2562, %v2561
        %v2572 = vpack.c.b16 %v2564, %v2563
        %2581 = vmatpush.bf16.msra.mxu0 %v2572
        %2582 = vmatpush.bf16.msra.mxu0 %v2571
        %2583 = vmatpush.bf16.msra.mxu0 %v2570
        %2584 = vmatpush.bf16.msra.mxu0 %v2569
        %2585 = vmatpush.bf16.msra.mxu0 %v2568
        %2586 = vmatpush.bf16.msra.mxu0 %v2567
        %2587 = vmatpush.bf16.msra.mxu0 %v2566
        %2588 = vmatpush.bf16.msra.mxu0 %v2565
        %2589 = vmatmul.bf16.gmra.mxu0 %v2512
        %v2590 = vpop.f32.mrf.mxu0
        %v2591 = vadd.f32 %v2531, %v2590
        %v2592 = vpop.f32.mrf.mxu0
        %2593 = vdwg.mxu0
        %v2594 = vxor.u32 %v2591, 2147483648
        %v2595 = vmul.f32 %v2594, 1.442695
        %v2596 = vpow.pop %v2595
        %v2597 = vadd.f32 %v2596, 1.0
        %v2598 = vrcp.pop %v2597
        %v2599 = vmul.f32 %v2597, %v2598
        %v2600 = vsub.f32 1.0, %v2599
        %v2601 = vmul.f32 %v2598, %v2600
        %v2602 = vadd.f32 %v2598, %v2601
        %vm2603 = vweird.f32 %v2597
        %vm2604 = vweird.f32 %v2598
        %vm2605 = vmor %vm2603, %vm2604
        %v2606 = vsel %vm2605, %v2598, %v2602
        %v2607 = vand.u32 2147483647, %v2597
        %vm2608 = vcmp.eq.f32.partialorder %v2607, 8.507059e+37
        %v2609 = vand.u32 %v2597, 2147483648
        %v2610 = vor.u32 1.1754944e-38, %v2609
        %v2611 = vsel %vm2608, %v2610, %v2606
        %v2612 = vmul.f32 1.0, %v2611
        %v2613 = vmul.f32 %v2612, %v470
        %v2614 = vpack.c.bf16 %v2613, %v2613
        %s2615 = scalar_lea.vmem %s397, 96 [#allocation5]
        %v2616 = vld [vmem:[%s2615] sm:$0xff]
        %v2617 = vld [vmem:[%s2615 + $0x8] sm:$0xff]
        %v2618 = vld [vmem:[%s2615 + $0x10] sm:$0xff]
        %v2619 = vld [vmem:[%s2615 + $0x18] sm:$0xff]
        %v2620 = vld [vmem:[#allocation13] sm:$0xff]
        %v2621 = vld [vmem:[#allocation13 + $0x8] sm:$0xff]
        %v2622 = vld [vmem:[#allocation13 + $0x10] sm:$0xff]
        %v2623 = vld [vmem:[#allocation13 + $0x18] sm:$0xff]
        %v2624 = vld [vmem:[#allocation13 + $0x20] sm:$0xff]
        %v2625 = vld [vmem:[#allocation13 + $0x28] sm:$0xff]
        %v2626 = vld [vmem:[#allocation13 + $0x30] sm:$0xff]
        %v2627 = vld [vmem:[#allocation13 + $0x38] sm:$0xff]
        %v2628 = vld [vmem:[#allocation13 + $0x40] sm:$0xff]
        %v2629 = vld [vmem:[#allocation13 + $0x48] sm:$0xff]
        %v2630 = vld [vmem:[#allocation13 + $0x50] sm:$0xff]
        %v2631 = vld [vmem:[#allocation13 + $0x58] sm:$0xff]
        %v2632 = vld [vmem:[#allocation13 + $0x60] sm:$0xff]
        %v2633 = vld [vmem:[#allocation13 + $0x68] sm:$0xff]
        %v2634 = vld [vmem:[#allocation13 + $0x70] sm:$0xff]
        %v2635 = vld [vmem:[#allocation13 + $0x78] sm:$0xff]
        %v2636 = vld [vmem:[#allocation13 + $0x80] sm:$0xff]
        %v2637 = vld [vmem:[#allocation13 + $0x88] sm:$0xff]
        %v2638 = vld [vmem:[#allocation13 + $0x90] sm:$0xff]
        %v2639 = vld [vmem:[#allocation13 + $0x98] sm:$0xff]
        %v2640 = vld [vmem:[#allocation13 + $0xa0] sm:$0xff]
        %v2641 = vld [vmem:[#allocation13 + $0xa8] sm:$0xff]
        %v2642 = vld [vmem:[#allocation13 + $0xb0] sm:$0xff]
        %v2643 = vld [vmem:[#allocation13 + $0xb8] sm:$0xff]
        %v2644 = vld [vmem:[#allocation13 + $0xc0] sm:$0xff]
        %v2645 = vld [vmem:[#allocation13 + $0xc8] sm:$0xff]
        %v2646 = vld [vmem:[#allocation13 + $0xd0] sm:$0xff]
        %v2647 = vld [vmem:[#allocation13 + $0xd8] sm:$0xff]
        %v2648 = vld [vmem:[#allocation13 + $0xe0] sm:$0xff]
        %v2649 = vld [vmem:[#allocation13 + $0xe8] sm:$0xff]
        %v2650 = vld [vmem:[#allocation13 + $0xf0] sm:$0xff]
        %v2651 = vld [vmem:[#allocation13 + $0xf8] sm:$0xff]
        %v2652 = vld [vmem:[#allocation13 + $0x100] sm:$0xff]
        %v2653 = vld [vmem:[#allocation13 + $0x108] sm:$0xff]
        %v2654 = vld [vmem:[#allocation13 + $0x110] sm:$0xff]
        %v2655 = vld [vmem:[#allocation13 + $0x118] sm:$0xff]
        %v2656 = vld [vmem:[#allocation13 + $0x120] sm:$0xff]
        %v2657 = vld [vmem:[#allocation13 + $0x128] sm:$0xff]
        %v2658 = vld [vmem:[#allocation13 + $0x130] sm:$0xff]
        %v2659 = vld [vmem:[#allocation13 + $0x138] sm:$0xff]
        %v2660 = vld [vmem:[#allocation13 + $0x140] sm:$0xff]
        %v2661 = vld [vmem:[#allocation13 + $0x148] sm:$0xff]
        %v2662 = vld [vmem:[#allocation13 + $0x150] sm:$0xff]
        %v2663 = vld [vmem:[#allocation13 + $0x158] sm:$0xff]
        %v2664 = vld [vmem:[#allocation13 + $0x160] sm:$0xff]
        %v2665 = vld [vmem:[#allocation13 + $0x168] sm:$0xff]
        %v2666 = vld [vmem:[#allocation13 + $0x170] sm:$0xff]
        %v2667 = vld [vmem:[#allocation13 + $0x178] sm:$0xff]
        %v2668 = vld [vmem:[#allocation13 + $0x180] sm:$0xff]
        %v2669 = vld [vmem:[#allocation13 + $0x188] sm:$0xff]
        %v2670 = vld [vmem:[#allocation13 + $0x190] sm:$0xff]
        %v2671 = vld [vmem:[#allocation13 + $0x198] sm:$0xff]
        %v2672 = vld [vmem:[#allocation13 + $0x1a0] sm:$0xff]
        %v2673 = vld [vmem:[#allocation13 + $0x1a8] sm:$0xff]
        %v2674 = vld [vmem:[#allocation13 + $0x1b0] sm:$0xff]
        %v2675 = vld [vmem:[#allocation13 + $0x1b8] sm:$0xff]
        %v2676 = vld [vmem:[#allocation13 + $0x1c0] sm:$0xff]
        %v2677 = vld [vmem:[#allocation13 + $0x1c8] sm:$0xff]
        %v2678 = vld [vmem:[#allocation13 + $0x1d0] sm:$0xff]
        %v2679 = vld [vmem:[#allocation13 + $0x1d8] sm:$0xff]
        %v2680 = vld [vmem:[#allocation13 + $0x1e0] sm:$0xff]
        %v2681 = vld [vmem:[#allocation13 + $0x1e8] sm:$0xff]
        %v2682 = vld [vmem:[#allocation13 + $0x1f0] sm:$0xff]
        %v2683 = vld [vmem:[#allocation13 + $0x1f8] sm:$0xff]
        %v2748 = vunpack.c.l.b16 %v2620
        %v2749 = vunpack.c.h.b16 %v2620
        %v2750 = vunpack.c.l.b16 %v2621
        %v2751 = vunpack.c.h.b16 %v2621
        %v2752 = vunpack.c.l.b16 %v2622
        %v2753 = vunpack.c.h.b16 %v2622
        %v2754 = vunpack.c.l.b16 %v2623
        %v2755 = vunpack.c.h.b16 %v2623
        %v2756 = vunpack.c.l.b16 %v2624
        %v2757 = vunpack.c.h.b16 %v2624
        %v2758 = vunpack.c.l.b16 %v2625
        %v2759 = vunpack.c.h.b16 %v2625
        %v2760 = vunpack.c.l.b16 %v2626
        %v2761 = vunpack.c.h.b16 %v2626
        %v2762 = vunpack.c.l.b16 %v2627
        %v2763 = vunpack.c.h.b16 %v2627
        %v2764 = vunpack.c.l.b16 %v2628
        %v2765 = vunpack.c.h.b16 %v2628
        %v2766 = vunpack.c.l.b16 %v2629
        %v2767 = vunpack.c.h.b16 %v2629
        %v2768 = vunpack.c.l.b16 %v2630
        %v2769 = vunpack.c.h.b16 %v2630
        %v2770 = vunpack.c.l.b16 %v2631
        %v2771 = vunpack.c.h.b16 %v2631
        %v2772 = vunpack.c.l.b16 %v2632
        %v2773 = vunpack.c.h.b16 %v2632
        %v2774 = vunpack.c.l.b16 %v2633
        %v2775 = vunpack.c.h.b16 %v2633
        %v2776 = vunpack.c.l.b16 %v2634
        %v2777 = vunpack.c.h.b16 %v2634
        %v2778 = vunpack.c.l.b16 %v2635
        %v2779 = vunpack.c.h.b16 %v2635
        %v2780 = vunpack.c.l.b16 %v2636
        %v2781 = vunpack.c.h.b16 %v2636
        %v2782 = vunpack.c.l.b16 %v2637
        %v2783 = vunpack.c.h.b16 %v2637
        %v2784 = vunpack.c.l.b16 %v2638
        %v2785 = vunpack.c.h.b16 %v2638
        %v2786 = vunpack.c.l.b16 %v2639
        %v2787 = vunpack.c.h.b16 %v2639
        %v2788 = vunpack.c.l.b16 %v2640
        %v2789 = vunpack.c.h.b16 %v2640
        %v2790 = vunpack.c.l.b16 %v2641
        %v2791 = vunpack.c.h.b16 %v2641
        %v2792 = vunpack.c.l.b16 %v2642
        %v2793 = vunpack.c.h.b16 %v2642
        %v2794 = vunpack.c.l.b16 %v2643
        %v2795 = vunpack.c.h.b16 %v2643
        %v2796 = vunpack.c.l.b16 %v2644
        %v2797 = vunpack.c.h.b16 %v2644
        %v2798 = vunpack.c.l.b16 %v2645
        %v2799 = vunpack.c.h.b16 %v2645
        %v2800 = vunpack.c.l.b16 %v2646
        %v2801 = vunpack.c.h.b16 %v2646
        %v2802 = vunpack.c.l.b16 %v2647
        %v2803 = vunpack.c.h.b16 %v2647
        %v2804 = vunpack.c.l.b16 %v2648
        %v2805 = vunpack.c.h.b16 %v2648
        %v2806 = vunpack.c.l.b16 %v2649
        %v2807 = vunpack.c.h.b16 %v2649
        %v2808 = vunpack.c.l.b16 %v2650
        %v2809 = vunpack.c.h.b16 %v2650
        %v2810 = vunpack.c.l.b16 %v2651
        %v2811 = vunpack.c.h.b16 %v2651
        %v2812 = vunpack.c.l.b16 %v2652
        %v2813 = vunpack.c.h.b16 %v2652
        %v2814 = vunpack.c.l.b16 %v2653
        %v2815 = vunpack.c.h.b16 %v2653
        %v2816 = vunpack.c.l.b16 %v2654
        %v2817 = vunpack.c.h.b16 %v2654
        %v2818 = vunpack.c.l.b16 %v2655
        %v2819 = vunpack.c.h.b16 %v2655
        %v2820 = vunpack.c.l.b16 %v2656
        %v2821 = vunpack.c.h.b16 %v2656
        %v2822 = vunpack.c.l.b16 %v2657
        %v2823 = vunpack.c.h.b16 %v2657
        %v2824 = vunpack.c.l.b16 %v2658
        %v2825 = vunpack.c.h.b16 %v2658
        %v2826 = vunpack.c.l.b16 %v2659
        %v2827 = vunpack.c.h.b16 %v2659
        %v2828 = vunpack.c.l.b16 %v2660
        %v2829 = vunpack.c.h.b16 %v2660
        %v2830 = vunpack.c.l.b16 %v2661
        %v2831 = vunpack.c.h.b16 %v2661
        %v2832 = vunpack.c.l.b16 %v2662
        %v2833 = vunpack.c.h.b16 %v2662
        %v2834 = vunpack.c.l.b16 %v2663
        %v2835 = vunpack.c.h.b16 %v2663
        %v2836 = vunpack.c.l.b16 %v2664
        %v2837 = vunpack.c.h.b16 %v2664
        %v2838 = vunpack.c.l.b16 %v2665
        %v2839 = vunpack.c.h.b16 %v2665
        %v2840 = vunpack.c.l.b16 %v2666
        %v2841 = vunpack.c.h.b16 %v2666
        %v2842 = vunpack.c.l.b16 %v2667
        %v2843 = vunpack.c.h.b16 %v2667
        %v2844 = vunpack.c.l.b16 %v2668
        %v2845 = vunpack.c.h.b16 %v2668
        %v2846 = vunpack.c.l.b16 %v2669
        %v2847 = vunpack.c.h.b16 %v2669
        %v2848 = vunpack.c.l.b16 %v2670
        %v2849 = vunpack.c.h.b16 %v2670
        %v2850 = vunpack.c.l.b16 %v2671
        %v2851 = vunpack.c.h.b16 %v2671
        %v2852 = vunpack.c.l.b16 %v2672
        %v2853 = vunpack.c.h.b16 %v2672
        %v2854 = vunpack.c.l.b16 %v2673
        %v2855 = vunpack.c.h.b16 %v2673
        %v2856 = vunpack.c.l.b16 %v2674
        %v2857 = vunpack.c.h.b16 %v2674
        %v2858 = vunpack.c.l.b16 %v2675
        %v2859 = vunpack.c.h.b16 %v2675
        %v2860 = vunpack.c.l.b16 %v2676
        %v2861 = vunpack.c.h.b16 %v2676
        %v2862 = vunpack.c.l.b16 %v2677
        %v2863 = vunpack.c.h.b16 %v2677
        %v2864 = vunpack.c.l.b16 %v2678
        %v2865 = vunpack.c.h.b16 %v2678
        %v2866 = vunpack.c.l.b16 %v2679
        %v2867 = vunpack.c.h.b16 %v2679
        %v2868 = vunpack.c.l.b16 %v2680
        %v2869 = vunpack.c.h.b16 %v2680
        %v2870 = vunpack.c.l.b16 %v2681
        %v2871 = vunpack.c.h.b16 %v2681
        %v2872 = vunpack.c.l.b16 %v2682
        %v2873 = vunpack.c.h.b16 %v2682
        %v2874 = vunpack.c.l.b16 %v2683
        %v2875 = vunpack.c.h.b16 %v2683
        %v2876 = vpack.c.b16 %v2752, %v2748
        %v2877 = vpack.c.b16 %v2753, %v2749
        %v2878 = vpack.c.b16 %v2754, %v2750
        %v2879 = vpack.c.b16 %v2755, %v2751
        %v2880 = vpack.c.b16 %v2760, %v2756
        %v2881 = vpack.c.b16 %v2761, %v2757
        %v2882 = vpack.c.b16 %v2762, %v2758
        %v2883 = vpack.c.b16 %v2763, %v2759
        %v2884 = vpack.c.b16 %v2768, %v2764
        %v2885 = vpack.c.b16 %v2769, %v2765
        %v2886 = vpack.c.b16 %v2770, %v2766
        %v2887 = vpack.c.b16 %v2771, %v2767
        %v2888 = vpack.c.b16 %v2776, %v2772
        %v2889 = vpack.c.b16 %v2777, %v2773
        %v2890 = vpack.c.b16 %v2778, %v2774
        %v2891 = vpack.c.b16 %v2779, %v2775
        %v2892 = vpack.c.b16 %v2784, %v2780
        %v2893 = vpack.c.b16 %v2785, %v2781
        %v2894 = vpack.c.b16 %v2786, %v2782
        %v2895 = vpack.c.b16 %v2787, %v2783
        %v2896 = vpack.c.b16 %v2792, %v2788
        %v2897 = vpack.c.b16 %v2793, %v2789
        %v2898 = vpack.c.b16 %v2794, %v2790
        %v2899 = vpack.c.b16 %v2795, %v2791
        %v2900 = vpack.c.b16 %v2800, %v2796
        %v2901 = vpack.c.b16 %v2801, %v2797
        %v2902 = vpack.c.b16 %v2802, %v2798
        %v2903 = vpack.c.b16 %v2803, %v2799
        %v2904 = vpack.c.b16 %v2808, %v2804
        %v2905 = vpack.c.b16 %v2809, %v2805
        %v2906 = vpack.c.b16 %v2810, %v2806
        %v2907 = vpack.c.b16 %v2811, %v2807
        %v2908 = vpack.c.b16 %v2816, %v2812
        %v2909 = vpack.c.b16 %v2817, %v2813
        %v2910 = vpack.c.b16 %v2818, %v2814
        %v2911 = vpack.c.b16 %v2819, %v2815
        %v2912 = vpack.c.b16 %v2824, %v2820
        %v2913 = vpack.c.b16 %v2825, %v2821
        %v2914 = vpack.c.b16 %v2826, %v2822
        %v2915 = vpack.c.b16 %v2827, %v2823
        %v2916 = vpack.c.b16 %v2832, %v2828
        %v2917 = vpack.c.b16 %v2833, %v2829
        %v2918 = vpack.c.b16 %v2834, %v2830
        %v2919 = vpack.c.b16 %v2835, %v2831
        %v2920 = vpack.c.b16 %v2840, %v2836
        %v2921 = vpack.c.b16 %v2841, %v2837
        %v2922 = vpack.c.b16 %v2842, %v2838
        %v2923 = vpack.c.b16 %v2843, %v2839
        %v2924 = vpack.c.b16 %v2848, %v2844
        %v2925 = vpack.c.b16 %v2849, %v2845
        %v2926 = vpack.c.b16 %v2850, %v2846
        %v2927 = vpack.c.b16 %v2851, %v2847
        %v2928 = vpack.c.b16 %v2856, %v2852
        %v2929 = vpack.c.b16 %v2857, %v2853
        %v2930 = vpack.c.b16 %v2858, %v2854
        %v2931 = vpack.c.b16 %v2859, %v2855
        %v2932 = vpack.c.b16 %v2864, %v2860
        %v2933 = vpack.c.b16 %v2865, %v2861
        %v2934 = vpack.c.b16 %v2866, %v2862
        %v2935 = vpack.c.b16 %v2867, %v2863
        %v2936 = vpack.c.b16 %v2872, %v2868
        %v2937 = vpack.c.b16 %v2873, %v2869
        %v2938 = vpack.c.b16 %v2874, %v2870
        %v2939 = vpack.c.b16 %v2875, %v2871
        %3004 = vmatpush.bf16.msra.mxu0 %v2904
        %3005 = vmatpush.bf16.msra.mxu0 %v2900
        %3006 = vmatpush.bf16.msra.mxu0 %v2896
        %3007 = vmatpush.bf16.msra.mxu0 %v2892
        %3008 = vmatpush.bf16.msra.mxu0 %v2888
        %3009 = vmatpush.bf16.msra.mxu0 %v2884
        %3010 = vmatpush.bf16.msra.mxu0 %v2880
        %3011 = vmatpush.bf16.msra.mxu0 %v2876
        %3012 = vmatmul.bf16.gmra.mxu0 %v2614
        %v3013 = vpop.f32.mrf.mxu0
        %v3014 = vadd.f32 0.0, %v3013
        %v3015 = vpop.f32.mrf.mxu0
        %3016 = vdwg.mxu0
        %3017 = vmatpush.bf16.msra.mxu0 %v2936
        %3018 = vmatpush.bf16.msra.mxu0 %v2932
        %3019 = vmatpush.bf16.msra.mxu0 %v2928
        %3020 = vmatpush.bf16.msra.mxu0 %v2924
        %3021 = vmatpush.bf16.msra.mxu0 %v2920
        %3022 = vmatpush.bf16.msra.mxu0 %v2916
        %3023 = vmatpush.bf16.msra.mxu0 %v2912
        %3024 = vmatpush.bf16.msra.mxu0 %v2908
        %3025 = vmatmul.bf16.gmra.mxu0 %v2512
        %v3026 = vpop.f32.mrf.mxu0
        %v3027 = vadd.f32 %v3014, %v3026
        %v3028 = vpop.f32.mrf.mxu0
        %3029 = vdwg.mxu0
        %3030 = vmatpush.bf16.msra.mxu0 %v2905
        %3031 = vmatpush.bf16.msra.mxu0 %v2901
        %3032 = vmatpush.bf16.msra.mxu0 %v2897
        %3033 = vmatpush.bf16.msra.mxu0 %v2893
        %3034 = vmatpush.bf16.msra.mxu0 %v2889
        %3035 = vmatpush.bf16.msra.mxu0 %v2885
        %3036 = vmatpush.bf16.msra.mxu0 %v2881
        %3037 = vmatpush.bf16.msra.mxu0 %v2877
        %3038 = vmatmul.bf16.gmra.mxu0 %v2614
        %v3039 = vpop.f32.mrf.mxu0
        %v3040 = vadd.f32 0.0, %v3039
        %v3041 = vpop.f32.mrf.mxu0
        %3042 = vdwg.mxu0
        %3043 = vmatpush.bf16.msra.mxu0 %v2937
        %3044 = vmatpush.bf16.msra.mxu0 %v2933
        %3045 = vmatpush.bf16.msra.mxu0 %v2929
        %3046 = vmatpush.bf16.msra.mxu0 %v2925
        %3047 = vmatpush.bf16.msra.mxu0 %v2921
        %3048 = vmatpush.bf16.msra.mxu0 %v2917
        %3049 = vmatpush.bf16.msra.mxu0 %v2913
        %3050 = vmatpush.bf16.msra.mxu0 %v2909
        %3051 = vmatmul.bf16.gmra.mxu0 %v2512
        %v3052 = vpop.f32.mrf.mxu0
        %v3053 = vadd.f32 %v3040, %v3052
        %v3054 = vpop.f32.mrf.mxu0
        %3055 = vdwg.mxu0
        %3056 = vmatpush.bf16.msra.mxu0 %v2906
        %3057 = vmatpush.bf16.msra.mxu0 %v2902
        %3058 = vmatpush.bf16.msra.mxu0 %v2898
        %3059 = vmatpush.bf16.msra.mxu0 %v2894
        %3060 = vmatpush.bf16.msra.mxu0 %v2890
        %3061 = vmatpush.bf16.msra.mxu0 %v2886
        %3062 = vmatpush.bf16.msra.mxu0 %v2882
        %3063 = vmatpush.bf16.msra.mxu0 %v2878
        %3064 = vmatmul.bf16.gmra.mxu0 %v2614
        %v3065 = vpop.f32.mrf.mxu0
        %v3066 = vadd.f32 0.0, %v3065
        %v3067 = vpop.f32.mrf.mxu0
        %3068 = vdwg.mxu0
        %3069 = vmatpush.bf16.msra.mxu0 %v2938
        %3070 = vmatpush.bf16.msra.mxu0 %v2934
        %3071 = vmatpush.bf16.msra.mxu0 %v2930
        %3072 = vmatpush.bf16.msra.mxu0 %v2926
        %3073 = vmatpush.bf16.msra.mxu0 %v2922
        %3074 = vmatpush.bf16.msra.mxu0 %v2918
        %3075 = vmatpush.bf16.msra.mxu0 %v2914
        %3076 = vmatpush.bf16.msra.mxu0 %v2910
        %3077 = vmatmul.bf16.gmra.mxu0 %v2512
        %v3078 = vpop.f32.mrf.mxu0
        %v3079 = vadd.f32 %v3066, %v3078
        %v3080 = vpop.f32.mrf.mxu0
        %3081 = vdwg.mxu0
        %3082 = vmatpush.bf16.msra.mxu0 %v2907
        %3083 = vmatpush.bf16.msra.mxu0 %v2903
        %3084 = vmatpush.bf16.msra.mxu0 %v2899
        %3085 = vmatpush.bf16.msra.mxu0 %v2895
        %3086 = vmatpush.bf16.msra.mxu0 %v2891
        %3087 = vmatpush.bf16.msra.mxu0 %v2887
        %3088 = vmatpush.bf16.msra.mxu0 %v2883
        %3089 = vmatpush.bf16.msra.mxu0 %v2879
        %3090 = vmatmul.bf16.gmra.mxu0 %v2614
        %v3091 = vpop.f32.mrf.mxu0
        %v3092 = vadd.f32 0.0, %v3091
        %v3093 = vpop.f32.mrf.mxu0
        %3094 = vdwg.mxu0
        %3095 = vmatpush.bf16.msra.mxu0 %v2939
        %3096 = vmatpush.bf16.msra.mxu0 %v2935
        %3097 = vmatpush.bf16.msra.mxu0 %v2931
        %3098 = vmatpush.bf16.msra.mxu0 %v2927
        %3099 = vmatpush.bf16.msra.mxu0 %v2923
        %3100 = vmatpush.bf16.msra.mxu0 %v2919
        %3101 = vmatpush.bf16.msra.mxu0 %v2915
        %3102 = vmatpush.bf16.msra.mxu0 %v2911
        %3103 = vmatmul.bf16.gmra.mxu0 %v2512
        %v3104 = vpop.f32.mrf.mxu0
        %v3105 = vadd.f32 %v3092, %v3104
        %v3106 = vpop.f32.mrf.mxu0
        %3107 = vdwg.mxu0
        %v3108 = vadd.f32 %v2616, %v3027
        %v3109 = vadd.f32 %v2617, %v3053
        %v3110 = vadd.f32 %v2618, %v3079
        %v3111 = vadd.f32 %v2619, %v3105
        %v3112 = vxor.u32 %v3108, 2147483648
        %v3113 = vmul.f32 %v3112, 1.442695
        %v3114 = vpow.pop %v3113
        %v3115 = vadd.f32 %v3114, 1.0
        %v3116 = vrcp.pop %v3115
        %v3117 = vmul.f32 %v3115, %v3116
        %v3118 = vsub.f32 1.0, %v3117
        %v3119 = vmul.f32 %v3116, %v3118
        %v3120 = vadd.f32 %v3116, %v3119
        %vm3121 = vweird.f32 %v3115
        %vm3122 = vweird.f32 %v3116
        %vm3123 = vmor %vm3121, %vm3122
        %v3124 = vsel %vm3123, %v3116, %v3120
        %v3125 = vand.u32 2147483647, %v3115
        %vm3126 = vcmp.eq.f32.partialorder %v3125, 8.507059e+37
        %v3127 = vand.u32 %v3115, 2147483648
        %v3128 = vor.u32 1.1754944e-38, %v3127
        %v3129 = vsel %vm3126, %v3128, %v3124
        %v3130 = vmul.f32 1.0, %v3129
        %v3131 = vxor.u32 %v3109, 2147483648
        %v3132 = vmul.f32 %v3131, 1.442695
        %v3133 = vpow.pop %v3132
        %v3134 = vadd.f32 %v3133, 1.0
        %v3135 = vrcp.pop %v3134
        %v3136 = vmul.f32 %v3134, %v3135
        %v3137 = vsub.f32 1.0, %v3136
        %v3138 = vmul.f32 %v3135, %v3137
        %v3139 = vadd.f32 %v3135, %v3138
        %vm3140 = vweird.f32 %v3134
        %vm3141 = vweird.f32 %v3135
        %vm3142 = vmor %vm3140, %vm3141
        %v3143 = vsel %vm3142, %v3135, %v3139
        %v3144 = vand.u32 2147483647, %v3134
        %vm3145 = vcmp.eq.f32.partialorder %v3144, 8.507059e+37
        %v3146 = vand.u32 %v3134, 2147483648
        %v3147 = vor.u32 1.1754944e-38, %v3146
        %v3148 = vsel %vm3145, %v3147, %v3143
        %v3149 = vmul.f32 1.0, %v3148
        %v3150 = vtanh.pop %v3110
        %v3151 = vxor.u32 %v3111, 2147483648
        %v3152 = vmul.f32 %v3151, 1.442695
        %v3153 = vpow.pop %v3152
        %v3154 = vadd.f32 %v3153, 1.0
        %v3155 = vrcp.pop %v3154
        %v3156 = vmul.f32 %v3154, %v3155
        %v3157 = vsub.f32 1.0, %v3156
        %v3158 = vmul.f32 %v3155, %v3157
        %v3159 = vadd.f32 %v3155, %v3158
        %vm3160 = vweird.f32 %v3154
        %vm3161 = vweird.f32 %v3155
        %vm3162 = vmor %vm3160, %vm3161
        %v3163 = vsel %vm3162, %v3155, %v3159
        %v3164 = vand.u32 2147483647, %v3154
        %vm3165 = vcmp.eq.f32.partialorder %v3164, 8.507059e+37
        %v3166 = vand.u32 %v3154, 2147483648
        %v3167 = vor.u32 1.1754944e-38, %v3166
        %v3168 = vsel %vm3165, %v3167, %v3163
        %v3169 = vmul.f32 1.0, %v3168
        %v3170 = vmul.f32 %v3149, %v2511
        %v3171 = vmul.f32 %v3130, %v3150
        %v3172 = vadd.f32 %v3170, %v3171
        %v3173 = vtanh.pop %v3172
        %v3174 = vmul.f32 %v3169, %v3173
        %v3175 = vsel %vm2509, 1, 0
        %3176 = vset.pattern.permute.xlu0 0
        %3177 = vperm.xlu0 %3176, %v3175
        %v3178 = vpop.permute.xlu0 %3177
        %vm3179 = vcmp.eq.s32.totalorder %v3178, 1
        %v3180 = vsel %vm3179, %v3174, %v2510
        %3181 = vst [vmem:[#allocation2] sm:$0xff] %v3180
        %v3182 = vsel %vm3179, %v3172, %v2511
        %3183 = vst [vmem:[#allocation3] sm:$0xff] %v3182
        %s3184 = scalar_lea.vmem [#allocation4], 24
        %3185 = vst [vmem:[%s3184] sm:$0xff] %v3174
        %v3186 = vld [vmem:[#allocation4] sm:$0xff]
        %v3187 = vld [vmem:[#allocation4 + $0x8] sm:$0xff]
        %v3188 = vld [vmem:[#allocation4 + $0x10] sm:$0xff]
        %v3189 = vld [vmem:[#allocation4 + $0x18] sm:$0xff]
        %v3190 = vpack.c.bf16 %v3187, %v3186
        %v3191 = vpack.c.bf16 %v3189, %v3188
        %v3192 = vld [vmem:[#allocation14] sm:$0xff]
        %v3193 = vld [vmem:[#allocation14 + $0x8] sm:$0xff]
        %v3194 = vld [vmem:[#allocation14 + $0x10] sm:$0xff]
        %v3195 = vld [vmem:[#allocation14 + $0x18] sm:$0xff]
        %v3196 = vld [vmem:[#allocation14 + $0x20] sm:$0xff]
        %v3197 = vld [vmem:[#allocation14 + $0x28] sm:$0xff]
        %v3198 = vld [vmem:[#allocation14 + $0x30] sm:$0xff]
        %v3199 = vld [vmem:[#allocation14 + $0x38] sm:$0xff]
        %v3200 = vld [vmem:[#allocation14 + $0x40] sm:$0xff]
        %v3201 = vld [vmem:[#allocation14 + $0x48] sm:$0xff]
        %v3202 = vld [vmem:[#allocation14 + $0x50] sm:$0xff]
        %v3203 = vld [vmem:[#allocation14 + $0x58] sm:$0xff]
        %v3204 = vld [vmem:[#allocation14 + $0x60] sm:$0xff]
        %v3205 = vld [vmem:[#allocation14 + $0x68] sm:$0xff]
        %v3206 = vld [vmem:[#allocation14 + $0x70] sm:$0xff]
        %v3207 = vld [vmem:[#allocation14 + $0x78] sm:$0xff]
        %v3208 = vld [vmem:[%s9] sm:$0x3]
        %v3210 = vperm.slane %v3208, 0
        %v3211 = vperm.slane %v3208, 1
        %v3230 = vunpack.c.l.b16 %v3192
        %v3231 = vunpack.c.h.b16 %v3192
        %v3232 = vunpack.c.l.b16 %v3193
        %v3233 = vunpack.c.h.b16 %v3193
        %v3234 = vunpack.c.l.b16 %v3194
        %v3235 = vunpack.c.h.b16 %v3194
        %v3236 = vunpack.c.l.b16 %v3195
        %v3237 = vunpack.c.h.b16 %v3195
        %v3238 = vunpack.c.l.b16 %v3196
        %v3239 = vunpack.c.h.b16 %v3196
        %v3240 = vunpack.c.l.b16 %v3197
        %v3241 = vunpack.c.h.b16 %v3197
        %v3242 = vunpack.c.l.b16 %v3198
        %v3243 = vunpack.c.h.b16 %v3198
        %v3244 = vunpack.c.l.b16 %v3199
        %v3245 = vunpack.c.h.b16 %v3199
        %v3246 = vunpack.c.l.b16 %v3200
        %v3247 = vunpack.c.h.b16 %v3200
        %v3248 = vunpack.c.l.b16 %v3201
        %v3249 = vunpack.c.h.b16 %v3201
        %v3250 = vunpack.c.l.b16 %v3202
        %v3251 = vunpack.c.h.b16 %v3202
        %v3252 = vunpack.c.l.b16 %v3203
        %v3253 = vunpack.c.h.b16 %v3203
        %v3254 = vunpack.c.l.b16 %v3204
        %v3255 = vunpack.c.h.b16 %v3204
        %v3256 = vunpack.c.l.b16 %v3205
        %v3257 = vunpack.c.h.b16 %v3205
        %v3258 = vunpack.c.l.b16 %v3206
        %v3259 = vunpack.c.h.b16 %v3206
        %v3260 = vunpack.c.l.b16 %v3207
        %v3261 = vunpack.c.h.b16 %v3207
        %v3262 = vpack.c.b16 %v3232, %v3230
        %v3263 = vpack.c.b16 %v3233, %v3231
        %v3264 = vpack.c.b16 %v3236, %v3234
        %v3265 = vpack.c.b16 %v3237, %v3235
        %v3266 = vpack.c.b16 %v3240, %v3238
        %v3267 = vpack.c.b16 %v3241, %v3239
        %v3268 = vpack.c.b16 %v3244, %v3242
        %v3269 = vpack.c.b16 %v3245, %v3243
        %v3270 = vpack.c.b16 %v3248, %v3246
        %v3271 = vpack.c.b16 %v3249, %v3247
        %v3272 = vpack.c.b16 %v3252, %v3250
        %v3273 = vpack.c.b16 %v3253, %v3251
        %v3274 = vpack.c.b16 %v3256, %v3254
        %v3275 = vpack.c.b16 %v3257, %v3255
        %v3276 = vpack.c.b16 %v3260, %v3258
        %v3277 = vpack.c.b16 %v3261, %v3259
        %3294 = vmatpush.bf16.msra.mxu0 %v3276
        %3295 = vmatpush.bf16.msra.mxu0 %v3274
        %3296 = vmatpush.bf16.msra.mxu0 %v3272
        %3297 = vmatpush.bf16.msra.mxu0 %v3270
        %3298 = vmatpush.bf16.msra.mxu0 %v3268
        %3299 = vmatpush.bf16.msra.mxu0 %v3266
        %3300 = vmatpush.bf16.msra.mxu0 %v3264
        %3301 = vmatpush.bf16.msra.mxu0 %v3262
        %3302 = vmatmul.bf16.gmra.mxu0 %v3190
        %v3303 = vpop.f32.mrf.mxu0
        %v3304 = vadd.f32 %v3210, %v3303
        %v3305 = vpop.f32.mrf.mxu0
        %v3306 = vadd.f32 %v3210, %v3305
        %3307 = vmatmul.bf16.gmra.mxu0 %v3191
        %v3308 = vpop.f32.mrf.mxu0
        %v3309 = vadd.f32 %v3210, %v3308
        %v3310 = vpop.f32.mrf.mxu0
        %v3311 = vadd.f32 %v3210, %v3310
        %3312 = vdwg.mxu0
        %3313 = vmatpush.bf16.msra.mxu0 %v3277
        %3314 = vmatpush.bf16.msra.mxu0 %v3275
        %3315 = vmatpush.bf16.msra.mxu0 %v3273
        %3316 = vmatpush.bf16.msra.mxu0 %v3271
        %3317 = vmatpush.bf16.msra.mxu0 %v3269
        %3318 = vmatpush.bf16.msra.mxu0 %v3267
        %3319 = vmatpush.bf16.msra.mxu0 %v3265
        %3320 = vmatpush.bf16.msra.mxu0 %v3263
        %3321 = vmatmul.bf16.gmra.mxu0 %v3190
        %v3322 = vpop.f32.mrf.mxu0
        %v3323 = vadd.f32 %v3211, %v3322
        %v3324 = vpop.f32.mrf.mxu0
        %v3325 = vadd.f32 %v3211, %v3324
        %3326 = vmatmul.bf16.gmra.mxu0 %v3191
        %v3327 = vpop.f32.mrf.mxu0
        %v3328 = vadd.f32 %v3211, %v3327
        %v3329 = vpop.f32.mrf.mxu0
        %v3330 = vadd.f32 %v3211, %v3329
        %3331 = vdwg.mxu0
        %v3332 = vadd.s32 %v473, 1
        %v3333 = vadd.s32 %v473, 2
        %v3334 = vadd.s32 %v473, 3
        %vm3335 = vcmp.gt.s32.totalorder %v471, %v3332
        %vm3336 = vcmp.gt.s32.totalorder %v471, %v3333
        %vm3337 = vcmp.gt.s32.totalorder %v471, %v3334
        %v3338 = vsel %vm3335, 1, 0
        %v3339 = vsel %vm3336, 1, 0
        %v3340 = vsel %vm3337, 1, 0
        %3341 = vset.pattern.permute.xlu0 0
        %3342 = vperm.xlu0 %3341, %v3338
        %v3343 = vpop.permute.xlu0 %3342
        %3344 = vset.pattern.permute.xlu0 0
        %3345 = vperm.xlu0 %3344, %v3339
        %v3346 = vpop.permute.xlu0 %3345
        %3347 = vset.pattern.permute.xlu0 0
        %3348 = vperm.xlu0 %3347, %v3340
        %v3349 = vpop.permute.xlu0 %3348
        %vm3350 = vcmp.eq.s32.totalorder %v3343, 1
        %vm3351 = vcmp.eq.s32.totalorder %v3346, 1
        %vm3352 = vcmp.eq.s32.totalorder %v3349, 1
        %v3353 = vsel %vm1143, %v3304, 0.0
        %v3354 = vsel %vm1143, %v3323, 0.0
        %v3355 = vsel %vm3350, %v3306, 0.0
        %v3356 = vsel %vm3350, %v3325, 0.0
        %v3357 = vsel %vm3351, %v3309, 0.0
        %v3358 = vsel %vm3351, %v3328, 0.0
        %v3359 = vsel %vm3352, %v3311, 0.0
        %v3360 = vsel %vm3352, %v3330, 0.0
        %3361 = vst [vmem:[%s459] sm:$0xff] %v3353
        %3362 = vst [vmem:[%s459 + $0x8] sm:$0xff] %v3354
        %3363 = vst [vmem:[%s459 + $0x10] sm:$0xff] %v3355
        %3364 = vst [vmem:[%s459 + $0x18] sm:$0xff] %v3356
        %3365 = vst [vmem:[%s459 + $0x20] sm:$0xff] %v3357
        %3366 = vst [vmem:[%s459 + $0x28] sm:$0xff] %v3358
        %3367 = vst [vmem:[%s459 + $0x30] sm:$0xff] %v3359
        %3368 = vst [vmem:[%s459 + $0x38] sm:$0xff] %v3360
        %s3369 = sand.u32 %s253, 1
        %s3370 = scalar_lea.sflag [#allocation7], %s3369
        %s3371 = sand.u32 %s253, 1
        %s3372 = smul.addr %s3371, 64
        %s3373 = scalar_lea.vmem [#allocation16], %s3372
        // Predicated region
        $region89: #{tpu_custom_call.1} parent=59 // pred_check
          %p3374 = pneg %p263
        $region90: #{tpu_custom_call.1} parent=59 // pred_check_branch
          %3376 = sbr.rel (%p3374) target = $region92
        $region91: #{tpu_custom_call.1} parent=59 // pred_region
          %s3377 = smul.u32 4, %s30
          %3379 = vsyncadd %s3370, 0
          %s3380 = smul.addr %s3377, 2
          %s3381 = smul.addr %s3380, 8
          %s3382 = scalar_lea.hbm %s10, %s3381
          %s3383 = sshll.u32 %s3373, 4
          %s3384 = int_to_ptr.vmem [resolvable:$true] %s3383
          %s3385 = sshll.u32 %s3382, 4
          %s3386 = int_to_ptr.hbm [resolvable:$true] %s3385
          %3391 = dma.vmem_to_hbm [thread:$0]  %s3384, 1024, %s3386, %s3370, 256, 256, 16
        $region92: #{tpu_custom_call.1} parent=59 // pred_fallthru
          _
      $region60: #{tpu_custom_call.1} parent=5 // pred_fallthru
        _
      %p3392 = scmp.le.s32.totalorder 2, %s25
      // Predicated region
      $region93: #{tpu_custom_call.1} parent=5 // pred_check
        %p3393 = pneg %p3392
      $region94: #{tpu_custom_call.1} parent=5 // pred_check_branch
        %3395 = sbr.rel (%p3393) target = $region96
      $region95: #{tpu_custom_call.1} parent=5 // pred_region
        %s3396 = ssub.s32 %s25, 2
        // Predicated region
        $region97: #{tpu_custom_call.1} parent=95 // pred_check
          %p3397 = pneg %p269
        $region98: #{tpu_custom_call.1} parent=95 // pred_check_branch
          %3399 = sbr.rel (%p3397) target = $region100
        $region99: #{tpu_custom_call.1} parent=95 // pred_region
          %s3400 = sand.u32 %s254, 1
          %s3401 = scalar_lea.sflag [#allocation7], %s3400
          %s3402 = sand.u32 %s254, 1
          %s3403 = smul.addr %s3402, 64
          %s3404 = scalar_lea.vmem [#allocation16], %s3403
          %3406 = dma.done %s3401, 1024
        $region100: #{tpu_custom_call.1} parent=95 // pred_fallthru
          _
      $region96: #{tpu_custom_call.1} parent=5 // pred_fallthru
        _
    $region6: #{tpu_custom_call.1} parent=1 // loop_footer
      %s29 = sadd.s32 1, %s25
    $region7: #{tpu_custom_call.1} parent=1 // loop_footer_branch
      %24 = sbr.rel target = $region3
    $region8: #{tpu_custom_call.1} parent=1 // loop_exit
      _
    %3407 = vsyncpa [#allocation6], 1
    %s3408 = scalar_lea.sflag [#allocation6], 1
    %3409 = vsyncpa %s3408, 1
    %3410 = vsyncpa [#allocation9], 1
    %3411 = vsyncpa [#allocation12], 1
    %3412 = vsyncpa [#allocation15], 1
    %3413 = vsyncpa [#allocation7], 1
    %s3414 = scalar_lea.sflag [#allocation7], 1
    %3415 = vsyncpa %s3414, 1

</llo_original>
